<compile_context>
chip_gen: v7x
topology: tpu7x:2x2x1
jax: 0.10.0
libtpu: 0.0.40
codegen_flags: <defaults>
</compile_context>

<pallas_src>
import functools

import jax
import jax.numpy as jnp
from jax import lax
from jax.experimental import pallas as pl
from jax.experimental.pallas import tpu as pltpu


# ----------------------------- fused RRDB kernel -----------------------------
def _rrdb_kernel(x_ref, w1, w2, w3, w4, w5, b1, b2, b3, b4, b5,
                 out_ref, ext_x, g0, g1, g2, g3, *, H, W, base):
    """Whole RRDB (3 dense blocks, 15 convs) for one batch image.

    Activations are (C, H*W) float32 values (lane dim = H*W).  ext_* are
    zero-extended VMEM scratch buffers of width base + H*W + W + 1; the
    activation occupies lanes [base, base+H*W) and everything else stays 0, so
    a slice at lane offset base + off (off = (dy-1)*W + (dx-1)) implements the
    spatial shift of a zero-padded 'same' 3x3 convolution.
    """
    HW = H * W
    w_refs = (w1, w2, w3, w4, w5)
    b_refs = (b1, b2, b3, b4, b5)
    ext_g = (g0, g1, g2, g3)

    # Column-validity masks for the horizontal taps (dx == 1 is always valid).
    # They zero positions where the flat lane shift wrapped across an image row.
    col = lax.broadcasted_iota(jnp.int32, (1, HW), 1) % W
    masks = [(col > 0).astype(jnp.float32),          # dx == 0  (left neighbor)
             None,                                   # dx == 1  (center column)
             (col < W - 1).astype(jnp.float32)]      # dx == 2  (right neighbor)

    # Zero the extended scratch: the border lanes must stay 0.  (Interiors are
    # fully rewritten before every read; kept unconditional so it is correct
    # when the batch grid is sharded across TensorCores.)
    ext_x[...] = jnp.zeros_like(ext_x)
    for g in ext_g:
        g[...] = jnp.zeros_like(g)

    def shifted_taps(ext_ref):
        """The 9 shifted + masked copies (C, H*W) of the activation in ext_ref."""
        taps = []
        for dy in range(3):
            for dx in range(3):
                off = (dy - 1) * W + (dx - 1)
                t = ext_ref[:, base + off: base + off + HW]
                if masks[dx] is not None:
                    t = t * masks[dx]
                taps.append(t)
        return taps

    def conv3x3(taps_per_source, r, i):
        """conv{i+1} of dense block r as one (Cout, 9*Cin) @ (9*Cin, HW) matmul."""
        # im2col patch; row order (dy, dx, channel) matches the reshaped OIHW
        # weights.  Sublane concat: every piece is a multiple of 8 rows.
        patch = jnp.concatenate(
            [taps_per_source[s][t]
             for t in range(9) for s in range(len(taps_per_source))],
            axis=0)
        acc = jnp.dot(w_refs[i][r], patch, preferred_element_type=jnp.float32)
        return acc + b_refs[i][r]                    # bias is (Cout, 1)

    def lrelu(v):
        return jnp.where(v >= 0, v, 0.2 * v)         # LeakyReLU(0.2)

    x_in = x_ref[0].astype(jnp.float32)              # original x, (nf, HW)
    x_cur = x_in                                     # current dense-block input

    for r in range(3):                               # the 3 ResidualDenseBlocks
        ext_x[:, base:base + HW] = x_cur
        taps = [shifted_taps(ext_x)]
        for i in range(4):                           # conv1..conv4 + LeakyReLU
            xi = lrelu(conv3x3(taps, r, i))          # (gc, HW)
            ext_g[i][:, base:base + HW] = xi
            taps.append(shifted_taps(ext_g[i]))
        x5 = conv3x3(taps, r, 4)                     # conv5 -> (nf, HW)
        x_cur = x5 * 0.2 + x_cur                     # fused RDB residual

    # fused outer RRDB residual: out*0.2 + x ; lane-dense (nf, HW) store.
    out_ref[0] = (x_cur * 0.2 + x_in).astype(out_ref.dtype)


# --------------------------------- wrapper -----------------------------------
def _prep_weight(w_oihw):
    """(Cout, Cin, 3, 3) OIHW -> (Cout, 9*Cin) with columns ordered (dy, dx, c)."""
    co, ci, kh, kw = w_oihw.shape
    return jnp.transpose(w_oihw, (0, 2, 3, 1)).reshape(co, kh * kw * ci)


@jax.jit
def rrdb_forward(params, x_nchw):
    """RRDB forward.  params: list of 3 dicts {'conv1'..'conv5': (w_oihw, b)}."""
    N, nf, H, W = x_nchw.shape
    gc = params[0]["conv1"][0].shape[0]
    HW = H * W
    base = pl.cdiv(W + 1, 128) * 128                 # lane-aligned interior start
    ext_len = base + HW + W + 1                      # extended buffer length

    x_flat = x_nchw.reshape(N, nf, HW)               # free reshape (row-major)

    # Stack the 3 dense blocks' weights per conv position -> (3, Cout, 9*Cin).
    w_stacks, b_stacks = [], []
    for i in range(1, 6):
        w_stacks.append(jnp.stack(
            [_prep_weight(params[r][f"conv{i}"][0]) for r in range(3)]))
        b_stacks.append(jnp.stack(
            [params[r][f"conv{i}"][1].reshape(-1, 1) for r in range(3)]))

    kernel = functools.partial(_rrdb_kernel, H=H, W=W, base=base)

    in_specs = [pl.BlockSpec((1, nf, HW), lambda n: (n, 0, 0))]
    in_specs += [pl.BlockSpec(w.shape, lambda n: (0, 0, 0)) for w in w_stacks]
    in_specs += [pl.BlockSpec(b.shape, lambda n: (0, 0, 0)) for b in b_stacks]

    out = pl.pallas_call(
        kernel,
        out_shape=jax.ShapeDtypeStruct((N, nf, HW), x_nchw.dtype),
        grid_spec=pltpu.PrefetchScalarGridSpec(
            num_scalar_prefetch=0,
            grid=(N,),
            in_specs=in_specs,
            out_specs=pl.BlockSpec((1, nf, HW), lambda n: (n, 0, 0)),
            scratch_shapes=[pltpu.VMEM((nf, ext_len), jnp.float32)]
                         + [pltpu.VMEM((gc, ext_len), jnp.float32)] * 4,
        ),
        compiler_params=pltpu.CompilerParams(
            dimension_semantics=("parallel",)),
    )(x_flat, *w_stacks, *b_stacks)

    return out.reshape(N, nf, H, W)


# ------------------------------- parameters ----------------------------------
def init_params(key, nf, gc):
    """3 RDBs; each conv: kaiming_normal_(fan_in) * 0.1, bias = 0 (like spec)."""
    rdbs = []
    cins = [nf, nf + gc, nf + 2 * gc, nf + 3 * gc, nf + 4 * gc]
    couts = [gc, gc, gc, gc, nf]
    for _ in range(3):
        blk = {}
        for i, (ci, co) in enumerate(zip(cins, couts), start=1):
            key, wk = jax.random.split(key)
            std = (2.0 / (ci * 9)) ** 0.5
            w = jax.random.normal(wk, (co, ci, 3, 3), jnp.float32) * std * 0.1
            b = jnp.zeros((co,), jnp.float32)
            blk[f"conv{i}"] = (w, b)
        rdbs.append(blk)
    return rdbs


# ----------------------------- pure-JAX reference -----------------------------
def _ref_conv(x, w, b):
    y = lax.conv_general_dilated(
        x, w, window_strides=(1, 1), padding="SAME",
        dimension_numbers=("NCHW", "OIHW", "NCHW"))
    return y + b.reshape(1, -1, 1, 1)


def _ref_rdb(blk, x):
    lrelu = lambda v: jnp.where(v >= 0, v, 0.2 * v)
    x1 = lrelu(_ref_conv(x, *blk["conv1"]))
    x2 = lrelu(_ref_conv(jnp.concatenate([x, x1], 1), *blk["conv2"]))
    x3 = lrelu(_ref_conv(jnp.concatenate([x, x1, x2], 1), *blk["conv3"]))
    x4 = lrelu(_ref_conv(jnp.concatenate([x, x1, x2, x3], 1), *blk["conv4"]))
    x5 = _ref_conv(jnp.concatenate([x, x1, x2, x3, x4], 1), *blk["conv5"])
    return x5 * 0.2 + x


def rrdb_ref(params, x):
    out = x
    for blk in params:
        out = _ref_rdb(blk, out)
    return out * 0.2 + x


# ----------------------------------- main -------------------------------------
if __name__ == "__main__":
    nf, gc = 16, 8
    N, H, W = 2, 16, 16

    key = jax.random.PRNGKey(0)
    pkey, xkey = jax.random.split(key)
    params = init_params(pkey, nf, gc)
    x = jax.random.normal(xkey, (N, nf, H, W), jnp.float32)   # NCHW, like PyTorch

    out = jax.block_until_ready(rrdb_forward(params, x))
    assert out.shape == (N, nf, H, W), out.shape

    ref = rrdb_ref(params, x)
    max_err = float(jnp.max(jnp.abs(out - ref)))
    assert jnp.allclose(out, ref, rtol=2e-3, atol=2e-3), max_err

    print("KERNEL_OK")
</pallas_src>

<mosaic_0001>
module attributes {stable_mosaic.version = 11 : i64} {
  func.func @_rrdb_kernel(%arg0: i32, %arg1: memref<1x16x256xf32, #tpu.memory_space<vmem>>, %arg2: memref<3x8x144xf32, #tpu.memory_space<vmem>>, %arg3: memref<3x8x216xf32, #tpu.memory_space<vmem>>, %arg4: memref<3x8x288xf32, #tpu.memory_space<vmem>>, %arg5: memref<3x8x360xf32, #tpu.memory_space<vmem>>, %arg6: memref<3x16x432xf32, #tpu.memory_space<vmem>>, %arg7: memref<3x8x1xf32, #tpu.memory_space<vmem>>, %arg8: memref<3x8x1xf32, #tpu.memory_space<vmem>>, %arg9: memref<3x8x1xf32, #tpu.memory_space<vmem>>, %arg10: memref<3x8x1xf32, #tpu.memory_space<vmem>>, %arg11: memref<3x16x1xf32, #tpu.memory_space<vmem>>, %arg12: memref<1x16x256xf32, #tpu.memory_space<vmem>>, %arg13: memref<16x401xf32, #tpu.memory_space<vmem>>, %arg14: memref<8x401xf32, #tpu.memory_space<vmem>>, %arg15: memref<8x401xf32, #tpu.memory_space<vmem>>, %arg16: memref<8x401xf32, #tpu.memory_space<vmem>>, %arg17: memref<8x401xf32, #tpu.memory_space<vmem>>) attributes {dimension_semantics = [#tpu.dimension_semantics<parallel>], iteration_bounds = array<i64: 2>, scalar_prefetch = 0 : i64, scratch_operands = 5 : i64, tpu.core_type = #tpu.core_type<tc>, window_params = [{transform_indices = @transform_0, window_bounds = array<i64: 1, 16, 256>}, {pipeline_mode = #tpu.pipeline_mode<synchronous>, transform_indices = @transform_1, window_bounds = array<i64: 3, 8, 144>}, {pipeline_mode = #tpu.pipeline_mode<synchronous>, transform_indices = @transform_2, window_bounds = array<i64: 3, 8, 216>}, {pipeline_mode = #tpu.pipeline_mode<synchronous>, transform_indices = @transform_3, window_bounds = array<i64: 3, 8, 288>}, {pipeline_mode = #tpu.pipeline_mode<synchronous>, transform_indices = @transform_4, window_bounds = array<i64: 3, 8, 360>}, {pipeline_mode = #tpu.pipeline_mode<synchronous>, transform_indices = @transform_5, window_bounds = array<i64: 3, 16, 432>}, {pipeline_mode = #tpu.pipeline_mode<synchronous>, transform_indices = @transform_6, window_bounds = array<i64: 3, 8, 1>}, {pipeline_mode = #tpu.pipeline_mode<synchronous>, transform_indices = @transform_7, window_bounds = array<i64: 3, 8, 1>}, {pipeline_mode = #tpu.pipeline_mode<synchronous>, transform_indices = @transform_8, window_bounds = array<i64: 3, 8, 1>}, {pipeline_mode = #tpu.pipeline_mode<synchronous>, transform_indices = @transform_9, window_bounds = array<i64: 3, 8, 1>}, {pipeline_mode = #tpu.pipeline_mode<synchronous>, transform_indices = @transform_10, window_bounds = array<i64: 3, 16, 1>}, {transform_indices = @transform_11, window_bounds = array<i64: 1, 16, 256>}]} {
    %0 = tpu.iota {dimensions = array<i32: 1>} : vector<1x256xi32>
    %c16_i32 = arith.constant 16 : i32
    %c0_i32 = arith.constant 0 : i32
    %1 = arith.cmpi eq, %c16_i32, %c0_i32 : i32
    %c1_i32 = arith.constant 1 : i32
    %2 = arith.select %1, %c1_i32, %c16_i32 : i32
    %3 = vector.broadcast %2 : i32 to vector<1x256xi32>
    %4 = arith.remsi %0, %3 : vector<1x256xi32>
    %c0_i32_0 = arith.constant 0 : i32
    %5 = vector.broadcast %c0_i32_0 : i32 to vector<1x256xi32>
    %6 = arith.cmpi ne, %4, %5 : vector<1x256xi32>
    %c0_i32_1 = arith.constant 0 : i32
    %7 = vector.broadcast %c0_i32_1 : i32 to vector<1x256xi32>
    %8 = arith.cmpi slt, %4, %7 : vector<1x256xi32>
    %c0_i32_2 = arith.constant 0 : i32
    %9 = arith.cmpi slt, %2, %c0_i32_2 : i32
    %10 = vector.broadcast %9 : i1 to vector<1x256xi1>
    %11 = vector.broadcast %10 : vector<1x256xi1> to vector<1x256xi1>
    %12 = arith.xori %8, %11 : vector<1x256xi1>
    %13 = arith.andi %12, %6 : vector<1x256xi1>
    %14 = vector.broadcast %2 : i32 to vector<1x256xi32>
    %15 = arith.addi %4, %14 : vector<1x256xi32>
    %16 = arith.select %13, %15, %4 : vector<1x256xi1>, vector<1x256xi32>
    %c0_i32_3 = arith.constant 0 : i32
    %17 = vector.broadcast %c0_i32_3 : i32 to vector<1x256xi32>
    %18 = arith.cmpi sgt, %16, %17 : vector<1x256xi32>
    %19 = arith.extui %18 : vector<1x256xi1> to vector<1x256xi32>
    %20 = arith.sitofp %19 : vector<1x256xi32> to vector<1x256xf32>
    %c15_i32 = arith.constant 15 : i32
    %21 = vector.broadcast %c15_i32 : i32 to vector<1x256xi32>
    %22 = arith.cmpi slt, %16, %21 : vector<1x256xi32>
    %23 = arith.extui %22 : vector<1x256xi1> to vector<1x256xi32>
    %24 = arith.sitofp %23 : vector<1x256xi32> to vector<1x256xf32>
    %cst = arith.constant 0.000000e+00 : f32
    %25 = vector.broadcast %cst : f32 to vector<16x401xf32>
    %c0 = arith.constant 0 : index
    %c0_4 = arith.constant 0 : index
    %26 = vector.load %arg13[%c0, %c0_4] : memref<16x401xf32, #tpu.memory_space<vmem>>, vector<16x401xf32>
    tpu.vector_store %arg13[%c0, %c0_4], %25 {strides = array<i32>} : memref<16x401xf32, #tpu.memory_space<vmem>>, vector<16x401xf32>,
    %cst_5 = arith.constant 0.000000e+00 : f32
    %27 = vector.broadcast %cst_5 : f32 to vector<8x401xf32>
    %c0_6 = arith.constant 0 : index
    %c0_7 = arith.constant 0 : index
    %28 = vector.load %arg14[%c0_6, %c0_7] : memref<8x401xf32, #tpu.memory_space<vmem>>, vector<8x401xf32>
    tpu.vector_store %arg14[%c0_6, %c0_7], %27 {strides = array<i32>} : memref<8x401xf32, #tpu.memory_space<vmem>>, vector<8x401xf32>,
    %cst_8 = arith.constant 0.000000e+00 : f32
    %29 = vector.broadcast %cst_8 : f32 to vector<8x401xf32>
    %c0_9 = arith.constant 0 : index
    %c0_10 = arith.constant 0 : index
    %30 = vector.load %arg15[%c0_9, %c0_10] : memref<8x401xf32, #tpu.memory_space<vmem>>, vector<8x401xf32>
    tpu.vector_store %arg15[%c0_9, %c0_10], %29 {strides = array<i32>} : memref<8x401xf32, #tpu.memory_space<vmem>>, vector<8x401xf32>,
    %cst_11 = arith.constant 0.000000e+00 : f32
    %31 = vector.broadcast %cst_11 : f32 to vector<8x401xf32>
    %c0_12 = arith.constant 0 : index
    %c0_13 = arith.constant 0 : index
    %32 = vector.load %arg16[%c0_12, %c0_13] : memref<8x401xf32, #tpu.memory_space<vmem>>, vector<8x401xf32>
    tpu.vector_store %arg16[%c0_12, %c0_13], %31 {strides = array<i32>} : memref<8x401xf32, #tpu.memory_space<vmem>>, vector<8x401xf32>,
    %cst_14 = arith.constant 0.000000e+00 : f32
    %33 = vector.broadcast %cst_14 : f32 to vector<8x401xf32>
    %c0_15 = arith.constant 0 : index
    %c0_16 = arith.constant 0 : index
    %34 = vector.load %arg17[%c0_15, %c0_16] : memref<8x401xf32, #tpu.memory_space<vmem>>, vector<8x401xf32>
    tpu.vector_store %arg17[%c0_15, %c0_16], %33 {strides = array<i32>} : memref<8x401xf32, #tpu.memory_space<vmem>>, vector<8x401xf32>,
    %c0_17 = arith.constant 0 : index
    %c0_18 = arith.constant 0 : index
    %c0_19 = arith.constant 0 : index
    %35 = vector.load %arg1[%c0_17, %c0_18, %c0_19] : memref<1x16x256xf32, #tpu.memory_space<vmem>>, vector<1x16x256xf32>
    %36 = vector.shape_cast %35 : vector<1x16x256xf32> to vector<16x256xf32>
    %c0_20 = arith.constant 0 : index
    %c128 = arith.constant 128 : index
    %37 = vector.load %arg13[%c0_20, %c128] : memref<16x401xf32, #tpu.memory_space<vmem>>, vector<16x256xf32>
    tpu.vector_store %arg13[%c0_20, %c128], %36 {strides = array<i32>} : memref<16x401xf32, #tpu.memory_space<vmem>>, vector<16x256xf32>,
    %c0_21 = arith.constant 0 : index
    %c111 = arith.constant 111 : index
    %38 = vector.load %arg13[%c0_21, %c111] : memref<16x401xf32, #tpu.memory_space<vmem>>, vector<16x256xf32>
    %39 = vector.broadcast %20 : vector<1x256xf32> to vector<16x256xf32>
    %40 = arith.mulf %38, %39 : vector<16x256xf32>
    %c0_22 = arith.constant 0 : index
    %c112 = arith.constant 112 : index
    %41 = vector.load %arg13[%c0_22, %c112] : memref<16x401xf32, #tpu.memory_space<vmem>>, vector<16x256xf32>
    %c0_23 = arith.constant 0 : index
    %c113 = arith.constant 113 : index
    %42 = vector.load %arg13[%c0_23, %c113] : memref<16x401xf32, #tpu.memory_space<vmem>>, vector<16x256xf32>
    %43 = vector.broadcast %24 : vector<1x256xf32> to vector<16x256xf32>
    %44 = arith.mulf %42, %43 : vector<16x256xf32>
    %c0_24 = arith.constant 0 : index
    %c127 = arith.constant 127 : index
    %45 = vector.load %arg13[%c0_24, %c127] : memref<16x401xf32, #tpu.memory_space<vmem>>, vector<16x256xf32>
    %46 = vector.broadcast %20 : vector<1x256xf32> to vector<16x256xf32>
    %47 = arith.mulf %45, %46 : vector<16x256xf32>
    %c0_25 = arith.constant 0 : index
    %c128_26 = arith.constant 128 : index
    %48 = vector.load %arg13[%c0_25, %c128_26] : memref<16x401xf32, #tpu.memory_space<vmem>>, vector<16x256xf32>
    %c0_27 = arith.constant 0 : index
    %c129 = arith.constant 129 : index
    %49 = vector.load %arg13[%c0_27, %c129] : memref<16x401xf32, #tpu.memory_space<vmem>>, vector<16x256xf32>
    %50 = vector.broadcast %24 : vector<1x256xf32> to vector<16x256xf32>
    %51 = arith.mulf %49, %50 : vector<16x256xf32>
    %c0_28 = arith.constant 0 : index
    %c143 = arith.constant 143 : index
    %52 = vector.load %arg13[%c0_28, %c143] : memref<16x401xf32, #tpu.memory_space<vmem>>, vector<16x256xf32>
    %53 = vector.broadcast %20 : vector<1x256xf32> to vector<16x256xf32>
    %54 = arith.mulf %52, %53 : vector<16x256xf32>
    %c0_29 = arith.constant 0 : index
    %c144 = arith.constant 144 : index
    %55 = vector.load %arg13[%c0_29, %c144] : memref<16x401xf32, #tpu.memory_space<vmem>>, vector<16x256xf32>
    %c0_30 = arith.constant 0 : index
    %c145 = arith.constant 145 : index
    %56 = vector.load %arg13[%c0_30, %c145] : memref<16x401xf32, #tpu.memory_space<vmem>>, vector<16x256xf32>
    %57 = vector.broadcast %24 : vector<1x256xf32> to vector<16x256xf32>
    %58 = arith.mulf %56, %57 : vector<16x256xf32>
    %59 = tpu.concatenate %40, %41, %44, %47, %48, %51, %54, %55, %58 in 0 : vector<16x256xf32>, vector<16x256xf32>, vector<16x256xf32>, vector<16x256xf32>, vector<16x256xf32>, vector<16x256xf32>, vector<16x256xf32>, vector<16x256xf32>, vector<16x256xf32> -> vector<144x256xf32>
    %c0_31 = arith.constant 0 : index
    %c0_32 = arith.constant 0 : index
    %c0_33 = arith.constant 0 : index
    %60 = vector.load %arg2[%c0_31, %c0_32, %c0_33] : memref<3x8x144xf32, #tpu.memory_space<vmem>>, vector<1x8x144xf32>
    %61 = vector.shape_cast %60 : vector<1x8x144xf32> to vector<8x144xf32>
    %cst_34 = arith.constant dense<0.000000e+00> : vector<8x256xf32>
    %62 = tpu.matmul %61, %59, %cst_34 {dimension_numbers = #tpu.dot_dimension_numbers<[1], [0], [0], [1], [0, 0, 1, 1], [], []>} : vector<8x144xf32>, vector<144x256xf32>, vector<8x256xf32> -> vector<8x256xf32>
    %c0_35 = arith.constant 0 : index
    %c0_36 = arith.constant 0 : index
    %c0_37 = arith.constant 0 : index
    %63 = vector.load %arg7[%c0_35, %c0_36, %c0_37] : memref<3x8x1xf32, #tpu.memory_space<vmem>>, vector<1x8x1xf32>
    %64 = vector.shape_cast %63 : vector<1x8x1xf32> to vector<8x1xf32>
    %65 = vector.broadcast %64 : vector<8x1xf32> to vector<8x256xf32>
    %66 = arith.addf %62, %65 : vector<8x256xf32>
    %cst_38 = arith.constant 0.000000e+00 : f32
    %67 = vector.broadcast %cst_38 : f32 to vector<8x256xf32>
    %68 = arith.cmpf oge, %66, %67 : vector<8x256xf32>
    %cst_39 = arith.constant 2.000000e-01 : f32
    %69 = vector.broadcast %cst_39 : f32 to vector<8x256xf32>
    %70 = arith.mulf %69, %66 : vector<8x256xf32>
    %71 = arith.select %68, %66, %70 : vector<8x256xi1>, vector<8x256xf32>
    %c0_40 = arith.constant 0 : index
    %c128_41 = arith.constant 128 : index
    %72 = vector.load %arg14[%c0_40, %c128_41] : memref<8x401xf32, #tpu.memory_space<vmem>>, vector<8x256xf32>
    tpu.vector_store %arg14[%c0_40, %c128_41], %71 {strides = array<i32>} : memref<8x401xf32, #tpu.memory_space<vmem>>, vector<8x256xf32>,
    %c0_42 = arith.constant 0 : index
    %c111_43 = arith.constant 111 : index
    %73 = vector.load %arg14[%c0_42, %c111_43] : memref<8x401xf32, #tpu.memory_space<vmem>>, vector<8x256xf32>
    %74 = vector.broadcast %20 : vector<1x256xf32> to vector<8x256xf32>
    %75 = arith.mulf %73, %74 : vector<8x256xf32>
    %c0_44 = arith.constant 0 : index
    %c112_45 = arith.constant 112 : index
    %76 = vector.load %arg14[%c0_44, %c112_45] : memref<8x401xf32, #tpu.memory_space<vmem>>, vector<8x256xf32>
    %c0_46 = arith.constant 0 : index
    %c113_47 = arith.constant 113 : index
    %77 = vector.load %arg14[%c0_46, %c113_47] : memref<8x401xf32, #tpu.memory_space<vmem>>, vector<8x256xf32>
    %78 = vector.broadcast %24 : vector<1x256xf32> to vector<8x256xf32>
    %79 = arith.mulf %77, %78 : vector<8x256xf32>
    %c0_48 = arith.constant 0 : index
    %c127_49 = arith.constant 127 : index
    %80 = vector.load %arg14[%c0_48, %c127_49] : memref<8x401xf32, #tpu.memory_space<vmem>>, vector<8x256xf32>
    %81 = vector.broadcast %20 : vector<1x256xf32> to vector<8x256xf32>
    %82 = arith.mulf %80, %81 : vector<8x256xf32>
    %c0_50 = arith.constant 0 : index
    %c128_51 = arith.constant 128 : index
    %83 = vector.load %arg14[%c0_50, %c128_51] : memref<8x401xf32, #tpu.memory_space<vmem>>, vector<8x256xf32>
    %c0_52 = arith.constant 0 : index
    %c129_53 = arith.constant 129 : index
    %84 = vector.load %arg14[%c0_52, %c129_53] : memref<8x401xf32, #tpu.memory_space<vmem>>, vector<8x256xf32>
    %85 = vector.broadcast %24 : vector<1x256xf32> to vector<8x256xf32>
    %86 = arith.mulf %84, %85 : vector<8x256xf32>
    %c0_54 = arith.constant 0 : index
    %c143_55 = arith.constant 143 : index
    %87 = vector.load %arg14[%c0_54, %c143_55] : memref<8x401xf32, #tpu.memory_space<vmem>>, vector<8x256xf32>
    %88 = vector.broadcast %20 : vector<1x256xf32> to vector<8x256xf32>
    %89 = arith.mulf %87, %88 : vector<8x256xf32>
    %c0_56 = arith.constant 0 : index
    %c144_57 = arith.constant 144 : index
    %90 = vector.load %arg14[%c0_56, %c144_57] : memref<8x401xf32, #tpu.memory_space<vmem>>, vector<8x256xf32>
    %c0_58 = arith.constant 0 : index
    %c145_59 = arith.constant 145 : index
    %91 = vector.load %arg14[%c0_58, %c145_59] : memref<8x401xf32, #tpu.memory_space<vmem>>, vector<8x256xf32>
    %92 = vector.broadcast %24 : vector<1x256xf32> to vector<8x256xf32>
    %93 = arith.mulf %91, %92 : vector<8x256xf32>
    %94 = tpu.concatenate %40, %75, %41, %76, %44, %79, %47, %82, %48, %83, %51, %86, %54, %89, %55, %90 in 0 : vector<16x256xf32>, vector<8x256xf32>, vector<16x256xf32>, vector<8x256xf32>, vector<16x256xf32>, vector<8x256xf32>, vector<16x256xf32>, vector<8x256xf32>, vector<16x256xf32>, vector<8x256xf32>, vector<16x256xf32>, vector<8x256xf32>, vector<16x256xf32>, vector<8x256xf32>, vector<16x256xf32>, vector<8x256xf32> -> vector<192x256xf32>
    %95 = tpu.concatenate %58, %93 in 0 : vector<16x256xf32>, vector<8x256xf32> -> vector<24x256xf32>
    %96 = tpu.concatenate %94, %95 in 0 : vector<192x256xf32>, vector<24x256xf32> -> vector<216x256xf32>
    %c0_60 = arith.constant 0 : index
    %c0_61 = arith.constant 0 : index
    %c0_62 = arith.constant 0 : index
    %97 = vector.load %arg3[%c0_60, %c0_61, %c0_62] : memref<3x8x216xf32, #tpu.memory_space<vmem>>, vector<1x8x216xf32>
    %98 = vector.shape_cast %97 : vector<1x8x216xf32> to vector<8x216xf32>
    %cst_63 = arith.constant dense<0.000000e+00> : vector<8x256xf32>
    %99 = tpu.matmul %98, %96, %cst_63 {dimension_numbers = #tpu.dot_dimension_numbers<[1], [0], [0], [1], [0, 0, 1, 1], [], []>} : vector<8x216xf32>, vector<216x256xf32>, vector<8x256xf32> -> vector<8x256xf32>
    %c0_64 = arith.constant 0 : index
    %c0_65 = arith.constant 0 : index
    %c0_66 = arith.constant 0 : index
    %100 = vector.load %arg8[%c0_64, %c0_65, %c0_66] : memref<3x8x1xf32, #tpu.memory_space<vmem>>, vector<1x8x1xf32>
    %101 = vector.shape_cast %100 : vector<1x8x1xf32> to vector<8x1xf32>
    %102 = vector.broadcast %101 : vector<8x1xf32> to vector<8x256xf32>
    %103 = arith.addf %99, %102 : vector<8x256xf32>
    %cst_67 = arith.constant 0.000000e+00 : f32
    %104 = vector.broadcast %cst_67 : f32 to vector<8x256xf32>
    %105 = arith.cmpf oge, %103, %104 : vector<8x256xf32>
    %cst_68 = arith.constant 2.000000e-01 : f32
    %106 = vector.broadcast %cst_68 : f32 to vector<8x256xf32>
    %107 = arith.mulf %106, %103 : vector<8x256xf32>
    %108 = arith.select %105, %103, %107 : vector<8x256xi1>, vector<8x256xf32>
    %c0_69 = arith.constant 0 : index
    %c128_70 = arith.constant 128 : index
    %109 = vector.load %arg15[%c0_69, %c128_70] : memref<8x401xf32, #tpu.memory_space<vmem>>, vector<8x256xf32>
    tpu.vector_store %arg15[%c0_69, %c128_70], %108 {strides = array<i32>} : memref<8x401xf32, #tpu.memory_space<vmem>>, vector<8x256xf32>,
    %c0_71 = arith.constant 0 : index
    %c111_72 = arith.constant 111 : index
    %110 = vector.load %arg15[%c0_71, %c111_72] : memref<8x401xf32, #tpu.memory_space<vmem>>, vector<8x256xf32>
    %111 = vector.broadcast %20 : vector<1x256xf32> to vector<8x256xf32>
    %112 = arith.mulf %110, %111 : vector<8x256xf32>
    %c0_73 = arith.constant 0 : index
    %c112_74 = arith.constant 112 : index
    %113 = vector.load %arg15[%c0_73, %c112_74] : memref<8x401xf32, #tpu.memory_space<vmem>>, vector<8x256xf32>
    %c0_75 = arith.constant 0 : index
    %c113_76 = arith.constant 113 : index
    %114 = vector.load %arg15[%c0_75, %c113_76] : memref<8x401xf32, #tpu.memory_space<vmem>>, vector<8x256xf32>
    %115 = vector.broadcast %24 : vector<1x256xf32> to vector<8x256xf32>
    %116 = arith.mulf %114, %115 : vector<8x256xf32>
    %c0_77 = arith.constant 0 : index
    %c127_78 = arith.constant 127 : index
    %117 = vector.load %arg15[%c0_77, %c127_78] : memref<8x401xf32, #tpu.memory_space<vmem>>, vector<8x256xf32>
    %118 = vector.broadcast %20 : vector<1x256xf32> to vector<8x256xf32>
    %119 = arith.mulf %117, %118 : vector<8x256xf32>
    %c0_79 = arith.constant 0 : index
    %c128_80 = arith.constant 128 : index
    %120 = vector.load %arg15[%c0_79, %c128_80] : memref<8x401xf32, #tpu.memory_space<vmem>>, vector<8x256xf32>
    %c0_81 = arith.constant 0 : index
    %c129_82 = arith.constant 129 : index
    %121 = vector.load %arg15[%c0_81, %c129_82] : memref<8x401xf32, #tpu.memory_space<vmem>>, vector<8x256xf32>
    %122 = vector.broadcast %24 : vector<1x256xf32> to vector<8x256xf32>
    %123 = arith.mulf %121, %122 : vector<8x256xf32>
    %c0_83 = arith.constant 0 : index
    %c143_84 = arith.constant 143 : index
    %124 = vector.load %arg15[%c0_83, %c143_84] : memref<8x401xf32, #tpu.memory_space<vmem>>, vector<8x256xf32>
    %125 = vector.broadcast %20 : vector<1x256xf32> to vector<8x256xf32>
    %126 = arith.mulf %124, %125 : vector<8x256xf32>
    %c0_85 = arith.constant 0 : index
    %c144_86 = arith.constant 144 : index
    %127 = vector.load %arg15[%c0_85, %c144_86] : memref<8x401xf32, #tpu.memory_space<vmem>>, vector<8x256xf32>
    %c0_87 = arith.constant 0 : index
    %c145_88 = arith.constant 145 : index
    %128 = vector.load %arg15[%c0_87, %c145_88] : memref<8x401xf32, #tpu.memory_space<vmem>>, vector<8x256xf32>
    %129 = vector.broadcast %24 : vector<1x256xf32> to vector<8x256xf32>
    %130 = arith.mulf %128, %129 : vector<8x256xf32>
    %131 = tpu.concatenate %40, %75, %112, %41, %76, %113, %44, %79, %116, %47, %82, %119, %48, %83, %120, %51 in 0 : vector<16x256xf32>, vector<8x256xf32>, vector<8x256xf32>, vector<16x256xf32>, vector<8x256xf32>, vector<8x256xf32>, vector<16x256xf32>, vector<8x256xf32>, vector<8x256xf32>, vector<16x256xf32>, vector<8x256xf32>, vector<8x256xf32>, vector<16x256xf32>, vector<8x256xf32>, vector<8x256xf32>, vector<16x256xf32> -> vector<176x256xf32>
    %132 = tpu.concatenate %86, %123, %54, %89, %126, %55, %90, %127, %58, %93, %130 in 0 : vector<8x256xf32>, vector<8x256xf32>, vector<16x256xf32>, vector<8x256xf32>, vector<8x256xf32>, vector<16x256xf32>, vector<8x256xf32>, vector<8x256xf32>, vector<16x256xf32>, vector<8x256xf32>, vector<8x256xf32> -> vector<112x256xf32>
    %133 = tpu.concatenate %131, %132 in 0 : vector<176x256xf32>, vector<112x256xf32> -> vector<288x256xf32>
    %c0_89 = arith.constant 0 : index
    %c0_90 = arith.constant 0 : index
    %c0_91 = arith.constant 0 : index
    %134 = vector.load %arg4[%c0_89, %c0_90, %c0_91] : memref<3x8x288xf32, #tpu.memory_space<vmem>>, vector<1x8x288xf32>
    %135 = vector.shape_cast %134 : vector<1x8x288xf32> to vector<8x288xf32>
    %cst_92 = arith.constant dense<0.000000e+00> : vector<8x256xf32>
    %136 = tpu.matmul %135, %133, %cst_92 {dimension_numbers = #tpu.dot_dimension_numbers<[1], [0], [0], [1], [0, 0, 1, 1], [], []>} : vector<8x288xf32>, vector<288x256xf32>, vector<8x256xf32> -> vector<8x256xf32>
    %c0_93 = arith.constant 0 : index
    %c0_94 = arith.constant 0 : index
    %c0_95 = arith.constant 0 : index
    %137 = vector.load %arg9[%c0_93, %c0_94, %c0_95] : memref<3x8x1xf32, #tpu.memory_space<vmem>>, vector<1x8x1xf32>
    %138 = vector.shape_cast %137 : vector<1x8x1xf32> to vector<8x1xf32>
    %139 = vector.broadcast %138 : vector<8x1xf32> to vector<8x256xf32>
    %140 = arith.addf %136, %139 : vector<8x256xf32>
    %cst_96 = arith.constant 0.000000e+00 : f32
    %141 = vector.broadcast %cst_96 : f32 to vector<8x256xf32>
    %142 = arith.cmpf oge, %140, %141 : vector<8x256xf32>
    %cst_97 = arith.constant 2.000000e-01 : f32
    %143 = vector.broadcast %cst_97 : f32 to vector<8x256xf32>
    %144 = arith.mulf %143, %140 : vector<8x256xf32>
    %145 = arith.select %142, %140, %144 : vector<8x256xi1>, vector<8x256xf32>
    %c0_98 = arith.constant 0 : index
    %c128_99 = arith.constant 128 : index
    %146 = vector.load %arg16[%c0_98, %c128_99] : memref<8x401xf32, #tpu.memory_space<vmem>>, vector<8x256xf32>
    tpu.vector_store %arg16[%c0_98, %c128_99], %145 {strides = array<i32>} : memref<8x401xf32, #tpu.memory_space<vmem>>, vector<8x256xf32>,
    %c0_100 = arith.constant 0 : index
    %c111_101 = arith.constant 111 : index
    %147 = vector.load %arg16[%c0_100, %c111_101] : memref<8x401xf32, #tpu.memory_space<vmem>>, vector<8x256xf32>
    %148 = vector.broadcast %20 : vector<1x256xf32> to vector<8x256xf32>
    %149 = arith.mulf %147, %148 : vector<8x256xf32>
    %c0_102 = arith.constant 0 : index
    %c112_103 = arith.constant 112 : index
    %150 = vector.load %arg16[%c0_102, %c112_103] : memref<8x401xf32, #tpu.memory_space<vmem>>, vector<8x256xf32>
    %c0_104 = arith.constant 0 : index
    %c113_105 = arith.constant 113 : index
    %151 = vector.load %arg16[%c0_104, %c113_105] : memref<8x401xf32, #tpu.memory_space<vmem>>, vector<8x256xf32>
    %152 = vector.broadcast %24 : vector<1x256xf32> to vector<8x256xf32>
    %153 = arith.mulf %151, %152 : vector<8x256xf32>
    %c0_106 = arith.constant 0 : index
    %c127_107 = arith.constant 127 : index
    %154 = vector.load %arg16[%c0_106, %c127_107] : memref<8x401xf32, #tpu.memory_space<vmem>>, vector<8x256xf32>
    %155 = vector.broadcast %20 : vector<1x256xf32> to vector<8x256xf32>
    %156 = arith.mulf %154, %155 : vector<8x256xf32>
    %c0_108 = arith.constant 0 : index
    %c128_109 = arith.constant 128 : index
    %157 = vector.load %arg16[%c0_108, %c128_109] : memref<8x401xf32, #tpu.memory_space<vmem>>, vector<8x256xf32>
    %c0_110 = arith.constant 0 : index
    %c129_111 = arith.constant 129 : index
    %158 = vector.load %arg16[%c0_110, %c129_111] : memref<8x401xf32, #tpu.memory_space<vmem>>, vector<8x256xf32>
    %159 = vector.broadcast %24 : vector<1x256xf32> to vector<8x256xf32>
    %160 = arith.mulf %158, %159 : vector<8x256xf32>
    %c0_112 = arith.constant 0 : index
    %c143_113 = arith.constant 143 : index
    %161 = vector.load %arg16[%c0_112, %c143_113] : memref<8x401xf32, #tpu.memory_space<vmem>>, vector<8x256xf32>
    %162 = vector.broadcast %20 : vector<1x256xf32> to vector<8x256xf32>
    %163 = arith.mulf %161, %162 : vector<8x256xf32>
    %c0_114 = arith.constant 0 : index
    %c144_115 = arith.constant 144 : index
    %164 = vector.load %arg16[%c0_114, %c144_115] : memref<8x401xf32, #tpu.memory_space<vmem>>, vector<8x256xf32>
    %c0_116 = arith.constant 0 : index
    %c145_117 = arith.constant 145 : index
    %165 = vector.load %arg16[%c0_116, %c145_117] : memref<8x401xf32, #tpu.memory_space<vmem>>, vector<8x256xf32>
    %166 = vector.broadcast %24 : vector<1x256xf32> to vector<8x256xf32>
    %167 = arith.mulf %165, %166 : vector<8x256xf32>
    %168 = tpu.concatenate %40, %75, %112, %149, %41, %76, %113, %150, %44, %79, %116, %153, %47, %82, %119, %156 in 0 : vector<16x256xf32>, vector<8x256xf32>, vector<8x256xf32>, vector<8x256xf32>, vector<16x256xf32>, vector<8x256xf32>, vector<8x256xf32>, vector<8x256xf32>, vector<16x256xf32>, vector<8x256xf32>, vector<8x256xf32>, vector<8x256xf32>, vector<16x256xf32>, vector<8x256xf32>, vector<8x256xf32>, vector<8x256xf32> -> vector<160x256xf32>
    %169 = tpu.concatenate %48, %83, %120, %157, %51, %86, %123, %160, %54, %89, %126, %163, %55, %90, %127, %164 in 0 : vector<16x256xf32>, vector<8x256xf32>, vector<8x256xf32>, vector<8x256xf32>, vector<16x256xf32>, vector<8x256xf32>, vector<8x256xf32>, vector<8x256xf32>, vector<16x256xf32>, vector<8x256xf32>, vector<8x256xf32>, vector<8x256xf32>, vector<16x256xf32>, vector<8x256xf32>, vector<8x256xf32>, vector<8x256xf32> -> vector<160x256xf32>
    %170 = tpu.concatenate %58, %93, %130, %167 in 0 : vector<16x256xf32>, vector<8x256xf32>, vector<8x256xf32>, vector<8x256xf32> -> vector<40x256xf32>
    %171 = tpu.concatenate %168, %169, %170 in 0 : vector<160x256xf32>, vector<160x256xf32>, vector<40x256xf32> -> vector<360x256xf32>
    %c0_118 = arith.constant 0 : index
    %c0_119 = arith.constant 0 : index
    %c0_120 = arith.constant 0 : index
    %172 = vector.load %arg5[%c0_118, %c0_119, %c0_120] : memref<3x8x360xf32, #tpu.memory_space<vmem>>, vector<1x8x360xf32>
    %173 = vector.shape_cast %172 : vector<1x8x360xf32> to vector<8x360xf32>
    %cst_121 = arith.constant dense<0.000000e+00> : vector<8x256xf32>
    %174 = tpu.matmul %173, %171, %cst_121 {dimension_numbers = #tpu.dot_dimension_numbers<[1], [0], [0], [1], [0, 0, 1, 1], [], []>} : vector<8x360xf32>, vector<360x256xf32>, vector<8x256xf32> -> vector<8x256xf32>
    %c0_122 = arith.constant 0 : index
    %c0_123 = arith.constant 0 : index
    %c0_124 = arith.constant 0 : index
    %175 = vector.load %arg10[%c0_122, %c0_123, %c0_124] : memref<3x8x1xf32, #tpu.memory_space<vmem>>, vector<1x8x1xf32>
    %176 = vector.shape_cast %175 : vector<1x8x1xf32> to vector<8x1xf32>
    %177 = vector.broadcast %176 : vector<8x1xf32> to vector<8x256xf32>
    %178 = arith.addf %174, %177 : vector<8x256xf32>
    %cst_125 = arith.constant 0.000000e+00 : f32
    %179 = vector.broadcast %cst_125 : f32 to vector<8x256xf32>
    %180 = arith.cmpf oge, %178, %179 : vector<8x256xf32>
    %cst_126 = arith.constant 2.000000e-01 : f32
    %181 = vector.broadcast %cst_126 : f32 to vector<8x256xf32>
    %182 = arith.mulf %181, %178 : vector<8x256xf32>
    %183 = arith.select %180, %178, %182 : vector<8x256xi1>, vector<8x256xf32>
    %c0_127 = arith.constant 0 : index
    %c128_128 = arith.constant 128 : index
    %184 = vector.load %arg17[%c0_127, %c128_128] : memref<8x401xf32, #tpu.memory_space<vmem>>, vector<8x256xf32>
    tpu.vector_store %arg17[%c0_127, %c128_128], %183 {strides = array<i32>} : memref<8x401xf32, #tpu.memory_space<vmem>>, vector<8x256xf32>,
    %c0_129 = arith.constant 0 : index
    %c111_130 = arith.constant 111 : index
    %185 = vector.load %arg17[%c0_129, %c111_130] : memref<8x401xf32, #tpu.memory_space<vmem>>, vector<8x256xf32>
    %186 = vector.broadcast %20 : vector<1x256xf32> to vector<8x256xf32>
    %187 = arith.mulf %185, %186 : vector<8x256xf32>
    %c0_131 = arith.constant 0 : index
    %c112_132 = arith.constant 112 : index
    %188 = vector.load %arg17[%c0_131, %c112_132] : memref<8x401xf32, #tpu.memory_space<vmem>>, vector<8x256xf32>
    %c0_133 = arith.constant 0 : index
    %c113_134 = arith.constant 113 : index
    %189 = vector.load %arg17[%c0_133, %c113_134] : memref<8x401xf32, #tpu.memory_space<vmem>>, vector<8x256xf32>
    %190 = vector.broadcast %24 : vector<1x256xf32> to vector<8x256xf32>
    %191 = arith.mulf %189, %190 : vector<8x256xf32>
    %c0_135 = arith.constant 0 : index
    %c127_136 = arith.constant 127 : index
    %192 = vector.load %arg17[%c0_135, %c127_136] : memref<8x401xf32, #tpu.memory_space<vmem>>, vector<8x256xf32>
    %193 = vector.broadcast %20 : vector<1x256xf32> to vector<8x256xf32>
    %194 = arith.mulf %192, %193 : vector<8x256xf32>
    %c0_137 = arith.constant 0 : index
    %c128_138 = arith.constant 128 : index
    %195 = vector.load %arg17[%c0_137, %c128_138] : memref<8x401xf32, #tpu.memory_space<vmem>>, vector<8x256xf32>
    %c0_139 = arith.constant 0 : index
    %c129_140 = arith.constant 129 : index
    %196 = vector.load %arg17[%c0_139, %c129_140] : memref<8x401xf32, #tpu.memory_space<vmem>>, vector<8x256xf32>
    %197 = vector.broadcast %24 : vector<1x256xf32> to vector<8x256xf32>
    %198 = arith.mulf %196, %197 : vector<8x256xf32>
    %c0_141 = arith.constant 0 : index
    %c143_142 = arith.constant 143 : index
    %199 = vector.load %arg17[%c0_141, %c143_142] : memref<8x401xf32, #tpu.memory_space<vmem>>, vector<8x256xf32>
    %200 = vector.broadcast %20 : vector<1x256xf32> to vector<8x256xf32>
    %201 = arith.mulf %199, %200 : vector<8x256xf32>
    %c0_143 = arith.constant 0 : index
    %c144_144 = arith.constant 144 : index
    %202 = vector.load %arg17[%c0_143, %c144_144] : memref<8x401xf32, #tpu.memory_space<vmem>>, vector<8x256xf32>
    %c0_145 = arith.constant 0 : index
    %c145_146 = arith.constant 145 : index
    %203 = vector.load %arg17[%c0_145, %c145_146] : memref<8x401xf32, #tpu.memory_space<vmem>>, vector<8x256xf32>
    %204 = vector.broadcast %24 : vector<1x256xf32> to vector<8x256xf32>
    %205 = arith.mulf %203, %204 : vector<8x256xf32>
    %206 = tpu.concatenate %40, %75, %112, %149, %187, %41, %76, %113, %150, %188, %44, %79, %116, %153, %191, %47 in 0 : vector<16x256xf32>, vector<8x256xf32>, vector<8x256xf32>, vector<8x256xf32>, vector<8x256xf32>, vector<16x256xf32>, vector<8x256xf32>, vector<8x256xf32>, vector<8x256xf32>, vector<8x256xf32>, vector<16x256xf32>, vector<8x256xf32>, vector<8x256xf32>, vector<8x256xf32>, vector<8x256xf32>, vector<16x256xf32> -> vector<160x256xf32>
    %207 = tpu.concatenate %82, %119, %156, %194, %48, %83, %120, %157, %195, %51, %86, %123, %160, %198, %54, %89 in 0 : vector<8x256xf32>, vector<8x256xf32>, vector<8x256xf32>, vector<8x256xf32>, vector<16x256xf32>, vector<8x256xf32>, vector<8x256xf32>, vector<8x256xf32>, vector<8x256xf32>, vector<16x256xf32>, vector<8x256xf32>, vector<8x256xf32>, vector<8x256xf32>, vector<8x256xf32>, vector<16x256xf32>, vector<8x256xf32> -> vector<152x256xf32>
    %208 = tpu.concatenate %126, %163, %201, %55, %90, %127, %164, %202, %58, %93, %130, %167, %205 in 0 : vector<8x256xf32>, vector<8x256xf32>, vector<8x256xf32>, vector<16x256xf32>, vector<8x256xf32>, vector<8x256xf32>, vector<8x256xf32>, vector<8x256xf32>, vector<16x256xf32>, vector<8x256xf32>, vector<8x256xf32>, vector<8x256xf32>, vector<8x256xf32> -> vector<120x256xf32>
    %209 = tpu.concatenate %206, %207, %208 in 0 : vector<160x256xf32>, vector<152x256xf32>, vector<120x256xf32> -> vector<432x256xf32>
    %c0_147 = arith.constant 0 : index
    %c0_148 = arith.constant 0 : index
    %c0_149 = arith.constant 0 : index
    %210 = vector.load %arg6[%c0_147, %c0_148, %c0_149] : memref<3x16x432xf32, #tpu.memory_space<vmem>>, vector<1x16x432xf32>
    %211 = vector.shape_cast %210 : vector<1x16x432xf32> to vector<16x432xf32>
    %cst_150 = arith.constant dense<0.000000e+00> : vector<16x256xf32>
    %212 = tpu.matmul %211, %209, %cst_150 {dimension_numbers = #tpu.dot_dimension_numbers<[1], [0], [0], [1], [0, 0, 1, 1], [], []>} : vector<16x432xf32>, vector<432x256xf32>, vector<16x256xf32> -> vector<16x256xf32>
    %c0_151 = arith.constant 0 : index
    %c0_152 = arith.constant 0 : index
    %c0_153 = arith.constant 0 : index
    %213 = vector.load %arg11[%c0_151, %c0_152, %c0_153] : memref<3x16x1xf32, #tpu.memory_space<vmem>>, vector<1x16x1xf32>
    %214 = vector.shape_cast %213 : vector<1x16x1xf32> to vector<16x1xf32>
    %215 = vector.broadcast %214 : vector<16x1xf32> to vector<16x256xf32>
    %216 = arith.addf %212, %215 : vector<16x256xf32>
    %cst_154 = arith.constant 2.000000e-01 : f32
    %217 = vector.broadcast %cst_154 : f32 to vector<16x256xf32>
    %218 = arith.mulf %216, %217 : vector<16x256xf32>
    %219 = arith.addf %218, %36 : vector<16x256xf32>
    %c0_155 = arith.constant 0 : index
    %c128_156 = arith.constant 128 : index
    %220 = vector.load %arg13[%c0_155, %c128_156] : memref<16x401xf32, #tpu.memory_space<vmem>>, vector<16x256xf32>
    tpu.vector_store %arg13[%c0_155, %c128_156], %219 {strides = array<i32>} : memref<16x401xf32, #tpu.memory_space<vmem>>, vector<16x256xf32>,
    %c0_157 = arith.constant 0 : index
    %c111_158 = arith.constant 111 : index
    %221 = vector.load %arg13[%c0_157, %c111_158] : memref<16x401xf32, #tpu.memory_space<vmem>>, vector<16x256xf32>
    %222 = vector.broadcast %20 : vector<1x256xf32> to vector<16x256xf32>
    %223 = arith.mulf %221, %222 : vector<16x256xf32>
    %c0_159 = arith.constant 0 : index
    %c112_160 = arith.constant 112 : index
    %224 = vector.load %arg13[%c0_159, %c112_160] : memref<16x401xf32, #tpu.memory_space<vmem>>, vector<16x256xf32>
    %c0_161 = arith.constant 0 : index
    %c113_162 = arith.constant 113 : index
    %225 = vector.load %arg13[%c0_161, %c113_162] : memref<16x401xf32, #tpu.memory_space<vmem>>, vector<16x256xf32>
    %226 = vector.broadcast %24 : vector<1x256xf32> to vector<16x256xf32>
    %227 = arith.mulf %225, %226 : vector<16x256xf32>
    %c0_163 = arith.constant 0 : index
    %c127_164 = arith.constant 127 : index
    %228 = vector.load %arg13[%c0_163, %c127_164] : memref<16x401xf32, #tpu.memory_space<vmem>>, vector<16x256xf32>
    %229 = vector.broadcast %20 : vector<1x256xf32> to vector<16x256xf32>
    %230 = arith.mulf %228, %229 : vector<16x256xf32>
    %c0_165 = arith.constant 0 : index
    %c128_166 = arith.constant 128 : index
    %231 = vector.load %arg13[%c0_165, %c128_166] : memref<16x401xf32, #tpu.memory_space<vmem>>, vector<16x256xf32>
    %c0_167 = arith.constant 0 : index
    %c129_168 = arith.constant 129 : index
    %232 = vector.load %arg13[%c0_167, %c129_168] : memref<16x401xf32, #tpu.memory_space<vmem>>, vector<16x256xf32>
    %233 = vector.broadcast %24 : vector<1x256xf32> to vector<16x256xf32>
    %234 = arith.mulf %232, %233 : vector<16x256xf32>
    %c0_169 = arith.constant 0 : index
    %c143_170 = arith.constant 143 : index
    %235 = vector.load %arg13[%c0_169, %c143_170] : memref<16x401xf32, #tpu.memory_space<vmem>>, vector<16x256xf32>
    %236 = vector.broadcast %20 : vector<1x256xf32> to vector<16x256xf32>
    %237 = arith.mulf %235, %236 : vector<16x256xf32>
    %c0_171 = arith.constant 0 : index
    %c144_172 = arith.constant 144 : index
    %238 = vector.load %arg13[%c0_171, %c144_172] : memref<16x401xf32, #tpu.memory_space<vmem>>, vector<16x256xf32>
    %c0_173 = arith.constant 0 : index
    %c145_174 = arith.constant 145 : index
    %239 = vector.load %arg13[%c0_173, %c145_174] : memref<16x401xf32, #tpu.memory_space<vmem>>, vector<16x256xf32>
    %240 = vector.broadcast %24 : vector<1x256xf32> to vector<16x256xf32>
    %241 = arith.mulf %239, %240 : vector<16x256xf32>
    %242 = tpu.concatenate %223, %224, %227, %230, %231, %234, %237, %238, %241 in 0 : vector<16x256xf32>, vector<16x256xf32>, vector<16x256xf32>, vector<16x256xf32>, vector<16x256xf32>, vector<16x256xf32>, vector<16x256xf32>, vector<16x256xf32>, vector<16x256xf32> -> vector<144x256xf32>
    %c1 = arith.constant 1 : index
    %c0_175 = arith.constant 0 : index
    %c0_176 = arith.constant 0 : index
    %243 = vector.load %arg2[%c1, %c0_175, %c0_176] : memref<3x8x144xf32, #tpu.memory_space<vmem>>, vector<1x8x144xf32>
    %244 = vector.shape_cast %243 : vector<1x8x144xf32> to vector<8x144xf32>
    %cst_177 = arith.constant dense<0.000000e+00> : vector<8x256xf32>
    %245 = tpu.matmul %244, %242, %cst_177 {dimension_numbers = #tpu.dot_dimension_numbers<[1], [0], [0], [1], [0, 0, 1, 1], [], []>} : vector<8x144xf32>, vector<144x256xf32>, vector<8x256xf32> -> vector<8x256xf32>
    %c1_178 = arith.constant 1 : index
    %c0_179 = arith.constant 0 : index
    %c0_180 = arith.constant 0 : index
    %246 = vector.load %arg7[%c1_178, %c0_179, %c0_180] : memref<3x8x1xf32, #tpu.memory_space<vmem>>, vector<1x8x1xf32>
    %247 = vector.shape_cast %246 : vector<1x8x1xf32> to vector<8x1xf32>
    %248 = vector.broadcast %247 : vector<8x1xf32> to vector<8x256xf32>
    %249 = arith.addf %245, %248 : vector<8x256xf32>
    %cst_181 = arith.constant 0.000000e+00 : f32
    %250 = vector.broadcast %cst_181 : f32 to vector<8x256xf32>
    %251 = arith.cmpf oge, %249, %250 : vector<8x256xf32>
    %cst_182 = arith.constant 2.000000e-01 : f32
    %252 = vector.broadcast %cst_182 : f32 to vector<8x256xf32>
    %253 = arith.mulf %252, %249 : vector<8x256xf32>
    %254 = arith.select %251, %249, %253 : vector<8x256xi1>, vector<8x256xf32>
    %c0_183 = arith.constant 0 : index
    %c128_184 = arith.constant 128 : index
    %255 = vector.load %arg14[%c0_183, %c128_184] : memref<8x401xf32, #tpu.memory_space<vmem>>, vector<8x256xf32>
    tpu.vector_store %arg14[%c0_183, %c128_184], %254 {strides = array<i32>} : memref<8x401xf32, #tpu.memory_space<vmem>>, vector<8x256xf32>,
    %c0_185 = arith.constant 0 : index
    %c111_186 = arith.constant 111 : index
    %256 = vector.load %arg14[%c0_185, %c111_186] : memref<8x401xf32, #tpu.memory_space<vmem>>, vector<8x256xf32>
    %257 = vector.broadcast %20 : vector<1x256xf32> to vector<8x256xf32>
    %258 = arith.mulf %256, %257 : vector<8x256xf32>
    %c0_187 = arith.constant 0 : index
    %c112_188 = arith.constant 112 : index
    %259 = vector.load %arg14[%c0_187, %c112_188] : memref<8x401xf32, #tpu.memory_space<vmem>>, vector<8x256xf32>
    %c0_189 = arith.constant 0 : index
    %c113_190 = arith.constant 113 : index
    %260 = vector.load %arg14[%c0_189, %c113_190] : memref<8x401xf32, #tpu.memory_space<vmem>>, vector<8x256xf32>
    %261 = vector.broadcast %24 : vector<1x256xf32> to vector<8x256xf32>
    %262 = arith.mulf %260, %261 : vector<8x256xf32>
    %c0_191 = arith.constant 0 : index
    %c127_192 = arith.constant 127 : index
    %263 = vector.load %arg14[%c0_191, %c127_192] : memref<8x401xf32, #tpu.memory_space<vmem>>, vector<8x256xf32>
    %264 = vector.broadcast %20 : vector<1x256xf32> to vector<8x256xf32>
    %265 = arith.mulf %263, %264 : vector<8x256xf32>
    %c0_193 = arith.constant 0 : index
    %c128_194 = arith.constant 128 : index
    %266 = vector.load %arg14[%c0_193, %c128_194] : memref<8x401xf32, #tpu.memory_space<vmem>>, vector<8x256xf32>
    %c0_195 = arith.constant 0 : index
    %c129_196 = arith.constant 129 : index
    %267 = vector.load %arg14[%c0_195, %c129_196] : memref<8x401xf32, #tpu.memory_space<vmem>>, vector<8x256xf32>
    %268 = vector.broadcast %24 : vector<1x256xf32> to vector<8x256xf32>
    %269 = arith.mulf %267, %268 : vector<8x256xf32>
    %c0_197 = arith.constant 0 : index
    %c143_198 = arith.constant 143 : index
    %270 = vector.load %arg14[%c0_197, %c143_198] : memref<8x401xf32, #tpu.memory_space<vmem>>, vector<8x256xf32>
    %271 = vector.broadcast %20 : vector<1x256xf32> to vector<8x256xf32>
    %272 = arith.mulf %270, %271 : vector<8x256xf32>
    %c0_199 = arith.constant 0 : index
    %c144_200 = arith.constant 144 : index
    %273 = vector.load %arg14[%c0_199, %c144_200] : memref<8x401xf32, #tpu.memory_space<vmem>>, vector<8x256xf32>
    %c0_201 = arith.constant 0 : index
    %c145_202 = arith.constant 145 : index
    %274 = vector.load %arg14[%c0_201, %c145_202] : memref<8x401xf32, #tpu.memory_space<vmem>>, vector<8x256xf32>
    %275 = vector.broadcast %24 : vector<1x256xf32> to vector<8x256xf32>
    %276 = arith.mulf %274, %275 : vector<8x256xf32>
    %277 = tpu.concatenate %223, %258, %224, %259, %227, %262, %230, %265, %231, %266, %234, %269, %237, %272, %238, %273 in 0 : vector<16x256xf32>, vector<8x256xf32>, vector<16x256xf32>, vector<8x256xf32>, vector<16x256xf32>, vector<8x256xf32>, vector<16x256xf32>, vector<8x256xf32>, vector<16x256xf32>, vector<8x256xf32>, vector<16x256xf32>, vector<8x256xf32>, vector<16x256xf32>, vector<8x256xf32>, vector<16x256xf32>, vector<8x256xf32> -> vector<192x256xf32>
    %278 = tpu.concatenate %241, %276 in 0 : vector<16x256xf32>, vector<8x256xf32> -> vector<24x256xf32>
    %279 = tpu.concatenate %277, %278 in 0 : vector<192x256xf32>, vector<24x256xf32> -> vector<216x256xf32>
    %c1_203 = arith.constant 1 : index
    %c0_204 = arith.constant 0 : index
    %c0_205 = arith.constant 0 : index
    %280 = vector.load %arg3[%c1_203, %c0_204, %c0_205] : memref<3x8x216xf32, #tpu.memory_space<vmem>>, vector<1x8x216xf32>
    %281 = vector.shape_cast %280 : vector<1x8x216xf32> to vector<8x216xf32>
    %cst_206 = arith.constant dense<0.000000e+00> : vector<8x256xf32>
    %282 = tpu.matmul %281, %279, %cst_206 {dimension_numbers = #tpu.dot_dimension_numbers<[1], [0], [0], [1], [0, 0, 1, 1], [], []>} : vector<8x216xf32>, vector<216x256xf32>, vector<8x256xf32> -> vector<8x256xf32>
    %c1_207 = arith.constant 1 : index
    %c0_208 = arith.constant 0 : index
    %c0_209 = arith.constant 0 : index
    %283 = vector.load %arg8[%c1_207, %c0_208, %c0_209] : memref<3x8x1xf32, #tpu.memory_space<vmem>>, vector<1x8x1xf32>
    %284 = vector.shape_cast %283 : vector<1x8x1xf32> to vector<8x1xf32>
    %285 = vector.broadcast %284 : vector<8x1xf32> to vector<8x256xf32>
    %286 = arith.addf %282, %285 : vector<8x256xf32>
    %cst_210 = arith.constant 0.000000e+00 : f32
    %287 = vector.broadcast %cst_210 : f32 to vector<8x256xf32>
    %288 = arith.cmpf oge, %286, %287 : vector<8x256xf32>
    %cst_211 = arith.constant 2.000000e-01 : f32
    %289 = vector.broadcast %cst_211 : f32 to vector<8x256xf32>
    %290 = arith.mulf %289, %286 : vector<8x256xf32>
    %291 = arith.select %288, %286, %290 : vector<8x256xi1>, vector<8x256xf32>
    %c0_212 = arith.constant 0 : index
    %c128_213 = arith.constant 128 : index
    %292 = vector.load %arg15[%c0_212, %c128_213] : memref<8x401xf32, #tpu.memory_space<vmem>>, vector<8x256xf32>
    tpu.vector_store %arg15[%c0_212, %c128_213], %291 {strides = array<i32>} : memref<8x401xf32, #tpu.memory_space<vmem>>, vector<8x256xf32>,
    %c0_214 = arith.constant 0 : index
    %c111_215 = arith.constant 111 : index
    %293 = vector.load %arg15[%c0_214, %c111_215] : memref<8x401xf32, #tpu.memory_space<vmem>>, vector<8x256xf32>
    %294 = vector.broadcast %20 : vector<1x256xf32> to vector<8x256xf32>
    %295 = arith.mulf %293, %294 : vector<8x256xf32>
    %c0_216 = arith.constant 0 : index
    %c112_217 = arith.constant 112 : index
    %296 = vector.load %arg15[%c0_216, %c112_217] : memref<8x401xf32, #tpu.memory_space<vmem>>, vector<8x256xf32>
    %c0_218 = arith.constant 0 : index
    %c113_219 = arith.constant 113 : index
    %297 = vector.load %arg15[%c0_218, %c113_219] : memref<8x401xf32, #tpu.memory_space<vmem>>, vector<8x256xf32>
    %298 = vector.broadcast %24 : vector<1x256xf32> to vector<8x256xf32>
    %299 = arith.mulf %297, %298 : vector<8x256xf32>
    %c0_220 = arith.constant 0 : index
    %c127_221 = arith.constant 127 : index
    %300 = vector.load %arg15[%c0_220, %c127_221] : memref<8x401xf32, #tpu.memory_space<vmem>>, vector<8x256xf32>
    %301 = vector.broadcast %20 : vector<1x256xf32> to vector<8x256xf32>
    %302 = arith.mulf %300, %301 : vector<8x256xf32>
    %c0_222 = arith.constant 0 : index
    %c128_223 = arith.constant 128 : index
    %303 = vector.load %arg15[%c0_222, %c128_223] : memref<8x401xf32, #tpu.memory_space<vmem>>, vector<8x256xf32>
    %c0_224 = arith.constant 0 : index
    %c129_225 = arith.constant 129 : index
    %304 = vector.load %arg15[%c0_224, %c129_225] : memref<8x401xf32, #tpu.memory_space<vmem>>, vector<8x256xf32>
    %305 = vector.broadcast %24 : vector<1x256xf32> to vector<8x256xf32>
    %306 = arith.mulf %304, %305 : vector<8x256xf32>
    %c0_226 = arith.constant 0 : index
    %c143_227 = arith.constant 143 : index
    %307 = vector.load %arg15[%c0_226, %c143_227] : memref<8x401xf32, #tpu.memory_space<vmem>>, vector<8x256xf32>
    %308 = vector.broadcast %20 : vector<1x256xf32> to vector<8x256xf32>
    %309 = arith.mulf %307, %308 : vector<8x256xf32>
    %c0_228 = arith.constant 0 : index
    %c144_229 = arith.constant 144 : index
    %310 = vector.load %arg15[%c0_228, %c144_229] : memref<8x401xf32, #tpu.memory_space<vmem>>, vector<8x256xf32>
    %c0_230 = arith.constant 0 : index
    %c145_231 = arith.constant 145 : index
    %311 = vector.load %arg15[%c0_230, %c145_231] : memref<8x401xf32, #tpu.memory_space<vmem>>, vector<8x256xf32>
    %312 = vector.broadcast %24 : vector<1x256xf32> to vector<8x256xf32>
    %313 = arith.mulf %311, %312 : vector<8x256xf32>
    %314 = tpu.concatenate %223, %258, %295, %224, %259, %296, %227, %262, %299, %230, %265, %302, %231, %266, %303, %234 in 0 : vector<16x256xf32>, vector<8x256xf32>, vector<8x256xf32>, vector<16x256xf32>, vector<8x256xf32>, vector<8x256xf32>, vector<16x256xf32>, vector<8x256xf32>, vector<8x256xf32>, vector<16x256xf32>, vector<8x256xf32>, vector<8x256xf32>, vector<16x256xf32>, vector<8x256xf32>, vector<8x256xf32>, vector<16x256xf32> -> vector<176x256xf32>
    %315 = tpu.concatenate %269, %306, %237, %272, %309, %238, %273, %310, %241, %276, %313 in 0 : vector<8x256xf32>, vector<8x256xf32>, vector<16x256xf32>, vector<8x256xf32>, vector<8x256xf32>, vector<16x256xf32>, vector<8x256xf32>, vector<8x256xf32>, vector<16x256xf32>, vector<8x256xf32>, vector<8x256xf32> -> vector<112x256xf32>
    %316 = tpu.concatenate %314, %315 in 0 : vector<176x256xf32>, vector<112x256xf32> -> vector<288x256xf32>
    %c1_232 = arith.constant 1 : index
    %c0_233 = arith.constant 0 : index
    %c0_234 = arith.constant 0 : index
    %317 = vector.load %arg4[%c1_232, %c0_233, %c0_234] : memref<3x8x288xf32, #tpu.memory_space<vmem>>, vector<1x8x288xf32>
    %318 = vector.shape_cast %317 : vector<1x8x288xf32> to vector<8x288xf32>
    %cst_235 = arith.constant dense<0.000000e+00> : vector<8x256xf32>
    %319 = tpu.matmul %318, %316, %cst_235 {dimension_numbers = #tpu.dot_dimension_numbers<[1], [0], [0], [1], [0, 0, 1, 1], [], []>} : vector<8x288xf32>, vector<288x256xf32>, vector<8x256xf32> -> vector<8x256xf32>
    %c1_236 = arith.constant 1 : index
    %c0_237 = arith.constant 0 : index
    %c0_238 = arith.constant 0 : index
    %320 = vector.load %arg9[%c1_236, %c0_237, %c0_238] : memref<3x8x1xf32, #tpu.memory_space<vmem>>, vector<1x8x1xf32>
    %321 = vector.shape_cast %320 : vector<1x8x1xf32> to vector<8x1xf32>
    %322 = vector.broadcast %321 : vector<8x1xf32> to vector<8x256xf32>
    %323 = arith.addf %319, %322 : vector<8x256xf32>
    %cst_239 = arith.constant 0.000000e+00 : f32
    %324 = vector.broadcast %cst_239 : f32 to vector<8x256xf32>
    %325 = arith.cmpf oge, %323, %324 : vector<8x256xf32>
    %cst_240 = arith.constant 2.000000e-01 : f32
    %326 = vector.broadcast %cst_240 : f32 to vector<8x256xf32>
    %327 = arith.mulf %326, %323 : vector<8x256xf32>
    %328 = arith.select %325, %323, %327 : vector<8x256xi1>, vector<8x256xf32>
    %c0_241 = arith.constant 0 : index
    %c128_242 = arith.constant 128 : index
    %329 = vector.load %arg16[%c0_241, %c128_242] : memref<8x401xf32, #tpu.memory_space<vmem>>, vector<8x256xf32>
    tpu.vector_store %arg16[%c0_241, %c128_242], %328 {strides = array<i32>} : memref<8x401xf32, #tpu.memory_space<vmem>>, vector<8x256xf32>,
    %c0_243 = arith.constant 0 : index
    %c111_244 = arith.constant 111 : index
    %330 = vector.load %arg16[%c0_243, %c111_244] : memref<8x401xf32, #tpu.memory_space<vmem>>, vector<8x256xf32>
    %331 = vector.broadcast %20 : vector<1x256xf32> to vector<8x256xf32>
    %332 = arith.mulf %330, %331 : vector<8x256xf32>
    %c0_245 = arith.constant 0 : index
    %c112_246 = arith.constant 112 : index
    %333 = vector.load %arg16[%c0_245, %c112_246] : memref<8x401xf32, #tpu.memory_space<vmem>>, vector<8x256xf32>
    %c0_247 = arith.constant 0 : index
    %c113_248 = arith.constant 113 : index
    %334 = vector.load %arg16[%c0_247, %c113_248] : memref<8x401xf32, #tpu.memory_space<vmem>>, vector<8x256xf32>
    %335 = vector.broadcast %24 : vector<1x256xf32> to vector<8x256xf32>
    %336 = arith.mulf %334, %335 : vector<8x256xf32>
    %c0_249 = arith.constant 0 : index
    %c127_250 = arith.constant 127 : index
    %337 = vector.load %arg16[%c0_249, %c127_250] : memref<8x401xf32, #tpu.memory_space<vmem>>, vector<8x256xf32>
    %338 = vector.broadcast %20 : vector<1x256xf32> to vector<8x256xf32>
    %339 = arith.mulf %337, %338 : vector<8x256xf32>
    %c0_251 = arith.constant 0 : index
    %c128_252 = arith.constant 128 : index
    %340 = vector.load %arg16[%c0_251, %c128_252] : memref<8x401xf32, #tpu.memory_space<vmem>>, vector<8x256xf32>
    %c0_253 = arith.constant 0 : index
    %c129_254 = arith.constant 129 : index
    %341 = vector.load %arg16[%c0_253, %c129_254] : memref<8x401xf32, #tpu.memory_space<vmem>>, vector<8x256xf32>
    %342 = vector.broadcast %24 : vector<1x256xf32> to vector<8x256xf32>
    %343 = arith.mulf %341, %342 : vector<8x256xf32>
    %c0_255 = arith.constant 0 : index
    %c143_256 = arith.constant 143 : index
    %344 = vector.load %arg16[%c0_255, %c143_256] : memref<8x401xf32, #tpu.memory_space<vmem>>, vector<8x256xf32>
    %345 = vector.broadcast %20 : vector<1x256xf32> to vector<8x256xf32>
    %346 = arith.mulf %344, %345 : vector<8x256xf32>
    %c0_257 = arith.constant 0 : index
    %c144_258 = arith.constant 144 : index
    %347 = vector.load %arg16[%c0_257, %c144_258] : memref<8x401xf32, #tpu.memory_space<vmem>>, vector<8x256xf32>
    %c0_259 = arith.constant 0 : index
    %c145_260 = arith.constant 145 : index
    %348 = vector.load %arg16[%c0_259, %c145_260] : memref<8x401xf32, #tpu.memory_space<vmem>>, vector<8x256xf32>
    %349 = vector.broadcast %24 : vector<1x256xf32> to vector<8x256xf32>
    %350 = arith.mulf %348, %349 : vector<8x256xf32>
    %351 = tpu.concatenate %223, %258, %295, %332, %224, %259, %296, %333, %227, %262, %299, %336, %230, %265, %302, %339 in 0 : vector<16x256xf32>, vector<8x256xf32>, vector<8x256xf32>, vector<8x256xf32>, vector<16x256xf32>, vector<8x256xf32>, vector<8x256xf32>, vector<8x256xf32>, vector<16x256xf32>, vector<8x256xf32>, vector<8x256xf32>, vector<8x256xf32>, vector<16x256xf32>, vector<8x256xf32>, vector<8x256xf32>, vector<8x256xf32> -> vector<160x256xf32>
    %352 = tpu.concatenate %231, %266, %303, %340, %234, %269, %306, %343, %237, %272, %309, %346, %238, %273, %310, %347 in 0 : vector<16x256xf32>, vector<8x256xf32>, vector<8x256xf32>, vector<8x256xf32>, vector<16x256xf32>, vector<8x256xf32>, vector<8x256xf32>, vector<8x256xf32>, vector<16x256xf32>, vector<8x256xf32>, vector<8x256xf32>, vector<8x256xf32>, vector<16x256xf32>, vector<8x256xf32>, vector<8x256xf32>, vector<8x256xf32> -> vector<160x256xf32>
    %353 = tpu.concatenate %241, %276, %313, %350 in 0 : vector<16x256xf32>, vector<8x256xf32>, vector<8x256xf32>, vector<8x256xf32> -> vector<40x256xf32>
    %354 = tpu.concatenate %351, %352, %353 in 0 : vector<160x256xf32>, vector<160x256xf32>, vector<40x256xf32> -> vector<360x256xf32>
    %c1_261 = arith.constant 1 : index
    %c0_262 = arith.constant 0 : index
    %c0_263 = arith.constant 0 : index
    %355 = vector.load %arg5[%c1_261, %c0_262, %c0_263] : memref<3x8x360xf32, #tpu.memory_space<vmem>>, vector<1x8x360xf32>
    %356 = vector.shape_cast %355 : vector<1x8x360xf32> to vector<8x360xf32>
    %cst_264 = arith.constant dense<0.000000e+00> : vector<8x256xf32>
    %357 = tpu.matmul %356, %354, %cst_264 {dimension_numbers = #tpu.dot_dimension_numbers<[1], [0], [0], [1], [0, 0, 1, 1], [], []>} : vector<8x360xf32>, vector<360x256xf32>, vector<8x256xf32> -> vector<8x256xf32>
    %c1_265 = arith.constant 1 : index
    %c0_266 = arith.constant 0 : index
    %c0_267 = arith.constant 0 : index
    %358 = vector.load %arg10[%c1_265, %c0_266, %c0_267] : memref<3x8x1xf32, #tpu.memory_space<vmem>>, vector<1x8x1xf32>
    %359 = vector.shape_cast %358 : vector<1x8x1xf32> to vector<8x1xf32>
    %360 = vector.broadcast %359 : vector<8x1xf32> to vector<8x256xf32>
    %361 = arith.addf %357, %360 : vector<8x256xf32>
    %cst_268 = arith.constant 0.000000e+00 : f32
    %362 = vector.broadcast %cst_268 : f32 to vector<8x256xf32>
    %363 = arith.cmpf oge, %361, %362 : vector<8x256xf32>
    %cst_269 = arith.constant 2.000000e-01 : f32
    %364 = vector.broadcast %cst_269 : f32 to vector<8x256xf32>
    %365 = arith.mulf %364, %361 : vector<8x256xf32>
    %366 = arith.select %363, %361, %365 : vector<8x256xi1>, vector<8x256xf32>
    %c0_270 = arith.constant 0 : index
    %c128_271 = arith.constant 128 : index
    %367 = vector.load %arg17[%c0_270, %c128_271] : memref<8x401xf32, #tpu.memory_space<vmem>>, vector<8x256xf32>
    tpu.vector_store %arg17[%c0_270, %c128_271], %366 {strides = array<i32>} : memref<8x401xf32, #tpu.memory_space<vmem>>, vector<8x256xf32>,
    %c0_272 = arith.constant 0 : index
    %c111_273 = arith.constant 111 : index
    %368 = vector.load %arg17[%c0_272, %c111_273] : memref<8x401xf32, #tpu.memory_space<vmem>>, vector<8x256xf32>
    %369 = vector.broadcast %20 : vector<1x256xf32> to vector<8x256xf32>
    %370 = arith.mulf %368, %369 : vector<8x256xf32>
    %c0_274 = arith.constant 0 : index
    %c112_275 = arith.constant 112 : index
    %371 = vector.load %arg17[%c0_274, %c112_275] : memref<8x401xf32, #tpu.memory_space<vmem>>, vector<8x256xf32>
    %c0_276 = arith.constant 0 : index
    %c113_277 = arith.constant 113 : index
    %372 = vector.load %arg17[%c0_276, %c113_277] : memref<8x401xf32, #tpu.memory_space<vmem>>, vector<8x256xf32>
    %373 = vector.broadcast %24 : vector<1x256xf32> to vector<8x256xf32>
    %374 = arith.mulf %372, %373 : vector<8x256xf32>
    %c0_278 = arith.constant 0 : index
    %c127_279 = arith.constant 127 : index
    %375 = vector.load %arg17[%c0_278, %c127_279] : memref<8x401xf32, #tpu.memory_space<vmem>>, vector<8x256xf32>
    %376 = vector.broadcast %20 : vector<1x256xf32> to vector<8x256xf32>
    %377 = arith.mulf %375, %376 : vector<8x256xf32>
    %c0_280 = arith.constant 0 : index
    %c128_281 = arith.constant 128 : index
    %378 = vector.load %arg17[%c0_280, %c128_281] : memref<8x401xf32, #tpu.memory_space<vmem>>, vector<8x256xf32>
    %c0_282 = arith.constant 0 : index
    %c129_283 = arith.constant 129 : index
    %379 = vector.load %arg17[%c0_282, %c129_283] : memref<8x401xf32, #tpu.memory_space<vmem>>, vector<8x256xf32>
    %380 = vector.broadcast %24 : vector<1x256xf32> to vector<8x256xf32>
    %381 = arith.mulf %379, %380 : vector<8x256xf32>
    %c0_284 = arith.constant 0 : index
    %c143_285 = arith.constant 143 : index
    %382 = vector.load %arg17[%c0_284, %c143_285] : memref<8x401xf32, #tpu.memory_space<vmem>>, vector<8x256xf32>
    %383 = vector.broadcast %20 : vector<1x256xf32> to vector<8x256xf32>
    %384 = arith.mulf %382, %383 : vector<8x256xf32>
    %c0_286 = arith.constant 0 : index
    %c144_287 = arith.constant 144 : index
    %385 = vector.load %arg17[%c0_286, %c144_287] : memref<8x401xf32, #tpu.memory_space<vmem>>, vector<8x256xf32>
    %c0_288 = arith.constant 0 : index
    %c145_289 = arith.constant 145 : index
    %386 = vector.load %arg17[%c0_288, %c145_289] : memref<8x401xf32, #tpu.memory_space<vmem>>, vector<8x256xf32>
    %387 = vector.broadcast %24 : vector<1x256xf32> to vector<8x256xf32>
    %388 = arith.mulf %386, %387 : vector<8x256xf32>
    %389 = tpu.concatenate %223, %258, %295, %332, %370, %224, %259, %296, %333, %371, %227, %262, %299, %336, %374, %230 in 0 : vector<16x256xf32>, vector<8x256xf32>, vector<8x256xf32>, vector<8x256xf32>, vector<8x256xf32>, vector<16x256xf32>, vector<8x256xf32>, vector<8x256xf32>, vector<8x256xf32>, vector<8x256xf32>, vector<16x256xf32>, vector<8x256xf32>, vector<8x256xf32>, vector<8x256xf32>, vector<8x256xf32>, vector<16x256xf32> -> vector<160x256xf32>
    %390 = tpu.concatenate %265, %302, %339, %377, %231, %266, %303, %340, %378, %234, %269, %306, %343, %381, %237, %272 in 0 : vector<8x256xf32>, vector<8x256xf32>, vector<8x256xf32>, vector<8x256xf32>, vector<16x256xf32>, vector<8x256xf32>, vector<8x256xf32>, vector<8x256xf32>, vector<8x256xf32>, vector<16x256xf32>, vector<8x256xf32>, vector<8x256xf32>, vector<8x256xf32>, vector<8x256xf32>, vector<16x256xf32>, vector<8x256xf32> -> vector<152x256xf32>
    %391 = tpu.concatenate %309, %346, %384, %238, %273, %310, %347, %385, %241, %276, %313, %350, %388 in 0 : vector<8x256xf32>, vector<8x256xf32>, vector<8x256xf32>, vector<16x256xf32>, vector<8x256xf32>, vector<8x256xf32>, vector<8x256xf32>, vector<8x256xf32>, vector<16x256xf32>, vector<8x256xf32>, vector<8x256xf32>, vector<8x256xf32>, vector<8x256xf32> -> vector<120x256xf32>
    %392 = tpu.concatenate %389, %390, %391 in 0 : vector<160x256xf32>, vector<152x256xf32>, vector<120x256xf32> -> vector<432x256xf32>
    %c1_290 = arith.constant 1 : index
    %c0_291 = arith.constant 0 : index
    %c0_292 = arith.constant 0 : index
    %393 = vector.load %arg6[%c1_290, %c0_291, %c0_292] : memref<3x16x432xf32, #tpu.memory_space<vmem>>, vector<1x16x432xf32>
    %394 = vector.shape_cast %393 : vector<1x16x432xf32> to vector<16x432xf32>
    %cst_293 = arith.constant dense<0.000000e+00> : vector<16x256xf32>
    %395 = tpu.matmul %394, %392, %cst_293 {dimension_numbers = #tpu.dot_dimension_numbers<[1], [0], [0], [1], [0, 0, 1, 1], [], []>} : vector<16x432xf32>, vector<432x256xf32>, vector<16x256xf32> -> vector<16x256xf32>
    %c1_294 = arith.constant 1 : index
    %c0_295 = arith.constant 0 : index
    %c0_296 = arith.constant 0 : index
    %396 = vector.load %arg11[%c1_294, %c0_295, %c0_296] : memref<3x16x1xf32, #tpu.memory_space<vmem>>, vector<1x16x1xf32>
    %397 = vector.shape_cast %396 : vector<1x16x1xf32> to vector<16x1xf32>
    %398 = vector.broadcast %397 : vector<16x1xf32> to vector<16x256xf32>
    %399 = arith.addf %395, %398 : vector<16x256xf32>
    %cst_297 = arith.constant 2.000000e-01 : f32
    %400 = vector.broadcast %cst_297 : f32 to vector<16x256xf32>
    %401 = arith.mulf %399, %400 : vector<16x256xf32>
    %402 = arith.addf %401, %219 : vector<16x256xf32>
    %c0_298 = arith.constant 0 : index
    %c128_299 = arith.constant 128 : index
    %403 = vector.load %arg13[%c0_298, %c128_299] : memref<16x401xf32, #tpu.memory_space<vmem>>, vector<16x256xf32>
    tpu.vector_store %arg13[%c0_298, %c128_299], %402 {strides = array<i32>} : memref<16x401xf32, #tpu.memory_space<vmem>>, vector<16x256xf32>,
    %c0_300 = arith.constant 0 : index
    %c111_301 = arith.constant 111 : index
    %404 = vector.load %arg13[%c0_300, %c111_301] : memref<16x401xf32, #tpu.memory_space<vmem>>, vector<16x256xf32>
    %405 = vector.broadcast %20 : vector<1x256xf32> to vector<16x256xf32>
    %406 = arith.mulf %404, %405 : vector<16x256xf32>
    %c0_302 = arith.constant 0 : index
    %c112_303 = arith.constant 112 : index
    %407 = vector.load %arg13[%c0_302, %c112_303] : memref<16x401xf32, #tpu.memory_space<vmem>>, vector<16x256xf32>
    %c0_304 = arith.constant 0 : index
    %c113_305 = arith.constant 113 : index
    %408 = vector.load %arg13[%c0_304, %c113_305] : memref<16x401xf32, #tpu.memory_space<vmem>>, vector<16x256xf32>
    %409 = vector.broadcast %24 : vector<1x256xf32> to vector<16x256xf32>
    %410 = arith.mulf %408, %409 : vector<16x256xf32>
    %c0_306 = arith.constant 0 : index
    %c127_307 = arith.constant 127 : index
    %411 = vector.load %arg13[%c0_306, %c127_307] : memref<16x401xf32, #tpu.memory_space<vmem>>, vector<16x256xf32>
    %412 = vector.broadcast %20 : vector<1x256xf32> to vector<16x256xf32>
    %413 = arith.mulf %411, %412 : vector<16x256xf32>
    %c0_308 = arith.constant 0 : index
    %c128_309 = arith.constant 128 : index
    %414 = vector.load %arg13[%c0_308, %c128_309] : memref<16x401xf32, #tpu.memory_space<vmem>>, vector<16x256xf32>
    %c0_310 = arith.constant 0 : index
    %c129_311 = arith.constant 129 : index
    %415 = vector.load %arg13[%c0_310, %c129_311] : memref<16x401xf32, #tpu.memory_space<vmem>>, vector<16x256xf32>
    %416 = vector.broadcast %24 : vector<1x256xf32> to vector<16x256xf32>
    %417 = arith.mulf %415, %416 : vector<16x256xf32>
    %c0_312 = arith.constant 0 : index
    %c143_313 = arith.constant 143 : index
    %418 = vector.load %arg13[%c0_312, %c143_313] : memref<16x401xf32, #tpu.memory_space<vmem>>, vector<16x256xf32>
    %419 = vector.broadcast %20 : vector<1x256xf32> to vector<16x256xf32>
    %420 = arith.mulf %418, %419 : vector<16x256xf32>
    %c0_314 = arith.constant 0 : index
    %c144_315 = arith.constant 144 : index
    %421 = vector.load %arg13[%c0_314, %c144_315] : memref<16x401xf32, #tpu.memory_space<vmem>>, vector<16x256xf32>
    %c0_316 = arith.constant 0 : index
    %c145_317 = arith.constant 145 : index
    %422 = vector.load %arg13[%c0_316, %c145_317] : memref<16x401xf32, #tpu.memory_space<vmem>>, vector<16x256xf32>
    %423 = vector.broadcast %24 : vector<1x256xf32> to vector<16x256xf32>
    %424 = arith.mulf %422, %423 : vector<16x256xf32>
    %425 = tpu.concatenate %406, %407, %410, %413, %414, %417, %420, %421, %424 in 0 : vector<16x256xf32>, vector<16x256xf32>, vector<16x256xf32>, vector<16x256xf32>, vector<16x256xf32>, vector<16x256xf32>, vector<16x256xf32>, vector<16x256xf32>, vector<16x256xf32> -> vector<144x256xf32>
    %c2 = arith.constant 2 : index
    %c0_318 = arith.constant 0 : index
    %c0_319 = arith.constant 0 : index
    %426 = vector.load %arg2[%c2, %c0_318, %c0_319] : memref<3x8x144xf32, #tpu.memory_space<vmem>>, vector<1x8x144xf32>
    %427 = vector.shape_cast %426 : vector<1x8x144xf32> to vector<8x144xf32>
    %cst_320 = arith.constant dense<0.000000e+00> : vector<8x256xf32>
    %428 = tpu.matmul %427, %425, %cst_320 {dimension_numbers = #tpu.dot_dimension_numbers<[1], [0], [0], [1], [0, 0, 1, 1], [], []>} : vector<8x144xf32>, vector<144x256xf32>, vector<8x256xf32> -> vector<8x256xf32>
    %c2_321 = arith.constant 2 : index
    %c0_322 = arith.constant 0 : index
    %c0_323 = arith.constant 0 : index
    %429 = vector.load %arg7[%c2_321, %c0_322, %c0_323] : memref<3x8x1xf32, #tpu.memory_space<vmem>>, vector<1x8x1xf32>
    %430 = vector.shape_cast %429 : vector<1x8x1xf32> to vector<8x1xf32>
    %431 = vector.broadcast %430 : vector<8x1xf32> to vector<8x256xf32>
    %432 = arith.addf %428, %431 : vector<8x256xf32>
    %cst_324 = arith.constant 0.000000e+00 : f32
    %433 = vector.broadcast %cst_324 : f32 to vector<8x256xf32>
    %434 = arith.cmpf oge, %432, %433 : vector<8x256xf32>
    %cst_325 = arith.constant 2.000000e-01 : f32
    %435 = vector.broadcast %cst_325 : f32 to vector<8x256xf32>
    %436 = arith.mulf %435, %432 : vector<8x256xf32>
    %437 = arith.select %434, %432, %436 : vector<8x256xi1>, vector<8x256xf32>
    %c0_326 = arith.constant 0 : index
    %c128_327 = arith.constant 128 : index
    %438 = vector.load %arg14[%c0_326, %c128_327] : memref<8x401xf32, #tpu.memory_space<vmem>>, vector<8x256xf32>
    tpu.vector_store %arg14[%c0_326, %c128_327], %437 {strides = array<i32>} : memref<8x401xf32, #tpu.memory_space<vmem>>, vector<8x256xf32>,
    %c0_328 = arith.constant 0 : index
    %c111_329 = arith.constant 111 : index
    %439 = vector.load %arg14[%c0_328, %c111_329] : memref<8x401xf32, #tpu.memory_space<vmem>>, vector<8x256xf32>
    %440 = vector.broadcast %20 : vector<1x256xf32> to vector<8x256xf32>
    %441 = arith.mulf %439, %440 : vector<8x256xf32>
    %c0_330 = arith.constant 0 : index
    %c112_331 = arith.constant 112 : index
    %442 = vector.load %arg14[%c0_330, %c112_331] : memref<8x401xf32, #tpu.memory_space<vmem>>, vector<8x256xf32>
    %c0_332 = arith.constant 0 : index
    %c113_333 = arith.constant 113 : index
    %443 = vector.load %arg14[%c0_332, %c113_333] : memref<8x401xf32, #tpu.memory_space<vmem>>, vector<8x256xf32>
    %444 = vector.broadcast %24 : vector<1x256xf32> to vector<8x256xf32>
    %445 = arith.mulf %443, %444 : vector<8x256xf32>
    %c0_334 = arith.constant 0 : index
    %c127_335 = arith.constant 127 : index
    %446 = vector.load %arg14[%c0_334, %c127_335] : memref<8x401xf32, #tpu.memory_space<vmem>>, vector<8x256xf32>
    %447 = vector.broadcast %20 : vector<1x256xf32> to vector<8x256xf32>
    %448 = arith.mulf %446, %447 : vector<8x256xf32>
    %c0_336 = arith.constant 0 : index
    %c128_337 = arith.constant 128 : index
    %449 = vector.load %arg14[%c0_336, %c128_337] : memref<8x401xf32, #tpu.memory_space<vmem>>, vector<8x256xf32>
    %c0_338 = arith.constant 0 : index
    %c129_339 = arith.constant 129 : index
    %450 = vector.load %arg14[%c0_338, %c129_339] : memref<8x401xf32, #tpu.memory_space<vmem>>, vector<8x256xf32>
    %451 = vector.broadcast %24 : vector<1x256xf32> to vector<8x256xf32>
    %452 = arith.mulf %450, %451 : vector<8x256xf32>
    %c0_340 = arith.constant 0 : index
    %c143_341 = arith.constant 143 : index
    %453 = vector.load %arg14[%c0_340, %c143_341] : memref<8x401xf32, #tpu.memory_space<vmem>>, vector<8x256xf32>
    %454 = vector.broadcast %20 : vector<1x256xf32> to vector<8x256xf32>
    %455 = arith.mulf %453, %454 : vector<8x256xf32>
    %c0_342 = arith.constant 0 : index
    %c144_343 = arith.constant 144 : index
    %456 = vector.load %arg14[%c0_342, %c144_343] : memref<8x401xf32, #tpu.memory_space<vmem>>, vector<8x256xf32>
    %c0_344 = arith.constant 0 : index
    %c145_345 = arith.constant 145 : index
    %457 = vector.load %arg14[%c0_344, %c145_345] : memref<8x401xf32, #tpu.memory_space<vmem>>, vector<8x256xf32>
    %458 = vector.broadcast %24 : vector<1x256xf32> to vector<8x256xf32>
    %459 = arith.mulf %457, %458 : vector<8x256xf32>
    %460 = tpu.concatenate %406, %441, %407, %442, %410, %445, %413, %448, %414, %449, %417, %452, %420, %455, %421, %456 in 0 : vector<16x256xf32>, vector<8x256xf32>, vector<16x256xf32>, vector<8x256xf32>, vector<16x256xf32>, vector<8x256xf32>, vector<16x256xf32>, vector<8x256xf32>, vector<16x256xf32>, vector<8x256xf32>, vector<16x256xf32>, vector<8x256xf32>, vector<16x256xf32>, vector<8x256xf32>, vector<16x256xf32>, vector<8x256xf32> -> vector<192x256xf32>
    %461 = tpu.concatenate %424, %459 in 0 : vector<16x256xf32>, vector<8x256xf32> -> vector<24x256xf32>
    %462 = tpu.concatenate %460, %461 in 0 : vector<192x256xf32>, vector<24x256xf32> -> vector<216x256xf32>
    %c2_346 = arith.constant 2 : index
    %c0_347 = arith.constant 0 : index
    %c0_348 = arith.constant 0 : index
    %463 = vector.load %arg3[%c2_346, %c0_347, %c0_348] : memref<3x8x216xf32, #tpu.memory_space<vmem>>, vector<1x8x216xf32>
    %464 = vector.shape_cast %463 : vector<1x8x216xf32> to vector<8x216xf32>
    %cst_349 = arith.constant dense<0.000000e+00> : vector<8x256xf32>
    %465 = tpu.matmul %464, %462, %cst_349 {dimension_numbers = #tpu.dot_dimension_numbers<[1], [0], [0], [1], [0, 0, 1, 1], [], []>} : vector<8x216xf32>, vector<216x256xf32>, vector<8x256xf32> -> vector<8x256xf32>
    %c2_350 = arith.constant 2 : index
    %c0_351 = arith.constant 0 : index
    %c0_352 = arith.constant 0 : index
    %466 = vector.load %arg8[%c2_350, %c0_351, %c0_352] : memref<3x8x1xf32, #tpu.memory_space<vmem>>, vector<1x8x1xf32>
    %467 = vector.shape_cast %466 : vector<1x8x1xf32> to vector<8x1xf32>
    %468 = vector.broadcast %467 : vector<8x1xf32> to vector<8x256xf32>
    %469 = arith.addf %465, %468 : vector<8x256xf32>
    %cst_353 = arith.constant 0.000000e+00 : f32
    %470 = vector.broadcast %cst_353 : f32 to vector<8x256xf32>
    %471 = arith.cmpf oge, %469, %470 : vector<8x256xf32>
    %cst_354 = arith.constant 2.000000e-01 : f32
    %472 = vector.broadcast %cst_354 : f32 to vector<8x256xf32>
    %473 = arith.mulf %472, %469 : vector<8x256xf32>
    %474 = arith.select %471, %469, %473 : vector<8x256xi1>, vector<8x256xf32>
    %c0_355 = arith.constant 0 : index
    %c128_356 = arith.constant 128 : index
    %475 = vector.load %arg15[%c0_355, %c128_356] : memref<8x401xf32, #tpu.memory_space<vmem>>, vector<8x256xf32>
    tpu.vector_store %arg15[%c0_355, %c128_356], %474 {strides = array<i32>} : memref<8x401xf32, #tpu.memory_space<vmem>>, vector<8x256xf32>,
    %c0_357 = arith.constant 0 : index
    %c111_358 = arith.constant 111 : index
    %476 = vector.load %arg15[%c0_357, %c111_358] : memref<8x401xf32, #tpu.memory_space<vmem>>, vector<8x256xf32>
    %477 = vector.broadcast %20 : vector<1x256xf32> to vector<8x256xf32>
    %478 = arith.mulf %476, %477 : vector<8x256xf32>
    %c0_359 = arith.constant 0 : index
    %c112_360 = arith.constant 112 : index
    %479 = vector.load %arg15[%c0_359, %c112_360] : memref<8x401xf32, #tpu.memory_space<vmem>>, vector<8x256xf32>
    %c0_361 = arith.constant 0 : index
    %c113_362 = arith.constant 113 : index
    %480 = vector.load %arg15[%c0_361, %c113_362] : memref<8x401xf32, #tpu.memory_space<vmem>>, vector<8x256xf32>
    %481 = vector.broadcast %24 : vector<1x256xf32> to vector<8x256xf32>
    %482 = arith.mulf %480, %481 : vector<8x256xf32>
    %c0_363 = arith.constant 0 : index
    %c127_364 = arith.constant 127 : index
    %483 = vector.load %arg15[%c0_363, %c127_364] : memref<8x401xf32, #tpu.memory_space<vmem>>, vector<8x256xf32>
    %484 = vector.broadcast %20 : vector<1x256xf32> to vector<8x256xf32>
    %485 = arith.mulf %483, %484 : vector<8x256xf32>
    %c0_365 = arith.constant 0 : index
    %c128_366 = arith.constant 128 : index
    %486 = vector.load %arg15[%c0_365, %c128_366] : memref<8x401xf32, #tpu.memory_space<vmem>>, vector<8x256xf32>
    %c0_367 = arith.constant 0 : index
    %c129_368 = arith.constant 129 : index
    %487 = vector.load %arg15[%c0_367, %c129_368] : memref<8x401xf32, #tpu.memory_space<vmem>>, vector<8x256xf32>
    %488 = vector.broadcast %24 : vector<1x256xf32> to vector<8x256xf32>
    %489 = arith.mulf %487, %488 : vector<8x256xf32>
    %c0_369 = arith.constant 0 : index
    %c143_370 = arith.constant 143 : index
    %490 = vector.load %arg15[%c0_369, %c143_370] : memref<8x401xf32, #tpu.memory_space<vmem>>, vector<8x256xf32>
    %491 = vector.broadcast %20 : vector<1x256xf32> to vector<8x256xf32>
    %492 = arith.mulf %490, %491 : vector<8x256xf32>
    %c0_371 = arith.constant 0 : index
    %c144_372 = arith.constant 144 : index
    %493 = vector.load %arg15[%c0_371, %c144_372] : memref<8x401xf32, #tpu.memory_space<vmem>>, vector<8x256xf32>
    %c0_373 = arith.constant 0 : index
    %c145_374 = arith.constant 145 : index
    %494 = vector.load %arg15[%c0_373, %c145_374] : memref<8x401xf32, #tpu.memory_space<vmem>>, vector<8x256xf32>
    %495 = vector.broadcast %24 : vector<1x256xf32> to vector<8x256xf32>
    %496 = arith.mulf %494, %495 : vector<8x256xf32>
    %497 = tpu.concatenate %406, %441, %478, %407, %442, %479, %410, %445, %482, %413, %448, %485, %414, %449, %486, %417 in 0 : vector<16x256xf32>, vector<8x256xf32>, vector<8x256xf32>, vector<16x256xf32>, vector<8x256xf32>, vector<8x256xf32>, vector<16x256xf32>, vector<8x256xf32>, vector<8x256xf32>, vector<16x256xf32>, vector<8x256xf32>, vector<8x256xf32>, vector<16x256xf32>, vector<8x256xf32>, vector<8x256xf32>, vector<16x256xf32> -> vector<176x256xf32>
    %498 = tpu.concatenate %452, %489, %420, %455, %492, %421, %456, %493, %424, %459, %496 in 0 : vector<8x256xf32>, vector<8x256xf32>, vector<16x256xf32>, vector<8x256xf32>, vector<8x256xf32>, vector<16x256xf32>, vector<8x256xf32>, vector<8x256xf32>, vector<16x256xf32>, vector<8x256xf32>, vector<8x256xf32> -> vector<112x256xf32>
    %499 = tpu.concatenate %497, %498 in 0 : vector<176x256xf32>, vector<112x256xf32> -> vector<288x256xf32>
    %c2_375 = arith.constant 2 : index
    %c0_376 = arith.constant 0 : index
    %c0_377 = arith.constant 0 : index
    %500 = vector.load %arg4[%c2_375, %c0_376, %c0_377] : memref<3x8x288xf32, #tpu.memory_space<vmem>>, vector<1x8x288xf32>
    %501 = vector.shape_cast %500 : vector<1x8x288xf32> to vector<8x288xf32>
    %cst_378 = arith.constant dense<0.000000e+00> : vector<8x256xf32>
    %502 = tpu.matmul %501, %499, %cst_378 {dimension_numbers = #tpu.dot_dimension_numbers<[1], [0], [0], [1], [0, 0, 1, 1], [], []>} : vector<8x288xf32>, vector<288x256xf32>, vector<8x256xf32> -> vector<8x256xf32>
    %c2_379 = arith.constant 2 : index
    %c0_380 = arith.constant 0 : index
    %c0_381 = arith.constant 0 : index
    %503 = vector.load %arg9[%c2_379, %c0_380, %c0_381] : memref<3x8x1xf32, #tpu.memory_space<vmem>>, vector<1x8x1xf32>
    %504 = vector.shape_cast %503 : vector<1x8x1xf32> to vector<8x1xf32>
    %505 = vector.broadcast %504 : vector<8x1xf32> to vector<8x256xf32>
    %506 = arith.addf %502, %505 : vector<8x256xf32>
    %cst_382 = arith.constant 0.000000e+00 : f32
    %507 = vector.broadcast %cst_382 : f32 to vector<8x256xf32>
    %508 = arith.cmpf oge, %506, %507 : vector<8x256xf32>
    %cst_383 = arith.constant 2.000000e-01 : f32
    %509 = vector.broadcast %cst_383 : f32 to vector<8x256xf32>
    %510 = arith.mulf %509, %506 : vector<8x256xf32>
    %511 = arith.select %508, %506, %510 : vector<8x256xi1>, vector<8x256xf32>
    %c0_384 = arith.constant 0 : index
    %c128_385 = arith.constant 128 : index
    %512 = vector.load %arg16[%c0_384, %c128_385] : memref<8x401xf32, #tpu.memory_space<vmem>>, vector<8x256xf32>
    tpu.vector_store %arg16[%c0_384, %c128_385], %511 {strides = array<i32>} : memref<8x401xf32, #tpu.memory_space<vmem>>, vector<8x256xf32>,
    %c0_386 = arith.constant 0 : index
    %c111_387 = arith.constant 111 : index
    %513 = vector.load %arg16[%c0_386, %c111_387] : memref<8x401xf32, #tpu.memory_space<vmem>>, vector<8x256xf32>
    %514 = vector.broadcast %20 : vector<1x256xf32> to vector<8x256xf32>
    %515 = arith.mulf %513, %514 : vector<8x256xf32>
    %c0_388 = arith.constant 0 : index
    %c112_389 = arith.constant 112 : index
    %516 = vector.load %arg16[%c0_388, %c112_389] : memref<8x401xf32, #tpu.memory_space<vmem>>, vector<8x256xf32>
    %c0_390 = arith.constant 0 : index
    %c113_391 = arith.constant 113 : index
    %517 = vector.load %arg16[%c0_390, %c113_391] : memref<8x401xf32, #tpu.memory_space<vmem>>, vector<8x256xf32>
    %518 = vector.broadcast %24 : vector<1x256xf32> to vector<8x256xf32>
    %519 = arith.mulf %517, %518 : vector<8x256xf32>
    %c0_392 = arith.constant 0 : index
    %c127_393 = arith.constant 127 : index
    %520 = vector.load %arg16[%c0_392, %c127_393] : memref<8x401xf32, #tpu.memory_space<vmem>>, vector<8x256xf32>
    %521 = vector.broadcast %20 : vector<1x256xf32> to vector<8x256xf32>
    %522 = arith.mulf %520, %521 : vector<8x256xf32>
    %c0_394 = arith.constant 0 : index
    %c128_395 = arith.constant 128 : index
    %523 = vector.load %arg16[%c0_394, %c128_395] : memref<8x401xf32, #tpu.memory_space<vmem>>, vector<8x256xf32>
    %c0_396 = arith.constant 0 : index
    %c129_397 = arith.constant 129 : index
    %524 = vector.load %arg16[%c0_396, %c129_397] : memref<8x401xf32, #tpu.memory_space<vmem>>, vector<8x256xf32>
    %525 = vector.broadcast %24 : vector<1x256xf32> to vector<8x256xf32>
    %526 = arith.mulf %524, %525 : vector<8x256xf32>
    %c0_398 = arith.constant 0 : index
    %c143_399 = arith.constant 143 : index
    %527 = vector.load %arg16[%c0_398, %c143_399] : memref<8x401xf32, #tpu.memory_space<vmem>>, vector<8x256xf32>
    %528 = vector.broadcast %20 : vector<1x256xf32> to vector<8x256xf32>
    %529 = arith.mulf %527, %528 : vector<8x256xf32>
    %c0_400 = arith.constant 0 : index
    %c144_401 = arith.constant 144 : index
    %530 = vector.load %arg16[%c0_400, %c144_401] : memref<8x401xf32, #tpu.memory_space<vmem>>, vector<8x256xf32>
    %c0_402 = arith.constant 0 : index
    %c145_403 = arith.constant 145 : index
    %531 = vector.load %arg16[%c0_402, %c145_403] : memref<8x401xf32, #tpu.memory_space<vmem>>, vector<8x256xf32>
    %532 = vector.broadcast %24 : vector<1x256xf32> to vector<8x256xf32>
    %533 = arith.mulf %531, %532 : vector<8x256xf32>
    %534 = tpu.concatenate %406, %441, %478, %515, %407, %442, %479, %516, %410, %445, %482, %519, %413, %448, %485, %522 in 0 : vector<16x256xf32>, vector<8x256xf32>, vector<8x256xf32>, vector<8x256xf32>, vector<16x256xf32>, vector<8x256xf32>, vector<8x256xf32>, vector<8x256xf32>, vector<16x256xf32>, vector<8x256xf32>, vector<8x256xf32>, vector<8x256xf32>, vector<16x256xf32>, vector<8x256xf32>, vector<8x256xf32>, vector<8x256xf32> -> vector<160x256xf32>
    %535 = tpu.concatenate %414, %449, %486, %523, %417, %452, %489, %526, %420, %455, %492, %529, %421, %456, %493, %530 in 0 : vector<16x256xf32>, vector<8x256xf32>, vector<8x256xf32>, vector<8x256xf32>, vector<16x256xf32>, vector<8x256xf32>, vector<8x256xf32>, vector<8x256xf32>, vector<16x256xf32>, vector<8x256xf32>, vector<8x256xf32>, vector<8x256xf32>, vector<16x256xf32>, vector<8x256xf32>, vector<8x256xf32>, vector<8x256xf32> -> vector<160x256xf32>
    %536 = tpu.concatenate %424, %459, %496, %533 in 0 : vector<16x256xf32>, vector<8x256xf32>, vector<8x256xf32>, vector<8x256xf32> -> vector<40x256xf32>
    %537 = tpu.concatenate %534, %535, %536 in 0 : vector<160x256xf32>, vector<160x256xf32>, vector<40x256xf32> -> vector<360x256xf32>
    %c2_404 = arith.constant 2 : index
    %c0_405 = arith.constant 0 : index
    %c0_406 = arith.constant 0 : index
    %538 = vector.load %arg5[%c2_404, %c0_405, %c0_406] : memref<3x8x360xf32, #tpu.memory_space<vmem>>, vector<1x8x360xf32>
    %539 = vector.shape_cast %538 : vector<1x8x360xf32> to vector<8x360xf32>
    %cst_407 = arith.constant dense<0.000000e+00> : vector<8x256xf32>
    %540 = tpu.matmul %539, %537, %cst_407 {dimension_numbers = #tpu.dot_dimension_numbers<[1], [0], [0], [1], [0, 0, 1, 1], [], []>} : vector<8x360xf32>, vector<360x256xf32>, vector<8x256xf32> -> vector<8x256xf32>
    %c2_408 = arith.constant 2 : index
    %c0_409 = arith.constant 0 : index
    %c0_410 = arith.constant 0 : index
    %541 = vector.load %arg10[%c2_408, %c0_409, %c0_410] : memref<3x8x1xf32, #tpu.memory_space<vmem>>, vector<1x8x1xf32>
    %542 = vector.shape_cast %541 : vector<1x8x1xf32> to vector<8x1xf32>
    %543 = vector.broadcast %542 : vector<8x1xf32> to vector<8x256xf32>
    %544 = arith.addf %540, %543 : vector<8x256xf32>
    %cst_411 = arith.constant 0.000000e+00 : f32
    %545 = vector.broadcast %cst_411 : f32 to vector<8x256xf32>
    %546 = arith.cmpf oge, %544, %545 : vector<8x256xf32>
    %cst_412 = arith.constant 2.000000e-01 : f32
    %547 = vector.broadcast %cst_412 : f32 to vector<8x256xf32>
    %548 = arith.mulf %547, %544 : vector<8x256xf32>
    %549 = arith.select %546, %544, %548 : vector<8x256xi1>, vector<8x256xf32>
    %c0_413 = arith.constant 0 : index
    %c128_414 = arith.constant 128 : index
    %550 = vector.load %arg17[%c0_413, %c128_414] : memref<8x401xf32, #tpu.memory_space<vmem>>, vector<8x256xf32>
    tpu.vector_store %arg17[%c0_413, %c128_414], %549 {strides = array<i32>} : memref<8x401xf32, #tpu.memory_space<vmem>>, vector<8x256xf32>,
    %c0_415 = arith.constant 0 : index
    %c111_416 = arith.constant 111 : index
    %551 = vector.load %arg17[%c0_415, %c111_416] : memref<8x401xf32, #tpu.memory_space<vmem>>, vector<8x256xf32>
    %552 = vector.broadcast %20 : vector<1x256xf32> to vector<8x256xf32>
    %553 = arith.mulf %551, %552 : vector<8x256xf32>
    %c0_417 = arith.constant 0 : index
    %c112_418 = arith.constant 112 : index
    %554 = vector.load %arg17[%c0_417, %c112_418] : memref<8x401xf32, #tpu.memory_space<vmem>>, vector<8x256xf32>
    %c0_419 = arith.constant 0 : index
    %c113_420 = arith.constant 113 : index
    %555 = vector.load %arg17[%c0_419, %c113_420] : memref<8x401xf32, #tpu.memory_space<vmem>>, vector<8x256xf32>
    %556 = vector.broadcast %24 : vector<1x256xf32> to vector<8x256xf32>
    %557 = arith.mulf %555, %556 : vector<8x256xf32>
    %c0_421 = arith.constant 0 : index
    %c127_422 = arith.constant 127 : index
    %558 = vector.load %arg17[%c0_421, %c127_422] : memref<8x401xf32, #tpu.memory_space<vmem>>, vector<8x256xf32>
    %559 = vector.broadcast %20 : vector<1x256xf32> to vector<8x256xf32>
    %560 = arith.mulf %558, %559 : vector<8x256xf32>
    %c0_423 = arith.constant 0 : index
    %c128_424 = arith.constant 128 : index
    %561 = vector.load %arg17[%c0_423, %c128_424] : memref<8x401xf32, #tpu.memory_space<vmem>>, vector<8x256xf32>
    %c0_425 = arith.constant 0 : index
    %c129_426 = arith.constant 129 : index
    %562 = vector.load %arg17[%c0_425, %c129_426] : memref<8x401xf32, #tpu.memory_space<vmem>>, vector<8x256xf32>
    %563 = vector.broadcast %24 : vector<1x256xf32> to vector<8x256xf32>
    %564 = arith.mulf %562, %563 : vector<8x256xf32>
    %c0_427 = arith.constant 0 : index
    %c143_428 = arith.constant 143 : index
    %565 = vector.load %arg17[%c0_427, %c143_428] : memref<8x401xf32, #tpu.memory_space<vmem>>, vector<8x256xf32>
    %566 = vector.broadcast %20 : vector<1x256xf32> to vector<8x256xf32>
    %567 = arith.mulf %565, %566 : vector<8x256xf32>
    %c0_429 = arith.constant 0 : index
    %c144_430 = arith.constant 144 : index
    %568 = vector.load %arg17[%c0_429, %c144_430] : memref<8x401xf32, #tpu.memory_space<vmem>>, vector<8x256xf32>
    %c0_431 = arith.constant 0 : index
    %c145_432 = arith.constant 145 : index
    %569 = vector.load %arg17[%c0_431, %c145_432] : memref<8x401xf32, #tpu.memory_space<vmem>>, vector<8x256xf32>
    %570 = vector.broadcast %24 : vector<1x256xf32> to vector<8x256xf32>
    %571 = arith.mulf %569, %570 : vector<8x256xf32>
    %572 = tpu.concatenate %406, %441, %478, %515, %553, %407, %442, %479, %516, %554, %410, %445, %482, %519, %557, %413 in 0 : vector<16x256xf32>, vector<8x256xf32>, vector<8x256xf32>, vector<8x256xf32>, vector<8x256xf32>, vector<16x256xf32>, vector<8x256xf32>, vector<8x256xf32>, vector<8x256xf32>, vector<8x256xf32>, vector<16x256xf32>, vector<8x256xf32>, vector<8x256xf32>, vector<8x256xf32>, vector<8x256xf32>, vector<16x256xf32> -> vector<160x256xf32>
    %573 = tpu.concatenate %448, %485, %522, %560, %414, %449, %486, %523, %561, %417, %452, %489, %526, %564, %420, %455 in 0 : vector<8x256xf32>, vector<8x256xf32>, vector<8x256xf32>, vector<8x256xf32>, vector<16x256xf32>, vector<8x256xf32>, vector<8x256xf32>, vector<8x256xf32>, vector<8x256xf32>, vector<16x256xf32>, vector<8x256xf32>, vector<8x256xf32>, vector<8x256xf32>, vector<8x256xf32>, vector<16x256xf32>, vector<8x256xf32> -> vector<152x256xf32>
    %574 = tpu.concatenate %492, %529, %567, %421, %456, %493, %530, %568, %424, %459, %496, %533, %571 in 0 : vector<8x256xf32>, vector<8x256xf32>, vector<8x256xf32>, vector<16x256xf32>, vector<8x256xf32>, vector<8x256xf32>, vector<8x256xf32>, vector<8x256xf32>, vector<16x256xf32>, vector<8x256xf32>, vector<8x256xf32>, vector<8x256xf32>, vector<8x256xf32> -> vector<120x256xf32>
    %575 = tpu.concatenate %572, %573, %574 in 0 : vector<160x256xf32>, vector<152x256xf32>, vector<120x256xf32> -> vector<432x256xf32>
    %c2_433 = arith.constant 2 : index
    %c0_434 = arith.constant 0 : index
    %c0_435 = arith.constant 0 : index
    %576 = vector.load %arg6[%c2_433, %c0_434, %c0_435] : memref<3x16x432xf32, #tpu.memory_space<vmem>>, vector<1x16x432xf32>
    %577 = vector.shape_cast %576 : vector<1x16x432xf32> to vector<16x432xf32>
    %cst_436 = arith.constant dense<0.000000e+00> : vector<16x256xf32>
    %578 = tpu.matmul %577, %575, %cst_436 {dimension_numbers = #tpu.dot_dimension_numbers<[1], [0], [0], [1], [0, 0, 1, 1], [], []>} : vector<16x432xf32>, vector<432x256xf32>, vector<16x256xf32> -> vector<16x256xf32>
    %c2_437 = arith.constant 2 : index
    %c0_438 = arith.constant 0 : index
    %c0_439 = arith.constant 0 : index
    %579 = vector.load %arg11[%c2_437, %c0_438, %c0_439] : memref<3x16x1xf32, #tpu.memory_space<vmem>>, vector<1x16x1xf32>
    %580 = vector.shape_cast %579 : vector<1x16x1xf32> to vector<16x1xf32>
    %581 = vector.broadcast %580 : vector<16x1xf32> to vector<16x256xf32>
    %582 = arith.addf %578, %581 : vector<16x256xf32>
    %cst_440 = arith.constant 2.000000e-01 : f32
    %583 = vector.broadcast %cst_440 : f32 to vector<16x256xf32>
    %584 = arith.mulf %582, %583 : vector<16x256xf32>
    %585 = arith.addf %584, %402 : vector<16x256xf32>
    %cst_441 = arith.constant 2.000000e-01 : f32
    %586 = vector.broadcast %cst_441 : f32 to vector<16x256xf32>
    %587 = arith.mulf %585, %586 : vector<16x256xf32>
    %588 = arith.addf %587, %36 : vector<16x256xf32>
    %c0_442 = arith.constant 0 : index
    %c0_443 = arith.constant 0 : index
    %c0_444 = arith.constant 0 : index
    %589 = vector.load %arg12[%c0_442, %c0_443, %c0_444] : memref<1x16x256xf32, #tpu.memory_space<vmem>>, vector<1x16x256xf32>
    %590 = vector.shape_cast %589 : vector<1x16x256xf32> to vector<16x256xf32>
    %591 = vector.shape_cast %588 : vector<16x256xf32> to vector<1x16x256xf32>
    tpu.vector_store %arg12[%c0_442, %c0_443, %c0_444], %591 {strides = array<i32>} : memref<1x16x256xf32, #tpu.memory_space<vmem>>, vector<1x16x256xf32>,
    return
  }
  func.func @transform_0(%arg0: i32) -> (i32, i32, i32) {
    %c0_i32 = arith.constant 0 : i32
    %c0_i32_0 = arith.constant 0 : i32
    %c0_i32_1 = arith.constant 0 : i32
    return %arg0, %c0_i32, %c0_i32_0 : i32, i32, i32
  }
  func.func @transform_1(%arg0: i32) -> (i32, i32, i32) {
    %c0_i32 = arith.constant 0 : i32
    %c0_i32_0 = arith.constant 0 : i32
    %c0_i32_1 = arith.constant 0 : i32
    %c0_i32_2 = arith.constant 0 : i32
    return %c0_i32, %c0_i32_0, %c0_i32_1 : i32, i32, i32
  }
  func.func @transform_2(%arg0: i32) -> (i32, i32, i32) {
    %c0_i32 = arith.constant 0 : i32
    %c0_i32_0 = arith.constant 0 : i32
    %c0_i32_1 = arith.constant 0 : i32
    %c0_i32_2 = arith.constant 0 : i32
    return %c0_i32, %c0_i32_0, %c0_i32_1 : i32, i32, i32
  }
  func.func @transform_3(%arg0: i32) -> (i32, i32, i32) {
    %c0_i32 = arith.constant 0 : i32
    %c0_i32_0 = arith.constant 0 : i32
    %c0_i32_1 = arith.constant 0 : i32
    %c0_i32_2 = arith.constant 0 : i32
    return %c0_i32, %c0_i32_0, %c0_i32_1 : i32, i32, i32
  }
  func.func @transform_4(%arg0: i32) -> (i32, i32, i32) {
    %c0_i32 = arith.constant 0 : i32
    %c0_i32_0 = arith.constant 0 : i32
    %c0_i32_1 = arith.constant 0 : i32
    %c0_i32_2 = arith.constant 0 : i32
    return %c0_i32, %c0_i32_0, %c0_i32_1 : i32, i32, i32
  }
  func.func @transform_5(%arg0: i32) -> (i32, i32, i32) {
    %c0_i32 = arith.constant 0 : i32
    %c0_i32_0 = arith.constant 0 : i32
    %c0_i32_1 = arith.constant 0 : i32
    %c0_i32_2 = arith.constant 0 : i32
    return %c0_i32, %c0_i32_0, %c0_i32_1 : i32, i32, i32
  }
  func.func @transform_6(%arg0: i32) -> (i32, i32, i32) {
    %c0_i32 = arith.constant 0 : i32
    %c0_i32_0 = arith.constant 0 : i32
    %c0_i32_1 = arith.constant 0 : i32
    %c0_i32_2 = arith.constant 0 : i32
    return %c0_i32, %c0_i32_0, %c0_i32_1 : i32, i32, i32
  }
  func.func @transform_7(%arg0: i32) -> (i32, i32, i32) {
    %c0_i32 = arith.constant 0 : i32
    %c0_i32_0 = arith.constant 0 : i32
    %c0_i32_1 = arith.constant 0 : i32
    %c0_i32_2 = arith.constant 0 : i32
    return %c0_i32, %c0_i32_0, %c0_i32_1 : i32, i32, i32
  }
  func.func @transform_8(%arg0: i32) -> (i32, i32, i32) {
    %c0_i32 = arith.constant 0 : i32
    %c0_i32_0 = arith.constant 0 : i32
    %c0_i32_1 = arith.constant 0 : i32
    %c0_i32_2 = arith.constant 0 : i32
    return %c0_i32, %c0_i32_0, %c0_i32_1 : i32, i32, i32
  }
  func.func @transform_9(%arg0: i32) -> (i32, i32, i32) {
    %c0_i32 = arith.constant 0 : i32
    %c0_i32_0 = arith.constant 0 : i32
    %c0_i32_1 = arith.constant 0 : i32
    %c0_i32_2 = arith.constant 0 : i32
    return %c0_i32, %c0_i32_0, %c0_i32_1 : i32, i32, i32
  }
  func.func @transform_10(%arg0: i32) -> (i32, i32, i32) {
    %c0_i32 = arith.constant 0 : i32
    %c0_i32_0 = arith.constant 0 : i32
    %c0_i32_1 = arith.constant 0 : i32
    %c0_i32_2 = arith.constant 0 : i32
    return %c0_i32, %c0_i32_0, %c0_i32_1 : i32, i32, i32
  }
  func.func @transform_11(%arg0: i32) -> (i32, i32, i32) {
    %c0_i32 = arith.constant 0 : i32
    %c0_i32_0 = arith.constant 0 : i32
    %c0_i32_1 = arith.constant 0 : i32
    return %arg0, %c0_i32, %c0_i32_0 : i32, i32, i32
  }
}

</mosaic_0001>

<llo_original>
// kernel: rrdb_forward.1
$region0: #{rrdb_forward.1}
  #allocation0 [shape = 'u32[]', space=smem, size = 0x4, offset = 0x4, fixed_abs, tag = 'smem constant byte address 0x4 - core index']
  #allocation1 [shape = 'u32[144,128]{1,0:T(1,128)}', space=vmem, size = 0x12000, scoped, tag = 'internal scratch']
  #allocation2 [shape = 'f32[16,401]{1,0:T(8,128)}', space=vmem, size = 0x8000, scoped, tag = 'scratch operand']
  #allocation3 [shape = 'f32[8,401]{1,0:T(8,128)}', space=vmem, size = 0x4000, scoped, tag = 'scratch operand']
  #allocation4 [shape = 'f32[8,401]{1,0:T(8,128)}', space=vmem, size = 0x4000, scoped, tag = 'scratch operand']
  #allocation5 [shape = 'f32[8,401]{1,0:T(8,128)}', space=vmem, size = 0x4000, scoped, tag = 'scratch operand']
  #allocation6 [shape = 'f32[8,401]{1,0:T(8,128)}', space=vmem, size = 0x4000, scoped, tag = 'scratch operand']
  %s0 = inlined_call_operand.vmem [shape: f32[2,16,256], index: 0, kind: input, shape index: {}]
  %s1 = inlined_call_operand.vmem [shape: f32[3,8,144], index: 1, kind: input, shape index: {}]
  %s2 = inlined_call_operand.vmem [shape: f32[3,8,216], index: 2, kind: input, shape index: {}]
  %s3 = inlined_call_operand.vmem [shape: f32[3,8,288], index: 3, kind: input, shape index: {}]
  %s4 = inlined_call_operand.vmem [shape: f32[3,8,360], index: 4, kind: input, shape index: {}]
  %s5 = inlined_call_operand.vmem [shape: f32[3,16,432], index: 5, kind: input, shape index: {}]
  %s6 = inlined_call_operand.vmem [shape: f32[3,8,1], index: 6, kind: input, shape index: {}]
  %s7 = inlined_call_operand.vmem [shape: f32[3,8,1], index: 7, kind: input, shape index: {}]
  %s8 = inlined_call_operand.vmem [shape: f32[3,8,1], index: 8, kind: input, shape index: {}]
  %s9 = inlined_call_operand.vmem [shape: f32[3,8,1], index: 9, kind: input, shape index: {}]
  %s10 = inlined_call_operand.vmem [shape: f32[3,16,1], index: 10, kind: input, shape index: {}]
  %s11 = inlined_call_operand.vmem [shape: f32[2,16,256], index: 11, kind: output, shape index: {}]
  %s12 = sld [smem:[#allocation0]]
  $region77: #{rrdb_forward.1} parent=0
    _
  %s14 = ssub.s32 1, %s12
  %s15 = scalar_select 0, %s14, %s12
  loop: start=0, step=1, limit=4
  $region2: #{rrdb_forward.1} parent=0 // loop_pre_header
    _
  $region3: #{rrdb_forward.1} parent=0 // loop_header
    %s17 = sphi 0, %s21
    %p18 = scmp.ge.s32.totalorder %s17, 4
    %s27 = sphi 0, %s29
    %s30 = sphi 0, %s27
    %s31 = sphi 0, %s30
    %s47 = sphi 0, %s31
    %s51 = sphi 0, %s51
    %s53 = sphi 0, %s51
    %s54 = sphi 0, %s53
    %s68 = sphi 0, %s54
    %s72 = sphi 0, %s72
    %s74 = sphi 0, %s72
    %s75 = sphi 0, %s74
    %s89 = sphi 0, %s75
    %s93 = sphi 0, %s93
    %s95 = sphi 0, %s93
    %s96 = sphi 0, %s95
    %s110 = sphi 0, %s96
    %s114 = sphi 0, %s114
    %s116 = sphi 0, %s114
    %s117 = sphi 0, %s116
    %s131 = sphi 0, %s117
    %s135 = sphi 0, %s135
    %s137 = sphi 0, %s135
    %s138 = sphi 0, %s137
    %s152 = sphi 0, %s138
    %s156 = sphi 0, %s156
    %s158 = sphi 0, %s156
    %s159 = sphi 0, %s158
    %s173 = sphi 0, %s159
    %s177 = sphi 0, %s177
    %s179 = sphi 0, %s177
    %s180 = sphi 0, %s179
    %s194 = sphi 0, %s180
    %s198 = sphi 0, %s198
    %s200 = sphi 0, %s198
    %s201 = sphi 0, %s200
    %s215 = sphi 0, %s201
    %s219 = sphi 0, %s219
    %s221 = sphi 0, %s219
    %s222 = sphi 0, %s221
    %s236 = sphi 0, %s222
    %s240 = sphi 0, %s240
    %s242 = sphi 0, %s240
    %s243 = sphi 0, %s242
    %s257 = sphi 0, %s243
    %s263 = sphi 0, %s265
    %s266 = sphi 0, %s263
    %s267 = sphi 0, %s266
    %s283 = sphi 0, %s267
  $region4: #{rrdb_forward.1} parent=0 // loop_header_branch
    %20 = sbr.rel (%p18) target = $region8
  $region5: #{rrdb_forward.1} parent=0 // loop_body
    %s22 = ssub.s32 %s17, 1
    %s23 = ssub.s32 %s17, 2
    %s24 = sadd.s32 %s17, 1
    %s25 = ssub.s32 %s17, %s24
    %p26 = scmp.eq.s32.totalorder %s25, 0
    %s28 = sadd.s32 %s27, 1
    %s29 = scalar_select %p26, %s27, %s28
    %p32 = pneg %p26
    %p33 = scmp.eq.s32.totalorder %s17, 1
    %p34 = por %p32, %p33
    %p35 = scmp.ne.s32.totalorder %s27, %s30
    %p36 = scmp.eq.s32.totalorder %s17, 0
    %p37 = por %p35, %p36
    %p38 = scmp.ne.s32.totalorder %s27, %s30
    %p39 = scmp.eq.s32.totalorder %s22, 1
    %p40 = por %p38, %p39
    %p41 = scmp.ne.s32.totalorder %s30, %s31
    %p42 = scmp.eq.s32.totalorder %s22, 0
    %p43 = por %p41, %p42
    %p44 = scmp.ne.s32.totalorder %s30, %s31
    %p45 = scmp.eq.s32.totalorder %s23, 1
    %p46 = por %p44, %p45
    %p48 = scmp.ne.s32.totalorder %s31, %s47
    %p49 = scmp.eq.s32.totalorder %s23, 0
    %p50 = por %p48, %p49
    %s52 = sadd.s32 %s51, 1
    %p55 = scmp.eq.s32.totalorder %s17, 1
    %p56 = scmp.ne.s32.totalorder %s51, %s53
    %p57 = scmp.eq.s32.totalorder %s17, 0
    %p58 = por %p56, %p57
    %p59 = scmp.ne.s32.totalorder %s51, %s53
    %p60 = scmp.eq.s32.totalorder %s22, 1
    %p61 = por %p59, %p60
    %p62 = scmp.ne.s32.totalorder %s53, %s54
    %p63 = scmp.eq.s32.totalorder %s22, 0
    %p64 = por %p62, %p63
    %p65 = scmp.ne.s32.totalorder %s53, %s54
    %p66 = scmp.eq.s32.totalorder %s23, 1
    %p67 = por %p65, %p66
    %p69 = scmp.ne.s32.totalorder %s54, %s68
    %p70 = scmp.eq.s32.totalorder %s23, 0
    %p71 = por %p69, %p70
    %s73 = sadd.s32 %s72, 1
    %p76 = scmp.eq.s32.totalorder %s17, 1
    %p77 = scmp.ne.s32.totalorder %s72, %s74
    %p78 = scmp.eq.s32.totalorder %s17, 0
    %p79 = por %p77, %p78
    %p80 = scmp.ne.s32.totalorder %s72, %s74
    %p81 = scmp.eq.s32.totalorder %s22, 1
    %p82 = por %p80, %p81
    %p83 = scmp.ne.s32.totalorder %s74, %s75
    %p84 = scmp.eq.s32.totalorder %s22, 0
    %p85 = por %p83, %p84
    %p86 = scmp.ne.s32.totalorder %s74, %s75
    %p87 = scmp.eq.s32.totalorder %s23, 1
    %p88 = por %p86, %p87
    %p90 = scmp.ne.s32.totalorder %s75, %s89
    %p91 = scmp.eq.s32.totalorder %s23, 0
    %p92 = por %p90, %p91
    %s94 = sadd.s32 %s93, 1
    %p97 = scmp.eq.s32.totalorder %s17, 1
    %p98 = scmp.ne.s32.totalorder %s93, %s95
    %p99 = scmp.eq.s32.totalorder %s17, 0
    %p100 = por %p98, %p99
    %p101 = scmp.ne.s32.totalorder %s93, %s95
    %p102 = scmp.eq.s32.totalorder %s22, 1
    %p103 = por %p101, %p102
    %p104 = scmp.ne.s32.totalorder %s95, %s96
    %p105 = scmp.eq.s32.totalorder %s22, 0
    %p106 = por %p104, %p105
    %p107 = scmp.ne.s32.totalorder %s95, %s96
    %p108 = scmp.eq.s32.totalorder %s23, 1
    %p109 = por %p107, %p108
    %p111 = scmp.ne.s32.totalorder %s96, %s110
    %p112 = scmp.eq.s32.totalorder %s23, 0
    %p113 = por %p111, %p112
    %s115 = sadd.s32 %s114, 1
    %p118 = scmp.eq.s32.totalorder %s17, 1
    %p119 = scmp.ne.s32.totalorder %s114, %s116
    %p120 = scmp.eq.s32.totalorder %s17, 0
    %p121 = por %p119, %p120
    %p122 = scmp.ne.s32.totalorder %s114, %s116
    %p123 = scmp.eq.s32.totalorder %s22, 1
    %p124 = por %p122, %p123
    %p125 = scmp.ne.s32.totalorder %s116, %s117
    %p126 = scmp.eq.s32.totalorder %s22, 0
    %p127 = por %p125, %p126
    %p128 = scmp.ne.s32.totalorder %s116, %s117
    %p129 = scmp.eq.s32.totalorder %s23, 1
    %p130 = por %p128, %p129
    %p132 = scmp.ne.s32.totalorder %s117, %s131
    %p133 = scmp.eq.s32.totalorder %s23, 0
    %p134 = por %p132, %p133
    %s136 = sadd.s32 %s135, 1
    %p139 = scmp.eq.s32.totalorder %s17, 1
    %p140 = scmp.ne.s32.totalorder %s135, %s137
    %p141 = scmp.eq.s32.totalorder %s17, 0
    %p142 = por %p140, %p141
    %p143 = scmp.ne.s32.totalorder %s135, %s137
    %p144 = scmp.eq.s32.totalorder %s22, 1
    %p145 = por %p143, %p144
    %p146 = scmp.ne.s32.totalorder %s137, %s138
    %p147 = scmp.eq.s32.totalorder %s22, 0
    %p148 = por %p146, %p147
    %p149 = scmp.ne.s32.totalorder %s137, %s138
    %p150 = scmp.eq.s32.totalorder %s23, 1
    %p151 = por %p149, %p150
    %p153 = scmp.ne.s32.totalorder %s138, %s152
    %p154 = scmp.eq.s32.totalorder %s23, 0
    %p155 = por %p153, %p154
    %s157 = sadd.s32 %s156, 1
    %p160 = scmp.eq.s32.totalorder %s17, 1
    %p161 = scmp.ne.s32.totalorder %s156, %s158
    %p162 = scmp.eq.s32.totalorder %s17, 0
    %p163 = por %p161, %p162
    %p164 = scmp.ne.s32.totalorder %s156, %s158
    %p165 = scmp.eq.s32.totalorder %s22, 1
    %p166 = por %p164, %p165
    %p167 = scmp.ne.s32.totalorder %s158, %s159
    %p168 = scmp.eq.s32.totalorder %s22, 0
    %p169 = por %p167, %p168
    %p170 = scmp.ne.s32.totalorder %s158, %s159
    %p171 = scmp.eq.s32.totalorder %s23, 1
    %p172 = por %p170, %p171
    %p174 = scmp.ne.s32.totalorder %s159, %s173
    %p175 = scmp.eq.s32.totalorder %s23, 0
    %p176 = por %p174, %p175
    %s178 = sadd.s32 %s177, 1
    %p181 = scmp.eq.s32.totalorder %s17, 1
    %p182 = scmp.ne.s32.totalorder %s177, %s179
    %p183 = scmp.eq.s32.totalorder %s17, 0
    %p184 = por %p182, %p183
    %p185 = scmp.ne.s32.totalorder %s177, %s179
    %p186 = scmp.eq.s32.totalorder %s22, 1
    %p187 = por %p185, %p186
    %p188 = scmp.ne.s32.totalorder %s179, %s180
    %p189 = scmp.eq.s32.totalorder %s22, 0
    %p190 = por %p188, %p189
    %p191 = scmp.ne.s32.totalorder %s179, %s180
    %p192 = scmp.eq.s32.totalorder %s23, 1
    %p193 = por %p191, %p192
    %p195 = scmp.ne.s32.totalorder %s180, %s194
    %p196 = scmp.eq.s32.totalorder %s23, 0
    %p197 = por %p195, %p196
    %s199 = sadd.s32 %s198, 1
    %p202 = scmp.eq.s32.totalorder %s17, 1
    %p203 = scmp.ne.s32.totalorder %s198, %s200
    %p204 = scmp.eq.s32.totalorder %s17, 0
    %p205 = por %p203, %p204
    %p206 = scmp.ne.s32.totalorder %s198, %s200
    %p207 = scmp.eq.s32.totalorder %s22, 1
    %p208 = por %p206, %p207
    %p209 = scmp.ne.s32.totalorder %s200, %s201
    %p210 = scmp.eq.s32.totalorder %s22, 0
    %p211 = por %p209, %p210
    %p212 = scmp.ne.s32.totalorder %s200, %s201
    %p213 = scmp.eq.s32.totalorder %s23, 1
    %p214 = por %p212, %p213
    %p216 = scmp.ne.s32.totalorder %s201, %s215
    %p217 = scmp.eq.s32.totalorder %s23, 0
    %p218 = por %p216, %p217
    %s220 = sadd.s32 %s219, 1
    %p223 = scmp.eq.s32.totalorder %s17, 1
    %p224 = scmp.ne.s32.totalorder %s219, %s221
    %p225 = scmp.eq.s32.totalorder %s17, 0
    %p226 = por %p224, %p225
    %p227 = scmp.ne.s32.totalorder %s219, %s221
    %p228 = scmp.eq.s32.totalorder %s22, 1
    %p229 = por %p227, %p228
    %p230 = scmp.ne.s32.totalorder %s221, %s222
    %p231 = scmp.eq.s32.totalorder %s22, 0
    %p232 = por %p230, %p231
    %p233 = scmp.ne.s32.totalorder %s221, %s222
    %p234 = scmp.eq.s32.totalorder %s23, 1
    %p235 = por %p233, %p234
    %p237 = scmp.ne.s32.totalorder %s222, %s236
    %p238 = scmp.eq.s32.totalorder %s23, 0
    %p239 = por %p237, %p238
    %s241 = sadd.s32 %s240, 1
    %p244 = scmp.eq.s32.totalorder %s17, 1
    %p245 = scmp.ne.s32.totalorder %s240, %s242
    %p246 = scmp.eq.s32.totalorder %s17, 0
    %p247 = por %p245, %p246
    %p248 = scmp.ne.s32.totalorder %s240, %s242
    %p249 = scmp.eq.s32.totalorder %s22, 1
    %p250 = por %p248, %p249
    %p251 = scmp.ne.s32.totalorder %s242, %s243
    %p252 = scmp.eq.s32.totalorder %s22, 0
    %p253 = por %p251, %p252
    %p254 = scmp.ne.s32.totalorder %s242, %s243
    %p255 = scmp.eq.s32.totalorder %s23, 1
    %p256 = por %p254, %p255
    %p258 = scmp.ne.s32.totalorder %s243, %s257
    %p259 = scmp.eq.s32.totalorder %s23, 0
    %p260 = por %p258, %p259
    %s261 = ssub.s32 %s17, %s24
    %p262 = scmp.eq.s32.totalorder %s261, 0
    %s264 = sadd.s32 %s263, 1
    %s265 = scalar_select %p262, %s263, %s264
    %p268 = pneg %p262
    %p269 = scmp.eq.s32.totalorder %s17, 1
    %p270 = por %p268, %p269
    %p271 = scmp.ne.s32.totalorder %s263, %s266
    %p272 = scmp.eq.s32.totalorder %s17, 0
    %p273 = por %p271, %p272
    %p274 = scmp.ne.s32.totalorder %s263, %s266
    %p275 = scmp.eq.s32.totalorder %s22, 1
    %p276 = por %p274, %p275
    %p277 = scmp.ne.s32.totalorder %s266, %s267
    %p278 = scmp.eq.s32.totalorder %s22, 0
    %p279 = por %p277, %p278
    %p280 = scmp.ne.s32.totalorder %s266, %s267
    %p281 = scmp.eq.s32.totalorder %s23, 1
    %p282 = por %p280, %p281
    %p284 = scmp.ne.s32.totalorder %s267, %s283
    %p285 = scmp.eq.s32.totalorder %s23, 0
    %p286 = por %p284, %p285
    %p287 = scmp.le.s32.totalorder 1, %s17
    %p288 = scmp.lt.s32.totalorder %s17, 3
    %p289 = pnand %p287, %p288
    %p290 = pneg %p289
    // Predicated region
    $region9: #{rrdb_forward.1} parent=5 // pred_check
      _
    $region10: #{rrdb_forward.1} parent=5 // pred_check_branch
      %292 = sbr.rel (%p289) target = $region12
    $region11: #{rrdb_forward.1} parent=5 // pred_region
      %s293 = ssub.s32 %s17, 1
      // Predicated region
      $region13: #{rrdb_forward.1} parent=11 // pred_check
        %p294 = pneg %p64
      $region14: #{rrdb_forward.1} parent=11 // pred_check_branch
        %296 = sbr.rel (%p294) target = $region16
      $region15: #{rrdb_forward.1} parent=11 // pred_region
        _
      $region16: #{rrdb_forward.1} parent=11 // pred_fallthru
        _
      // Predicated region
      $region17: #{rrdb_forward.1} parent=11 // pred_check
        %p297 = pneg %p85
      $region18: #{rrdb_forward.1} parent=11 // pred_check_branch
        %299 = sbr.rel (%p297) target = $region20
      $region19: #{rrdb_forward.1} parent=11 // pred_region
        _
      $region20: #{rrdb_forward.1} parent=11 // pred_fallthru
        _
      // Predicated region
      $region21: #{rrdb_forward.1} parent=11 // pred_check
        %p300 = pneg %p106
      $region22: #{rrdb_forward.1} parent=11 // pred_check_branch
        %302 = sbr.rel (%p300) target = $region24
      $region23: #{rrdb_forward.1} parent=11 // pred_region
        _
      $region24: #{rrdb_forward.1} parent=11 // pred_fallthru
        _
      // Predicated region
      $region25: #{rrdb_forward.1} parent=11 // pred_check
        %p303 = pneg %p127
      $region26: #{rrdb_forward.1} parent=11 // pred_check_branch
        %305 = sbr.rel (%p303) target = $region28
      $region27: #{rrdb_forward.1} parent=11 // pred_region
        _
      $region28: #{rrdb_forward.1} parent=11 // pred_fallthru
        _
      // Predicated region
      $region29: #{rrdb_forward.1} parent=11 // pred_check
        %p306 = pneg %p148
      $region30: #{rrdb_forward.1} parent=11 // pred_check_branch
        %308 = sbr.rel (%p306) target = $region32
      $region31: #{rrdb_forward.1} parent=11 // pred_region
        _
      $region32: #{rrdb_forward.1} parent=11 // pred_fallthru
        _
      // Predicated region
      $region33: #{rrdb_forward.1} parent=11 // pred_check
        %p309 = pneg %p169
      $region34: #{rrdb_forward.1} parent=11 // pred_check_branch
        %311 = sbr.rel (%p309) target = $region36
      $region35: #{rrdb_forward.1} parent=11 // pred_region
        _
      $region36: #{rrdb_forward.1} parent=11 // pred_fallthru
        _
      // Predicated region
      $region37: #{rrdb_forward.1} parent=11 // pred_check
        %p312 = pneg %p190
      $region38: #{rrdb_forward.1} parent=11 // pred_check_branch
        %314 = sbr.rel (%p312) target = $region40
      $region39: #{rrdb_forward.1} parent=11 // pred_region
        _
      $region40: #{rrdb_forward.1} parent=11 // pred_fallthru
        _
      // Predicated region
      $region41: #{rrdb_forward.1} parent=11 // pred_check
        %p315 = pneg %p211
      $region42: #{rrdb_forward.1} parent=11 // pred_check_branch
        %317 = sbr.rel (%p315) target = $region44
      $region43: #{rrdb_forward.1} parent=11 // pred_region
        _
      $region44: #{rrdb_forward.1} parent=11 // pred_fallthru
        _
      // Predicated region
      $region45: #{rrdb_forward.1} parent=11 // pred_check
        %p318 = pneg %p232
      $region46: #{rrdb_forward.1} parent=11 // pred_check_branch
        %320 = sbr.rel (%p318) target = $region48
      $region47: #{rrdb_forward.1} parent=11 // pred_region
        _
      $region48: #{rrdb_forward.1} parent=11 // pred_fallthru
        _
      // Predicated region
      $region49: #{rrdb_forward.1} parent=11 // pred_check
        %p321 = pneg %p253
      $region50: #{rrdb_forward.1} parent=11 // pred_check_branch
        %323 = sbr.rel (%p321) target = $region52
      $region51: #{rrdb_forward.1} parent=11 // pred_region
        _
      $region52: #{rrdb_forward.1} parent=11 // pred_fallthru
        _
    $region12: #{rrdb_forward.1} parent=5 // pred_fallthru
      _
    %p324 = scmp.lt.s32.totalorder %s17, 2
    // Predicated region
    $region53: #{rrdb_forward.1} parent=5 // pred_check
      %p325 = pneg %p324
    $region54: #{rrdb_forward.1} parent=5 // pred_check_branch
      %327 = sbr.rel (%p325) target = $region56
    $region55: #{rrdb_forward.1} parent=5 // pred_region
      // Predicated region
      $region57: #{rrdb_forward.1} parent=55 // pred_check
        %p328 = pneg %p37
      $region58: #{rrdb_forward.1} parent=55 // pred_check_branch
        %330 = sbr.rel (%p328) target = $region60
      $region59: #{rrdb_forward.1} parent=55 // pred_region
        %p331 = scmp.lt.s32.totalorder %s17, 1
        %s332 = scalar_select %p331, %s17, 1
        %s333 = smul.addr %s332, 4
        %s334 = smul.addr %s333, 8
        %s335 = scalar_lea.vmem %s0, %s334
      $region60: #{rrdb_forward.1} parent=55 // pred_fallthru
        _
    $region56: #{rrdb_forward.1} parent=5 // pred_fallthru
      _
    %p336 = scmp.le.s32.totalorder 1, %s17
    %p337 = scmp.lt.s32.totalorder %s17, 3
    %p338 = pnand %p336, %p337
    %p339 = pneg %p338
    // Predicated region
    $region61: #{rrdb_forward.1} parent=5 // pred_check
      _
    $region62: #{rrdb_forward.1} parent=5 // pred_check_branch
      %341 = sbr.rel (%p338) target = $region64
    $region63: #{rrdb_forward.1} parent=5 // pred_region
      %s342 = ssub.s32 %s17, 1
      %p343 = scmp.lt.s32.totalorder %s22, 1
      %s344 = scalar_select %p343, %s22, 1
      %s345 = smul.addr %s344, 4
      %s346 = smul.addr %s345, 8
      %s347 = scalar_lea.vmem %s0, %s346
      %p348 = pneg %p43
      %p349 = pneg %p40
      %p350 = pneg %p64
      %p351 = pneg %p61
      %p352 = pneg %p85
      %p353 = pneg %p82
      %p354 = pneg %p106
      %p355 = pneg %p103
      %p356 = pneg %p127
      %p357 = pneg %p124
      %p358 = pneg %p148
      %p359 = pneg %p145
      %p360 = pneg %p169
      %p361 = pneg %p166
      %p362 = pneg %p190
      %p363 = pneg %p187
      %p364 = pneg %p211
      %p365 = pneg %p208
      %p366 = pneg %p232
      %p367 = pneg %p229
      %p368 = pneg %p253
      %p369 = pneg %p250
      %p370 = pneg %p279
      %p371 = pneg %p276
      %p372 = scmp.lt.s32.totalorder %s22, 1
      %s373 = scalar_select %p372, %s22, 1
      %s374 = smul.addr %s373, 4
      %s375 = smul.addr %s374, 8
      %s376 = scalar_lea.vmem %s11, %s375
      %p377 = scmp.lt.s32.totalorder %s22, 1
      %s378 = scalar_select %p377, %s22, 1
      %s379 = smul.addr %s378, 4
      %s380 = smul.addr %s379, 8
      %s381 = scalar_lea.vmem %s0, %s380
      %p382 = scmp.lt.s32.totalorder %s22, 1
      %s383 = scalar_select %p382, %s22, 1
      %s384 = smul.addr %s383, 4
      %s385 = smul.addr %s384, 8
      %s386 = scalar_lea.vmem %s11, %s385
      %v387 = vlaneseq
      %v388 = vand.u32 %v387, 127
      %v389 = vadd.s32 %v388, 128
      %vm390 = vcmp.lt.s32.totalorder %v388, 0
      %v391 = vsub.s32 0, %v388
      %v392 = vsel %vm390, %v391, %v388
      %v393 = vshrl.u32 %v392, 4
      %v394 = vand.u32 %v392, 15
      %v395 = vsub.s32 0, %v394
      %v396 = vsel %vm390, %v395, %v394
      %vm397 = vcmp.lt.s32.totalorder %v389, 0
      %v398 = vsub.s32 0, %v389
      %v399 = vsel %vm397, %v398, %v389
      %v400 = vshrl.u32 %v399, 4
      %v401 = vand.u32 %v399, 15
      %v402 = vsub.s32 0, %v401
      %v403 = vsel %vm397, %v402, %v401
      %vm404 = vcmp.ne.s32.totalorder %v396, 0
      %vm405 = vcmp.ne.s32.totalorder %v403, 0
      %vm406 = vcmp.lt.s32.totalorder %v396, 0
      %vm407 = vcmp.lt.s32.totalorder %v403, 0
      %vm408 = vmand %vm406, %vm404
      %vm409 = vmand %vm407, %vm405
      %v410 = vadd.s32 %v396, 16
      %v411 = vadd.s32 %v403, 16
      %v412 = vsel %vm408, %v410, %v396
      %v413 = vsel %vm409, %v411, %v403
      %vm414 = vcmp.gt.s32.totalorder %v412, 0
      %vm415 = vcmp.gt.s32.totalorder %v413, 0
      %v416 = vsel %vm414, 1, 0
      %v417 = vsel %vm415, 1, 0
      %v418 = vcvt.s32.f32 %v416
      %v419 = vcvt.s32.f32 %v417
      %vm420 = vcmp.lt.s32.totalorder %v412, 15
      %vm421 = vcmp.lt.s32.totalorder %v413, 15
      %v422 = vsel %vm420, 1, 0
      %v423 = vsel %vm421, 1, 0
      %v424 = vcvt.s32.f32 %v422
      %v425 = vcvt.s32.f32 %v423
      %426 = vst [vmem:[#allocation2] sm:$0xff] 0.0
      %427 = vst [vmem:[#allocation2 + $0x8] sm:$0xff] 0.0
      %428 = vst [vmem:[#allocation2 + $0x10] sm:$0xff] 0.0
      %vm429 = vcmask 138240
      %430 = vst.msk [vmem:[#allocation2 + $0x18] sm:$0xff] %vm429, 0.0
      %431 = vst [vmem:[#allocation2 + $0x20] sm:$0xff] 0.0
      %432 = vst [vmem:[#allocation2 + $0x28] sm:$0xff] 0.0
      %433 = vst [vmem:[#allocation2 + $0x30] sm:$0xff] 0.0
      %434 = vst.msk [vmem:[#allocation2 + $0x38] sm:$0xff] %vm429, 0.0
      %435 = vst [vmem:[#allocation3] sm:$0xff] 0.0
      %436 = vst [vmem:[#allocation3 + $0x8] sm:$0xff] 0.0
      %437 = vst [vmem:[#allocation3 + $0x10] sm:$0xff] 0.0
      %438 = vst.msk [vmem:[#allocation3 + $0x18] sm:$0xff] %vm429, 0.0
      %439 = vst [vmem:[#allocation4] sm:$0xff] 0.0
      %440 = vst [vmem:[#allocation4 + $0x8] sm:$0xff] 0.0
      %441 = vst [vmem:[#allocation4 + $0x10] sm:$0xff] 0.0
      %442 = vst.msk [vmem:[#allocation4 + $0x18] sm:$0xff] %vm429, 0.0
      %443 = vst [vmem:[#allocation5] sm:$0xff] 0.0
      %444 = vst [vmem:[#allocation5 + $0x8] sm:$0xff] 0.0
      %445 = vst [vmem:[#allocation5 + $0x10] sm:$0xff] 0.0
      %446 = vst.msk [vmem:[#allocation5 + $0x18] sm:$0xff] %vm429, 0.0
      %447 = vst [vmem:[#allocation6] sm:$0xff] 0.0
      %448 = vst [vmem:[#allocation6 + $0x8] sm:$0xff] 0.0
      %449 = vst [vmem:[#allocation6 + $0x10] sm:$0xff] 0.0
      %450 = vst.msk [vmem:[#allocation6 + $0x18] sm:$0xff] %vm429, 0.0
      %v451 = vld [vmem:[%s381] sm:$0xff]
      %v452 = vld [vmem:[%s381 + $0x8] sm:$0xff]
      %v453 = vld [vmem:[%s381 + $0x10] sm:$0xff]
      %v454 = vld [vmem:[%s381 + $0x18] sm:$0xff]
      %455 = vst [vmem:[#allocation2 + $0x8] sm:$0xff] %v451
      %456 = vst [vmem:[#allocation2 + $0x10] sm:$0xff] %v452
      %457 = vst [vmem:[#allocation2 + $0x28] sm:$0xff] %v453
      %458 = vst [vmem:[#allocation2 + $0x30] sm:$0xff] %v454
      %v459 = vld [vmem:[#allocation2] sm:$0xff]
      %v460 = vld [vmem:[#allocation2 + $0x8] sm:$0xff]
      %v461 = vld [vmem:[#allocation2 + $0x10] sm:$0xff]
      %v462 = vld [vmem:[#allocation2 + $0x20] sm:$0xff]
      %v463 = vld [vmem:[#allocation2 + $0x28] sm:$0xff]
      %v464 = vld [vmem:[#allocation2 + $0x30] sm:$0xff]
      %467 = vrot.lane.b32.xlu0 %v418, 111
      %v468 = vpop.permute.xlu0 %467
      %469 = vrot.lane.b32.xlu0 %v419, 111
      %v470 = vpop.permute.xlu0 %469
      %vm471 = vcmask 908288
      %v472 = vsel %vm471, %v468, %v470
      %v476 = vmul.f32 %v459, %v468
      %v477 = vmul.f32 %v460, %v472
      %v478 = vmul.f32 %v461, %v470
      %v479 = vmul.f32 %v462, %v468
      %v480 = vmul.f32 %v463, %v472
      %v481 = vmul.f32 %v464, %v470
      %484 = vrot.lane.b32.xlu0 %v424, 113
      %v485 = vpop.permute.xlu0 %484
      %486 = vrot.lane.b32.xlu0 %v425, 113
      %v487 = vpop.permute.xlu0 %486
      %vm488 = vcmask 924672
      %v489 = vsel %vm488, %v485, %v487
      %v493 = vmul.f32 %v459, %v485
      %v494 = vmul.f32 %v460, %v489
      %v495 = vmul.f32 %v461, %v487
      %v496 = vmul.f32 %v462, %v485
      %v497 = vmul.f32 %v463, %v489
      %v498 = vmul.f32 %v464, %v487
      %499 = vrot.lane.b32.xlu0 %v418, 127
      %v500 = vpop.permute.xlu0 %499
      %501 = vrot.lane.b32.xlu0 %v419, 127
      %v502 = vpop.permute.xlu0 %501
      %vm503 = vcmask 1039360
      %v504 = vsel %vm503, %v500, %v502
      %v508 = vmul.f32 %v459, %v500
      %v509 = vmul.f32 %v460, %v504
      %v510 = vmul.f32 %v461, %v502
      %v511 = vmul.f32 %v462, %v500
      %v512 = vmul.f32 %v463, %v504
      %v513 = vmul.f32 %v464, %v502
      %v514 = vld [vmem:[#allocation2 + $0x18] sm:$0xff]
      %v515 = vld [vmem:[#allocation2 + $0x38] sm:$0xff]
      %516 = vrot.lane.b32.xlu0 %v424, 1
      %v517 = vpop.permute.xlu0 %516
      %518 = vrot.lane.b32.xlu0 %v425, 1
      %v519 = vpop.permute.xlu0 %518
      %vm520 = vcmask 7168
      %v521 = vsel %vm520, %v517, %v519
      %v525 = vmul.f32 %v460, %v517
      %v526 = vmul.f32 %v461, %v521
      %v527 = vmul.f32 %v514, %v519
      %v528 = vmul.f32 %v463, %v517
      %v529 = vmul.f32 %v464, %v521
      %v530 = vmul.f32 %v515, %v519
      %531 = vrot.lane.b32.xlu0 %v418, 15
      %v532 = vpop.permute.xlu0 %531
      %533 = vrot.lane.b32.xlu0 %v419, 15
      %v534 = vpop.permute.xlu0 %533
      %vm535 = vcmask 121856
      %v536 = vsel %vm535, %v532, %v534
      %v540 = vmul.f32 %v460, %v532
      %v541 = vmul.f32 %v461, %v536
      %v542 = vmul.f32 %v514, %v534
      %v543 = vmul.f32 %v463, %v532
      %v544 = vmul.f32 %v464, %v536
      %v545 = vmul.f32 %v515, %v534
      %546 = vrot.lane.b32.xlu0 %v424, 17
      %v547 = vpop.permute.xlu0 %546
      %548 = vrot.lane.b32.xlu0 %v425, 17
      %v549 = vpop.permute.xlu0 %548
      %v550 = vsel %vm429, %v547, %v549
      %v554 = vmul.f32 %v460, %v547
      %v555 = vmul.f32 %v461, %v550
      %v556 = vmul.f32 %v514, %v549
      %v557 = vmul.f32 %v463, %v547
      %v558 = vmul.f32 %v464, %v550
      %v559 = vmul.f32 %v515, %v549
      %566 = vrot.lane.b32.xlu0 %v459, 127
      %v567 = vpop.permute.xlu0 %566
      %568 = vrot.lane.b32.xlu0 %v460, 127
      %v569 = vpop.permute.xlu0 %568
      %570 = vrot.lane.b32.xlu0 %v461, 127
      %v571 = vpop.permute.xlu0 %570
      %572 = vrot.lane.b32.xlu0 %v462, 127
      %v573 = vpop.permute.xlu0 %572
      %574 = vrot.lane.b32.xlu0 %v463, 127
      %v575 = vpop.permute.xlu0 %574
      %576 = vrot.lane.b32.xlu0 %v464, 127
      %v577 = vpop.permute.xlu0 %576
      %v578 = vsel %vm503, %v567, %v569
      %v579 = vsel %vm503, %v569, %v571
      %v580 = vsel %vm503, %v573, %v575
      %v581 = vsel %vm503, %v575, %v577
      %588 = vrot.lane.b32.xlu0 %v493, 126
      %v589 = vpop.permute.xlu0 %588
      %590 = vrot.lane.b32.xlu0 %v494, 126
      %v591 = vpop.permute.xlu0 %590
      %592 = vrot.lane.b32.xlu0 %v495, 126
      %v593 = vpop.permute.xlu0 %592
      %594 = vrot.lane.b32.xlu0 %v496, 126
      %v595 = vpop.permute.xlu0 %594
      %596 = vrot.lane.b32.xlu0 %v497, 126
      %v597 = vpop.permute.xlu0 %596
      %598 = vrot.lane.b32.xlu0 %v498, 126
      %v599 = vpop.permute.xlu0 %598
      %vm600 = vcmask 1031168
      %v601 = vsel %vm600, %v589, %v591
      %v602 = vsel %vm600, %v591, %v593
      %v603 = vsel %vm600, %v595, %v597
      %v604 = vsel %vm600, %v597, %v599
      %611 = vrot.lane.b32.xlu0 %v508, 112
      %v612 = vpop.permute.xlu0 %611
      %613 = vrot.lane.b32.xlu0 %v509, 112
      %v614 = vpop.permute.xlu0 %613
      %615 = vrot.lane.b32.xlu0 %v510, 112
      %v616 = vpop.permute.xlu0 %615
      %617 = vrot.lane.b32.xlu0 %v511, 112
      %v618 = vpop.permute.xlu0 %617
      %619 = vrot.lane.b32.xlu0 %v512, 112
      %v620 = vpop.permute.xlu0 %619
      %621 = vrot.lane.b32.xlu0 %v513, 112
      %v622 = vpop.permute.xlu0 %621
      %vm623 = vcmask 916480
      %v624 = vsel %vm623, %v612, %v614
      %v625 = vsel %vm623, %v614, %v616
      %v626 = vsel %vm623, %v618, %v620
      %v627 = vsel %vm623, %v620, %v622
      %628 = vrot.lane.b32.xlu0 %v460, 111
      %v629 = vpop.permute.xlu0 %628
      %630 = vrot.lane.b32.xlu0 %v461, 111
      %v631 = vpop.permute.xlu0 %630
      %632 = vrot.lane.b32.xlu0 %v463, 111
      %v633 = vpop.permute.xlu0 %632
      %634 = vrot.lane.b32.xlu0 %v464, 111
      %v635 = vpop.permute.xlu0 %634
      %v636 = vsel %vm471, %v629, %v631
      %v637 = vsel %vm471, %v633, %v635
      %644 = vrot.lane.b32.xlu0 %v525, 110
      %v645 = vpop.permute.xlu0 %644
      %646 = vrot.lane.b32.xlu0 %v526, 110
      %v647 = vpop.permute.xlu0 %646
      %648 = vrot.lane.b32.xlu0 %v527, 110
      %v649 = vpop.permute.xlu0 %648
      %650 = vrot.lane.b32.xlu0 %v528, 110
      %v651 = vpop.permute.xlu0 %650
      %652 = vrot.lane.b32.xlu0 %v529, 110
      %v653 = vpop.permute.xlu0 %652
      %654 = vrot.lane.b32.xlu0 %v530, 110
      %v655 = vpop.permute.xlu0 %654
      %vm656 = vcmask 900096
      %v657 = vsel %vm656, %v645, %v647
      %v658 = vsel %vm656, %v647, %v649
      %v659 = vsel %vm656, %v651, %v653
      %v660 = vsel %vm656, %v653, %v655
      %667 = vrot.lane.b32.xlu0 %v540, 96
      %v668 = vpop.permute.xlu0 %667
      %669 = vrot.lane.b32.xlu0 %v541, 96
      %v670 = vpop.permute.xlu0 %669
      %671 = vrot.lane.b32.xlu0 %v542, 96
      %v672 = vpop.permute.xlu0 %671
      %673 = vrot.lane.b32.xlu0 %v543, 96
      %v674 = vpop.permute.xlu0 %673
      %675 = vrot.lane.b32.xlu0 %v544, 96
      %v676 = vpop.permute.xlu0 %675
      %677 = vrot.lane.b32.xlu0 %v545, 96
      %v678 = vpop.permute.xlu0 %677
      %vm679 = vcmask 785408
      %v680 = vsel %vm679, %v668, %v670
      %v681 = vsel %vm679, %v670, %v672
      %v682 = vsel %vm679, %v674, %v676
      %v683 = vsel %vm679, %v676, %v678
      %686 = vrot.lane.b32.xlu0 %v460, 95
      %v687 = vpop.permute.xlu0 %686
      %688 = vrot.lane.b32.xlu0 %v461, 95
      %v689 = vpop.permute.xlu0 %688
      %690 = vrot.lane.b32.xlu0 %v514, 95
      %v691 = vpop.permute.xlu0 %690
      %692 = vrot.lane.b32.xlu0 %v463, 95
      %v693 = vpop.permute.xlu0 %692
      %694 = vrot.lane.b32.xlu0 %v464, 95
      %v695 = vpop.permute.xlu0 %694
      %696 = vrot.lane.b32.xlu0 %v515, 95
      %v697 = vpop.permute.xlu0 %696
      %vm698 = vcmask 777216
      %v699 = vsel %vm698, %v687, %v689
      %v700 = vsel %vm698, %v689, %v691
      %v701 = vsel %vm698, %v693, %v695
      %v702 = vsel %vm698, %v695, %v697
      %709 = vrot.lane.b32.xlu0 %v554, 94
      %v710 = vpop.permute.xlu0 %709
      %711 = vrot.lane.b32.xlu0 %v555, 94
      %v712 = vpop.permute.xlu0 %711
      %713 = vrot.lane.b32.xlu0 %v556, 94
      %v714 = vpop.permute.xlu0 %713
      %715 = vrot.lane.b32.xlu0 %v557, 94
      %v716 = vpop.permute.xlu0 %715
      %717 = vrot.lane.b32.xlu0 %v558, 94
      %v718 = vpop.permute.xlu0 %717
      %719 = vrot.lane.b32.xlu0 %v559, 94
      %v720 = vpop.permute.xlu0 %719
      %vm721 = vcmask 769024
      %v722 = vsel %vm721, %v710, %v712
      %v723 = vsel %vm721, %v712, %v714
      %v724 = vsel %vm721, %v716, %v718
      %v725 = vsel %vm721, %v718, %v720
      %v726 = vld [vmem:[%s1] sm:$0xff]
      %v727 = vld [vmem:[%s1 + $0x8] sm:$0xff]
      %v728 = vld [vmem:[%s6] sm:$0xff]
      %730 = vset.pattern.permute.xlu0 0
      %731 = vperm.xlu0 %730, %v728
      %v732 = vpop.permute.xlu0 %731
      %740 = vrot.lane.b32.xlu0 %v476, 17
      %v741 = vpop.permute.xlu0 %740
      %742 = vrot.lane.b32.xlu0 %v477, 17
      %v743 = vpop.permute.xlu0 %742
      %744 = vrot.lane.b32.xlu0 %v478, 17
      %v745 = vpop.permute.xlu0 %744
      %746 = vrot.lane.b32.xlu0 %v479, 17
      %v747 = vpop.permute.xlu0 %746
      %748 = vrot.lane.b32.xlu0 %v480, 17
      %v749 = vpop.permute.xlu0 %748
      %750 = vrot.lane.b32.xlu0 %v481, 17
      %v751 = vpop.permute.xlu0 %750
      %752 = vrot.lane.b32.xlu0 %v578, 17
      %v753 = vpop.permute.xlu0 %752
      %754 = vrot.lane.b32.xlu0 %v579, 17
      %v755 = vpop.permute.xlu0 %754
      %756 = vrot.lane.b32.xlu0 %v571, 17
      %v757 = vpop.permute.xlu0 %756
      %758 = vrot.lane.b32.xlu0 %v580, 17
      %v759 = vpop.permute.xlu0 %758
      %760 = vrot.lane.b32.xlu0 %v581, 17
      %v761 = vpop.permute.xlu0 %760
      %762 = vrot.lane.b32.xlu0 %v577, 17
      %v763 = vpop.permute.xlu0 %762
      %764 = vrot.lane.b32.xlu0 %v601, 17
      %v765 = vpop.permute.xlu0 %764
      %766 = vrot.lane.b32.xlu0 %v602, 17
      %v767 = vpop.permute.xlu0 %766
      %768 = vrot.lane.b32.xlu0 %v593, 17
      %v769 = vpop.permute.xlu0 %768
      %770 = vrot.lane.b32.xlu0 %v603, 17
      %v771 = vpop.permute.xlu0 %770
      %772 = vrot.lane.b32.xlu0 %v604, 17
      %v773 = vpop.permute.xlu0 %772
      %774 = vrot.lane.b32.xlu0 %v599, 17
      %v775 = vpop.permute.xlu0 %774
      %776 = vrot.lane.b32.xlu0 %v624, 17
      %v777 = vpop.permute.xlu0 %776
      %778 = vrot.lane.b32.xlu0 %v625, 17
      %v779 = vpop.permute.xlu0 %778
      %780 = vrot.lane.b32.xlu0 %v616, 17
      %v781 = vpop.permute.xlu0 %780
      %782 = vrot.lane.b32.xlu0 %v626, 17
      %v783 = vpop.permute.xlu0 %782
      %784 = vrot.lane.b32.xlu0 %v627, 17
      %v785 = vpop.permute.xlu0 %784
      %786 = vrot.lane.b32.xlu0 %v622, 17
      %v787 = vpop.permute.xlu0 %786
      %788 = vrot.lane.b32.xlu0 %v629, 17
      %v789 = vpop.permute.xlu0 %788
      %790 = vrot.lane.b32.xlu0 %v636, 17
      %v791 = vpop.permute.xlu0 %790
      %792 = vrot.lane.b32.xlu0 %v631, 17
      %v793 = vpop.permute.xlu0 %792
      %794 = vrot.lane.b32.xlu0 %v633, 17
      %v795 = vpop.permute.xlu0 %794
      %796 = vrot.lane.b32.xlu0 %v637, 17
      %v797 = vpop.permute.xlu0 %796
      %798 = vrot.lane.b32.xlu0 %v635, 17
      %v799 = vpop.permute.xlu0 %798
      %800 = vrot.lane.b32.xlu0 %v645, 17
      %v801 = vpop.permute.xlu0 %800
      %802 = vrot.lane.b32.xlu0 %v657, 17
      %v803 = vpop.permute.xlu0 %802
      %804 = vrot.lane.b32.xlu0 %v658, 17
      %v805 = vpop.permute.xlu0 %804
      %806 = vrot.lane.b32.xlu0 %v651, 17
      %v807 = vpop.permute.xlu0 %806
      %808 = vrot.lane.b32.xlu0 %v659, 17
      %v809 = vpop.permute.xlu0 %808
      %810 = vrot.lane.b32.xlu0 %v660, 17
      %v811 = vpop.permute.xlu0 %810
      %812 = vrot.lane.b32.xlu0 %v668, 17
      %v813 = vpop.permute.xlu0 %812
      %814 = vrot.lane.b32.xlu0 %v680, 17
      %v815 = vpop.permute.xlu0 %814
      %816 = vrot.lane.b32.xlu0 %v681, 17
      %v817 = vpop.permute.xlu0 %816
      %818 = vrot.lane.b32.xlu0 %v674, 17
      %v819 = vpop.permute.xlu0 %818
      %820 = vrot.lane.b32.xlu0 %v682, 17
      %v821 = vpop.permute.xlu0 %820
      %822 = vrot.lane.b32.xlu0 %v683, 17
      %v823 = vpop.permute.xlu0 %822
      %824 = vrot.lane.b32.xlu0 %v687, 17
      %v825 = vpop.permute.xlu0 %824
      %826 = vrot.lane.b32.xlu0 %v699, 17
      %v827 = vpop.permute.xlu0 %826
      %828 = vrot.lane.b32.xlu0 %v700, 17
      %v829 = vpop.permute.xlu0 %828
      %830 = vrot.lane.b32.xlu0 %v693, 17
      %v831 = vpop.permute.xlu0 %830
      %832 = vrot.lane.b32.xlu0 %v701, 17
      %v833 = vpop.permute.xlu0 %832
      %834 = vrot.lane.b32.xlu0 %v702, 17
      %v835 = vpop.permute.xlu0 %834
      %836 = vrot.lane.b32.xlu0 %v710, 17
      %v837 = vpop.permute.xlu0 %836
      %838 = vrot.lane.b32.xlu0 %v722, 17
      %v839 = vpop.permute.xlu0 %838
      %840 = vrot.lane.b32.xlu0 %v723, 17
      %v841 = vpop.permute.xlu0 %840
      %842 = vrot.lane.b32.xlu0 %v716, 17
      %v843 = vpop.permute.xlu0 %842
      %844 = vrot.lane.b32.xlu0 %v724, 17
      %v845 = vpop.permute.xlu0 %844
      %846 = vrot.lane.b32.xlu0 %v725, 17
      %v847 = vpop.permute.xlu0 %846
      %v848 = vsel %vm429, %v741, %v743
      %v849 = vsel %vm429, %v743, %v745
      %v850 = vsel %vm429, %v747, %v749
      %v851 = vsel %vm429, %v749, %v751
      %v852 = vsel %vm429, %v753, %v755
      %v853 = vsel %vm429, %v755, %v757
      %v854 = vsel %vm429, %v759, %v761
      %v855 = vsel %vm429, %v761, %v763
      %v856 = vsel %vm429, %v765, %v767
      %v857 = vsel %vm429, %v767, %v769
      %v858 = vsel %vm429, %v771, %v773
      %v859 = vsel %vm429, %v773, %v775
      %v860 = vsel %vm429, %v777, %v779
      %v861 = vsel %vm429, %v779, %v781
      %v862 = vsel %vm429, %v783, %v785
      %v863 = vsel %vm429, %v785, %v787
      %v864 = vsel %vm429, %v789, %v791
      %v865 = vsel %vm429, %v791, %v793
      %v866 = vsel %vm429, %v795, %v797
      %v867 = vsel %vm429, %v797, %v799
      %v868 = vsel %vm429, %v801, %v803
      %v869 = vsel %vm429, %v803, %v805
      %v870 = vsel %vm429, %v807, %v809
      %v871 = vsel %vm429, %v809, %v811
      %v872 = vsel %vm429, %v813, %v815
      %v873 = vsel %vm429, %v815, %v817
      %v874 = vsel %vm429, %v819, %v821
      %v875 = vsel %vm429, %v821, %v823
      %v876 = vsel %vm429, %v825, %v827
      %v877 = vsel %vm429, %v827, %v829
      %v878 = vsel %vm429, %v831, %v833
      %v879 = vsel %vm429, %v833, %v835
      %v880 = vsel %vm429, %v837, %v839
      %v881 = vsel %vm429, %v839, %v841
      %v882 = vsel %vm429, %v843, %v845
      %v883 = vsel %vm429, %v845, %v847
      %vm920 = vcmask 130048
      %v922 = vsel %vm920, %v727, 0
      %924 = vmatprep.subr.mxu0 %v849
      %925 = vmatpush1.msra.mxu0 %v848
      %926 = vmatprep.subr.mxu0 %v851
      %927 = vmatpush1.msra.mxu0 %v850
      %928 = vmatprep.subr.mxu0 %v853
      %929 = vmatpush1.msra.mxu0 %v852
      %930 = vmatprep.subr.mxu0 %v855
      %931 = vmatpush1.msra.mxu0 %v854
      %932 = vmatprep.subr.mxu0 %v857
      %933 = vmatpush1.msra.mxu0 %v856
      %934 = vmatprep.subr.mxu0 %v859
      %935 = vmatpush1.msra.mxu0 %v858
      %936 = vmatprep.subr.mxu0 %v861
      %937 = vmatpush1.msra.mxu0 %v860
      %938 = vmatprep.subr.mxu0 %v863
      %939 = vmatpush1.msra.mxu0 %v862
      %940 = vmatprep.subr.mxu0 %v865
      %941 = vmatpush1.msra.mxu0 %v864
      %942 = vmatprep.subr.mxu0 %v867
      %943 = vmatpush1.msra.mxu0 %v866
      %944 = vmatprep.subr.mxu0 %v869
      %945 = vmatpush1.msra.mxu0 %v868
      %946 = vmatprep.subr.mxu0 %v871
      %947 = vmatpush1.msra.mxu0 %v870
      %948 = vmatprep.subr.mxu0 %v873
      %949 = vmatpush1.msra.mxu0 %v872
      %950 = vmatprep.subr.mxu0 %v875
      %951 = vmatpush1.msra.mxu0 %v874
      %952 = vmatprep.subr.mxu0 %v877
      %953 = vmatpush1.msra.mxu0 %v876
      %954 = vmatprep.subr.mxu0 %v879
      %955 = vmatpush1.msra.mxu0 %v878
      %956 = vmatprep.subr.mxu0 %v881
      %957 = vmatpush1.msra.mxu0 %v880
      %958 = vmatprep.subr.mxu0 %v883
      %959 = vmatpush1.msra.mxu0 %v882
      %960 = vmatprep.subr.mxu0 0.0
      %961 = vmatpush1.msra.mxu0 0.0
      %962 = vmatprep.subr.mxu0 0.0
      %963 = vmatpush1.msra.mxu0 0.0
      %964 = vmatprep.subr.mxu0 0.0
      %965 = vmatpush1.msra.mxu0 0.0
      %966 = vmatprep.subr.mxu0 0.0
      %967 = vmatpush1.msra.mxu0 0.0
      %968 = vmatprep.subr.mxu0 0.0
      %969 = vmatpush1.msra.mxu0 0.0
      %970 = vmatprep.subr.mxu0 0.0
      %971 = vmatpush1.msra.mxu0 0.0
      %972 = vmatprep.subr.mxu0 0.0
      %973 = vmatpush1.msra.mxu0 0.0
      %974 = vmatprep.subr.mxu0 0.0
      %975 = vmatpush1.msra.mxu0 0.0
      %976 = vmatprep.subr.mxu0 0.0
      %977 = vmatpush1.msra.mxu0 0.0
      %978 = vmatprep.subr.mxu0 0.0
      %979 = vmatpush1.msra.mxu0 0.0
      %980 = vmatprep.subr.mxu0 0.0
      %981 = vmatpush1.msra.mxu0 0.0
      %982 = vmatprep.subr.mxu0 0.0
      %983 = vmatpush1.msra.mxu0 0.0
      %984 = vmatprep.subr.mxu0 0.0
      %985 = vmatpush1.msra.mxu0 0.0
      %986 = vmatprep.subr.mxu0 0.0
      %987 = vmatpush1.msra.mxu0 0.0
      %988 = vmatprep.mubr.f32.mxu0 %v922
      %989 = vmatmul.mubr.f32.gmra.mrb[0].mxu0 %v726
      %v990 = vpop.f32.mrb[0].mxu0
      %v991 = vadd.f32 %v732, %v990
      %v992 = vpop.f32.mrb[0].mxu0
      %v993 = vadd.f32 %v732, %v992
      %994 = vdwg.mxu0
      %vm995 = vcmp.ge.f32.partialorder %v991, 0.0
      %vm996 = vcmp.ge.f32.partialorder %v993, 0.0
      %v997 = vmul.f32 %v991, 0.2
      %v998 = vmul.f32 %v993, 0.2
      %v999 = vsel %vm995, %v991, %v997
      %v1000 = vsel %vm996, %v993, %v998
      %1001 = vst [vmem:[#allocation3 + $0x8] sm:$0xff] %v999
      %1002 = vst [vmem:[#allocation3 + $0x10] sm:$0xff] %v1000
      %v1003 = vld [vmem:[#allocation3] sm:$0xff]
      %v1004 = vld [vmem:[#allocation3 + $0x8] sm:$0xff]
      %v1005 = vld [vmem:[#allocation3 + $0x10] sm:$0xff]
      %v1006 = vmul.f32 %v1003, %v468
      %v1007 = vmul.f32 %v1004, %v472
      %v1008 = vmul.f32 %v1005, %v470
      %v1009 = vmul.f32 %v1003, %v485
      %v1010 = vmul.f32 %v1004, %v489
      %v1011 = vmul.f32 %v1005, %v487
      %v1012 = vmul.f32 %v1003, %v500
      %v1013 = vmul.f32 %v1004, %v504
      %v1014 = vmul.f32 %v1005, %v502
      %v1015 = vld [vmem:[#allocation3 + $0x18] sm:$0xff]
      %v1016 = vmul.f32 %v1004, %v517
      %v1017 = vmul.f32 %v1005, %v521
      %v1018 = vmul.f32 %v1015, %v519
      %v1019 = vmul.f32 %v1004, %v532
      %v1020 = vmul.f32 %v1005, %v536
      %v1021 = vmul.f32 %v1015, %v534
      %v1022 = vmul.f32 %v1004, %v547
      %v1023 = vmul.f32 %v1005, %v550
      %v1024 = vmul.f32 %v1015, %v549
      %1028 = vrot.lane.b32.xlu0 %v1003, 127
      %v1029 = vpop.permute.xlu0 %1028
      %1030 = vrot.lane.b32.xlu0 %v1004, 127
      %v1031 = vpop.permute.xlu0 %1030
      %1032 = vrot.lane.b32.xlu0 %v1005, 127
      %v1033 = vpop.permute.xlu0 %1032
      %v1034 = vsel %vm503, %v1029, %v1031
      %v1035 = vsel %vm503, %v1031, %v1033
      %1039 = vrot.lane.b32.xlu0 %v1009, 126
      %v1040 = vpop.permute.xlu0 %1039
      %1041 = vrot.lane.b32.xlu0 %v1010, 126
      %v1042 = vpop.permute.xlu0 %1041
      %1043 = vrot.lane.b32.xlu0 %v1011, 126
      %v1044 = vpop.permute.xlu0 %1043
      %v1045 = vsel %vm600, %v1040, %v1042
      %v1046 = vsel %vm600, %v1042, %v1044
      %1050 = vrot.lane.b32.xlu0 %v1012, 112
      %v1051 = vpop.permute.xlu0 %1050
      %1052 = vrot.lane.b32.xlu0 %v1013, 112
      %v1053 = vpop.permute.xlu0 %1052
      %1054 = vrot.lane.b32.xlu0 %v1014, 112
      %v1055 = vpop.permute.xlu0 %1054
      %v1056 = vsel %vm623, %v1051, %v1053
      %v1057 = vsel %vm623, %v1053, %v1055
      %1058 = vrot.lane.b32.xlu0 %v1004, 111
      %v1059 = vpop.permute.xlu0 %1058
      %1060 = vrot.lane.b32.xlu0 %v1005, 111
      %v1061 = vpop.permute.xlu0 %1060
      %v1062 = vsel %vm471, %v1059, %v1061
      %1066 = vrot.lane.b32.xlu0 %v1016, 110
      %v1067 = vpop.permute.xlu0 %1066
      %1068 = vrot.lane.b32.xlu0 %v1017, 110
      %v1069 = vpop.permute.xlu0 %1068
      %1070 = vrot.lane.b32.xlu0 %v1018, 110
      %v1071 = vpop.permute.xlu0 %1070
      %v1072 = vsel %vm656, %v1067, %v1069
      %v1073 = vsel %vm656, %v1069, %v1071
      %1077 = vrot.lane.b32.xlu0 %v1019, 96
      %v1078 = vpop.permute.xlu0 %1077
      %1079 = vrot.lane.b32.xlu0 %v1020, 96
      %v1080 = vpop.permute.xlu0 %1079
      %1081 = vrot.lane.b32.xlu0 %v1021, 96
      %v1082 = vpop.permute.xlu0 %1081
      %v1083 = vsel %vm679, %v1078, %v1080
      %v1084 = vsel %vm679, %v1080, %v1082
      %1086 = vrot.lane.b32.xlu0 %v1004, 95
      %v1087 = vpop.permute.xlu0 %1086
      %1088 = vrot.lane.b32.xlu0 %v1005, 95
      %v1089 = vpop.permute.xlu0 %1088
      %1090 = vrot.lane.b32.xlu0 %v1015, 95
      %v1091 = vpop.permute.xlu0 %1090
      %v1092 = vsel %vm698, %v1087, %v1089
      %v1093 = vsel %vm698, %v1089, %v1091
      %1097 = vrot.lane.b32.xlu0 %v1022, 94
      %v1098 = vpop.permute.xlu0 %1097
      %1099 = vrot.lane.b32.xlu0 %v1023, 94
      %v1100 = vpop.permute.xlu0 %1099
      %1101 = vrot.lane.b32.xlu0 %v1024, 94
      %v1102 = vpop.permute.xlu0 %1101
      %v1103 = vsel %vm721, %v1098, %v1100
      %v1104 = vsel %vm721, %v1100, %v1102
      %v1105 = vld [vmem:[%s2] sm:$0xff]
      %v1106 = vld [vmem:[%s2 + $0x8] sm:$0xff]
      %v1107 = vld [vmem:[%s7] sm:$0xff]
      %1109 = vset.pattern.permute.xlu0 0
      %1110 = vperm.xlu0 %1109, %v1107
      %v1111 = vpop.permute.xlu0 %1110
      %1116 = vrot.lane.b32.xlu0 %v1006, 17
      %v1117 = vpop.permute.xlu0 %1116
      %1118 = vrot.lane.b32.xlu0 %v1007, 17
      %v1119 = vpop.permute.xlu0 %1118
      %1120 = vrot.lane.b32.xlu0 %v1008, 17
      %v1121 = vpop.permute.xlu0 %1120
      %1122 = vrot.lane.b32.xlu0 %v1034, 17
      %v1123 = vpop.permute.xlu0 %1122
      %1124 = vrot.lane.b32.xlu0 %v1035, 17
      %v1125 = vpop.permute.xlu0 %1124
      %1126 = vrot.lane.b32.xlu0 %v1033, 17
      %v1127 = vpop.permute.xlu0 %1126
      %1128 = vrot.lane.b32.xlu0 %v1045, 17
      %v1129 = vpop.permute.xlu0 %1128
      %1130 = vrot.lane.b32.xlu0 %v1046, 17
      %v1131 = vpop.permute.xlu0 %1130
      %1132 = vrot.lane.b32.xlu0 %v1044, 17
      %v1133 = vpop.permute.xlu0 %1132
      %1134 = vrot.lane.b32.xlu0 %v1056, 17
      %v1135 = vpop.permute.xlu0 %1134
      %1136 = vrot.lane.b32.xlu0 %v1057, 17
      %v1137 = vpop.permute.xlu0 %1136
      %1138 = vrot.lane.b32.xlu0 %v1055, 17
      %v1139 = vpop.permute.xlu0 %1138
      %1140 = vrot.lane.b32.xlu0 %v1059, 17
      %v1141 = vpop.permute.xlu0 %1140
      %1142 = vrot.lane.b32.xlu0 %v1062, 17
      %v1143 = vpop.permute.xlu0 %1142
      %1144 = vrot.lane.b32.xlu0 %v1061, 17
      %v1145 = vpop.permute.xlu0 %1144
      %1146 = vrot.lane.b32.xlu0 %v1067, 17
      %v1147 = vpop.permute.xlu0 %1146
      %1148 = vrot.lane.b32.xlu0 %v1072, 17
      %v1149 = vpop.permute.xlu0 %1148
      %1150 = vrot.lane.b32.xlu0 %v1073, 17
      %v1151 = vpop.permute.xlu0 %1150
      %1152 = vrot.lane.b32.xlu0 %v1078, 17
      %v1153 = vpop.permute.xlu0 %1152
      %1154 = vrot.lane.b32.xlu0 %v1083, 17
      %v1155 = vpop.permute.xlu0 %1154
      %1156 = vrot.lane.b32.xlu0 %v1084, 17
      %v1157 = vpop.permute.xlu0 %1156
      %1158 = vrot.lane.b32.xlu0 %v1087, 17
      %v1159 = vpop.permute.xlu0 %1158
      %1160 = vrot.lane.b32.xlu0 %v1092, 17
      %v1161 = vpop.permute.xlu0 %1160
      %1162 = vrot.lane.b32.xlu0 %v1093, 17
      %v1163 = vpop.permute.xlu0 %1162
      %1164 = vrot.lane.b32.xlu0 %v1098, 17
      %v1165 = vpop.permute.xlu0 %1164
      %1166 = vrot.lane.b32.xlu0 %v1103, 17
      %v1167 = vpop.permute.xlu0 %1166
      %1168 = vrot.lane.b32.xlu0 %v1104, 17
      %v1169 = vpop.permute.xlu0 %1168
      %v1170 = vsel %vm429, %v1117, %v1119
      %v1171 = vsel %vm429, %v1119, %v1121
      %v1172 = vsel %vm429, %v1123, %v1125
      %v1173 = vsel %vm429, %v1125, %v1127
      %v1174 = vsel %vm429, %v1129, %v1131
      %v1175 = vsel %vm429, %v1131, %v1133
      %v1176 = vsel %vm429, %v1135, %v1137
      %v1177 = vsel %vm429, %v1137, %v1139
      %v1178 = vsel %vm429, %v1141, %v1143
      %v1179 = vsel %vm429, %v1143, %v1145
      %v1180 = vsel %vm429, %v1147, %v1149
      %v1181 = vsel %vm429, %v1149, %v1151
      %v1182 = vsel %vm429, %v1153, %v1155
      %v1183 = vsel %vm429, %v1155, %v1157
      %v1184 = vsel %vm429, %v1159, %v1161
      %v1185 = vsel %vm429, %v1161, %v1163
      %v1186 = vsel %vm429, %v1165, %v1167
      %v1187 = vsel %vm429, %v1167, %v1169
      %vm1206 = vcmask 719872
      %v1208 = vsel %vm1206, %v1106, 0
      %1210 = vmatprep.subr.mxu0 %v849
      %1211 = vmatpush1.msra.mxu0 %v848
      %1212 = vmatprep.subr.mxu0 %v851
      %1213 = vmatpush1.msra.mxu0 %v850
      %1214 = vmatprep.subr.mxu0 %v1171
      %1215 = vmatpush1.msra.mxu0 %v1170
      %1216 = vmatprep.subr.mxu0 %v853
      %1217 = vmatpush1.msra.mxu0 %v852
      %1218 = vmatprep.subr.mxu0 %v855
      %1219 = vmatpush1.msra.mxu0 %v854
      %1220 = vmatprep.subr.mxu0 %v1173
      %1221 = vmatpush1.msra.mxu0 %v1172
      %1222 = vmatprep.subr.mxu0 %v857
      %1223 = vmatpush1.msra.mxu0 %v856
      %1224 = vmatprep.subr.mxu0 %v859
      %1225 = vmatpush1.msra.mxu0 %v858
      %1226 = vmatprep.subr.mxu0 %v1175
      %1227 = vmatpush1.msra.mxu0 %v1174
      %1228 = vmatprep.subr.mxu0 %v861
      %1229 = vmatpush1.msra.mxu0 %v860
      %1230 = vmatprep.subr.mxu0 %v863
      %1231 = vmatpush1.msra.mxu0 %v862
      %1232 = vmatprep.subr.mxu0 %v1177
      %1233 = vmatpush1.msra.mxu0 %v1176
      %1234 = vmatprep.subr.mxu0 %v865
      %1235 = vmatpush1.msra.mxu0 %v864
      %1236 = vmatprep.subr.mxu0 %v867
      %1237 = vmatpush1.msra.mxu0 %v866
      %1238 = vmatprep.subr.mxu0 %v1179
      %1239 = vmatpush1.msra.mxu0 %v1178
      %1240 = vmatprep.subr.mxu0 %v869
      %1241 = vmatpush1.msra.mxu0 %v868
      %1242 = vmatprep.subr.mxu0 %v871
      %1243 = vmatpush1.msra.mxu0 %v870
      %1244 = vmatprep.subr.mxu0 %v1181
      %1245 = vmatpush1.msra.mxu0 %v1180
      %1246 = vmatprep.subr.mxu0 %v873
      %1247 = vmatpush1.msra.mxu0 %v872
      %1248 = vmatprep.subr.mxu0 %v875
      %1249 = vmatpush1.msra.mxu0 %v874
      %1250 = vmatprep.subr.mxu0 %v1183
      %1251 = vmatpush1.msra.mxu0 %v1182
      %1252 = vmatprep.subr.mxu0 %v877
      %1253 = vmatpush1.msra.mxu0 %v876
      %1254 = vmatprep.subr.mxu0 %v879
      %1255 = vmatpush1.msra.mxu0 %v878
      %1256 = vmatprep.subr.mxu0 %v1185
      %1257 = vmatpush1.msra.mxu0 %v1184
      %1258 = vmatprep.subr.mxu0 %v881
      %1259 = vmatpush1.msra.mxu0 %v880
      %1260 = vmatprep.subr.mxu0 %v883
      %1261 = vmatpush1.msra.mxu0 %v882
      %1262 = vmatprep.subr.mxu0 %v1187
      %1263 = vmatpush1.msra.mxu0 %v1186
      %1264 = vmatprep.subr.mxu0 0.0
      %1265 = vmatpush1.msra.mxu0 0.0
      %1266 = vmatprep.subr.mxu0 0.0
      %1267 = vmatpush1.msra.mxu0 0.0
      %1268 = vmatprep.subr.mxu0 0.0
      %1269 = vmatpush1.msra.mxu0 0.0
      %1270 = vmatprep.subr.mxu0 0.0
      %1271 = vmatpush1.msra.mxu0 0.0
      %1272 = vmatprep.subr.mxu0 0.0
      %1273 = vmatpush1.msra.mxu0 0.0
      %1274 = vmatprep.mubr.f32.mxu0 %v1208
      %1275 = vmatmul.mubr.f32.gmra.mrb[0].mxu0 %v1105
      %v1276 = vpop.f32.mrb[0].mxu0
      %v1277 = vadd.f32 %v1111, %v1276
      %v1278 = vpop.f32.mrb[0].mxu0
      %v1279 = vadd.f32 %v1111, %v1278
      %1280 = vdwg.mxu0
      %vm1281 = vcmp.ge.f32.partialorder %v1277, 0.0
      %vm1282 = vcmp.ge.f32.partialorder %v1279, 0.0
      %v1283 = vmul.f32 %v1277, 0.2
      %v1284 = vmul.f32 %v1279, 0.2
      %v1285 = vsel %vm1281, %v1277, %v1283
      %v1286 = vsel %vm1282, %v1279, %v1284
      %1287 = vst [vmem:[#allocation4 + $0x8] sm:$0xff] %v1285
      %1288 = vst [vmem:[#allocation4 + $0x10] sm:$0xff] %v1286
      %v1289 = vld [vmem:[#allocation4] sm:$0xff]
      %v1290 = vld [vmem:[#allocation4 + $0x8] sm:$0xff]
      %v1291 = vld [vmem:[#allocation4 + $0x10] sm:$0xff]
      %v1292 = vmul.f32 %v1289, %v468
      %v1293 = vmul.f32 %v1290, %v472
      %v1294 = vmul.f32 %v1291, %v470
      %v1295 = vmul.f32 %v1289, %v485
      %v1296 = vmul.f32 %v1290, %v489
      %v1297 = vmul.f32 %v1291, %v487
      %v1298 = vmul.f32 %v1289, %v500
      %v1299 = vmul.f32 %v1290, %v504
      %v1300 = vmul.f32 %v1291, %v502
      %v1301 = vld [vmem:[#allocation4 + $0x18] sm:$0xff]
      %v1302 = vmul.f32 %v1290, %v517
      %v1303 = vmul.f32 %v1291, %v521
      %v1304 = vmul.f32 %v1301, %v519
      %v1305 = vmul.f32 %v1290, %v532
      %v1306 = vmul.f32 %v1291, %v536
      %v1307 = vmul.f32 %v1301, %v534
      %v1308 = vmul.f32 %v1290, %v547
      %v1309 = vmul.f32 %v1291, %v550
      %v1310 = vmul.f32 %v1301, %v549
      %1314 = vrot.lane.b32.xlu0 %v1289, 127
      %v1315 = vpop.permute.xlu0 %1314
      %1316 = vrot.lane.b32.xlu0 %v1290, 127
      %v1317 = vpop.permute.xlu0 %1316
      %1318 = vrot.lane.b32.xlu0 %v1291, 127
      %v1319 = vpop.permute.xlu0 %1318
      %v1320 = vsel %vm503, %v1315, %v1317
      %v1321 = vsel %vm503, %v1317, %v1319
      %1325 = vrot.lane.b32.xlu0 %v1295, 126
      %v1326 = vpop.permute.xlu0 %1325
      %1327 = vrot.lane.b32.xlu0 %v1296, 126
      %v1328 = vpop.permute.xlu0 %1327
      %1329 = vrot.lane.b32.xlu0 %v1297, 126
      %v1330 = vpop.permute.xlu0 %1329
      %v1331 = vsel %vm600, %v1326, %v1328
      %v1332 = vsel %vm600, %v1328, %v1330
      %1336 = vrot.lane.b32.xlu0 %v1298, 112
      %v1337 = vpop.permute.xlu0 %1336
      %1338 = vrot.lane.b32.xlu0 %v1299, 112
      %v1339 = vpop.permute.xlu0 %1338
      %1340 = vrot.lane.b32.xlu0 %v1300, 112
      %v1341 = vpop.permute.xlu0 %1340
      %v1342 = vsel %vm623, %v1337, %v1339
      %v1343 = vsel %vm623, %v1339, %v1341
      %1344 = vrot.lane.b32.xlu0 %v1290, 111
      %v1345 = vpop.permute.xlu0 %1344
      %1346 = vrot.lane.b32.xlu0 %v1291, 111
      %v1347 = vpop.permute.xlu0 %1346
      %v1348 = vsel %vm471, %v1345, %v1347
      %1349 = vrot.lane.b32.xlu0 %v540, 114
      %v1350 = vpop.permute.xlu0 %1349
      %1351 = vrot.lane.b32.xlu0 %v541, 114
      %v1352 = vpop.permute.xlu0 %1351
      %1353 = vrot.lane.b32.xlu0 %v542, 114
      %v1354 = vpop.permute.xlu0 %1353
      %1355 = vrot.lane.b32.xlu0 %v543, 114
      %v1356 = vpop.permute.xlu0 %1355
      %1357 = vrot.lane.b32.xlu0 %v544, 114
      %v1358 = vpop.permute.xlu0 %1357
      %1359 = vrot.lane.b32.xlu0 %v545, 114
      %v1360 = vpop.permute.xlu0 %1359
      %vm1361 = vcmask 932864
      %v1362 = vsel %vm1361, %v1350, %v1352
      %v1363 = vsel %vm1361, %v1352, %v1354
      %v1364 = vsel %vm1361, %v1356, %v1358
      %v1365 = vsel %vm1361, %v1358, %v1360
      %1366 = vrot.lane.b32.xlu0 %v1019, 114
      %v1367 = vpop.permute.xlu0 %1366
      %1368 = vrot.lane.b32.xlu0 %v1020, 114
      %v1369 = vpop.permute.xlu0 %1368
      %1370 = vrot.lane.b32.xlu0 %v1021, 114
      %v1371 = vpop.permute.xlu0 %1370
      %v1372 = vsel %vm1361, %v1367, %v1369
      %v1373 = vsel %vm1361, %v1369, %v1371
      %1377 = vrot.lane.b32.xlu0 %v1305, 114
      %v1378 = vpop.permute.xlu0 %1377
      %1379 = vrot.lane.b32.xlu0 %v1306, 114
      %v1380 = vpop.permute.xlu0 %1379
      %1381 = vrot.lane.b32.xlu0 %v1307, 114
      %v1382 = vpop.permute.xlu0 %1381
      %v1383 = vsel %vm1361, %v1378, %v1380
      %v1384 = vsel %vm1361, %v1380, %v1382
      %1385 = vrot.lane.b32.xlu0 %v460, 113
      %v1386 = vpop.permute.xlu0 %1385
      %1387 = vrot.lane.b32.xlu0 %v461, 113
      %v1388 = vpop.permute.xlu0 %1387
      %1389 = vrot.lane.b32.xlu0 %v514, 113
      %v1390 = vpop.permute.xlu0 %1389
      %1391 = vrot.lane.b32.xlu0 %v463, 113
      %v1392 = vpop.permute.xlu0 %1391
      %1393 = vrot.lane.b32.xlu0 %v464, 113
      %v1394 = vpop.permute.xlu0 %1393
      %1395 = vrot.lane.b32.xlu0 %v515, 113
      %v1396 = vpop.permute.xlu0 %1395
      %v1397 = vsel %vm488, %v1386, %v1388
      %v1398 = vsel %vm488, %v1388, %v1390
      %v1399 = vsel %vm488, %v1392, %v1394
      %v1400 = vsel %vm488, %v1394, %v1396
      %1401 = vrot.lane.b32.xlu0 %v1004, 113
      %v1402 = vpop.permute.xlu0 %1401
      %1403 = vrot.lane.b32.xlu0 %v1005, 113
      %v1404 = vpop.permute.xlu0 %1403
      %1405 = vrot.lane.b32.xlu0 %v1015, 113
      %v1406 = vpop.permute.xlu0 %1405
      %v1407 = vsel %vm488, %v1402, %v1404
      %v1408 = vsel %vm488, %v1404, %v1406
      %1410 = vrot.lane.b32.xlu0 %v1290, 113
      %v1411 = vpop.permute.xlu0 %1410
      %1412 = vrot.lane.b32.xlu0 %v1291, 113
      %v1413 = vpop.permute.xlu0 %1412
      %1414 = vrot.lane.b32.xlu0 %v1301, 113
      %v1415 = vpop.permute.xlu0 %1414
      %v1416 = vsel %vm488, %v1411, %v1413
      %v1417 = vsel %vm488, %v1413, %v1415
      %1418 = vrot.lane.b32.xlu0 %v554, 112
      %v1419 = vpop.permute.xlu0 %1418
      %1420 = vrot.lane.b32.xlu0 %v555, 112
      %v1421 = vpop.permute.xlu0 %1420
      %1422 = vrot.lane.b32.xlu0 %v556, 112
      %v1423 = vpop.permute.xlu0 %1422
      %1424 = vrot.lane.b32.xlu0 %v557, 112
      %v1425 = vpop.permute.xlu0 %1424
      %1426 = vrot.lane.b32.xlu0 %v558, 112
      %v1427 = vpop.permute.xlu0 %1426
      %1428 = vrot.lane.b32.xlu0 %v559, 112
      %v1429 = vpop.permute.xlu0 %1428
      %v1430 = vsel %vm623, %v1419, %v1421
      %v1431 = vsel %vm623, %v1421, %v1423
      %v1432 = vsel %vm623, %v1425, %v1427
      %v1433 = vsel %vm623, %v1427, %v1429
      %1434 = vrot.lane.b32.xlu0 %v1022, 112
      %v1435 = vpop.permute.xlu0 %1434
      %1436 = vrot.lane.b32.xlu0 %v1023, 112
      %v1437 = vpop.permute.xlu0 %1436
      %1438 = vrot.lane.b32.xlu0 %v1024, 112
      %v1439 = vpop.permute.xlu0 %1438
      %v1440 = vsel %vm623, %v1435, %v1437
      %v1441 = vsel %vm623, %v1437, %v1439
      %1445 = vrot.lane.b32.xlu0 %v1308, 112
      %v1446 = vpop.permute.xlu0 %1445
      %1447 = vrot.lane.b32.xlu0 %v1309, 112
      %v1448 = vpop.permute.xlu0 %1447
      %1449 = vrot.lane.b32.xlu0 %v1310, 112
      %v1450 = vpop.permute.xlu0 %1449
      %v1451 = vsel %vm623, %v1446, %v1448
      %v1452 = vsel %vm623, %v1448, %v1450
      %1456 = vrot.lane.b32.xlu0 %v1302, 110
      %v1457 = vpop.permute.xlu0 %1456
      %1458 = vrot.lane.b32.xlu0 %v1303, 110
      %v1459 = vpop.permute.xlu0 %1458
      %1460 = vrot.lane.b32.xlu0 %v1304, 110
      %v1461 = vpop.permute.xlu0 %1460
      %1462 = vrot.lane.b32.xlu0 %v1362, 110
      %v1463 = vpop.permute.xlu0 %1462
      %1464 = vrot.lane.b32.xlu0 %v1363, 110
      %v1465 = vpop.permute.xlu0 %1464
      %1466 = vrot.lane.b32.xlu0 %v1354, 110
      %v1467 = vpop.permute.xlu0 %1466
      %1468 = vrot.lane.b32.xlu0 %v1364, 110
      %v1469 = vpop.permute.xlu0 %1468
      %1470 = vrot.lane.b32.xlu0 %v1365, 110
      %v1471 = vpop.permute.xlu0 %1470
      %1472 = vrot.lane.b32.xlu0 %v1360, 110
      %v1473 = vpop.permute.xlu0 %1472
      %1474 = vrot.lane.b32.xlu0 %v1372, 110
      %v1475 = vpop.permute.xlu0 %1474
      %1476 = vrot.lane.b32.xlu0 %v1373, 110
      %v1477 = vpop.permute.xlu0 %1476
      %1478 = vrot.lane.b32.xlu0 %v1371, 110
      %v1479 = vpop.permute.xlu0 %1478
      %1480 = vrot.lane.b32.xlu0 %v1383, 110
      %v1481 = vpop.permute.xlu0 %1480
      %1482 = vrot.lane.b32.xlu0 %v1384, 110
      %v1483 = vpop.permute.xlu0 %1482
      %1484 = vrot.lane.b32.xlu0 %v1382, 110
      %v1485 = vpop.permute.xlu0 %1484
      %1486 = vrot.lane.b32.xlu0 %v1397, 110
      %v1487 = vpop.permute.xlu0 %1486
      %1488 = vrot.lane.b32.xlu0 %v1398, 110
      %v1489 = vpop.permute.xlu0 %1488
      %1490 = vrot.lane.b32.xlu0 %v1390, 110
      %v1491 = vpop.permute.xlu0 %1490
      %1492 = vrot.lane.b32.xlu0 %v1399, 110
      %v1493 = vpop.permute.xlu0 %1492
      %1494 = vrot.lane.b32.xlu0 %v1400, 110
      %v1495 = vpop.permute.xlu0 %1494
      %1496 = vrot.lane.b32.xlu0 %v1396, 110
      %v1497 = vpop.permute.xlu0 %1496
      %1498 = vrot.lane.b32.xlu0 %v1407, 110
      %v1499 = vpop.permute.xlu0 %1498
      %1500 = vrot.lane.b32.xlu0 %v1408, 110
      %v1501 = vpop.permute.xlu0 %1500
      %1502 = vrot.lane.b32.xlu0 %v1406, 110
      %v1503 = vpop.permute.xlu0 %1502
      %1504 = vrot.lane.b32.xlu0 %v1416, 110
      %v1505 = vpop.permute.xlu0 %1504
      %1506 = vrot.lane.b32.xlu0 %v1417, 110
      %v1507 = vpop.permute.xlu0 %1506
      %1508 = vrot.lane.b32.xlu0 %v1415, 110
      %v1509 = vpop.permute.xlu0 %1508
      %1510 = vrot.lane.b32.xlu0 %v1430, 110
      %v1511 = vpop.permute.xlu0 %1510
      %1512 = vrot.lane.b32.xlu0 %v1431, 110
      %v1513 = vpop.permute.xlu0 %1512
      %1514 = vrot.lane.b32.xlu0 %v1423, 110
      %v1515 = vpop.permute.xlu0 %1514
      %1516 = vrot.lane.b32.xlu0 %v1432, 110
      %v1517 = vpop.permute.xlu0 %1516
      %1518 = vrot.lane.b32.xlu0 %v1433, 110
      %v1519 = vpop.permute.xlu0 %1518
      %1520 = vrot.lane.b32.xlu0 %v1429, 110
      %v1521 = vpop.permute.xlu0 %1520
      %1522 = vrot.lane.b32.xlu0 %v1440, 110
      %v1523 = vpop.permute.xlu0 %1522
      %1524 = vrot.lane.b32.xlu0 %v1441, 110
      %v1525 = vpop.permute.xlu0 %1524
      %1526 = vrot.lane.b32.xlu0 %v1439, 110
      %v1527 = vpop.permute.xlu0 %1526
      %1528 = vrot.lane.b32.xlu0 %v1451, 110
      %v1529 = vpop.permute.xlu0 %1528
      %1530 = vrot.lane.b32.xlu0 %v1452, 110
      %v1531 = vpop.permute.xlu0 %1530
      %1532 = vrot.lane.b32.xlu0 %v1450, 110
      %v1533 = vpop.permute.xlu0 %1532
      %v1534 = vsel %vm656, %v1457, %v1459
      %v1535 = vsel %vm656, %v1459, %v1461
      %v1536 = vsel %vm656, %v1463, %v1465
      %v1537 = vsel %vm656, %v1465, %v1467
      %v1538 = vsel %vm656, %v1469, %v1471
      %v1539 = vsel %vm656, %v1471, %v1473
      %v1540 = vsel %vm656, %v1475, %v1477
      %v1541 = vsel %vm656, %v1477, %v1479
      %v1542 = vsel %vm656, %v1481, %v1483
      %v1543 = vsel %vm656, %v1483, %v1485
      %v1544 = vsel %vm656, %v1487, %v1489
      %v1545 = vsel %vm656, %v1489, %v1491
      %v1546 = vsel %vm656, %v1493, %v1495
      %v1547 = vsel %vm656, %v1495, %v1497
      %v1548 = vsel %vm656, %v1499, %v1501
      %v1549 = vsel %vm656, %v1501, %v1503
      %v1550 = vsel %vm656, %v1505, %v1507
      %v1551 = vsel %vm656, %v1507, %v1509
      %v1552 = vsel %vm656, %v1511, %v1513
      %v1553 = vsel %vm656, %v1513, %v1515
      %v1554 = vsel %vm656, %v1517, %v1519
      %v1555 = vsel %vm656, %v1519, %v1521
      %v1556 = vsel %vm656, %v1523, %v1525
      %v1557 = vsel %vm656, %v1525, %v1527
      %v1558 = vsel %vm656, %v1529, %v1531
      %v1559 = vsel %vm656, %v1531, %v1533
      %v1560 = vld [vmem:[%s3] sm:$0xff]
      %v1561 = vld [vmem:[%s3 + $0x8] sm:$0xff]
      %v1562 = vld [vmem:[%s3 + $0x10] sm:$0xff]
      %v1563 = vld [vmem:[%s8] sm:$0xff]
      %1565 = vset.pattern.permute.xlu0 0
      %1566 = vperm.xlu0 %1565, %v1563
      %v1567 = vpop.permute.xlu0 %1566
      %1572 = vrot.lane.b32.xlu0 %v1292, 17
      %v1573 = vpop.permute.xlu0 %1572
      %1574 = vrot.lane.b32.xlu0 %v1293, 17
      %v1575 = vpop.permute.xlu0 %1574
      %1576 = vrot.lane.b32.xlu0 %v1294, 17
      %v1577 = vpop.permute.xlu0 %1576
      %1578 = vrot.lane.b32.xlu0 %v1320, 17
      %v1579 = vpop.permute.xlu0 %1578
      %1580 = vrot.lane.b32.xlu0 %v1321, 17
      %v1581 = vpop.permute.xlu0 %1580
      %1582 = vrot.lane.b32.xlu0 %v1319, 17
      %v1583 = vpop.permute.xlu0 %1582
      %1584 = vrot.lane.b32.xlu0 %v1331, 17
      %v1585 = vpop.permute.xlu0 %1584
      %1586 = vrot.lane.b32.xlu0 %v1332, 17
      %v1587 = vpop.permute.xlu0 %1586
      %1588 = vrot.lane.b32.xlu0 %v1330, 17
      %v1589 = vpop.permute.xlu0 %1588
      %1590 = vrot.lane.b32.xlu0 %v1342, 17
      %v1591 = vpop.permute.xlu0 %1590
      %1592 = vrot.lane.b32.xlu0 %v1343, 17
      %v1593 = vpop.permute.xlu0 %1592
      %1594 = vrot.lane.b32.xlu0 %v1341, 17
      %v1595 = vpop.permute.xlu0 %1594
      %1596 = vrot.lane.b32.xlu0 %v1345, 17
      %v1597 = vpop.permute.xlu0 %1596
      %1598 = vrot.lane.b32.xlu0 %v1348, 17
      %v1599 = vpop.permute.xlu0 %1598
      %1600 = vrot.lane.b32.xlu0 %v1347, 17
      %v1601 = vpop.permute.xlu0 %1600
      %1602 = vrot.lane.b32.xlu0 %v1457, 17
      %v1603 = vpop.permute.xlu0 %1602
      %1604 = vrot.lane.b32.xlu0 %v1534, 17
      %v1605 = vpop.permute.xlu0 %1604
      %1606 = vrot.lane.b32.xlu0 %v1535, 17
      %v1607 = vpop.permute.xlu0 %1606
      %1608 = vrot.lane.b32.xlu0 %v1463, 17
      %v1609 = vpop.permute.xlu0 %1608
      %1610 = vrot.lane.b32.xlu0 %v1536, 17
      %v1611 = vpop.permute.xlu0 %1610
      %1612 = vrot.lane.b32.xlu0 %v1537, 17
      %v1613 = vpop.permute.xlu0 %1612
      %1614 = vrot.lane.b32.xlu0 %v1469, 17
      %v1615 = vpop.permute.xlu0 %1614
      %1616 = vrot.lane.b32.xlu0 %v1538, 17
      %v1617 = vpop.permute.xlu0 %1616
      %1618 = vrot.lane.b32.xlu0 %v1539, 17
      %v1619 = vpop.permute.xlu0 %1618
      %1620 = vrot.lane.b32.xlu0 %v1475, 17
      %v1621 = vpop.permute.xlu0 %1620
      %1622 = vrot.lane.b32.xlu0 %v1540, 17
      %v1623 = vpop.permute.xlu0 %1622
      %1624 = vrot.lane.b32.xlu0 %v1541, 17
      %v1625 = vpop.permute.xlu0 %1624
      %1626 = vrot.lane.b32.xlu0 %v1481, 17
      %v1627 = vpop.permute.xlu0 %1626
      %1628 = vrot.lane.b32.xlu0 %v1542, 17
      %v1629 = vpop.permute.xlu0 %1628
      %1630 = vrot.lane.b32.xlu0 %v1543, 17
      %v1631 = vpop.permute.xlu0 %1630
      %1632 = vrot.lane.b32.xlu0 %v1487, 17
      %v1633 = vpop.permute.xlu0 %1632
      %1634 = vrot.lane.b32.xlu0 %v1544, 17
      %v1635 = vpop.permute.xlu0 %1634
      %1636 = vrot.lane.b32.xlu0 %v1545, 17
      %v1637 = vpop.permute.xlu0 %1636
      %1638 = vrot.lane.b32.xlu0 %v1493, 17
      %v1639 = vpop.permute.xlu0 %1638
      %1640 = vrot.lane.b32.xlu0 %v1546, 17
      %v1641 = vpop.permute.xlu0 %1640
      %1642 = vrot.lane.b32.xlu0 %v1547, 17
      %v1643 = vpop.permute.xlu0 %1642
      %1644 = vrot.lane.b32.xlu0 %v1499, 17
      %v1645 = vpop.permute.xlu0 %1644
      %1646 = vrot.lane.b32.xlu0 %v1548, 17
      %v1647 = vpop.permute.xlu0 %1646
      %1648 = vrot.lane.b32.xlu0 %v1549, 17
      %v1649 = vpop.permute.xlu0 %1648
      %1650 = vrot.lane.b32.xlu0 %v1505, 17
      %v1651 = vpop.permute.xlu0 %1650
      %1652 = vrot.lane.b32.xlu0 %v1550, 17
      %v1653 = vpop.permute.xlu0 %1652
      %1654 = vrot.lane.b32.xlu0 %v1551, 17
      %v1655 = vpop.permute.xlu0 %1654
      %1656 = vrot.lane.b32.xlu0 %v1511, 17
      %v1657 = vpop.permute.xlu0 %1656
      %1658 = vrot.lane.b32.xlu0 %v1552, 17
      %v1659 = vpop.permute.xlu0 %1658
      %1660 = vrot.lane.b32.xlu0 %v1553, 17
      %v1661 = vpop.permute.xlu0 %1660
      %1662 = vrot.lane.b32.xlu0 %v1517, 17
      %v1663 = vpop.permute.xlu0 %1662
      %1664 = vrot.lane.b32.xlu0 %v1554, 17
      %v1665 = vpop.permute.xlu0 %1664
      %1666 = vrot.lane.b32.xlu0 %v1555, 17
      %v1667 = vpop.permute.xlu0 %1666
      %1668 = vrot.lane.b32.xlu0 %v1523, 17
      %v1669 = vpop.permute.xlu0 %1668
      %1670 = vrot.lane.b32.xlu0 %v1556, 17
      %v1671 = vpop.permute.xlu0 %1670
      %1672 = vrot.lane.b32.xlu0 %v1557, 17
      %v1673 = vpop.permute.xlu0 %1672
      %1674 = vrot.lane.b32.xlu0 %v1529, 17
      %v1675 = vpop.permute.xlu0 %1674
      %1676 = vrot.lane.b32.xlu0 %v1558, 17
      %v1677 = vpop.permute.xlu0 %1676
      %1678 = vrot.lane.b32.xlu0 %v1559, 17
      %v1679 = vpop.permute.xlu0 %1678
      %v1680 = vsel %vm429, %v1573, %v1575
      %v1681 = vsel %vm429, %v1575, %v1577
      %v1682 = vsel %vm429, %v1579, %v1581
      %v1683 = vsel %vm429, %v1581, %v1583
      %v1684 = vsel %vm429, %v1585, %v1587
      %v1685 = vsel %vm429, %v1587, %v1589
      %v1686 = vsel %vm429, %v1591, %v1593
      %v1687 = vsel %vm429, %v1593, %v1595
      %v1688 = vsel %vm429, %v1597, %v1599
      %v1689 = vsel %vm429, %v1599, %v1601
      %v1690 = vsel %vm429, %v1603, %v1605
      %v1691 = vsel %vm429, %v1605, %v1607
      %v1692 = vsel %vm429, %v1609, %v1611
      %v1693 = vsel %vm429, %v1611, %v1613
      %v1694 = vsel %vm429, %v1615, %v1617
      %v1695 = vsel %vm429, %v1617, %v1619
      %v1696 = vsel %vm429, %v1621, %v1623
      %v1697 = vsel %vm429, %v1623, %v1625
      %v1698 = vsel %vm429, %v1627, %v1629
      %v1699 = vsel %vm429, %v1629, %v1631
      %v1700 = vsel %vm429, %v1633, %v1635
      %v1701 = vsel %vm429, %v1635, %v1637
      %v1702 = vsel %vm429, %v1639, %v1641
      %v1703 = vsel %vm429, %v1641, %v1643
      %v1704 = vsel %vm429, %v1645, %v1647
      %v1705 = vsel %vm429, %v1647, %v1649
      %v1706 = vsel %vm429, %v1651, %v1653
      %v1707 = vsel %vm429, %v1653, %v1655
      %v1708 = vsel %vm429, %v1657, %v1659
      %v1709 = vsel %vm429, %v1659, %v1661
      %v1710 = vsel %vm429, %v1663, %v1665
      %v1711 = vsel %vm429, %v1665, %v1667
      %v1712 = vsel %vm429, %v1669, %v1671
      %v1713 = vsel %vm429, %v1671, %v1673
      %v1714 = vsel %vm429, %v1675, %v1677
      %v1715 = vsel %vm429, %v1677, %v1679
      %vm1752 = vcmask 261120
      %v1754 = vsel %vm1752, %v1562, 0
      %1756 = vmatprep.subr.mxu0 %v849
      %1757 = vmatpush1.msra.mxu0 %v848
      %1758 = vmatprep.subr.mxu0 %v851
      %1759 = vmatpush1.msra.mxu0 %v850
      %1760 = vmatprep.subr.mxu0 %v1171
      %1761 = vmatpush1.msra.mxu0 %v1170
      %1762 = vmatprep.subr.mxu0 %v1681
      %1763 = vmatpush1.msra.mxu0 %v1680
      %1764 = vmatprep.subr.mxu0 %v853
      %1765 = vmatpush1.msra.mxu0 %v852
      %1766 = vmatprep.subr.mxu0 %v855
      %1767 = vmatpush1.msra.mxu0 %v854
      %1768 = vmatprep.subr.mxu0 %v1173
      %1769 = vmatpush1.msra.mxu0 %v1172
      %1770 = vmatprep.subr.mxu0 %v1683
      %1771 = vmatpush1.msra.mxu0 %v1682
      %1772 = vmatprep.subr.mxu0 %v857
      %1773 = vmatpush1.msra.mxu0 %v856
      %1774 = vmatprep.subr.mxu0 %v859
      %1775 = vmatpush1.msra.mxu0 %v858
      %1776 = vmatprep.subr.mxu0 %v1175
      %1777 = vmatpush1.msra.mxu0 %v1174
      %1778 = vmatprep.subr.mxu0 %v1685
      %1779 = vmatpush1.msra.mxu0 %v1684
      %1780 = vmatprep.subr.mxu0 %v861
      %1781 = vmatpush1.msra.mxu0 %v860
      %1782 = vmatprep.subr.mxu0 %v863
      %1783 = vmatpush1.msra.mxu0 %v862
      %1784 = vmatprep.subr.mxu0 %v1177
      %1785 = vmatpush1.msra.mxu0 %v1176
      %1786 = vmatprep.subr.mxu0 %v1687
      %1787 = vmatpush1.msra.mxu0 %v1686
      %1788 = vmatprep.subr.mxu0 %v865
      %1789 = vmatpush1.msra.mxu0 %v864
      %1790 = vmatprep.subr.mxu0 %v867
      %1791 = vmatpush1.msra.mxu0 %v866
      %1792 = vmatprep.subr.mxu0 %v1179
      %1793 = vmatpush1.msra.mxu0 %v1178
      %1794 = vmatprep.subr.mxu0 %v1689
      %1795 = vmatpush1.msra.mxu0 %v1688
      %1796 = vmatprep.subr.mxu0 %v869
      %1797 = vmatpush1.msra.mxu0 %v868
      %1798 = vmatprep.subr.mxu0 %v871
      %1799 = vmatpush1.msra.mxu0 %v870
      %1800 = vmatprep.subr.mxu0 %v1181
      %1801 = vmatpush1.msra.mxu0 %v1180
      %1802 = vmatprep.subr.mxu0 %v1691
      %1803 = vmatpush1.msra.mxu0 %v1690
      %1804 = vmatprep.subr.mxu0 %v1693
      %1805 = vmatpush1.msra.mxu0 %v1692
      %1806 = vmatprep.subr.mxu0 %v1695
      %1807 = vmatpush1.msra.mxu0 %v1694
      %1808 = vmatprep.subr.mxu0 %v1697
      %1809 = vmatpush1.msra.mxu0 %v1696
      %1810 = vmatprep.subr.mxu0 %v1699
      %1811 = vmatpush1.msra.mxu0 %v1698
      %1812 = vmatprep.subr.mxu0 %v1701
      %1813 = vmatpush1.msra.mxu0 %v1700
      %1814 = vmatprep.subr.mxu0 %v1703
      %1815 = vmatpush1.msra.mxu0 %v1702
      %1816 = vmatprep.subr.mxu0 %v1705
      %1817 = vmatpush1.msra.mxu0 %v1704
      %1818 = vmatprep.subr.mxu0 %v1707
      %1819 = vmatpush1.msra.mxu0 %v1706
      %1820 = vmatprep.mubr.f32.mxu0 %v1561
      %1821 = vmatmul.mubr.f32.gmra.mrb[0].mxu0 %v1560
      %v1822 = vpop.f32.mrb[0].mxu0
      %v1823 = vadd.f32 %v1567, %v1822
      %v1824 = vpop.f32.mrb[0].mxu0
      %v1825 = vadd.f32 %v1567, %v1824
      %1826 = vdwg.mxu0
      %1827 = vmatprep.subr.mxu0 %v1709
      %1828 = vmatpush1.msra.mxu0 %v1708
      %1829 = vmatprep.subr.mxu0 %v1711
      %1830 = vmatpush1.msra.mxu0 %v1710
      %1831 = vmatprep.subr.mxu0 %v1713
      %1832 = vmatpush1.msra.mxu0 %v1712
      %1833 = vmatprep.subr.mxu0 %v1715
      %1834 = vmatpush1.msra.mxu0 %v1714
      %1835 = vmatprep.subr.mxu0 0.0
      %1836 = vmatpush1.msra.mxu0 0.0
      %1837 = vmatprep.subr.mxu0 0.0
      %1838 = vmatpush1.msra.mxu0 0.0
      %1839 = vmatprep.subr.mxu0 0.0
      %1840 = vmatpush1.msra.mxu0 0.0
      %1841 = vmatprep.subr.mxu0 0.0
      %1842 = vmatpush1.msra.mxu0 0.0
      %1843 = vmatprep.subr.mxu0 0.0
      %1844 = vmatpush1.msra.mxu0 0.0
      %1845 = vmatprep.subr.mxu0 0.0
      %1846 = vmatpush1.msra.mxu0 0.0
      %1847 = vmatprep.subr.mxu0 0.0
      %1848 = vmatpush1.msra.mxu0 0.0
      %1849 = vmatprep.subr.mxu0 0.0
      %1850 = vmatpush1.msra.mxu0 0.0
      %1851 = vmatprep.subr.mxu0 0.0
      %1852 = vmatpush1.msra.mxu0 0.0
      %1853 = vmatprep.subr.mxu0 0.0
      %1854 = vmatpush1.msra.mxu0 0.0
      %1855 = vmatprep.subr.mxu0 0.0
      %1856 = vmatpush1.msra.mxu0 0.0
      %1857 = vmatprep.subr.mxu0 0.0
      %1858 = vmatpush1.msra.mxu0 0.0
      %1859 = vmatprep.subr.mxu0 0.0
      %1860 = vmatpush1.msra.mxu0 0.0
      %1861 = vmatprep.subr.mxu0 0.0
      %1862 = vmatpush1.msra.mxu0 0.0
      %1863 = vmatprep.subr.mxu0 0.0
      %1864 = vmatpush1.msra.mxu0 0.0
      %1865 = vmatprep.subr.mxu0 0.0
      %1866 = vmatpush1.msra.mxu0 0.0
      %1867 = vmatprep.subr.mxu0 0.0
      %1868 = vmatpush1.msra.mxu0 0.0
      %1869 = vmatprep.subr.mxu0 0.0
      %1870 = vmatpush1.msra.mxu0 0.0
      %1871 = vmatprep.subr.mxu0 0.0
      %1872 = vmatpush1.msra.mxu0 0.0
      %1873 = vmatprep.subr.mxu0 0.0
      %1874 = vmatpush1.msra.mxu0 0.0
      %1875 = vmatprep.subr.mxu0 0.0
      %1876 = vmatpush1.msra.mxu0 0.0
      %1877 = vmatprep.subr.mxu0 0.0
      %1878 = vmatpush1.msra.mxu0 0.0
      %1879 = vmatprep.subr.mxu0 0.0
      %1880 = vmatpush1.msra.mxu0 0.0
      %1881 = vmatprep.subr.mxu0 0.0
      %1882 = vmatpush1.msra.mxu0 0.0
      %1883 = vmatprep.subr.mxu0 0.0
      %1884 = vmatpush1.msra.mxu0 0.0
      %1885 = vmatprep.subr.mxu0 0.0
      %1886 = vmatpush1.msra.mxu0 0.0
      %1887 = vmatprep.subr.mxu0 0.0
      %1888 = vmatpush1.msra.mxu0 0.0
      %1889 = vmatprep.subr.mxu0 0.0
      %1890 = vmatpush1.msra.mxu0 0.0
      %1891 = vmatprep.mubr.f32.mxu0 0.0
      %1892 = vmatmul.mubr.f32.gmra.mrb[0].mxu0 %v1754
      %v1893 = vpop.f32.mrb[0].mxu0
      %v1894 = vadd.f32 %v1823, %v1893
      %v1895 = vpop.f32.mrb[0].mxu0
      %v1896 = vadd.f32 %v1825, %v1895
      %1897 = vdwg.mxu0
      %vm1898 = vcmp.ge.f32.partialorder %v1894, 0.0
      %vm1899 = vcmp.ge.f32.partialorder %v1896, 0.0
      %v1900 = vmul.f32 %v1894, 0.2
      %v1901 = vmul.f32 %v1896, 0.2
      %v1902 = vsel %vm1898, %v1894, %v1900
      %v1903 = vsel %vm1899, %v1896, %v1901
      %1904 = vst [vmem:[#allocation5 + $0x8] sm:$0xff] %v1902
      %1905 = vst [vmem:[#allocation5 + $0x10] sm:$0xff] %v1903
      %v1906 = vld [vmem:[#allocation5] sm:$0xff]
      %v1907 = vld [vmem:[#allocation5 + $0x8] sm:$0xff]
      %v1908 = vld [vmem:[#allocation5 + $0x10] sm:$0xff]
      %v1909 = vmul.f32 %v1906, %v468
      %v1910 = vmul.f32 %v1907, %v472
      %v1911 = vmul.f32 %v1908, %v470
      %v1912 = vmul.f32 %v1906, %v485
      %v1913 = vmul.f32 %v1907, %v489
      %v1914 = vmul.f32 %v1908, %v487
      %v1915 = vmul.f32 %v1906, %v500
      %v1916 = vmul.f32 %v1907, %v504
      %v1917 = vmul.f32 %v1908, %v502
      %v1918 = vld [vmem:[#allocation5 + $0x18] sm:$0xff]
      %v1919 = vmul.f32 %v1907, %v517
      %v1920 = vmul.f32 %v1908, %v521
      %v1921 = vmul.f32 %v1918, %v519
      %v1922 = vmul.f32 %v1907, %v532
      %v1923 = vmul.f32 %v1908, %v536
      %v1924 = vmul.f32 %v1918, %v534
      %v1925 = vmul.f32 %v1907, %v547
      %v1926 = vmul.f32 %v1908, %v550
      %v1927 = vmul.f32 %v1918, %v549
      %1931 = vrot.lane.b32.xlu0 %v1906, 127
      %v1932 = vpop.permute.xlu0 %1931
      %1933 = vrot.lane.b32.xlu0 %v1907, 127
      %v1934 = vpop.permute.xlu0 %1933
      %1935 = vrot.lane.b32.xlu0 %v1908, 127
      %v1936 = vpop.permute.xlu0 %1935
      %v1937 = vsel %vm503, %v1932, %v1934
      %v1938 = vsel %vm503, %v1934, %v1936
      %1942 = vrot.lane.b32.xlu0 %v1912, 126
      %v1943 = vpop.permute.xlu0 %1942
      %1944 = vrot.lane.b32.xlu0 %v1913, 126
      %v1945 = vpop.permute.xlu0 %1944
      %1946 = vrot.lane.b32.xlu0 %v1914, 126
      %v1947 = vpop.permute.xlu0 %1946
      %v1948 = vsel %vm600, %v1943, %v1945
      %v1949 = vsel %vm600, %v1945, %v1947
      %1953 = vrot.lane.b32.xlu0 %v1915, 112
      %v1954 = vpop.permute.xlu0 %1953
      %1955 = vrot.lane.b32.xlu0 %v1916, 112
      %v1956 = vpop.permute.xlu0 %1955
      %1957 = vrot.lane.b32.xlu0 %v1917, 112
      %v1958 = vpop.permute.xlu0 %1957
      %v1959 = vsel %vm623, %v1954, %v1956
      %v1960 = vsel %vm623, %v1956, %v1958
      %1961 = vrot.lane.b32.xlu0 %v525, 127
      %v1962 = vpop.permute.xlu0 %1961
      %1963 = vrot.lane.b32.xlu0 %v526, 127
      %v1964 = vpop.permute.xlu0 %1963
      %1965 = vrot.lane.b32.xlu0 %v527, 127
      %v1966 = vpop.permute.xlu0 %1965
      %1967 = vrot.lane.b32.xlu0 %v528, 127
      %v1968 = vpop.permute.xlu0 %1967
      %1969 = vrot.lane.b32.xlu0 %v529, 127
      %v1970 = vpop.permute.xlu0 %1969
      %1971 = vrot.lane.b32.xlu0 %v530, 127
      %v1972 = vpop.permute.xlu0 %1971
      %v1973 = vsel %vm503, %v1962, %v1964
      %v1974 = vsel %vm503, %v1964, %v1966
      %v1975 = vsel %vm503, %v1968, %v1970
      %v1976 = vsel %vm503, %v1970, %v1972
      %1977 = vrot.lane.b32.xlu0 %v1016, 127
      %v1978 = vpop.permute.xlu0 %1977
      %1979 = vrot.lane.b32.xlu0 %v1017, 127
      %v1980 = vpop.permute.xlu0 %1979
      %1981 = vrot.lane.b32.xlu0 %v1018, 127
      %v1982 = vpop.permute.xlu0 %1981
      %v1983 = vsel %vm503, %v1978, %v1980
      %v1984 = vsel %vm503, %v1980, %v1982
      %1985 = vrot.lane.b32.xlu0 %v1302, 127
      %v1986 = vpop.permute.xlu0 %1985
      %1987 = vrot.lane.b32.xlu0 %v1303, 127
      %v1988 = vpop.permute.xlu0 %1987
      %1989 = vrot.lane.b32.xlu0 %v1304, 127
      %v1990 = vpop.permute.xlu0 %1989
      %v1991 = vsel %vm503, %v1986, %v1988
      %v1992 = vsel %vm503, %v1988, %v1990
      %1996 = vrot.lane.b32.xlu0 %v1919, 127
      %v1997 = vpop.permute.xlu0 %1996
      %1998 = vrot.lane.b32.xlu0 %v1920, 127
      %v1999 = vpop.permute.xlu0 %1998
      %2000 = vrot.lane.b32.xlu0 %v1921, 127
      %v2001 = vpop.permute.xlu0 %2000
      %v2002 = vsel %vm503, %v1997, %v1999
      %v2003 = vsel %vm503, %v1999, %v2001
      %2004 = vrot.lane.b32.xlu0 %v540, 113
      %v2005 = vpop.permute.xlu0 %2004
      %2006 = vrot.lane.b32.xlu0 %v541, 113
      %v2007 = vpop.permute.xlu0 %2006
      %2008 = vrot.lane.b32.xlu0 %v542, 113
      %v2009 = vpop.permute.xlu0 %2008
      %2010 = vrot.lane.b32.xlu0 %v543, 113
      %v2011 = vpop.permute.xlu0 %2010
      %2012 = vrot.lane.b32.xlu0 %v544, 113
      %v2013 = vpop.permute.xlu0 %2012
      %2014 = vrot.lane.b32.xlu0 %v545, 113
      %v2015 = vpop.permute.xlu0 %2014
      %v2016 = vsel %vm488, %v2005, %v2007
      %v2017 = vsel %vm488, %v2007, %v2009
      %v2018 = vsel %vm488, %v2011, %v2013
      %v2019 = vsel %vm488, %v2013, %v2015
      %2020 = vrot.lane.b32.xlu0 %v1019, 113
      %v2021 = vpop.permute.xlu0 %2020
      %2022 = vrot.lane.b32.xlu0 %v1020, 113
      %v2023 = vpop.permute.xlu0 %2022
      %2024 = vrot.lane.b32.xlu0 %v1021, 113
      %v2025 = vpop.permute.xlu0 %2024
      %v2026 = vsel %vm488, %v2021, %v2023
      %v2027 = vsel %vm488, %v2023, %v2025
      %2028 = vrot.lane.b32.xlu0 %v1305, 113
      %v2029 = vpop.permute.xlu0 %2028
      %2030 = vrot.lane.b32.xlu0 %v1306, 113
      %v2031 = vpop.permute.xlu0 %2030
      %2032 = vrot.lane.b32.xlu0 %v1307, 113
      %v2033 = vpop.permute.xlu0 %2032
      %v2034 = vsel %vm488, %v2029, %v2031
      %v2035 = vsel %vm488, %v2031, %v2033
      %2039 = vrot.lane.b32.xlu0 %v1922, 113
      %v2040 = vpop.permute.xlu0 %2039
      %2041 = vrot.lane.b32.xlu0 %v1923, 113
      %v2042 = vpop.permute.xlu0 %2041
      %2043 = vrot.lane.b32.xlu0 %v1924, 113
      %v2044 = vpop.permute.xlu0 %2043
      %v2045 = vsel %vm488, %v2040, %v2042
      %v2046 = vsel %vm488, %v2042, %v2044
      %2047 = vrot.lane.b32.xlu0 %v460, 112
      %v2048 = vpop.permute.xlu0 %2047
      %2049 = vrot.lane.b32.xlu0 %v461, 112
      %v2050 = vpop.permute.xlu0 %2049
      %2051 = vrot.lane.b32.xlu0 %v514, 112
      %v2052 = vpop.permute.xlu0 %2051
      %2053 = vrot.lane.b32.xlu0 %v463, 112
      %v2054 = vpop.permute.xlu0 %2053
      %2055 = vrot.lane.b32.xlu0 %v464, 112
      %v2056 = vpop.permute.xlu0 %2055
      %2057 = vrot.lane.b32.xlu0 %v515, 112
      %v2058 = vpop.permute.xlu0 %2057
      %v2059 = vsel %vm623, %v2048, %v2050
      %v2060 = vsel %vm623, %v2050, %v2052
      %v2061 = vsel %vm623, %v2054, %v2056
      %v2062 = vsel %vm623, %v2056, %v2058
      %2063 = vrot.lane.b32.xlu0 %v1004, 112
      %v2064 = vpop.permute.xlu0 %2063
      %2065 = vrot.lane.b32.xlu0 %v1005, 112
      %v2066 = vpop.permute.xlu0 %2065
      %2067 = vrot.lane.b32.xlu0 %v1015, 112
      %v2068 = vpop.permute.xlu0 %2067
      %v2069 = vsel %vm623, %v2064, %v2066
      %v2070 = vsel %vm623, %v2066, %v2068
      %2071 = vrot.lane.b32.xlu0 %v1290, 112
      %v2072 = vpop.permute.xlu0 %2071
      %2073 = vrot.lane.b32.xlu0 %v1291, 112
      %v2074 = vpop.permute.xlu0 %2073
      %2075 = vrot.lane.b32.xlu0 %v1301, 112
      %v2076 = vpop.permute.xlu0 %2075
      %v2077 = vsel %vm623, %v2072, %v2074
      %v2078 = vsel %vm623, %v2074, %v2076
      %2080 = vrot.lane.b32.xlu0 %v1907, 112
      %v2081 = vpop.permute.xlu0 %2080
      %2082 = vrot.lane.b32.xlu0 %v1908, 112
      %v2083 = vpop.permute.xlu0 %2082
      %2084 = vrot.lane.b32.xlu0 %v1918, 112
      %v2085 = vpop.permute.xlu0 %2084
      %v2086 = vsel %vm623, %v2081, %v2083
      %v2087 = vsel %vm623, %v2083, %v2085
      %2088 = vrot.lane.b32.xlu0 %v1907, 111
      %v2089 = vpop.permute.xlu0 %2088
      %2090 = vrot.lane.b32.xlu0 %v1908, 111
      %v2091 = vpop.permute.xlu0 %2090
      %2092 = vrot.lane.b32.xlu0 %v1973, 111
      %v2093 = vpop.permute.xlu0 %2092
      %2094 = vrot.lane.b32.xlu0 %v1974, 111
      %v2095 = vpop.permute.xlu0 %2094
      %2096 = vrot.lane.b32.xlu0 %v1975, 111
      %v2097 = vpop.permute.xlu0 %2096
      %2098 = vrot.lane.b32.xlu0 %v1976, 111
      %v2099 = vpop.permute.xlu0 %2098
      %2100 = vrot.lane.b32.xlu0 %v1983, 111
      %v2101 = vpop.permute.xlu0 %2100
      %2102 = vrot.lane.b32.xlu0 %v1984, 111
      %v2103 = vpop.permute.xlu0 %2102
      %2104 = vrot.lane.b32.xlu0 %v1991, 111
      %v2105 = vpop.permute.xlu0 %2104
      %2106 = vrot.lane.b32.xlu0 %v1992, 111
      %v2107 = vpop.permute.xlu0 %2106
      %2108 = vrot.lane.b32.xlu0 %v2002, 111
      %v2109 = vpop.permute.xlu0 %2108
      %2110 = vrot.lane.b32.xlu0 %v2003, 111
      %v2111 = vpop.permute.xlu0 %2110
      %2112 = vrot.lane.b32.xlu0 %v2016, 111
      %v2113 = vpop.permute.xlu0 %2112
      %2114 = vrot.lane.b32.xlu0 %v2017, 111
      %v2115 = vpop.permute.xlu0 %2114
      %2116 = vrot.lane.b32.xlu0 %v2018, 111
      %v2117 = vpop.permute.xlu0 %2116
      %2118 = vrot.lane.b32.xlu0 %v2019, 111
      %v2119 = vpop.permute.xlu0 %2118
      %2120 = vrot.lane.b32.xlu0 %v2026, 111
      %v2121 = vpop.permute.xlu0 %2120
      %2122 = vrot.lane.b32.xlu0 %v2027, 111
      %v2123 = vpop.permute.xlu0 %2122
      %2124 = vrot.lane.b32.xlu0 %v2034, 111
      %v2125 = vpop.permute.xlu0 %2124
      %2126 = vrot.lane.b32.xlu0 %v2035, 111
      %v2127 = vpop.permute.xlu0 %2126
      %2128 = vrot.lane.b32.xlu0 %v2045, 111
      %v2129 = vpop.permute.xlu0 %2128
      %2130 = vrot.lane.b32.xlu0 %v2046, 111
      %v2131 = vpop.permute.xlu0 %2130
      %2132 = vrot.lane.b32.xlu0 %v2059, 111
      %v2133 = vpop.permute.xlu0 %2132
      %2134 = vrot.lane.b32.xlu0 %v2060, 111
      %v2135 = vpop.permute.xlu0 %2134
      %2136 = vrot.lane.b32.xlu0 %v2061, 111
      %v2137 = vpop.permute.xlu0 %2136
      %2138 = vrot.lane.b32.xlu0 %v2062, 111
      %v2139 = vpop.permute.xlu0 %2138
      %2140 = vrot.lane.b32.xlu0 %v2069, 111
      %v2141 = vpop.permute.xlu0 %2140
      %2142 = vrot.lane.b32.xlu0 %v2070, 111
      %v2143 = vpop.permute.xlu0 %2142
      %2144 = vrot.lane.b32.xlu0 %v2077, 111
      %v2145 = vpop.permute.xlu0 %2144
      %2146 = vrot.lane.b32.xlu0 %v2078, 111
      %v2147 = vpop.permute.xlu0 %2146
      %2148 = vrot.lane.b32.xlu0 %v2086, 111
      %v2149 = vpop.permute.xlu0 %2148
      %2150 = vrot.lane.b32.xlu0 %v2087, 111
      %v2151 = vpop.permute.xlu0 %2150
      %v2152 = vsel %vm471, %v2089, %v2091
      %v2153 = vsel %vm471, %v2093, %v2095
      %v2154 = vsel %vm471, %v2097, %v2099
      %v2155 = vsel %vm471, %v2101, %v2103
      %v2156 = vsel %vm471, %v2105, %v2107
      %v2157 = vsel %vm471, %v2109, %v2111
      %v2158 = vsel %vm471, %v2113, %v2115
      %v2159 = vsel %vm471, %v2117, %v2119
      %v2160 = vsel %vm471, %v2121, %v2123
      %v2161 = vsel %vm471, %v2125, %v2127
      %v2162 = vsel %vm471, %v2129, %v2131
      %v2163 = vsel %vm471, %v2133, %v2135
      %v2164 = vsel %vm471, %v2137, %v2139
      %v2165 = vsel %vm471, %v2141, %v2143
      %v2166 = vsel %vm471, %v2145, %v2147
      %v2167 = vsel %vm471, %v2149, %v2151
      %2171 = vrot.lane.b32.xlu0 %v1308, 94
      %v2172 = vpop.permute.xlu0 %2171
      %2173 = vrot.lane.b32.xlu0 %v1309, 94
      %v2174 = vpop.permute.xlu0 %2173
      %2175 = vrot.lane.b32.xlu0 %v1310, 94
      %v2176 = vpop.permute.xlu0 %2175
      %2177 = vrot.lane.b32.xlu0 %v1925, 94
      %v2178 = vpop.permute.xlu0 %2177
      %2179 = vrot.lane.b32.xlu0 %v1926, 94
      %v2180 = vpop.permute.xlu0 %2179
      %2181 = vrot.lane.b32.xlu0 %v1927, 94
      %v2182 = vpop.permute.xlu0 %2181
      %v2183 = vsel %vm721, %v2172, %v2174
      %v2184 = vsel %vm721, %v2174, %v2176
      %v2185 = vsel %vm721, %v2178, %v2180
      %v2186 = vsel %vm721, %v2180, %v2182
      %v2187 = vld [vmem:[%s4] sm:$0xff]
      %v2188 = vld [vmem:[%s4 + $0x8] sm:$0xff]
      %v2189 = vld [vmem:[%s4 + $0x10] sm:$0xff]
      %v2190 = vld [vmem:[%s9] sm:$0xff]
      %2192 = vset.pattern.permute.xlu0 0
      %2193 = vperm.xlu0 %2192, %v2190
      %v2194 = vpop.permute.xlu0 %2193
      %2199 = vrot.lane.b32.xlu0 %v1909, 17
      %v2200 = vpop.permute.xlu0 %2199
      %2201 = vrot.lane.b32.xlu0 %v1910, 17
      %v2202 = vpop.permute.xlu0 %2201
      %2203 = vrot.lane.b32.xlu0 %v1911, 17
      %v2204 = vpop.permute.xlu0 %2203
      %2205 = vrot.lane.b32.xlu0 %v1937, 17
      %v2206 = vpop.permute.xlu0 %2205
      %2207 = vrot.lane.b32.xlu0 %v1938, 17
      %v2208 = vpop.permute.xlu0 %2207
      %2209 = vrot.lane.b32.xlu0 %v1936, 17
      %v2210 = vpop.permute.xlu0 %2209
      %2211 = vrot.lane.b32.xlu0 %v1948, 17
      %v2212 = vpop.permute.xlu0 %2211
      %2213 = vrot.lane.b32.xlu0 %v1949, 17
      %v2214 = vpop.permute.xlu0 %2213
      %2215 = vrot.lane.b32.xlu0 %v1947, 17
      %v2216 = vpop.permute.xlu0 %2215
      %2217 = vrot.lane.b32.xlu0 %v1959, 17
      %v2218 = vpop.permute.xlu0 %2217
      %2219 = vrot.lane.b32.xlu0 %v1960, 17
      %v2220 = vpop.permute.xlu0 %2219
      %2221 = vrot.lane.b32.xlu0 %v1958, 17
      %v2222 = vpop.permute.xlu0 %2221
      %2223 = vrot.lane.b32.xlu0 %v2089, 17
      %v2224 = vpop.permute.xlu0 %2223
      %2225 = vrot.lane.b32.xlu0 %v2152, 17
      %v2226 = vpop.permute.xlu0 %2225
      %2227 = vrot.lane.b32.xlu0 %v2091, 17
      %v2228 = vpop.permute.xlu0 %2227
      %2229 = vrot.lane.b32.xlu0 %v2093, 17
      %v2230 = vpop.permute.xlu0 %2229
      %2231 = vrot.lane.b32.xlu0 %v2153, 17
      %v2232 = vpop.permute.xlu0 %2231
      %2233 = vrot.lane.b32.xlu0 %v2095, 17
      %v2234 = vpop.permute.xlu0 %2233
      %2235 = vrot.lane.b32.xlu0 %v2097, 17
      %v2236 = vpop.permute.xlu0 %2235
      %2237 = vrot.lane.b32.xlu0 %v2154, 17
      %v2238 = vpop.permute.xlu0 %2237
      %2239 = vrot.lane.b32.xlu0 %v2099, 17
      %v2240 = vpop.permute.xlu0 %2239
      %2241 = vrot.lane.b32.xlu0 %v2101, 17
      %v2242 = vpop.permute.xlu0 %2241
      %2243 = vrot.lane.b32.xlu0 %v2155, 17
      %v2244 = vpop.permute.xlu0 %2243
      %2245 = vrot.lane.b32.xlu0 %v2103, 17
      %v2246 = vpop.permute.xlu0 %2245
      %2247 = vrot.lane.b32.xlu0 %v2105, 17
      %v2248 = vpop.permute.xlu0 %2247
      %2249 = vrot.lane.b32.xlu0 %v2156, 17
      %v2250 = vpop.permute.xlu0 %2249
      %2251 = vrot.lane.b32.xlu0 %v2107, 17
      %v2252 = vpop.permute.xlu0 %2251
      %2253 = vrot.lane.b32.xlu0 %v2109, 17
      %v2254 = vpop.permute.xlu0 %2253
      %2255 = vrot.lane.b32.xlu0 %v2157, 17
      %v2256 = vpop.permute.xlu0 %2255
      %2257 = vrot.lane.b32.xlu0 %v2111, 17
      %v2258 = vpop.permute.xlu0 %2257
      %2259 = vrot.lane.b32.xlu0 %v2113, 17
      %v2260 = vpop.permute.xlu0 %2259
      %2261 = vrot.lane.b32.xlu0 %v2158, 17
      %v2262 = vpop.permute.xlu0 %2261
      %2263 = vrot.lane.b32.xlu0 %v2115, 17
      %v2264 = vpop.permute.xlu0 %2263
      %2265 = vrot.lane.b32.xlu0 %v2117, 17
      %v2266 = vpop.permute.xlu0 %2265
      %2267 = vrot.lane.b32.xlu0 %v2159, 17
      %v2268 = vpop.permute.xlu0 %2267
      %2269 = vrot.lane.b32.xlu0 %v2119, 17
      %v2270 = vpop.permute.xlu0 %2269
      %2271 = vrot.lane.b32.xlu0 %v2121, 17
      %v2272 = vpop.permute.xlu0 %2271
      %2273 = vrot.lane.b32.xlu0 %v2160, 17
      %v2274 = vpop.permute.xlu0 %2273
      %2275 = vrot.lane.b32.xlu0 %v2123, 17
      %v2276 = vpop.permute.xlu0 %2275
      %2277 = vrot.lane.b32.xlu0 %v2125, 17
      %v2278 = vpop.permute.xlu0 %2277
      %2279 = vrot.lane.b32.xlu0 %v2161, 17
      %v2280 = vpop.permute.xlu0 %2279
      %2281 = vrot.lane.b32.xlu0 %v2127, 17
      %v2282 = vpop.permute.xlu0 %2281
      %2283 = vrot.lane.b32.xlu0 %v2129, 17
      %v2284 = vpop.permute.xlu0 %2283
      %2285 = vrot.lane.b32.xlu0 %v2162, 17
      %v2286 = vpop.permute.xlu0 %2285
      %2287 = vrot.lane.b32.xlu0 %v2131, 17
      %v2288 = vpop.permute.xlu0 %2287
      %2289 = vrot.lane.b32.xlu0 %v2133, 17
      %v2290 = vpop.permute.xlu0 %2289
      %2291 = vrot.lane.b32.xlu0 %v2163, 17
      %v2292 = vpop.permute.xlu0 %2291
      %2293 = vrot.lane.b32.xlu0 %v2135, 17
      %v2294 = vpop.permute.xlu0 %2293
      %2295 = vrot.lane.b32.xlu0 %v2137, 17
      %v2296 = vpop.permute.xlu0 %2295
      %2297 = vrot.lane.b32.xlu0 %v2164, 17
      %v2298 = vpop.permute.xlu0 %2297
      %2299 = vrot.lane.b32.xlu0 %v2139, 17
      %v2300 = vpop.permute.xlu0 %2299
      %2301 = vrot.lane.b32.xlu0 %v2141, 17
      %v2302 = vpop.permute.xlu0 %2301
      %2303 = vrot.lane.b32.xlu0 %v2165, 17
      %v2304 = vpop.permute.xlu0 %2303
      %2305 = vrot.lane.b32.xlu0 %v2143, 17
      %v2306 = vpop.permute.xlu0 %2305
      %2307 = vrot.lane.b32.xlu0 %v2145, 17
      %v2308 = vpop.permute.xlu0 %2307
      %2309 = vrot.lane.b32.xlu0 %v2166, 17
      %v2310 = vpop.permute.xlu0 %2309
      %2311 = vrot.lane.b32.xlu0 %v2147, 17
      %v2312 = vpop.permute.xlu0 %2311
      %2313 = vrot.lane.b32.xlu0 %v2149, 17
      %v2314 = vpop.permute.xlu0 %2313
      %2315 = vrot.lane.b32.xlu0 %v2167, 17
      %v2316 = vpop.permute.xlu0 %2315
      %2317 = vrot.lane.b32.xlu0 %v2151, 17
      %v2318 = vpop.permute.xlu0 %2317
      %2319 = vrot.lane.b32.xlu0 %v2172, 17
      %v2320 = vpop.permute.xlu0 %2319
      %2321 = vrot.lane.b32.xlu0 %v2183, 17
      %v2322 = vpop.permute.xlu0 %2321
      %2323 = vrot.lane.b32.xlu0 %v2184, 17
      %v2324 = vpop.permute.xlu0 %2323
      %2325 = vrot.lane.b32.xlu0 %v2178, 17
      %v2326 = vpop.permute.xlu0 %2325
      %2327 = vrot.lane.b32.xlu0 %v2185, 17
      %v2328 = vpop.permute.xlu0 %2327
      %2329 = vrot.lane.b32.xlu0 %v2186, 17
      %v2330 = vpop.permute.xlu0 %2329
      %v2331 = vsel %vm429, %v2200, %v2202
      %v2332 = vsel %vm429, %v2202, %v2204
      %v2333 = vsel %vm429, %v2206, %v2208
      %v2334 = vsel %vm429, %v2208, %v2210
      %v2335 = vsel %vm429, %v2212, %v2214
      %v2336 = vsel %vm429, %v2214, %v2216
      %v2337 = vsel %vm429, %v2218, %v2220
      %v2338 = vsel %vm429, %v2220, %v2222
      %v2339 = vsel %vm429, %v2224, %v2226
      %v2340 = vsel %vm429, %v2226, %v2228
      %v2341 = vsel %vm429, %v2230, %v2232
      %v2342 = vsel %vm429, %v2232, %v2234
      %v2343 = vsel %vm429, %v2236, %v2238
      %v2344 = vsel %vm429, %v2238, %v2240
      %v2345 = vsel %vm429, %v2242, %v2244
      %v2346 = vsel %vm429, %v2244, %v2246
      %v2347 = vsel %vm429, %v2248, %v2250
      %v2348 = vsel %vm429, %v2250, %v2252
      %v2349 = vsel %vm429, %v2254, %v2256
      %v2350 = vsel %vm429, %v2256, %v2258
      %v2351 = vsel %vm429, %v2260, %v2262
      %v2352 = vsel %vm429, %v2262, %v2264
      %v2353 = vsel %vm429, %v2266, %v2268
      %v2354 = vsel %vm429, %v2268, %v2270
      %v2355 = vsel %vm429, %v2272, %v2274
      %v2356 = vsel %vm429, %v2274, %v2276
      %v2357 = vsel %vm429, %v2278, %v2280
      %v2358 = vsel %vm429, %v2280, %v2282
      %v2359 = vsel %vm429, %v2284, %v2286
      %v2360 = vsel %vm429, %v2286, %v2288
      %v2361 = vsel %vm429, %v2290, %v2292
      %v2362 = vsel %vm429, %v2292, %v2294
      %v2363 = vsel %vm429, %v2296, %v2298
      %v2364 = vsel %vm429, %v2298, %v2300
      %v2365 = vsel %vm429, %v2302, %v2304
      %v2366 = vsel %vm429, %v2304, %v2306
      %v2367 = vsel %vm429, %v2308, %v2310
      %v2368 = vsel %vm429, %v2310, %v2312
      %v2369 = vsel %vm429, %v2314, %v2316
      %v2370 = vsel %vm429, %v2316, %v2318
      %v2371 = vsel %vm429, %v2320, %v2322
      %v2372 = vsel %vm429, %v2322, %v2324
      %v2373 = vsel %vm429, %v2326, %v2328
      %v2374 = vsel %vm429, %v2328, %v2330
      %vm2419 = vcmask 850944
      %v2421 = vsel %vm2419, %v2189, 0
      %2423 = vmatprep.subr.mxu0 %v849
      %2424 = vmatpush1.msra.mxu0 %v848
      %2425 = vmatprep.subr.mxu0 %v851
      %2426 = vmatpush1.msra.mxu0 %v850
      %2427 = vmatprep.subr.mxu0 %v1171
      %2428 = vmatpush1.msra.mxu0 %v1170
      %2429 = vmatprep.subr.mxu0 %v1681
      %2430 = vmatpush1.msra.mxu0 %v1680
      %2431 = vmatprep.subr.mxu0 %v2332
      %2432 = vmatpush1.msra.mxu0 %v2331
      %2433 = vmatprep.subr.mxu0 %v853
      %2434 = vmatpush1.msra.mxu0 %v852
      %2435 = vmatprep.subr.mxu0 %v855
      %2436 = vmatpush1.msra.mxu0 %v854
      %2437 = vmatprep.subr.mxu0 %v1173
      %2438 = vmatpush1.msra.mxu0 %v1172
      %2439 = vmatprep.subr.mxu0 %v1683
      %2440 = vmatpush1.msra.mxu0 %v1682
      %2441 = vmatprep.subr.mxu0 %v2334
      %2442 = vmatpush1.msra.mxu0 %v2333
      %2443 = vmatprep.subr.mxu0 %v857
      %2444 = vmatpush1.msra.mxu0 %v856
      %2445 = vmatprep.subr.mxu0 %v859
      %2446 = vmatpush1.msra.mxu0 %v858
      %2447 = vmatprep.subr.mxu0 %v1175
      %2448 = vmatpush1.msra.mxu0 %v1174
      %2449 = vmatprep.subr.mxu0 %v1685
      %2450 = vmatpush1.msra.mxu0 %v1684
      %2451 = vmatprep.subr.mxu0 %v2336
      %2452 = vmatpush1.msra.mxu0 %v2335
      %2453 = vmatprep.subr.mxu0 %v861
      %2454 = vmatpush1.msra.mxu0 %v860
      %2455 = vmatprep.subr.mxu0 %v863
      %2456 = vmatpush1.msra.mxu0 %v862
      %2457 = vmatprep.subr.mxu0 %v1177
      %2458 = vmatpush1.msra.mxu0 %v1176
      %2459 = vmatprep.subr.mxu0 %v1687
      %2460 = vmatpush1.msra.mxu0 %v1686
      %2461 = vmatprep.subr.mxu0 %v2338
      %2462 = vmatpush1.msra.mxu0 %v2337
      %2463 = vmatprep.subr.mxu0 %v865
      %2464 = vmatpush1.msra.mxu0 %v864
      %2465 = vmatprep.subr.mxu0 %v867
      %2466 = vmatpush1.msra.mxu0 %v866
      %2467 = vmatprep.subr.mxu0 %v1179
      %2468 = vmatpush1.msra.mxu0 %v1178
      %2469 = vmatprep.subr.mxu0 %v1689
      %2470 = vmatpush1.msra.mxu0 %v1688
      %2471 = vmatprep.subr.mxu0 %v2340
      %2472 = vmatpush1.msra.mxu0 %v2339
      %2473 = vmatprep.subr.mxu0 %v2342
      %2474 = vmatpush1.msra.mxu0 %v2341
      %2475 = vmatprep.subr.mxu0 %v2344
      %2476 = vmatpush1.msra.mxu0 %v2343
      %2477 = vmatprep.subr.mxu0 %v2346
      %2478 = vmatpush1.msra.mxu0 %v2345
      %2479 = vmatprep.subr.mxu0 %v2348
      %2480 = vmatpush1.msra.mxu0 %v2347
      %2481 = vmatprep.subr.mxu0 %v2350
      %2482 = vmatpush1.msra.mxu0 %v2349
      %2483 = vmatprep.subr.mxu0 %v2352
      %2484 = vmatpush1.msra.mxu0 %v2351
      %2485 = vmatprep.subr.mxu0 %v2354
      %2486 = vmatpush1.msra.mxu0 %v2353
      %2487 = vmatprep.mubr.f32.mxu0 %v2188
      %2488 = vmatmul.mubr.f32.gmra.mrb[0].mxu0 %v2187
      %v2489 = vpop.f32.mrb[0].mxu0
      %v2490 = vadd.f32 %v2194, %v2489
      %v2491 = vpop.f32.mrb[0].mxu0
      %v2492 = vadd.f32 %v2194, %v2491
      %2493 = vdwg.mxu0
      %2494 = vmatprep.subr.mxu0 %v2356
      %2495 = vmatpush1.msra.mxu0 %v2355
      %2496 = vmatprep.subr.mxu0 %v2358
      %2497 = vmatpush1.msra.mxu0 %v2357
      %2498 = vmatprep.subr.mxu0 %v2360
      %2499 = vmatpush1.msra.mxu0 %v2359
      %2500 = vmatprep.subr.mxu0 %v2362
      %2501 = vmatpush1.msra.mxu0 %v2361
      %2502 = vmatprep.subr.mxu0 %v2364
      %2503 = vmatpush1.msra.mxu0 %v2363
      %2504 = vmatprep.subr.mxu0 %v2366
      %2505 = vmatpush1.msra.mxu0 %v2365
      %2506 = vmatprep.subr.mxu0 %v2368
      %2507 = vmatpush1.msra.mxu0 %v2367
      %2508 = vmatprep.subr.mxu0 %v2370
      %2509 = vmatpush1.msra.mxu0 %v2369
      %2510 = vmatprep.subr.mxu0 %v881
      %2511 = vmatpush1.msra.mxu0 %v880
      %2512 = vmatprep.subr.mxu0 %v883
      %2513 = vmatpush1.msra.mxu0 %v882
      %2514 = vmatprep.subr.mxu0 %v1187
      %2515 = vmatpush1.msra.mxu0 %v1186
      %2516 = vmatprep.subr.mxu0 %v2372
      %2517 = vmatpush1.msra.mxu0 %v2371
      %2518 = vmatprep.subr.mxu0 %v2374
      %2519 = vmatpush1.msra.mxu0 %v2373
      %2520 = vmatprep.subr.mxu0 0.0
      %2521 = vmatpush1.msra.mxu0 0.0
      %2522 = vmatprep.subr.mxu0 0.0
      %2523 = vmatpush1.msra.mxu0 0.0
      %2524 = vmatprep.subr.mxu0 0.0
      %2525 = vmatpush1.msra.mxu0 0.0
      %2526 = vmatprep.subr.mxu0 0.0
      %2527 = vmatpush1.msra.mxu0 0.0
      %2528 = vmatprep.subr.mxu0 0.0
      %2529 = vmatpush1.msra.mxu0 0.0
      %2530 = vmatprep.subr.mxu0 0.0
      %2531 = vmatpush1.msra.mxu0 0.0
      %2532 = vmatprep.subr.mxu0 0.0
      %2533 = vmatpush1.msra.mxu0 0.0
      %2534 = vmatprep.subr.mxu0 0.0
      %2535 = vmatpush1.msra.mxu0 0.0
      %2536 = vmatprep.subr.mxu0 0.0
      %2537 = vmatpush1.msra.mxu0 0.0
      %2538 = vmatprep.subr.mxu0 0.0
      %2539 = vmatpush1.msra.mxu0 0.0
      %2540 = vmatprep.subr.mxu0 0.0
      %2541 = vmatpush1.msra.mxu0 0.0
      %2542 = vmatprep.subr.mxu0 0.0
      %2543 = vmatpush1.msra.mxu0 0.0
      %2544 = vmatprep.subr.mxu0 0.0
      %2545 = vmatpush1.msra.mxu0 0.0
      %2546 = vmatprep.subr.mxu0 0.0
      %2547 = vmatpush1.msra.mxu0 0.0
      %2548 = vmatprep.subr.mxu0 0.0
      %2549 = vmatpush1.msra.mxu0 0.0
      %2550 = vmatprep.subr.mxu0 0.0
      %2551 = vmatpush1.msra.mxu0 0.0
      %2552 = vmatprep.subr.mxu0 0.0
      %2553 = vmatpush1.msra.mxu0 0.0
      %2554 = vmatprep.subr.mxu0 0.0
      %2555 = vmatpush1.msra.mxu0 0.0
      %2556 = vmatprep.subr.mxu0 0.0
      %2557 = vmatpush1.msra.mxu0 0.0
      %2558 = vmatprep.mubr.f32.mxu0 0.0
      %2559 = vmatmul.mubr.f32.gmra.mrb[0].mxu0 %v2421
      %v2560 = vpop.f32.mrb[0].mxu0
      %v2561 = vadd.f32 %v2490, %v2560
      %v2562 = vpop.f32.mrb[0].mxu0
      %v2563 = vadd.f32 %v2492, %v2562
      %2564 = vdwg.mxu0
      %vm2565 = vcmp.ge.f32.partialorder %v2561, 0.0
      %vm2566 = vcmp.ge.f32.partialorder %v2563, 0.0
      %v2567 = vmul.f32 %v2561, 0.2
      %v2568 = vmul.f32 %v2563, 0.2
      %v2569 = vsel %vm2565, %v2561, %v2567
      %v2570 = vsel %vm2566, %v2563, %v2568
      %2571 = vst [vmem:[#allocation6 + $0x8] sm:$0xff] %v2569
      %2572 = vst [vmem:[#allocation6 + $0x10] sm:$0xff] %v2570
      %v2573 = vld [vmem:[#allocation6] sm:$0xff]
      %v2574 = vld [vmem:[#allocation6 + $0x8] sm:$0xff]
      %v2575 = vld [vmem:[#allocation6 + $0x10] sm:$0xff]
      %v2576 = vmul.f32 %v2573, %v468
      %v2577 = vmul.f32 %v2574, %v472
      %v2578 = vmul.f32 %v2575, %v470
      %v2579 = vmul.f32 %v2573, %v485
      %v2580 = vmul.f32 %v2574, %v489
      %v2581 = vmul.f32 %v2575, %v487
      %v2582 = vmul.f32 %v2573, %v500
      %v2583 = vmul.f32 %v2574, %v504
      %v2584 = vmul.f32 %v2575, %v502
      %v2585 = vld [vmem:[#allocation6 + $0x18] sm:$0xff]
      %v2586 = vmul.f32 %v2574, %v517
      %v2587 = vmul.f32 %v2575, %v521
      %v2588 = vmul.f32 %v2585, %v519
      %v2589 = vmul.f32 %v2574, %v532
      %v2590 = vmul.f32 %v2575, %v536
      %v2591 = vmul.f32 %v2585, %v534
      %v2592 = vmul.f32 %v2574, %v547
      %v2593 = vmul.f32 %v2575, %v550
      %v2594 = vmul.f32 %v2585, %v549
      %2598 = vrot.lane.b32.xlu0 %v2573, 127
      %v2599 = vpop.permute.xlu0 %2598
      %2600 = vrot.lane.b32.xlu0 %v2574, 127
      %v2601 = vpop.permute.xlu0 %2600
      %2602 = vrot.lane.b32.xlu0 %v2575, 127
      %v2603 = vpop.permute.xlu0 %2602
      %v2604 = vsel %vm503, %v2599, %v2601
      %v2605 = vsel %vm503, %v2601, %v2603
      %2609 = vrot.lane.b32.xlu0 %v2579, 126
      %v2610 = vpop.permute.xlu0 %2609
      %2611 = vrot.lane.b32.xlu0 %v2580, 126
      %v2612 = vpop.permute.xlu0 %2611
      %2613 = vrot.lane.b32.xlu0 %v2581, 126
      %v2614 = vpop.permute.xlu0 %2613
      %v2615 = vsel %vm600, %v2610, %v2612
      %v2616 = vsel %vm600, %v2612, %v2614
      %2617 = vrot.lane.b32.xlu0 %v525, 126
      %v2618 = vpop.permute.xlu0 %2617
      %2619 = vrot.lane.b32.xlu0 %v526, 126
      %v2620 = vpop.permute.xlu0 %2619
      %2621 = vrot.lane.b32.xlu0 %v527, 126
      %v2622 = vpop.permute.xlu0 %2621
      %2623 = vrot.lane.b32.xlu0 %v528, 126
      %v2624 = vpop.permute.xlu0 %2623
      %2625 = vrot.lane.b32.xlu0 %v529, 126
      %v2626 = vpop.permute.xlu0 %2625
      %2627 = vrot.lane.b32.xlu0 %v530, 126
      %v2628 = vpop.permute.xlu0 %2627
      %v2629 = vsel %vm600, %v2618, %v2620
      %v2630 = vsel %vm600, %v2620, %v2622
      %v2631 = vsel %vm600, %v2624, %v2626
      %v2632 = vsel %vm600, %v2626, %v2628
      %2633 = vrot.lane.b32.xlu0 %v1016, 126
      %v2634 = vpop.permute.xlu0 %2633
      %2635 = vrot.lane.b32.xlu0 %v1017, 126
      %v2636 = vpop.permute.xlu0 %2635
      %2637 = vrot.lane.b32.xlu0 %v1018, 126
      %v2638 = vpop.permute.xlu0 %2637
      %v2639 = vsel %vm600, %v2634, %v2636
      %v2640 = vsel %vm600, %v2636, %v2638
      %2641 = vrot.lane.b32.xlu0 %v1302, 126
      %v2642 = vpop.permute.xlu0 %2641
      %2643 = vrot.lane.b32.xlu0 %v1303, 126
      %v2644 = vpop.permute.xlu0 %2643
      %2645 = vrot.lane.b32.xlu0 %v1304, 126
      %v2646 = vpop.permute.xlu0 %2645
      %v2647 = vsel %vm600, %v2642, %v2644
      %v2648 = vsel %vm600, %v2644, %v2646
      %2649 = vrot.lane.b32.xlu0 %v1919, 126
      %v2650 = vpop.permute.xlu0 %2649
      %2651 = vrot.lane.b32.xlu0 %v1920, 126
      %v2652 = vpop.permute.xlu0 %2651
      %2653 = vrot.lane.b32.xlu0 %v1921, 126
      %v2654 = vpop.permute.xlu0 %2653
      %v2655 = vsel %vm600, %v2650, %v2652
      %v2656 = vsel %vm600, %v2652, %v2654
      %2660 = vrot.lane.b32.xlu0 %v2586, 126
      %v2661 = vpop.permute.xlu0 %2660
      %2662 = vrot.lane.b32.xlu0 %v2587, 126
      %v2663 = vpop.permute.xlu0 %2662
      %2664 = vrot.lane.b32.xlu0 %v2588, 126
      %v2665 = vpop.permute.xlu0 %2664
      %v2666 = vsel %vm600, %v2661, %v2663
      %v2667 = vsel %vm600, %v2663, %v2665
      %2668 = vrot.lane.b32.xlu0 %v540, 112
      %v2669 = vpop.permute.xlu0 %2668
      %2670 = vrot.lane.b32.xlu0 %v541, 112
      %v2671 = vpop.permute.xlu0 %2670
      %2672 = vrot.lane.b32.xlu0 %v542, 112
      %v2673 = vpop.permute.xlu0 %2672
      %2674 = vrot.lane.b32.xlu0 %v543, 112
      %v2675 = vpop.permute.xlu0 %2674
      %2676 = vrot.lane.b32.xlu0 %v544, 112
      %v2677 = vpop.permute.xlu0 %2676
      %2678 = vrot.lane.b32.xlu0 %v545, 112
      %v2679 = vpop.permute.xlu0 %2678
      %v2680 = vsel %vm623, %v2669, %v2671
      %v2681 = vsel %vm623, %v2671, %v2673
      %v2682 = vsel %vm623, %v2675, %v2677
      %v2683 = vsel %vm623, %v2677, %v2679
      %2684 = vrot.lane.b32.xlu0 %v1019, 112
      %v2685 = vpop.permute.xlu0 %2684
      %2686 = vrot.lane.b32.xlu0 %v1020, 112
      %v2687 = vpop.permute.xlu0 %2686
      %2688 = vrot.lane.b32.xlu0 %v1021, 112
      %v2689 = vpop.permute.xlu0 %2688
      %v2690 = vsel %vm623, %v2685, %v2687
      %v2691 = vsel %vm623, %v2687, %v2689
      %2692 = vrot.lane.b32.xlu0 %v514, 127
      %v2693 = vpop.permute.xlu0 %2692
      %2694 = vrot.lane.b32.xlu0 %v515, 127
      %v2695 = vpop.permute.xlu0 %2694
      %v2696 = vsel %vm503, %v571, %v2693
      %v2697 = vsel %vm503, %v577, %v2695
      %2698 = vrot.lane.b32.xlu0 %v1015, 127
      %v2699 = vpop.permute.xlu0 %2698
      %v2700 = vsel %vm503, %v1033, %v2699
      %2701 = vrot.lane.b32.xlu0 %v1301, 127
      %v2702 = vpop.permute.xlu0 %2701
      %v2703 = vsel %vm503, %v1319, %v2702
      %2704 = vrot.lane.b32.xlu0 %v1918, 127
      %v2705 = vpop.permute.xlu0 %2704
      %v2706 = vsel %vm503, %v1936, %v2705
      %2708 = vrot.lane.b32.xlu0 %v2585, 127
      %v2709 = vpop.permute.xlu0 %2708
      %v2710 = vsel %vm503, %v2603, %v2709
      %2711 = vrot.lane.b32.xlu0 %v554, 126
      %v2712 = vpop.permute.xlu0 %2711
      %2713 = vrot.lane.b32.xlu0 %v555, 126
      %v2714 = vpop.permute.xlu0 %2713
      %2715 = vrot.lane.b32.xlu0 %v556, 126
      %v2716 = vpop.permute.xlu0 %2715
      %2717 = vrot.lane.b32.xlu0 %v557, 126
      %v2718 = vpop.permute.xlu0 %2717
      %2719 = vrot.lane.b32.xlu0 %v558, 126
      %v2720 = vpop.permute.xlu0 %2719
      %2721 = vrot.lane.b32.xlu0 %v559, 126
      %v2722 = vpop.permute.xlu0 %2721
      %v2723 = vsel %vm600, %v2712, %v2714
      %v2724 = vsel %vm600, %v2714, %v2716
      %v2725 = vsel %vm600, %v2718, %v2720
      %v2726 = vsel %vm600, %v2720, %v2722
      %2727 = vrot.lane.b32.xlu0 %v1022, 126
      %v2728 = vpop.permute.xlu0 %2727
      %2729 = vrot.lane.b32.xlu0 %v1023, 126
      %v2730 = vpop.permute.xlu0 %2729
      %2731 = vrot.lane.b32.xlu0 %v1024, 126
      %v2732 = vpop.permute.xlu0 %2731
      %v2733 = vsel %vm600, %v2728, %v2730
      %v2734 = vsel %vm600, %v2730, %v2732
      %2735 = vrot.lane.b32.xlu0 %v1308, 126
      %v2736 = vpop.permute.xlu0 %2735
      %2737 = vrot.lane.b32.xlu0 %v1309, 126
      %v2738 = vpop.permute.xlu0 %2737
      %2739 = vrot.lane.b32.xlu0 %v1310, 126
      %v2740 = vpop.permute.xlu0 %2739
      %v2741 = vsel %vm600, %v2736, %v2738
      %v2742 = vsel %vm600, %v2738, %v2740
      %2743 = vrot.lane.b32.xlu0 %v1925, 126
      %v2744 = vpop.permute.xlu0 %2743
      %2745 = vrot.lane.b32.xlu0 %v1926, 126
      %v2746 = vpop.permute.xlu0 %2745
      %2747 = vrot.lane.b32.xlu0 %v1927, 126
      %v2748 = vpop.permute.xlu0 %2747
      %v2749 = vsel %vm600, %v2744, %v2746
      %v2750 = vsel %vm600, %v2746, %v2748
      %2754 = vrot.lane.b32.xlu0 %v2592, 126
      %v2755 = vpop.permute.xlu0 %2754
      %2756 = vrot.lane.b32.xlu0 %v2593, 126
      %v2757 = vpop.permute.xlu0 %2756
      %2758 = vrot.lane.b32.xlu0 %v2594, 126
      %v2759 = vpop.permute.xlu0 %2758
      %v2760 = vsel %vm600, %v2755, %v2757
      %v2761 = vsel %vm600, %v2757, %v2759
      %2765 = vrot.lane.b32.xlu0 %v2582, 112
      %v2766 = vpop.permute.xlu0 %2765
      %2767 = vrot.lane.b32.xlu0 %v2583, 112
      %v2768 = vpop.permute.xlu0 %2767
      %2769 = vrot.lane.b32.xlu0 %v2584, 112
      %v2770 = vpop.permute.xlu0 %2769
      %2771 = vrot.lane.b32.xlu0 %v569, 112
      %v2772 = vpop.permute.xlu0 %2771
      %2773 = vrot.lane.b32.xlu0 %v579, 112
      %v2774 = vpop.permute.xlu0 %2773
      %2775 = vrot.lane.b32.xlu0 %v571, 112
      %v2776 = vpop.permute.xlu0 %2775
      %2777 = vrot.lane.b32.xlu0 %v575, 112
      %v2778 = vpop.permute.xlu0 %2777
      %2779 = vrot.lane.b32.xlu0 %v581, 112
      %v2780 = vpop.permute.xlu0 %2779
      %2781 = vrot.lane.b32.xlu0 %v577, 112
      %v2782 = vpop.permute.xlu0 %2781
      %2783 = vrot.lane.b32.xlu0 %v1031, 112
      %v2784 = vpop.permute.xlu0 %2783
      %2785 = vrot.lane.b32.xlu0 %v1035, 112
      %v2786 = vpop.permute.xlu0 %2785
      %2787 = vrot.lane.b32.xlu0 %v1033, 112
      %v2788 = vpop.permute.xlu0 %2787
      %2789 = vrot.lane.b32.xlu0 %v1317, 112
      %v2790 = vpop.permute.xlu0 %2789
      %2791 = vrot.lane.b32.xlu0 %v1321, 112
      %v2792 = vpop.permute.xlu0 %2791
      %2793 = vrot.lane.b32.xlu0 %v1319, 112
      %v2794 = vpop.permute.xlu0 %2793
      %2795 = vrot.lane.b32.xlu0 %v1934, 112
      %v2796 = vpop.permute.xlu0 %2795
      %2797 = vrot.lane.b32.xlu0 %v1938, 112
      %v2798 = vpop.permute.xlu0 %2797
      %2799 = vrot.lane.b32.xlu0 %v1936, 112
      %v2800 = vpop.permute.xlu0 %2799
      %2801 = vrot.lane.b32.xlu0 %v2601, 112
      %v2802 = vpop.permute.xlu0 %2801
      %2803 = vrot.lane.b32.xlu0 %v2605, 112
      %v2804 = vpop.permute.xlu0 %2803
      %2805 = vrot.lane.b32.xlu0 %v2603, 112
      %v2806 = vpop.permute.xlu0 %2805
      %2807 = vrot.lane.b32.xlu0 %v2618, 112
      %v2808 = vpop.permute.xlu0 %2807
      %2809 = vrot.lane.b32.xlu0 %v2629, 112
      %v2810 = vpop.permute.xlu0 %2809
      %2811 = vrot.lane.b32.xlu0 %v2630, 112
      %v2812 = vpop.permute.xlu0 %2811
      %2813 = vrot.lane.b32.xlu0 %v2624, 112
      %v2814 = vpop.permute.xlu0 %2813
      %2815 = vrot.lane.b32.xlu0 %v2631, 112
      %v2816 = vpop.permute.xlu0 %2815
      %2817 = vrot.lane.b32.xlu0 %v2632, 112
      %v2818 = vpop.permute.xlu0 %2817
      %2819 = vrot.lane.b32.xlu0 %v2634, 112
      %v2820 = vpop.permute.xlu0 %2819
      %2821 = vrot.lane.b32.xlu0 %v2639, 112
      %v2822 = vpop.permute.xlu0 %2821
      %2823 = vrot.lane.b32.xlu0 %v2640, 112
      %v2824 = vpop.permute.xlu0 %2823
      %2825 = vrot.lane.b32.xlu0 %v2642, 112
      %v2826 = vpop.permute.xlu0 %2825
      %2827 = vrot.lane.b32.xlu0 %v2647, 112
      %v2828 = vpop.permute.xlu0 %2827
      %2829 = vrot.lane.b32.xlu0 %v2648, 112
      %v2830 = vpop.permute.xlu0 %2829
      %2831 = vrot.lane.b32.xlu0 %v2650, 112
      %v2832 = vpop.permute.xlu0 %2831
      %2833 = vrot.lane.b32.xlu0 %v2655, 112
      %v2834 = vpop.permute.xlu0 %2833
      %2835 = vrot.lane.b32.xlu0 %v2656, 112
      %v2836 = vpop.permute.xlu0 %2835
      %2837 = vrot.lane.b32.xlu0 %v2661, 112
      %v2838 = vpop.permute.xlu0 %2837
      %2839 = vrot.lane.b32.xlu0 %v2666, 112
      %v2840 = vpop.permute.xlu0 %2839
      %2841 = vrot.lane.b32.xlu0 %v2667, 112
      %v2842 = vpop.permute.xlu0 %2841
      %2843 = vrot.lane.b32.xlu0 %v2669, 112
      %v2844 = vpop.permute.xlu0 %2843
      %2845 = vrot.lane.b32.xlu0 %v2680, 112
      %v2846 = vpop.permute.xlu0 %2845
      %2847 = vrot.lane.b32.xlu0 %v2681, 112
      %v2848 = vpop.permute.xlu0 %2847
      %2849 = vrot.lane.b32.xlu0 %v2675, 112
      %v2850 = vpop.permute.xlu0 %2849
      %2851 = vrot.lane.b32.xlu0 %v2682, 112
      %v2852 = vpop.permute.xlu0 %2851
      %2853 = vrot.lane.b32.xlu0 %v2683, 112
      %v2854 = vpop.permute.xlu0 %2853
      %2855 = vrot.lane.b32.xlu0 %v2685, 112
      %v2856 = vpop.permute.xlu0 %2855
      %2857 = vrot.lane.b32.xlu0 %v2690, 112
      %v2858 = vpop.permute.xlu0 %2857
      %2859 = vrot.lane.b32.xlu0 %v2691, 112
      %v2860 = vpop.permute.xlu0 %2859
      %v2861 = vsel %vm623, %v2766, %v2768
      %v2862 = vsel %vm623, %v2768, %v2770
      %v2863 = vsel %vm623, %v2772, %v2774
      %v2864 = vsel %vm623, %v2774, %v2776
      %v2865 = vsel %vm623, %v2778, %v2780
      %v2866 = vsel %vm623, %v2780, %v2782
      %v2867 = vsel %vm623, %v2784, %v2786
      %v2868 = vsel %vm623, %v2786, %v2788
      %v2869 = vsel %vm623, %v2790, %v2792
      %v2870 = vsel %vm623, %v2792, %v2794
      %v2871 = vsel %vm623, %v2796, %v2798
      %v2872 = vsel %vm623, %v2798, %v2800
      %v2873 = vsel %vm623, %v2802, %v2804
      %v2874 = vsel %vm623, %v2804, %v2806
      %v2875 = vsel %vm623, %v2808, %v2810
      %v2876 = vsel %vm623, %v2810, %v2812
      %v2877 = vsel %vm623, %v2814, %v2816
      %v2878 = vsel %vm623, %v2816, %v2818
      %v2879 = vsel %vm623, %v2820, %v2822
      %v2880 = vsel %vm623, %v2822, %v2824
      %v2881 = vsel %vm623, %v2826, %v2828
      %v2882 = vsel %vm623, %v2828, %v2830
      %v2883 = vsel %vm623, %v2832, %v2834
      %v2884 = vsel %vm623, %v2834, %v2836
      %v2885 = vsel %vm623, %v2838, %v2840
      %v2886 = vsel %vm623, %v2840, %v2842
      %v2887 = vsel %vm623, %v2844, %v2846
      %v2888 = vsel %vm623, %v2846, %v2848
      %v2889 = vsel %vm623, %v2850, %v2852
      %v2890 = vsel %vm623, %v2852, %v2854
      %v2891 = vsel %vm623, %v2856, %v2858
      %v2892 = vsel %vm623, %v2858, %v2860
      %2896 = vrot.lane.b32.xlu0 %v1305, 96
      %v2897 = vpop.permute.xlu0 %2896
      %2898 = vrot.lane.b32.xlu0 %v1306, 96
      %v2899 = vpop.permute.xlu0 %2898
      %2900 = vrot.lane.b32.xlu0 %v1307, 96
      %v2901 = vpop.permute.xlu0 %2900
      %2902 = vrot.lane.b32.xlu0 %v1922, 96
      %v2903 = vpop.permute.xlu0 %2902
      %2904 = vrot.lane.b32.xlu0 %v1923, 96
      %v2905 = vpop.permute.xlu0 %2904
      %2906 = vrot.lane.b32.xlu0 %v1924, 96
      %v2907 = vpop.permute.xlu0 %2906
      %2908 = vrot.lane.b32.xlu0 %v2589, 96
      %v2909 = vpop.permute.xlu0 %2908
      %2910 = vrot.lane.b32.xlu0 %v2590, 96
      %v2911 = vpop.permute.xlu0 %2910
      %2912 = vrot.lane.b32.xlu0 %v2591, 96
      %v2913 = vpop.permute.xlu0 %2912
      %2914 = vrot.lane.b32.xlu0 %v579, 96
      %v2915 = vpop.permute.xlu0 %2914
      %2916 = vrot.lane.b32.xlu0 %v2696, 96
      %v2917 = vpop.permute.xlu0 %2916
      %2918 = vrot.lane.b32.xlu0 %v2693, 96
      %v2919 = vpop.permute.xlu0 %2918
      %2920 = vrot.lane.b32.xlu0 %v581, 96
      %v2921 = vpop.permute.xlu0 %2920
      %2922 = vrot.lane.b32.xlu0 %v2697, 96
      %v2923 = vpop.permute.xlu0 %2922
      %2924 = vrot.lane.b32.xlu0 %v2695, 96
      %v2925 = vpop.permute.xlu0 %2924
      %2926 = vrot.lane.b32.xlu0 %v1035, 96
      %v2927 = vpop.permute.xlu0 %2926
      %2928 = vrot.lane.b32.xlu0 %v2700, 96
      %v2929 = vpop.permute.xlu0 %2928
      %2930 = vrot.lane.b32.xlu0 %v2699, 96
      %v2931 = vpop.permute.xlu0 %2930
      %2932 = vrot.lane.b32.xlu0 %v1321, 96
      %v2933 = vpop.permute.xlu0 %2932
      %2934 = vrot.lane.b32.xlu0 %v2703, 96
      %v2935 = vpop.permute.xlu0 %2934
      %2936 = vrot.lane.b32.xlu0 %v2702, 96
      %v2937 = vpop.permute.xlu0 %2936
      %2938 = vrot.lane.b32.xlu0 %v1938, 96
      %v2939 = vpop.permute.xlu0 %2938
      %2940 = vrot.lane.b32.xlu0 %v2706, 96
      %v2941 = vpop.permute.xlu0 %2940
      %2942 = vrot.lane.b32.xlu0 %v2705, 96
      %v2943 = vpop.permute.xlu0 %2942
      %2944 = vrot.lane.b32.xlu0 %v2605, 96
      %v2945 = vpop.permute.xlu0 %2944
      %2946 = vrot.lane.b32.xlu0 %v2710, 96
      %v2947 = vpop.permute.xlu0 %2946
      %2948 = vrot.lane.b32.xlu0 %v2709, 96
      %v2949 = vpop.permute.xlu0 %2948
      %2950 = vrot.lane.b32.xlu0 %v2723, 96
      %v2951 = vpop.permute.xlu0 %2950
      %2952 = vrot.lane.b32.xlu0 %v2724, 96
      %v2953 = vpop.permute.xlu0 %2952
      %2954 = vrot.lane.b32.xlu0 %v2716, 96
      %v2955 = vpop.permute.xlu0 %2954
      %2956 = vrot.lane.b32.xlu0 %v2725, 96
      %v2957 = vpop.permute.xlu0 %2956
      %2958 = vrot.lane.b32.xlu0 %v2726, 96
      %v2959 = vpop.permute.xlu0 %2958
      %2960 = vrot.lane.b32.xlu0 %v2722, 96
      %v2961 = vpop.permute.xlu0 %2960
      %2962 = vrot.lane.b32.xlu0 %v2733, 96
      %v2963 = vpop.permute.xlu0 %2962
      %2964 = vrot.lane.b32.xlu0 %v2734, 96
      %v2965 = vpop.permute.xlu0 %2964
      %2966 = vrot.lane.b32.xlu0 %v2732, 96
      %v2967 = vpop.permute.xlu0 %2966
      %2968 = vrot.lane.b32.xlu0 %v2741, 96
      %v2969 = vpop.permute.xlu0 %2968
      %2970 = vrot.lane.b32.xlu0 %v2742, 96
      %v2971 = vpop.permute.xlu0 %2970
      %2972 = vrot.lane.b32.xlu0 %v2740, 96
      %v2973 = vpop.permute.xlu0 %2972
      %2974 = vrot.lane.b32.xlu0 %v2749, 96
      %v2975 = vpop.permute.xlu0 %2974
      %2976 = vrot.lane.b32.xlu0 %v2750, 96
      %v2977 = vpop.permute.xlu0 %2976
      %2978 = vrot.lane.b32.xlu0 %v2748, 96
      %v2979 = vpop.permute.xlu0 %2978
      %2980 = vrot.lane.b32.xlu0 %v2760, 96
      %v2981 = vpop.permute.xlu0 %2980
      %2982 = vrot.lane.b32.xlu0 %v2761, 96
      %v2983 = vpop.permute.xlu0 %2982
      %2984 = vrot.lane.b32.xlu0 %v2759, 96
      %v2985 = vpop.permute.xlu0 %2984
      %v2986 = vsel %vm679, %v2897, %v2899
      %v2987 = vsel %vm679, %v2899, %v2901
      %v2988 = vsel %vm679, %v2903, %v2905
      %v2989 = vsel %vm679, %v2905, %v2907
      %v2990 = vsel %vm679, %v2909, %v2911
      %v2991 = vsel %vm679, %v2911, %v2913
      %v2992 = vsel %vm679, %v2915, %v2917
      %v2993 = vsel %vm679, %v2917, %v2919
      %v2994 = vsel %vm679, %v2921, %v2923
      %v2995 = vsel %vm679, %v2923, %v2925
      %v2996 = vsel %vm679, %v2927, %v2929
      %v2997 = vsel %vm679, %v2929, %v2931
      %v2998 = vsel %vm679, %v2933, %v2935
      %v2999 = vsel %vm679, %v2935, %v2937
      %v3000 = vsel %vm679, %v2939, %v2941
      %v3001 = vsel %vm679, %v2941, %v2943
      %v3002 = vsel %vm679, %v2945, %v2947
      %v3003 = vsel %vm679, %v2947, %v2949
      %v3004 = vsel %vm679, %v2951, %v2953
      %v3005 = vsel %vm679, %v2953, %v2955
      %v3006 = vsel %vm679, %v2957, %v2959
      %v3007 = vsel %vm679, %v2959, %v2961
      %v3008 = vsel %vm679, %v2963, %v2965
      %v3009 = vsel %vm679, %v2965, %v2967
      %v3010 = vsel %vm679, %v2969, %v2971
      %v3011 = vsel %vm679, %v2971, %v2973
      %v3012 = vsel %vm679, %v2975, %v2977
      %v3013 = vsel %vm679, %v2977, %v2979
      %v3014 = vsel %vm679, %v2981, %v2983
      %v3015 = vsel %vm679, %v2983, %v2985
      %v3016 = vld [vmem:[%s5] sm:$0xff]
      %v3017 = vld [vmem:[%s5 + $0x8] sm:$0xff]
      %v3018 = vld [vmem:[%s5 + $0x10] sm:$0xff]
      %v3019 = vld [vmem:[%s5 + $0x18] sm:$0xff]
      %v3020 = vld [vmem:[%s5 + $0x20] sm:$0xff]
      %v3021 = vld [vmem:[%s5 + $0x28] sm:$0xff]
      %v3022 = vld [vmem:[%s5 + $0x30] sm:$0xff]
      %v3023 = vld [vmem:[%s5 + $0x38] sm:$0xff]
      %v3024 = vld [vmem:[%s10] sm:$0xff]
      %v3025 = vld [vmem:[%s10 + $0x8] sm:$0xff]
      %3027 = vset.pattern.permute.xlu0 0
      %3028 = vperm.xlu0 %3027, %v3024
      %v3029 = vpop.permute.xlu0 %3028
      %3032 = vset.pattern.permute.xlu0 0
      %3033 = vperm.xlu0 %3032, %v3025
      %v3034 = vpop.permute.xlu0 %3033
      %3039 = vrot.lane.b32.xlu0 %v2576, 17
      %v3040 = vpop.permute.xlu0 %3039
      %3041 = vrot.lane.b32.xlu0 %v2577, 17
      %v3042 = vpop.permute.xlu0 %3041
      %3043 = vrot.lane.b32.xlu0 %v2578, 17
      %v3044 = vpop.permute.xlu0 %3043
      %3045 = vrot.lane.b32.xlu0 %v2604, 17
      %v3046 = vpop.permute.xlu0 %3045
      %3047 = vrot.lane.b32.xlu0 %v2605, 17
      %v3048 = vpop.permute.xlu0 %3047
      %3049 = vrot.lane.b32.xlu0 %v2603, 17
      %v3050 = vpop.permute.xlu0 %3049
      %3051 = vrot.lane.b32.xlu0 %v2615, 17
      %v3052 = vpop.permute.xlu0 %3051
      %3053 = vrot.lane.b32.xlu0 %v2616, 17
      %v3054 = vpop.permute.xlu0 %3053
      %3055 = vrot.lane.b32.xlu0 %v2614, 17
      %v3056 = vpop.permute.xlu0 %3055
      %3057 = vrot.lane.b32.xlu0 %v2861, 17
      %v3058 = vpop.permute.xlu0 %3057
      %3059 = vrot.lane.b32.xlu0 %v2862, 17
      %v3060 = vpop.permute.xlu0 %3059
      %3061 = vrot.lane.b32.xlu0 %v2770, 17
      %v3062 = vpop.permute.xlu0 %3061
      %3063 = vrot.lane.b32.xlu0 %v2863, 17
      %v3064 = vpop.permute.xlu0 %3063
      %3065 = vrot.lane.b32.xlu0 %v2864, 17
      %v3066 = vpop.permute.xlu0 %3065
      %3067 = vrot.lane.b32.xlu0 %v2776, 17
      %v3068 = vpop.permute.xlu0 %3067
      %3069 = vrot.lane.b32.xlu0 %v2865, 17
      %v3070 = vpop.permute.xlu0 %3069
      %3071 = vrot.lane.b32.xlu0 %v2866, 17
      %v3072 = vpop.permute.xlu0 %3071
      %3073 = vrot.lane.b32.xlu0 %v2782, 17
      %v3074 = vpop.permute.xlu0 %3073
      %3075 = vrot.lane.b32.xlu0 %v2867, 17
      %v3076 = vpop.permute.xlu0 %3075
      %3077 = vrot.lane.b32.xlu0 %v2868, 17
      %v3078 = vpop.permute.xlu0 %3077
      %3079 = vrot.lane.b32.xlu0 %v2788, 17
      %v3080 = vpop.permute.xlu0 %3079
      %3081 = vrot.lane.b32.xlu0 %v2869, 17
      %v3082 = vpop.permute.xlu0 %3081
      %3083 = vrot.lane.b32.xlu0 %v2870, 17
      %v3084 = vpop.permute.xlu0 %3083
      %3085 = vrot.lane.b32.xlu0 %v2794, 17
      %v3086 = vpop.permute.xlu0 %3085
      %3087 = vrot.lane.b32.xlu0 %v2871, 17
      %v3088 = vpop.permute.xlu0 %3087
      %3089 = vrot.lane.b32.xlu0 %v2872, 17
      %v3090 = vpop.permute.xlu0 %3089
      %3091 = vrot.lane.b32.xlu0 %v2800, 17
      %v3092 = vpop.permute.xlu0 %3091
      %3093 = vrot.lane.b32.xlu0 %v2873, 17
      %v3094 = vpop.permute.xlu0 %3093
      %3095 = vrot.lane.b32.xlu0 %v2874, 17
      %v3096 = vpop.permute.xlu0 %3095
      %3097 = vrot.lane.b32.xlu0 %v2806, 17
      %v3098 = vpop.permute.xlu0 %3097
      %3099 = vrot.lane.b32.xlu0 %v2875, 17
      %v3100 = vpop.permute.xlu0 %3099
      %3101 = vrot.lane.b32.xlu0 %v2876, 17
      %v3102 = vpop.permute.xlu0 %3101
      %3103 = vrot.lane.b32.xlu0 %v2812, 17
      %v3104 = vpop.permute.xlu0 %3103
      %3105 = vrot.lane.b32.xlu0 %v2877, 17
      %v3106 = vpop.permute.xlu0 %3105
      %3107 = vrot.lane.b32.xlu0 %v2878, 17
      %v3108 = vpop.permute.xlu0 %3107
      %3109 = vrot.lane.b32.xlu0 %v2818, 17
      %v3110 = vpop.permute.xlu0 %3109
      %3111 = vrot.lane.b32.xlu0 %v2879, 17
      %v3112 = vpop.permute.xlu0 %3111
      %3113 = vrot.lane.b32.xlu0 %v2880, 17
      %v3114 = vpop.permute.xlu0 %3113
      %3115 = vrot.lane.b32.xlu0 %v2824, 17
      %v3116 = vpop.permute.xlu0 %3115
      %3117 = vrot.lane.b32.xlu0 %v2881, 17
      %v3118 = vpop.permute.xlu0 %3117
      %3119 = vrot.lane.b32.xlu0 %v2882, 17
      %v3120 = vpop.permute.xlu0 %3119
      %3121 = vrot.lane.b32.xlu0 %v2830, 17
      %v3122 = vpop.permute.xlu0 %3121
      %3123 = vrot.lane.b32.xlu0 %v2883, 17
      %v3124 = vpop.permute.xlu0 %3123
      %3125 = vrot.lane.b32.xlu0 %v2884, 17
      %v3126 = vpop.permute.xlu0 %3125
      %3127 = vrot.lane.b32.xlu0 %v2836, 17
      %v3128 = vpop.permute.xlu0 %3127
      %3129 = vrot.lane.b32.xlu0 %v2885, 17
      %v3130 = vpop.permute.xlu0 %3129
      %3131 = vrot.lane.b32.xlu0 %v2886, 17
      %v3132 = vpop.permute.xlu0 %3131
      %3133 = vrot.lane.b32.xlu0 %v2842, 17
      %v3134 = vpop.permute.xlu0 %3133
      %3135 = vrot.lane.b32.xlu0 %v2887, 17
      %v3136 = vpop.permute.xlu0 %3135
      %3137 = vrot.lane.b32.xlu0 %v2888, 17
      %v3138 = vpop.permute.xlu0 %3137
      %3139 = vrot.lane.b32.xlu0 %v2848, 17
      %v3140 = vpop.permute.xlu0 %3139
      %3141 = vrot.lane.b32.xlu0 %v2889, 17
      %v3142 = vpop.permute.xlu0 %3141
      %3143 = vrot.lane.b32.xlu0 %v2890, 17
      %v3144 = vpop.permute.xlu0 %3143
      %3145 = vrot.lane.b32.xlu0 %v2854, 17
      %v3146 = vpop.permute.xlu0 %3145
      %3147 = vrot.lane.b32.xlu0 %v2891, 17
      %v3148 = vpop.permute.xlu0 %3147
      %3149 = vrot.lane.b32.xlu0 %v2892, 17
      %v3150 = vpop.permute.xlu0 %3149
      %3151 = vrot.lane.b32.xlu0 %v2860, 17
      %v3152 = vpop.permute.xlu0 %3151
      %3153 = vrot.lane.b32.xlu0 %v2897, 17
      %v3154 = vpop.permute.xlu0 %3153
      %3155 = vrot.lane.b32.xlu0 %v2986, 17
      %v3156 = vpop.permute.xlu0 %3155
      %3157 = vrot.lane.b32.xlu0 %v2987, 17
      %v3158 = vpop.permute.xlu0 %3157
      %3159 = vrot.lane.b32.xlu0 %v2903, 17
      %v3160 = vpop.permute.xlu0 %3159
      %3161 = vrot.lane.b32.xlu0 %v2988, 17
      %v3162 = vpop.permute.xlu0 %3161
      %3163 = vrot.lane.b32.xlu0 %v2989, 17
      %v3164 = vpop.permute.xlu0 %3163
      %3165 = vrot.lane.b32.xlu0 %v2909, 17
      %v3166 = vpop.permute.xlu0 %3165
      %3167 = vrot.lane.b32.xlu0 %v2990, 17
      %v3168 = vpop.permute.xlu0 %3167
      %3169 = vrot.lane.b32.xlu0 %v2991, 17
      %v3170 = vpop.permute.xlu0 %3169
      %3171 = vrot.lane.b32.xlu0 %v2915, 17
      %v3172 = vpop.permute.xlu0 %3171
      %3173 = vrot.lane.b32.xlu0 %v2992, 17
      %v3174 = vpop.permute.xlu0 %3173
      %3175 = vrot.lane.b32.xlu0 %v2993, 17
      %v3176 = vpop.permute.xlu0 %3175
      %3177 = vrot.lane.b32.xlu0 %v2921, 17
      %v3178 = vpop.permute.xlu0 %3177
      %3179 = vrot.lane.b32.xlu0 %v2994, 17
      %v3180 = vpop.permute.xlu0 %3179
      %3181 = vrot.lane.b32.xlu0 %v2995, 17
      %v3182 = vpop.permute.xlu0 %3181
      %3183 = vrot.lane.b32.xlu0 %v2927, 17
      %v3184 = vpop.permute.xlu0 %3183
      %3185 = vrot.lane.b32.xlu0 %v2996, 17
      %v3186 = vpop.permute.xlu0 %3185
      %3187 = vrot.lane.b32.xlu0 %v2997, 17
      %v3188 = vpop.permute.xlu0 %3187
      %3189 = vrot.lane.b32.xlu0 %v2933, 17
      %v3190 = vpop.permute.xlu0 %3189
      %3191 = vrot.lane.b32.xlu0 %v2998, 17
      %v3192 = vpop.permute.xlu0 %3191
      %3193 = vrot.lane.b32.xlu0 %v2999, 17
      %v3194 = vpop.permute.xlu0 %3193
      %3195 = vrot.lane.b32.xlu0 %v2939, 17
      %v3196 = vpop.permute.xlu0 %3195
      %3197 = vrot.lane.b32.xlu0 %v3000, 17
      %v3198 = vpop.permute.xlu0 %3197
      %3199 = vrot.lane.b32.xlu0 %v3001, 17
      %v3200 = vpop.permute.xlu0 %3199
      %3201 = vrot.lane.b32.xlu0 %v2945, 17
      %v3202 = vpop.permute.xlu0 %3201
      %3203 = vrot.lane.b32.xlu0 %v3002, 17
      %v3204 = vpop.permute.xlu0 %3203
      %3205 = vrot.lane.b32.xlu0 %v3003, 17
      %v3206 = vpop.permute.xlu0 %3205
      %3207 = vrot.lane.b32.xlu0 %v2951, 17
      %v3208 = vpop.permute.xlu0 %3207
      %3209 = vrot.lane.b32.xlu0 %v3004, 17
      %v3210 = vpop.permute.xlu0 %3209
      %3211 = vrot.lane.b32.xlu0 %v3005, 17
      %v3212 = vpop.permute.xlu0 %3211
      %3213 = vrot.lane.b32.xlu0 %v2957, 17
      %v3214 = vpop.permute.xlu0 %3213
      %3215 = vrot.lane.b32.xlu0 %v3006, 17
      %v3216 = vpop.permute.xlu0 %3215
      %3217 = vrot.lane.b32.xlu0 %v3007, 17
      %v3218 = vpop.permute.xlu0 %3217
      %3219 = vrot.lane.b32.xlu0 %v2963, 17
      %v3220 = vpop.permute.xlu0 %3219
      %3221 = vrot.lane.b32.xlu0 %v3008, 17
      %v3222 = vpop.permute.xlu0 %3221
      %3223 = vrot.lane.b32.xlu0 %v3009, 17
      %v3224 = vpop.permute.xlu0 %3223
      %3225 = vrot.lane.b32.xlu0 %v2969, 17
      %v3226 = vpop.permute.xlu0 %3225
      %3227 = vrot.lane.b32.xlu0 %v3010, 17
      %v3228 = vpop.permute.xlu0 %3227
      %3229 = vrot.lane.b32.xlu0 %v3011, 17
      %v3230 = vpop.permute.xlu0 %3229
      %3231 = vrot.lane.b32.xlu0 %v2975, 17
      %v3232 = vpop.permute.xlu0 %3231
      %3233 = vrot.lane.b32.xlu0 %v3012, 17
      %v3234 = vpop.permute.xlu0 %3233
      %3235 = vrot.lane.b32.xlu0 %v3013, 17
      %v3236 = vpop.permute.xlu0 %3235
      %3237 = vrot.lane.b32.xlu0 %v2981, 17
      %v3238 = vpop.permute.xlu0 %3237
      %3239 = vrot.lane.b32.xlu0 %v3014, 17
      %v3240 = vpop.permute.xlu0 %3239
      %3241 = vrot.lane.b32.xlu0 %v3015, 17
      %v3242 = vpop.permute.xlu0 %3241
      %v3243 = vsel %vm429, %v3040, %v3042
      %v3244 = vsel %vm429, %v3042, %v3044
      %v3245 = vsel %vm429, %v3046, %v3048
      %v3246 = vsel %vm429, %v3048, %v3050
      %v3247 = vsel %vm429, %v3052, %v3054
      %v3248 = vsel %vm429, %v3054, %v3056
      %v3249 = vsel %vm429, %v3058, %v3060
      %v3250 = vsel %vm429, %v3060, %v3062
      %v3251 = vsel %vm429, %v3064, %v3066
      %v3252 = vsel %vm429, %v3066, %v3068
      %v3253 = vsel %vm429, %v3070, %v3072
      %v3254 = vsel %vm429, %v3072, %v3074
      %v3255 = vsel %vm429, %v3076, %v3078
      %v3256 = vsel %vm429, %v3078, %v3080
      %v3257 = vsel %vm429, %v3082, %v3084
      %v3258 = vsel %vm429, %v3084, %v3086
      %v3259 = vsel %vm429, %v3088, %v3090
      %v3260 = vsel %vm429, %v3090, %v3092
      %v3261 = vsel %vm429, %v3094, %v3096
      %v3262 = vsel %vm429, %v3096, %v3098
      %v3263 = vsel %vm429, %v3100, %v3102
      %v3264 = vsel %vm429, %v3102, %v3104
      %v3265 = vsel %vm429, %v3106, %v3108
      %v3266 = vsel %vm429, %v3108, %v3110
      %v3267 = vsel %vm429, %v3112, %v3114
      %v3268 = vsel %vm429, %v3114, %v3116
      %v3269 = vsel %vm429, %v3118, %v3120
      %v3270 = vsel %vm429, %v3120, %v3122
      %v3271 = vsel %vm429, %v3124, %v3126
      %v3272 = vsel %vm429, %v3126, %v3128
      %v3273 = vsel %vm429, %v3130, %v3132
      %v3274 = vsel %vm429, %v3132, %v3134
      %v3275 = vsel %vm429, %v3136, %v3138
      %v3276 = vsel %vm429, %v3138, %v3140
      %v3277 = vsel %vm429, %v3142, %v3144
      %v3278 = vsel %vm429, %v3144, %v3146
      %v3279 = vsel %vm429, %v3148, %v3150
      %v3280 = vsel %vm429, %v3150, %v3152
      %v3281 = vsel %vm429, %v3154, %v3156
      %v3282 = vsel %vm429, %v3156, %v3158
      %v3283 = vsel %vm429, %v3160, %v3162
      %v3284 = vsel %vm429, %v3162, %v3164
      %v3285 = vsel %vm429, %v3166, %v3168
      %v3286 = vsel %vm429, %v3168, %v3170
      %v3287 = vsel %vm429, %v3172, %v3174
      %v3288 = vsel %vm429, %v3174, %v3176
      %v3289 = vsel %vm429, %v3178, %v3180
      %v3290 = vsel %vm429, %v3180, %v3182
      %v3291 = vsel %vm429, %v3184, %v3186
      %v3292 = vsel %vm429, %v3186, %v3188
      %v3293 = vsel %vm429, %v3190, %v3192
      %v3294 = vsel %vm429, %v3192, %v3194
      %v3295 = vsel %vm429, %v3196, %v3198
      %v3296 = vsel %vm429, %v3198, %v3200
      %v3297 = vsel %vm429, %v3202, %v3204
      %v3298 = vsel %vm429, %v3204, %v3206
      %v3299 = vsel %vm429, %v3208, %v3210
      %v3300 = vsel %vm429, %v3210, %v3212
      %v3301 = vsel %vm429, %v3214, %v3216
      %v3302 = vsel %vm429, %v3216, %v3218
      %v3303 = vsel %vm429, %v3220, %v3222
      %v3304 = vsel %vm429, %v3222, %v3224
      %v3305 = vsel %vm429, %v3226, %v3228
      %v3306 = vsel %vm429, %v3228, %v3230
      %v3307 = vsel %vm429, %v3232, %v3234
      %v3308 = vsel %vm429, %v3234, %v3236
      %v3309 = vsel %vm429, %v3238, %v3240
      %v3310 = vsel %vm429, %v3240, %v3242
      %vm3379 = vcmask 392192
      %v3381 = vsel %vm3379, %v3019, 0
      %v3384 = vsel %vm3379, %v3023, 0
      %3386 = vmatprep.subr.mxu0 %v849
      %3387 = vmatpush1.msra.mxu0 %v848
      %3388 = vmatprep.subr.mxu0 %v851
      %3389 = vmatpush1.msra.mxu0 %v850
      %3390 = vmatprep.subr.mxu0 %v1171
      %3391 = vmatpush1.msra.mxu0 %v1170
      %3392 = vmatprep.subr.mxu0 %v1681
      %3393 = vmatpush1.msra.mxu0 %v1680
      %3394 = vmatprep.subr.mxu0 %v2332
      %3395 = vmatpush1.msra.mxu0 %v2331
      %3396 = vmatprep.subr.mxu0 %v3244
      %3397 = vmatpush1.msra.mxu0 %v3243
      %3398 = vmatprep.subr.mxu0 %v853
      %3399 = vmatpush1.msra.mxu0 %v852
      %3400 = vmatprep.subr.mxu0 %v855
      %3401 = vmatpush1.msra.mxu0 %v854
      %3402 = vmatprep.subr.mxu0 %v1173
      %3403 = vmatpush1.msra.mxu0 %v1172
      %3404 = vmatprep.subr.mxu0 %v1683
      %3405 = vmatpush1.msra.mxu0 %v1682
      %3406 = vmatprep.subr.mxu0 %v2334
      %3407 = vmatpush1.msra.mxu0 %v2333
      %3408 = vmatprep.subr.mxu0 %v3246
      %3409 = vmatpush1.msra.mxu0 %v3245
      %3410 = vmatprep.subr.mxu0 %v857
      %3411 = vmatpush1.msra.mxu0 %v856
      %3412 = vmatprep.subr.mxu0 %v859
      %3413 = vmatpush1.msra.mxu0 %v858
      %3414 = vmatprep.subr.mxu0 %v1175
      %3415 = vmatpush1.msra.mxu0 %v1174
      %3416 = vmatprep.subr.mxu0 %v1685
      %3417 = vmatpush1.msra.mxu0 %v1684
      %3418 = vmatprep.subr.mxu0 %v2336
      %3419 = vmatpush1.msra.mxu0 %v2335
      %3420 = vmatprep.subr.mxu0 %v3248
      %3421 = vmatpush1.msra.mxu0 %v3247
      %3422 = vmatprep.subr.mxu0 %v861
      %3423 = vmatpush1.msra.mxu0 %v860
      %3424 = vmatprep.subr.mxu0 %v863
      %3425 = vmatpush1.msra.mxu0 %v862
      %3426 = vmatprep.subr.mxu0 %v1177
      %3427 = vmatpush1.msra.mxu0 %v1176
      %3428 = vmatprep.subr.mxu0 %v1687
      %3429 = vmatpush1.msra.mxu0 %v1686
      %3430 = vmatprep.subr.mxu0 %v2338
      %3431 = vmatpush1.msra.mxu0 %v2337
      %3432 = vmatprep.subr.mxu0 %v3250
      %3433 = vmatpush1.msra.mxu0 %v3249
      %3434 = vmatprep.subr.mxu0 %v3252
      %3435 = vmatpush1.msra.mxu0 %v3251
      %3436 = vmatprep.subr.mxu0 %v3254
      %3437 = vmatpush1.msra.mxu0 %v3253
      %3438 = vmatprep.subr.mxu0 %v3256
      %3439 = vmatpush1.msra.mxu0 %v3255
      %3440 = vmatprep.subr.mxu0 %v3258
      %3441 = vmatpush1.msra.mxu0 %v3257
      %3442 = vmatprep.subr.mxu0 %v3260
      %3443 = vmatpush1.msra.mxu0 %v3259
      %3444 = vmatprep.subr.mxu0 %v3262
      %3445 = vmatpush1.msra.mxu0 %v3261
      %3446 = vmatprep.subr.mxu0 %v3264
      %3447 = vmatpush1.msra.mxu0 %v3263
      %3448 = vmatprep.subr.mxu0 %v3266
      %3449 = vmatpush1.msra.mxu0 %v3265
      %3450 = vmatprep.mubr.f32.mxu0 %v3017
      %3451 = vmatmul.mubr.f32.gmra.mrb[0].mxu0 %v3016
      %v3452 = vpop.f32.mrb[0].mxu0
      %v3453 = vadd.f32 %v3029, %v3452
      %v3454 = vpop.f32.mrb[0].mxu0
      %v3455 = vadd.f32 %v3029, %v3454
      %3456 = vmatprep.mubr.f32.mxu0 %v3021
      %3457 = vmatmul.mubr.f32.gmra.mrb[0].mxu0 %v3020
      %v3458 = vpop.f32.mrb[0].mxu0
      %v3459 = vadd.f32 %v3034, %v3458
      %v3460 = vpop.f32.mrb[0].mxu0
      %v3461 = vadd.f32 %v3034, %v3460
      %3462 = vdwg.mxu0
      %3463 = vmatprep.subr.mxu0 %v3268
      %3464 = vmatpush1.msra.mxu0 %v3267
      %3465 = vmatprep.subr.mxu0 %v3270
      %3466 = vmatpush1.msra.mxu0 %v3269
      %3467 = vmatprep.subr.mxu0 %v3272
      %3468 = vmatpush1.msra.mxu0 %v3271
      %3469 = vmatprep.subr.mxu0 %v3274
      %3470 = vmatpush1.msra.mxu0 %v3273
      %3471 = vmatprep.subr.mxu0 %v3276
      %3472 = vmatpush1.msra.mxu0 %v3275
      %3473 = vmatprep.subr.mxu0 %v3278
      %3474 = vmatpush1.msra.mxu0 %v3277
      %3475 = vmatprep.subr.mxu0 %v3280
      %3476 = vmatpush1.msra.mxu0 %v3279
      %3477 = vmatprep.subr.mxu0 %v3282
      %3478 = vmatpush1.msra.mxu0 %v3281
      %3479 = vmatprep.subr.mxu0 %v3284
      %3480 = vmatpush1.msra.mxu0 %v3283
      %3481 = vmatprep.subr.mxu0 %v3286
      %3482 = vmatpush1.msra.mxu0 %v3285
      %3483 = vmatprep.subr.mxu0 %v3288
      %3484 = vmatpush1.msra.mxu0 %v3287
      %3485 = vmatprep.subr.mxu0 %v3290
      %3486 = vmatpush1.msra.mxu0 %v3289
      %3487 = vmatprep.subr.mxu0 %v3292
      %3488 = vmatpush1.msra.mxu0 %v3291
      %3489 = vmatprep.subr.mxu0 %v3294
      %3490 = vmatpush1.msra.mxu0 %v3293
      %3491 = vmatprep.subr.mxu0 %v3296
      %3492 = vmatpush1.msra.mxu0 %v3295
      %3493 = vmatprep.subr.mxu0 %v3298
      %3494 = vmatpush1.msra.mxu0 %v3297
      %3495 = vmatprep.subr.mxu0 %v3300
      %3496 = vmatpush1.msra.mxu0 %v3299
      %3497 = vmatprep.subr.mxu0 %v3302
      %3498 = vmatpush1.msra.mxu0 %v3301
      %3499 = vmatprep.subr.mxu0 %v3304
      %3500 = vmatpush1.msra.mxu0 %v3303
      %3501 = vmatprep.subr.mxu0 %v3306
      %3502 = vmatpush1.msra.mxu0 %v3305
      %3503 = vmatprep.subr.mxu0 %v3308
      %3504 = vmatpush1.msra.mxu0 %v3307
      %3505 = vmatprep.subr.mxu0 %v3310
      %3506 = vmatpush1.msra.mxu0 %v3309
      %3507 = vmatprep.subr.mxu0 0.0
      %3508 = vmatpush1.msra.mxu0 0.0
      %3509 = vmatprep.subr.mxu0 0.0
      %3510 = vmatpush1.msra.mxu0 0.0
      %3511 = vmatprep.subr.mxu0 0.0
      %3512 = vmatpush1.msra.mxu0 0.0
      %3513 = vmatprep.subr.mxu0 0.0
      %3514 = vmatpush1.msra.mxu0 0.0
      %3515 = vmatprep.subr.mxu0 0.0
      %3516 = vmatpush1.msra.mxu0 0.0
      %3517 = vmatprep.subr.mxu0 0.0
      %3518 = vmatpush1.msra.mxu0 0.0
      %3519 = vmatprep.subr.mxu0 0.0
      %3520 = vmatpush1.msra.mxu0 0.0
      %3521 = vmatprep.subr.mxu0 0.0
      %3522 = vmatpush1.msra.mxu0 0.0
      %3523 = vmatprep.subr.mxu0 0.0
      %3524 = vmatpush1.msra.mxu0 0.0
      %3525 = vmatprep.subr.mxu0 0.0
      %3526 = vmatpush1.msra.mxu0 0.0
      %3527 = vmatprep.mubr.f32.mxu0 %v3381
      %3528 = vmatmul.mubr.f32.gmra.mrb[0].mxu0 %v3018
      %v3529 = vpop.f32.mrb[0].mxu0
      %v3530 = vadd.f32 %v3453, %v3529
      %v3531 = vpop.f32.mrb[0].mxu0
      %v3532 = vadd.f32 %v3455, %v3531
      %3533 = vmatprep.mubr.f32.mxu0 %v3384
      %3534 = vmatmul.mubr.f32.gmra.mrb[0].mxu0 %v3022
      %v3535 = vpop.f32.mrb[0].mxu0
      %v3536 = vadd.f32 %v3459, %v3535
      %v3537 = vpop.f32.mrb[0].mxu0
      %v3538 = vadd.f32 %v3461, %v3537
      %3539 = vdwg.mxu0
      %v3540 = vmul.f32 %v3530, 0.2
      %v3541 = vmul.f32 %v3532, 0.2
      %v3542 = vmul.f32 %v3536, 0.2
      %v3543 = vmul.f32 %v3538, 0.2
      %v3544 = vadd.f32 %v3540, %v451
      %v3545 = vadd.f32 %v3541, %v452
      %v3546 = vadd.f32 %v3542, %v453
      %v3547 = vadd.f32 %v3543, %v454
      %3548 = vst [vmem:[#allocation2 + $0x8] sm:$0xff] %v3544
      %3549 = vst [vmem:[#allocation2 + $0x10] sm:$0xff] %v3545
      %3550 = vst [vmem:[#allocation2 + $0x28] sm:$0xff] %v3546
      %3551 = vst [vmem:[#allocation2 + $0x30] sm:$0xff] %v3547
      %v3552 = vld [vmem:[#allocation2] sm:$0xff]
      %v3553 = vld [vmem:[#allocation2 + $0x8] sm:$0xff]
      %v3554 = vld [vmem:[#allocation2 + $0x10] sm:$0xff]
      %v3555 = vld [vmem:[#allocation2 + $0x20] sm:$0xff]
      %v3556 = vld [vmem:[#allocation2 + $0x28] sm:$0xff]
      %v3557 = vld [vmem:[#allocation2 + $0x30] sm:$0xff]
      %v3558 = vmul.f32 %v3552, %v468
      %v3559 = vmul.f32 %v3553, %v472
      %v3560 = vmul.f32 %v3554, %v470
      %v3561 = vmul.f32 %v3555, %v468
      %v3562 = vmul.f32 %v3556, %v472
      %v3563 = vmul.f32 %v3557, %v470
      %v3564 = vmul.f32 %v3552, %v485
      %v3565 = vmul.f32 %v3553, %v489
      %v3566 = vmul.f32 %v3554, %v487
      %v3567 = vmul.f32 %v3555, %v485
      %v3568 = vmul.f32 %v3556, %v489
      %v3569 = vmul.f32 %v3557, %v487
      %v3570 = vmul.f32 %v3552, %v500
      %v3571 = vmul.f32 %v3553, %v504
      %v3572 = vmul.f32 %v3554, %v502
      %v3573 = vmul.f32 %v3555, %v500
      %v3574 = vmul.f32 %v3556, %v504
      %v3575 = vmul.f32 %v3557, %v502
      %v3576 = vld [vmem:[#allocation2 + $0x18] sm:$0xff]
      %v3577 = vld [vmem:[#allocation2 + $0x38] sm:$0xff]
      %v3578 = vmul.f32 %v3553, %v517
      %v3579 = vmul.f32 %v3554, %v521
      %v3580 = vmul.f32 %v3576, %v519
      %v3581 = vmul.f32 %v3556, %v517
      %v3582 = vmul.f32 %v3557, %v521
      %v3583 = vmul.f32 %v3577, %v519
      %v3584 = vmul.f32 %v3553, %v532
      %v3585 = vmul.f32 %v3554, %v536
      %v3586 = vmul.f32 %v3576, %v534
      %v3587 = vmul.f32 %v3556, %v532
      %v3588 = vmul.f32 %v3557, %v536
      %v3589 = vmul.f32 %v3577, %v534
      %v3590 = vmul.f32 %v3553, %v547
      %v3591 = vmul.f32 %v3554, %v550
      %v3592 = vmul.f32 %v3576, %v549
      %v3593 = vmul.f32 %v3556, %v547
      %v3594 = vmul.f32 %v3557, %v550
      %v3595 = vmul.f32 %v3577, %v549
      %3602 = vrot.lane.b32.xlu0 %v3552, 127
      %v3603 = vpop.permute.xlu0 %3602
      %3604 = vrot.lane.b32.xlu0 %v3553, 127
      %v3605 = vpop.permute.xlu0 %3604
      %3606 = vrot.lane.b32.xlu0 %v3554, 127
      %v3607 = vpop.permute.xlu0 %3606
      %3608 = vrot.lane.b32.xlu0 %v3555, 127
      %v3609 = vpop.permute.xlu0 %3608
      %3610 = vrot.lane.b32.xlu0 %v3556, 127
      %v3611 = vpop.permute.xlu0 %3610
      %3612 = vrot.lane.b32.xlu0 %v3557, 127
      %v3613 = vpop.permute.xlu0 %3612
      %v3614 = vsel %vm503, %v3603, %v3605
      %v3615 = vsel %vm503, %v3605, %v3607
      %v3616 = vsel %vm503, %v3609, %v3611
      %v3617 = vsel %vm503, %v3611, %v3613
      %3624 = vrot.lane.b32.xlu0 %v3564, 126
      %v3625 = vpop.permute.xlu0 %3624
      %3626 = vrot.lane.b32.xlu0 %v3565, 126
      %v3627 = vpop.permute.xlu0 %3626
      %3628 = vrot.lane.b32.xlu0 %v3566, 126
      %v3629 = vpop.permute.xlu0 %3628
      %3630 = vrot.lane.b32.xlu0 %v3567, 126
      %v3631 = vpop.permute.xlu0 %3630
      %3632 = vrot.lane.b32.xlu0 %v3568, 126
      %v3633 = vpop.permute.xlu0 %3632
      %3634 = vrot.lane.b32.xlu0 %v3569, 126
      %v3635 = vpop.permute.xlu0 %3634
      %v3636 = vsel %vm600, %v3625, %v3627
      %v3637 = vsel %vm600, %v3627, %v3629
      %v3638 = vsel %vm600, %v3631, %v3633
      %v3639 = vsel %vm600, %v3633, %v3635
      %3646 = vrot.lane.b32.xlu0 %v3570, 112
      %v3647 = vpop.permute.xlu0 %3646
      %3648 = vrot.lane.b32.xlu0 %v3571, 112
      %v3649 = vpop.permute.xlu0 %3648
      %3650 = vrot.lane.b32.xlu0 %v3572, 112
      %v3651 = vpop.permute.xlu0 %3650
      %3652 = vrot.lane.b32.xlu0 %v3573, 112
      %v3653 = vpop.permute.xlu0 %3652
      %3654 = vrot.lane.b32.xlu0 %v3574, 112
      %v3655 = vpop.permute.xlu0 %3654
      %3656 = vrot.lane.b32.xlu0 %v3575, 112
      %v3657 = vpop.permute.xlu0 %3656
      %v3658 = vsel %vm623, %v3647, %v3649
      %v3659 = vsel %vm623, %v3649, %v3651
      %v3660 = vsel %vm623, %v3653, %v3655
      %v3661 = vsel %vm623, %v3655, %v3657
      %3662 = vrot.lane.b32.xlu0 %v3553, 111
      %v3663 = vpop.permute.xlu0 %3662
      %3664 = vrot.lane.b32.xlu0 %v3554, 111
      %v3665 = vpop.permute.xlu0 %3664
      %3666 = vrot.lane.b32.xlu0 %v3556, 111
      %v3667 = vpop.permute.xlu0 %3666
      %3668 = vrot.lane.b32.xlu0 %v3557, 111
      %v3669 = vpop.permute.xlu0 %3668
      %v3670 = vsel %vm471, %v3663, %v3665
      %v3671 = vsel %vm471, %v3667, %v3669
      %3678 = vrot.lane.b32.xlu0 %v3578, 110
      %v3679 = vpop.permute.xlu0 %3678
      %3680 = vrot.lane.b32.xlu0 %v3579, 110
      %v3681 = vpop.permute.xlu0 %3680
      %3682 = vrot.lane.b32.xlu0 %v3580, 110
      %v3683 = vpop.permute.xlu0 %3682
      %3684 = vrot.lane.b32.xlu0 %v3581, 110
      %v3685 = vpop.permute.xlu0 %3684
      %3686 = vrot.lane.b32.xlu0 %v3582, 110
      %v3687 = vpop.permute.xlu0 %3686
      %3688 = vrot.lane.b32.xlu0 %v3583, 110
      %v3689 = vpop.permute.xlu0 %3688
      %v3690 = vsel %vm656, %v3679, %v3681
      %v3691 = vsel %vm656, %v3681, %v3683
      %v3692 = vsel %vm656, %v3685, %v3687
      %v3693 = vsel %vm656, %v3687, %v3689
      %3700 = vrot.lane.b32.xlu0 %v3584, 96
      %v3701 = vpop.permute.xlu0 %3700
      %3702 = vrot.lane.b32.xlu0 %v3585, 96
      %v3703 = vpop.permute.xlu0 %3702
      %3704 = vrot.lane.b32.xlu0 %v3586, 96
      %v3705 = vpop.permute.xlu0 %3704
      %3706 = vrot.lane.b32.xlu0 %v3587, 96
      %v3707 = vpop.permute.xlu0 %3706
      %3708 = vrot.lane.b32.xlu0 %v3588, 96
      %v3709 = vpop.permute.xlu0 %3708
      %3710 = vrot.lane.b32.xlu0 %v3589, 96
      %v3711 = vpop.permute.xlu0 %3710
      %v3712 = vsel %vm679, %v3701, %v3703
      %v3713 = vsel %vm679, %v3703, %v3705
      %v3714 = vsel %vm679, %v3707, %v3709
      %v3715 = vsel %vm679, %v3709, %v3711
      %3718 = vrot.lane.b32.xlu0 %v3553, 95
      %v3719 = vpop.permute.xlu0 %3718
      %3720 = vrot.lane.b32.xlu0 %v3554, 95
      %v3721 = vpop.permute.xlu0 %3720
      %3722 = vrot.lane.b32.xlu0 %v3576, 95
      %v3723 = vpop.permute.xlu0 %3722
      %3724 = vrot.lane.b32.xlu0 %v3556, 95
      %v3725 = vpop.permute.xlu0 %3724
      %3726 = vrot.lane.b32.xlu0 %v3557, 95
      %v3727 = vpop.permute.xlu0 %3726
      %3728 = vrot.lane.b32.xlu0 %v3577, 95
      %v3729 = vpop.permute.xlu0 %3728
      %v3730 = vsel %vm698, %v3719, %v3721
      %v3731 = vsel %vm698, %v3721, %v3723
      %v3732 = vsel %vm698, %v3725, %v3727
      %v3733 = vsel %vm698, %v3727, %v3729
      %3740 = vrot.lane.b32.xlu0 %v3590, 94
      %v3741 = vpop.permute.xlu0 %3740
      %3742 = vrot.lane.b32.xlu0 %v3591, 94
      %v3743 = vpop.permute.xlu0 %3742
      %3744 = vrot.lane.b32.xlu0 %v3592, 94
      %v3745 = vpop.permute.xlu0 %3744
      %3746 = vrot.lane.b32.xlu0 %v3593, 94
      %v3747 = vpop.permute.xlu0 %3746
      %3748 = vrot.lane.b32.xlu0 %v3594, 94
      %v3749 = vpop.permute.xlu0 %3748
      %3750 = vrot.lane.b32.xlu0 %v3595, 94
      %v3751 = vpop.permute.xlu0 %3750
      %v3752 = vsel %vm721, %v3741, %v3743
      %v3753 = vsel %vm721, %v3743, %v3745
      %v3754 = vsel %vm721, %v3747, %v3749
      %v3755 = vsel %vm721, %v3749, %v3751
      %s3756 = scalar_lea.vmem %s1, 16
      %v3757 = vld [vmem:[%s3756] sm:$0xff]
      %v3758 = vld [vmem:[%s3756 + $0x8] sm:$0xff]
      %s3759 = scalar_lea.vmem %s6, 8
      %v3760 = vld [vmem:[%s3759] sm:$0xff]
      %3762 = vset.pattern.permute.xlu0 0
      %3763 = vperm.xlu0 %3762, %v3760
      %v3764 = vpop.permute.xlu0 %3763
      %3772 = vrot.lane.b32.xlu0 %v3558, 17
      %v3773 = vpop.permute.xlu0 %3772
      %3774 = vrot.lane.b32.xlu0 %v3559, 17
      %v3775 = vpop.permute.xlu0 %3774
      %3776 = vrot.lane.b32.xlu0 %v3560, 17
      %v3777 = vpop.permute.xlu0 %3776
      %3778 = vrot.lane.b32.xlu0 %v3561, 17
      %v3779 = vpop.permute.xlu0 %3778
      %3780 = vrot.lane.b32.xlu0 %v3562, 17
      %v3781 = vpop.permute.xlu0 %3780
      %3782 = vrot.lane.b32.xlu0 %v3563, 17
      %v3783 = vpop.permute.xlu0 %3782
      %3784 = vrot.lane.b32.xlu0 %v3614, 17
      %v3785 = vpop.permute.xlu0 %3784
      %3786 = vrot.lane.b32.xlu0 %v3615, 17
      %v3787 = vpop.permute.xlu0 %3786
      %3788 = vrot.lane.b32.xlu0 %v3607, 17
      %v3789 = vpop.permute.xlu0 %3788
      %3790 = vrot.lane.b32.xlu0 %v3616, 17
      %v3791 = vpop.permute.xlu0 %3790
      %3792 = vrot.lane.b32.xlu0 %v3617, 17
      %v3793 = vpop.permute.xlu0 %3792
      %3794 = vrot.lane.b32.xlu0 %v3613, 17
      %v3795 = vpop.permute.xlu0 %3794
      %3796 = vrot.lane.b32.xlu0 %v3636, 17
      %v3797 = vpop.permute.xlu0 %3796
      %3798 = vrot.lane.b32.xlu0 %v3637, 17
      %v3799 = vpop.permute.xlu0 %3798
      %3800 = vrot.lane.b32.xlu0 %v3629, 17
      %v3801 = vpop.permute.xlu0 %3800
      %3802 = vrot.lane.b32.xlu0 %v3638, 17
      %v3803 = vpop.permute.xlu0 %3802
      %3804 = vrot.lane.b32.xlu0 %v3639, 17
      %v3805 = vpop.permute.xlu0 %3804
      %3806 = vrot.lane.b32.xlu0 %v3635, 17
      %v3807 = vpop.permute.xlu0 %3806
      %3808 = vrot.lane.b32.xlu0 %v3658, 17
      %v3809 = vpop.permute.xlu0 %3808
      %3810 = vrot.lane.b32.xlu0 %v3659, 17
      %v3811 = vpop.permute.xlu0 %3810
      %3812 = vrot.lane.b32.xlu0 %v3651, 17
      %v3813 = vpop.permute.xlu0 %3812
      %3814 = vrot.lane.b32.xlu0 %v3660, 17
      %v3815 = vpop.permute.xlu0 %3814
      %3816 = vrot.lane.b32.xlu0 %v3661, 17
      %v3817 = vpop.permute.xlu0 %3816
      %3818 = vrot.lane.b32.xlu0 %v3657, 17
      %v3819 = vpop.permute.xlu0 %3818
      %3820 = vrot.lane.b32.xlu0 %v3663, 17
      %v3821 = vpop.permute.xlu0 %3820
      %3822 = vrot.lane.b32.xlu0 %v3670, 17
      %v3823 = vpop.permute.xlu0 %3822
      %3824 = vrot.lane.b32.xlu0 %v3665, 17
      %v3825 = vpop.permute.xlu0 %3824
      %3826 = vrot.lane.b32.xlu0 %v3667, 17
      %v3827 = vpop.permute.xlu0 %3826
      %3828 = vrot.lane.b32.xlu0 %v3671, 17
      %v3829 = vpop.permute.xlu0 %3828
      %3830 = vrot.lane.b32.xlu0 %v3669, 17
      %v3831 = vpop.permute.xlu0 %3830
      %3832 = vrot.lane.b32.xlu0 %v3679, 17
      %v3833 = vpop.permute.xlu0 %3832
      %3834 = vrot.lane.b32.xlu0 %v3690, 17
      %v3835 = vpop.permute.xlu0 %3834
      %3836 = vrot.lane.b32.xlu0 %v3691, 17
      %v3837 = vpop.permute.xlu0 %3836
      %3838 = vrot.lane.b32.xlu0 %v3685, 17
      %v3839 = vpop.permute.xlu0 %3838
      %3840 = vrot.lane.b32.xlu0 %v3692, 17
      %v3841 = vpop.permute.xlu0 %3840
      %3842 = vrot.lane.b32.xlu0 %v3693, 17
      %v3843 = vpop.permute.xlu0 %3842
      %3844 = vrot.lane.b32.xlu0 %v3701, 17
      %v3845 = vpop.permute.xlu0 %3844
      %3846 = vrot.lane.b32.xlu0 %v3712, 17
      %v3847 = vpop.permute.xlu0 %3846
      %3848 = vrot.lane.b32.xlu0 %v3713, 17
      %v3849 = vpop.permute.xlu0 %3848
      %3850 = vrot.lane.b32.xlu0 %v3707, 17
      %v3851 = vpop.permute.xlu0 %3850
      %3852 = vrot.lane.b32.xlu0 %v3714, 17
      %v3853 = vpop.permute.xlu0 %3852
      %3854 = vrot.lane.b32.xlu0 %v3715, 17
      %v3855 = vpop.permute.xlu0 %3854
      %3856 = vrot.lane.b32.xlu0 %v3719, 17
      %v3857 = vpop.permute.xlu0 %3856
      %3858 = vrot.lane.b32.xlu0 %v3730, 17
      %v3859 = vpop.permute.xlu0 %3858
      %3860 = vrot.lane.b32.xlu0 %v3731, 17
      %v3861 = vpop.permute.xlu0 %3860
      %3862 = vrot.lane.b32.xlu0 %v3725, 17
      %v3863 = vpop.permute.xlu0 %3862
      %3864 = vrot.lane.b32.xlu0 %v3732, 17
      %v3865 = vpop.permute.xlu0 %3864
      %3866 = vrot.lane.b32.xlu0 %v3733, 17
      %v3867 = vpop.permute.xlu0 %3866
      %3868 = vrot.lane.b32.xlu0 %v3741, 17
      %v3869 = vpop.permute.xlu0 %3868
      %3870 = vrot.lane.b32.xlu0 %v3752, 17
      %v3871 = vpop.permute.xlu0 %3870
      %3872 = vrot.lane.b32.xlu0 %v3753, 17
      %v3873 = vpop.permute.xlu0 %3872
      %3874 = vrot.lane.b32.xlu0 %v3747, 17
      %v3875 = vpop.permute.xlu0 %3874
      %3876 = vrot.lane.b32.xlu0 %v3754, 17
      %v3877 = vpop.permute.xlu0 %3876
      %3878 = vrot.lane.b32.xlu0 %v3755, 17
      %v3879 = vpop.permute.xlu0 %3878
      %v3880 = vsel %vm429, %v3773, %v3775
      %v3881 = vsel %vm429, %v3775, %v3777
      %v3882 = vsel %vm429, %v3779, %v3781
      %v3883 = vsel %vm429, %v3781, %v3783
      %v3884 = vsel %vm429, %v3785, %v3787
      %v3885 = vsel %vm429, %v3787, %v3789
      %v3886 = vsel %vm429, %v3791, %v3793
      %v3887 = vsel %vm429, %v3793, %v3795
      %v3888 = vsel %vm429, %v3797, %v3799
      %v3889 = vsel %vm429, %v3799, %v3801
      %v3890 = vsel %vm429, %v3803, %v3805
      %v3891 = vsel %vm429, %v3805, %v3807
      %v3892 = vsel %vm429, %v3809, %v3811
      %v3893 = vsel %vm429, %v3811, %v3813
      %v3894 = vsel %vm429, %v3815, %v3817
      %v3895 = vsel %vm429, %v3817, %v3819
      %v3896 = vsel %vm429, %v3821, %v3823
      %v3897 = vsel %vm429, %v3823, %v3825
      %v3898 = vsel %vm429, %v3827, %v3829
      %v3899 = vsel %vm429, %v3829, %v3831
      %v3900 = vsel %vm429, %v3833, %v3835
      %v3901 = vsel %vm429, %v3835, %v3837
      %v3902 = vsel %vm429, %v3839, %v3841
      %v3903 = vsel %vm429, %v3841, %v3843
      %v3904 = vsel %vm429, %v3845, %v3847
      %v3905 = vsel %vm429, %v3847, %v3849
      %v3906 = vsel %vm429, %v3851, %v3853
      %v3907 = vsel %vm429, %v3853, %v3855
      %v3908 = vsel %vm429, %v3857, %v3859
      %v3909 = vsel %vm429, %v3859, %v3861
      %v3910 = vsel %vm429, %v3863, %v3865
      %v3911 = vsel %vm429, %v3865, %v3867
      %v3912 = vsel %vm429, %v3869, %v3871
      %v3913 = vsel %vm429, %v3871, %v3873
      %v3914 = vsel %vm429, %v3875, %v3877
      %v3915 = vsel %vm429, %v3877, %v3879
      %v3953 = vsel %vm920, %v3758, 0
      %3955 = vmatprep.subr.mxu0 %v3881
      %3956 = vmatpush1.msra.mxu0 %v3880
      %3957 = vmatprep.subr.mxu0 %v3883
      %3958 = vmatpush1.msra.mxu0 %v3882
      %3959 = vmatprep.subr.mxu0 %v3885
      %3960 = vmatpush1.msra.mxu0 %v3884
      %3961 = vmatprep.subr.mxu0 %v3887
      %3962 = vmatpush1.msra.mxu0 %v3886
      %3963 = vmatprep.subr.mxu0 %v3889
      %3964 = vmatpush1.msra.mxu0 %v3888
      %3965 = vmatprep.subr.mxu0 %v3891
      %3966 = vmatpush1.msra.mxu0 %v3890
      %3967 = vmatprep.subr.mxu0 %v3893
      %3968 = vmatpush1.msra.mxu0 %v3892
      %3969 = vmatprep.subr.mxu0 %v3895
      %3970 = vmatpush1.msra.mxu0 %v3894
      %3971 = vmatprep.subr.mxu0 %v3897
      %3972 = vmatpush1.msra.mxu0 %v3896
      %3973 = vmatprep.subr.mxu0 %v3899
      %3974 = vmatpush1.msra.mxu0 %v3898
      %3975 = vmatprep.subr.mxu0 %v3901
      %3976 = vmatpush1.msra.mxu0 %v3900
      %3977 = vmatprep.subr.mxu0 %v3903
      %3978 = vmatpush1.msra.mxu0 %v3902
      %3979 = vmatprep.subr.mxu0 %v3905
      %3980 = vmatpush1.msra.mxu0 %v3904
      %3981 = vmatprep.subr.mxu0 %v3907
      %3982 = vmatpush1.msra.mxu0 %v3906
      %3983 = vmatprep.subr.mxu0 %v3909
      %3984 = vmatpush1.msra.mxu0 %v3908
      %3985 = vmatprep.subr.mxu0 %v3911
      %3986 = vmatpush1.msra.mxu0 %v3910
      %3987 = vmatprep.subr.mxu0 %v3913
      %3988 = vmatpush1.msra.mxu0 %v3912
      %3989 = vmatprep.subr.mxu0 %v3915
      %3990 = vmatpush1.msra.mxu0 %v3914
      %3991 = vmatprep.subr.mxu0 0.0
      %3992 = vmatpush1.msra.mxu0 0.0
      %3993 = vmatprep.subr.mxu0 0.0
      %3994 = vmatpush1.msra.mxu0 0.0
      %3995 = vmatprep.subr.mxu0 0.0
      %3996 = vmatpush1.msra.mxu0 0.0
      %3997 = vmatprep.subr.mxu0 0.0
      %3998 = vmatpush1.msra.mxu0 0.0
      %3999 = vmatprep.subr.mxu0 0.0
      %4000 = vmatpush1.msra.mxu0 0.0
      %4001 = vmatprep.subr.mxu0 0.0
      %4002 = vmatpush1.msra.mxu0 0.0
      %4003 = vmatprep.subr.mxu0 0.0
      %4004 = vmatpush1.msra.mxu0 0.0
      %4005 = vmatprep.subr.mxu0 0.0
      %4006 = vmatpush1.msra.mxu0 0.0
      %4007 = vmatprep.subr.mxu0 0.0
      %4008 = vmatpush1.msra.mxu0 0.0
      %4009 = vmatprep.subr.mxu0 0.0
      %4010 = vmatpush1.msra.mxu0 0.0
      %4011 = vmatprep.subr.mxu0 0.0
      %4012 = vmatpush1.msra.mxu0 0.0
      %4013 = vmatprep.subr.mxu0 0.0
      %4014 = vmatpush1.msra.mxu0 0.0
      %4015 = vmatprep.subr.mxu0 0.0
      %4016 = vmatpush1.msra.mxu0 0.0
      %4017 = vmatprep.subr.mxu0 0.0
      %4018 = vmatpush1.msra.mxu0 0.0
      %4019 = vmatprep.mubr.f32.mxu0 %v3953
      %4020 = vmatmul.mubr.f32.gmra.mrb[0].mxu0 %v3757
      %v4021 = vpop.f32.mrb[0].mxu0
      %v4022 = vadd.f32 %v3764, %v4021
      %v4023 = vpop.f32.mrb[0].mxu0
      %v4024 = vadd.f32 %v3764, %v4023
      %4025 = vdwg.mxu0
      %vm4026 = vcmp.ge.f32.partialorder %v4022, 0.0
      %vm4027 = vcmp.ge.f32.partialorder %v4024, 0.0
      %v4028 = vmul.f32 %v4022, 0.2
      %v4029 = vmul.f32 %v4024, 0.2
      %v4030 = vsel %vm4026, %v4022, %v4028
      %v4031 = vsel %vm4027, %v4024, %v4029
      %4032 = vst [vmem:[#allocation3 + $0x8] sm:$0xff] %v4030
      %4033 = vst [vmem:[#allocation3 + $0x10] sm:$0xff] %v4031
      %v4034 = vld [vmem:[#allocation3] sm:$0xff]
      %v4035 = vld [vmem:[#allocation3 + $0x8] sm:$0xff]
      %v4036 = vld [vmem:[#allocation3 + $0x10] sm:$0xff]
      %v4037 = vmul.f32 %v4034, %v468
      %v4038 = vmul.f32 %v4035, %v472
      %v4039 = vmul.f32 %v4036, %v470
      %v4040 = vmul.f32 %v4034, %v485
      %v4041 = vmul.f32 %v4035, %v489
      %v4042 = vmul.f32 %v4036, %v487
      %v4043 = vmul.f32 %v4034, %v500
      %v4044 = vmul.f32 %v4035, %v504
      %v4045 = vmul.f32 %v4036, %v502
      %v4046 = vld [vmem:[#allocation3 + $0x18] sm:$0xff]
      %v4047 = vmul.f32 %v4035, %v517
      %v4048 = vmul.f32 %v4036, %v521
      %v4049 = vmul.f32 %v4046, %v519
      %v4050 = vmul.f32 %v4035, %v532
      %v4051 = vmul.f32 %v4036, %v536
      %v4052 = vmul.f32 %v4046, %v534
      %v4053 = vmul.f32 %v4035, %v547
      %v4054 = vmul.f32 %v4036, %v550
      %v4055 = vmul.f32 %v4046, %v549
      %4059 = vrot.lane.b32.xlu0 %v4034, 127
      %v4060 = vpop.permute.xlu0 %4059
      %4061 = vrot.lane.b32.xlu0 %v4035, 127
      %v4062 = vpop.permute.xlu0 %4061
      %4063 = vrot.lane.b32.xlu0 %v4036, 127
      %v4064 = vpop.permute.xlu0 %4063
      %v4065 = vsel %vm503, %v4060, %v4062
      %v4066 = vsel %vm503, %v4062, %v4064
      %4070 = vrot.lane.b32.xlu0 %v4040, 126
      %v4071 = vpop.permute.xlu0 %4070
      %4072 = vrot.lane.b32.xlu0 %v4041, 126
      %v4073 = vpop.permute.xlu0 %4072
      %4074 = vrot.lane.b32.xlu0 %v4042, 126
      %v4075 = vpop.permute.xlu0 %4074
      %v4076 = vsel %vm600, %v4071, %v4073
      %v4077 = vsel %vm600, %v4073, %v4075
      %4081 = vrot.lane.b32.xlu0 %v4043, 112
      %v4082 = vpop.permute.xlu0 %4081
      %4083 = vrot.lane.b32.xlu0 %v4044, 112
      %v4084 = vpop.permute.xlu0 %4083
      %4085 = vrot.lane.b32.xlu0 %v4045, 112
      %v4086 = vpop.permute.xlu0 %4085
      %v4087 = vsel %vm623, %v4082, %v4084
      %v4088 = vsel %vm623, %v4084, %v4086
      %4089 = vrot.lane.b32.xlu0 %v4035, 111
      %v4090 = vpop.permute.xlu0 %4089
      %4091 = vrot.lane.b32.xlu0 %v4036, 111
      %v4092 = vpop.permute.xlu0 %4091
      %v4093 = vsel %vm471, %v4090, %v4092
      %4097 = vrot.lane.b32.xlu0 %v4047, 110
      %v4098 = vpop.permute.xlu0 %4097
      %4099 = vrot.lane.b32.xlu0 %v4048, 110
      %v4100 = vpop.permute.xlu0 %4099
      %4101 = vrot.lane.b32.xlu0 %v4049, 110
      %v4102 = vpop.permute.xlu0 %4101
      %v4103 = vsel %vm656, %v4098, %v4100
      %v4104 = vsel %vm656, %v4100, %v4102
      %4108 = vrot.lane.b32.xlu0 %v4050, 96
      %v4109 = vpop.permute.xlu0 %4108
      %4110 = vrot.lane.b32.xlu0 %v4051, 96
      %v4111 = vpop.permute.xlu0 %4110
      %4112 = vrot.lane.b32.xlu0 %v4052, 96
      %v4113 = vpop.permute.xlu0 %4112
      %v4114 = vsel %vm679, %v4109, %v4111
      %v4115 = vsel %vm679, %v4111, %v4113
      %4117 = vrot.lane.b32.xlu0 %v4035, 95
      %v4118 = vpop.permute.xlu0 %4117
      %4119 = vrot.lane.b32.xlu0 %v4036, 95
      %v4120 = vpop.permute.xlu0 %4119
      %4121 = vrot.lane.b32.xlu0 %v4046, 95
      %v4122 = vpop.permute.xlu0 %4121
      %v4123 = vsel %vm698, %v4118, %v4120
      %v4124 = vsel %vm698, %v4120, %v4122
      %4128 = vrot.lane.b32.xlu0 %v4053, 94
      %v4129 = vpop.permute.xlu0 %4128
      %4130 = vrot.lane.b32.xlu0 %v4054, 94
      %v4131 = vpop.permute.xlu0 %4130
      %4132 = vrot.lane.b32.xlu0 %v4055, 94
      %v4133 = vpop.permute.xlu0 %4132
      %v4134 = vsel %vm721, %v4129, %v4131
      %v4135 = vsel %vm721, %v4131, %v4133
      %s4136 = scalar_lea.vmem %s2, 16
      %v4137 = vld [vmem:[%s4136] sm:$0xff]
      %v4138 = vld [vmem:[%s4136 + $0x8] sm:$0xff]
      %s4139 = scalar_lea.vmem %s7, 8
      %v4140 = vld [vmem:[%s4139] sm:$0xff]
      %4142 = vset.pattern.permute.xlu0 0
      %4143 = vperm.xlu0 %4142, %v4140
      %v4144 = vpop.permute.xlu0 %4143
      %4149 = vrot.lane.b32.xlu0 %v4037, 17
      %v4150 = vpop.permute.xlu0 %4149
      %4151 = vrot.lane.b32.xlu0 %v4038, 17
      %v4152 = vpop.permute.xlu0 %4151
      %4153 = vrot.lane.b32.xlu0 %v4039, 17
      %v4154 = vpop.permute.xlu0 %4153
      %4155 = vrot.lane.b32.xlu0 %v4065, 17
      %v4156 = vpop.permute.xlu0 %4155
      %4157 = vrot.lane.b32.xlu0 %v4066, 17
      %v4158 = vpop.permute.xlu0 %4157
      %4159 = vrot.lane.b32.xlu0 %v4064, 17
      %v4160 = vpop.permute.xlu0 %4159
      %4161 = vrot.lane.b32.xlu0 %v4076, 17
      %v4162 = vpop.permute.xlu0 %4161
      %4163 = vrot.lane.b32.xlu0 %v4077, 17
      %v4164 = vpop.permute.xlu0 %4163
      %4165 = vrot.lane.b32.xlu0 %v4075, 17
      %v4166 = vpop.permute.xlu0 %4165
      %4167 = vrot.lane.b32.xlu0 %v4087, 17
      %v4168 = vpop.permute.xlu0 %4167
      %4169 = vrot.lane.b32.xlu0 %v4088, 17
      %v4170 = vpop.permute.xlu0 %4169
      %4171 = vrot.lane.b32.xlu0 %v4086, 17
      %v4172 = vpop.permute.xlu0 %4171
      %4173 = vrot.lane.b32.xlu0 %v4090, 17
      %v4174 = vpop.permute.xlu0 %4173
      %4175 = vrot.lane.b32.xlu0 %v4093, 17
      %v4176 = vpop.permute.xlu0 %4175
      %4177 = vrot.lane.b32.xlu0 %v4092, 17
      %v4178 = vpop.permute.xlu0 %4177
      %4179 = vrot.lane.b32.xlu0 %v4098, 17
      %v4180 = vpop.permute.xlu0 %4179
      %4181 = vrot.lane.b32.xlu0 %v4103, 17
      %v4182 = vpop.permute.xlu0 %4181
      %4183 = vrot.lane.b32.xlu0 %v4104, 17
      %v4184 = vpop.permute.xlu0 %4183
      %4185 = vrot.lane.b32.xlu0 %v4109, 17
      %v4186 = vpop.permute.xlu0 %4185
      %4187 = vrot.lane.b32.xlu0 %v4114, 17
      %v4188 = vpop.permute.xlu0 %4187
      %4189 = vrot.lane.b32.xlu0 %v4115, 17
      %v4190 = vpop.permute.xlu0 %4189
      %4191 = vrot.lane.b32.xlu0 %v4118, 17
      %v4192 = vpop.permute.xlu0 %4191
      %4193 = vrot.lane.b32.xlu0 %v4123, 17
      %v4194 = vpop.permute.xlu0 %4193
      %4195 = vrot.lane.b32.xlu0 %v4124, 17
      %v4196 = vpop.permute.xlu0 %4195
      %4197 = vrot.lane.b32.xlu0 %v4129, 17
      %v4198 = vpop.permute.xlu0 %4197
      %4199 = vrot.lane.b32.xlu0 %v4134, 17
      %v4200 = vpop.permute.xlu0 %4199
      %4201 = vrot.lane.b32.xlu0 %v4135, 17
      %v4202 = vpop.permute.xlu0 %4201
      %v4203 = vsel %vm429, %v4150, %v4152
      %v4204 = vsel %vm429, %v4152, %v4154
      %v4205 = vsel %vm429, %v4156, %v4158
      %v4206 = vsel %vm429, %v4158, %v4160
      %v4207 = vsel %vm429, %v4162, %v4164
      %v4208 = vsel %vm429, %v4164, %v4166
      %v4209 = vsel %vm429, %v4168, %v4170
      %v4210 = vsel %vm429, %v4170, %v4172
      %v4211 = vsel %vm429, %v4174, %v4176
      %v4212 = vsel %vm429, %v4176, %v4178
      %v4213 = vsel %vm429, %v4180, %v4182
      %v4214 = vsel %vm429, %v4182, %v4184
      %v4215 = vsel %vm429, %v4186, %v4188
      %v4216 = vsel %vm429, %v4188, %v4190
      %v4217 = vsel %vm429, %v4192, %v4194
      %v4218 = vsel %vm429, %v4194, %v4196
      %v4219 = vsel %vm429, %v4198, %v4200
      %v4220 = vsel %vm429, %v4200, %v4202
      %v4240 = vsel %vm1206, %v4138, 0
      %4242 = vmatprep.subr.mxu0 %v3881
      %4243 = vmatpush1.msra.mxu0 %v3880
      %4244 = vmatprep.subr.mxu0 %v3883
      %4245 = vmatpush1.msra.mxu0 %v3882
      %4246 = vmatprep.subr.mxu0 %v4204
      %4247 = vmatpush1.msra.mxu0 %v4203
      %4248 = vmatprep.subr.mxu0 %v3885
      %4249 = vmatpush1.msra.mxu0 %v3884
      %4250 = vmatprep.subr.mxu0 %v3887
      %4251 = vmatpush1.msra.mxu0 %v3886
      %4252 = vmatprep.subr.mxu0 %v4206
      %4253 = vmatpush1.msra.mxu0 %v4205
      %4254 = vmatprep.subr.mxu0 %v3889
      %4255 = vmatpush1.msra.mxu0 %v3888
      %4256 = vmatprep.subr.mxu0 %v3891
      %4257 = vmatpush1.msra.mxu0 %v3890
      %4258 = vmatprep.subr.mxu0 %v4208
      %4259 = vmatpush1.msra.mxu0 %v4207
      %4260 = vmatprep.subr.mxu0 %v3893
      %4261 = vmatpush1.msra.mxu0 %v3892
      %4262 = vmatprep.subr.mxu0 %v3895
      %4263 = vmatpush1.msra.mxu0 %v3894
      %4264 = vmatprep.subr.mxu0 %v4210
      %4265 = vmatpush1.msra.mxu0 %v4209
      %4266 = vmatprep.subr.mxu0 %v3897
      %4267 = vmatpush1.msra.mxu0 %v3896
      %4268 = vmatprep.subr.mxu0 %v3899
      %4269 = vmatpush1.msra.mxu0 %v3898
      %4270 = vmatprep.subr.mxu0 %v4212
      %4271 = vmatpush1.msra.mxu0 %v4211
      %4272 = vmatprep.subr.mxu0 %v3901
      %4273 = vmatpush1.msra.mxu0 %v3900
      %4274 = vmatprep.subr.mxu0 %v3903
      %4275 = vmatpush1.msra.mxu0 %v3902
      %4276 = vmatprep.subr.mxu0 %v4214
      %4277 = vmatpush1.msra.mxu0 %v4213
      %4278 = vmatprep.subr.mxu0 %v3905
      %4279 = vmatpush1.msra.mxu0 %v3904
      %4280 = vmatprep.subr.mxu0 %v3907
      %4281 = vmatpush1.msra.mxu0 %v3906
      %4282 = vmatprep.subr.mxu0 %v4216
      %4283 = vmatpush1.msra.mxu0 %v4215
      %4284 = vmatprep.subr.mxu0 %v3909
      %4285 = vmatpush1.msra.mxu0 %v3908
      %4286 = vmatprep.subr.mxu0 %v3911
      %4287 = vmatpush1.msra.mxu0 %v3910
      %4288 = vmatprep.subr.mxu0 %v4218
      %4289 = vmatpush1.msra.mxu0 %v4217
      %4290 = vmatprep.subr.mxu0 %v3913
      %4291 = vmatpush1.msra.mxu0 %v3912
      %4292 = vmatprep.subr.mxu0 %v3915
      %4293 = vmatpush1.msra.mxu0 %v3914
      %4294 = vmatprep.subr.mxu0 %v4220
      %4295 = vmatpush1.msra.mxu0 %v4219
      %4296 = vmatprep.subr.mxu0 0.0
      %4297 = vmatpush1.msra.mxu0 0.0
      %4298 = vmatprep.subr.mxu0 0.0
      %4299 = vmatpush1.msra.mxu0 0.0
      %4300 = vmatprep.subr.mxu0 0.0
      %4301 = vmatpush1.msra.mxu0 0.0
      %4302 = vmatprep.subr.mxu0 0.0
      %4303 = vmatpush1.msra.mxu0 0.0
      %4304 = vmatprep.subr.mxu0 0.0
      %4305 = vmatpush1.msra.mxu0 0.0
      %4306 = vmatprep.mubr.f32.mxu0 %v4240
      %4307 = vmatmul.mubr.f32.gmra.mrb[0].mxu0 %v4137
      %v4308 = vpop.f32.mrb[0].mxu0
      %v4309 = vadd.f32 %v4144, %v4308
      %v4310 = vpop.f32.mrb[0].mxu0
      %v4311 = vadd.f32 %v4144, %v4310
      %4312 = vdwg.mxu0
      %vm4313 = vcmp.ge.f32.partialorder %v4309, 0.0
      %vm4314 = vcmp.ge.f32.partialorder %v4311, 0.0
      %v4315 = vmul.f32 %v4309, 0.2
      %v4316 = vmul.f32 %v4311, 0.2
      %v4317 = vsel %vm4313, %v4309, %v4315
      %v4318 = vsel %vm4314, %v4311, %v4316
      %4319 = vst [vmem:[#allocation4 + $0x8] sm:$0xff] %v4317
      %4320 = vst [vmem:[#allocation4 + $0x10] sm:$0xff] %v4318
      %v4321 = vld [vmem:[#allocation4] sm:$0xff]
      %v4322 = vld [vmem:[#allocation4 + $0x8] sm:$0xff]
      %v4323 = vld [vmem:[#allocation4 + $0x10] sm:$0xff]
      %v4324 = vmul.f32 %v4321, %v468
      %v4325 = vmul.f32 %v4322, %v472
      %v4326 = vmul.f32 %v4323, %v470
      %v4327 = vmul.f32 %v4321, %v485
      %v4328 = vmul.f32 %v4322, %v489
      %v4329 = vmul.f32 %v4323, %v487
      %v4330 = vmul.f32 %v4321, %v500
      %v4331 = vmul.f32 %v4322, %v504
      %v4332 = vmul.f32 %v4323, %v502
      %v4333 = vld [vmem:[#allocation4 + $0x18] sm:$0xff]
      %v4334 = vmul.f32 %v4322, %v517
      %v4335 = vmul.f32 %v4323, %v521
      %v4336 = vmul.f32 %v4333, %v519
      %v4337 = vmul.f32 %v4322, %v532
      %v4338 = vmul.f32 %v4323, %v536
      %v4339 = vmul.f32 %v4333, %v534
      %v4340 = vmul.f32 %v4322, %v547
      %v4341 = vmul.f32 %v4323, %v550
      %v4342 = vmul.f32 %v4333, %v549
      %4346 = vrot.lane.b32.xlu0 %v4321, 127
      %v4347 = vpop.permute.xlu0 %4346
      %4348 = vrot.lane.b32.xlu0 %v4322, 127
      %v4349 = vpop.permute.xlu0 %4348
      %4350 = vrot.lane.b32.xlu0 %v4323, 127
      %v4351 = vpop.permute.xlu0 %4350
      %v4352 = vsel %vm503, %v4347, %v4349
      %v4353 = vsel %vm503, %v4349, %v4351
      %4357 = vrot.lane.b32.xlu0 %v4327, 126
      %v4358 = vpop.permute.xlu0 %4357
      %4359 = vrot.lane.b32.xlu0 %v4328, 126
      %v4360 = vpop.permute.xlu0 %4359
      %4361 = vrot.lane.b32.xlu0 %v4329, 126
      %v4362 = vpop.permute.xlu0 %4361
      %v4363 = vsel %vm600, %v4358, %v4360
      %v4364 = vsel %vm600, %v4360, %v4362
      %4368 = vrot.lane.b32.xlu0 %v4330, 112
      %v4369 = vpop.permute.xlu0 %4368
      %4370 = vrot.lane.b32.xlu0 %v4331, 112
      %v4371 = vpop.permute.xlu0 %4370
      %4372 = vrot.lane.b32.xlu0 %v4332, 112
      %v4373 = vpop.permute.xlu0 %4372
      %v4374 = vsel %vm623, %v4369, %v4371
      %v4375 = vsel %vm623, %v4371, %v4373
      %4376 = vrot.lane.b32.xlu0 %v4322, 111
      %v4377 = vpop.permute.xlu0 %4376
      %4378 = vrot.lane.b32.xlu0 %v4323, 111
      %v4379 = vpop.permute.xlu0 %4378
      %v4380 = vsel %vm471, %v4377, %v4379
      %4381 = vrot.lane.b32.xlu0 %v3584, 114
      %v4382 = vpop.permute.xlu0 %4381
      %4383 = vrot.lane.b32.xlu0 %v3585, 114
      %v4384 = vpop.permute.xlu0 %4383
      %4385 = vrot.lane.b32.xlu0 %v3586, 114
      %v4386 = vpop.permute.xlu0 %4385
      %4387 = vrot.lane.b32.xlu0 %v3587, 114
      %v4388 = vpop.permute.xlu0 %4387
      %4389 = vrot.lane.b32.xlu0 %v3588, 114
      %v4390 = vpop.permute.xlu0 %4389
      %4391 = vrot.lane.b32.xlu0 %v3589, 114
      %v4392 = vpop.permute.xlu0 %4391
      %v4393 = vsel %vm1361, %v4382, %v4384
      %v4394 = vsel %vm1361, %v4384, %v4386
      %v4395 = vsel %vm1361, %v4388, %v4390
      %v4396 = vsel %vm1361, %v4390, %v4392
      %4397 = vrot.lane.b32.xlu0 %v4050, 114
      %v4398 = vpop.permute.xlu0 %4397
      %4399 = vrot.lane.b32.xlu0 %v4051, 114
      %v4400 = vpop.permute.xlu0 %4399
      %4401 = vrot.lane.b32.xlu0 %v4052, 114
      %v4402 = vpop.permute.xlu0 %4401
      %v4403 = vsel %vm1361, %v4398, %v4400
      %v4404 = vsel %vm1361, %v4400, %v4402
      %4408 = vrot.lane.b32.xlu0 %v4337, 114
      %v4409 = vpop.permute.xlu0 %4408
      %4410 = vrot.lane.b32.xlu0 %v4338, 114
      %v4411 = vpop.permute.xlu0 %4410
      %4412 = vrot.lane.b32.xlu0 %v4339, 114
      %v4413 = vpop.permute.xlu0 %4412
      %v4414 = vsel %vm1361, %v4409, %v4411
      %v4415 = vsel %vm1361, %v4411, %v4413
      %4416 = vrot.lane.b32.xlu0 %v3553, 113
      %v4417 = vpop.permute.xlu0 %4416
      %4418 = vrot.lane.b32.xlu0 %v3554, 113
      %v4419 = vpop.permute.xlu0 %4418
      %4420 = vrot.lane.b32.xlu0 %v3576, 113
      %v4421 = vpop.permute.xlu0 %4420
      %4422 = vrot.lane.b32.xlu0 %v3556, 113
      %v4423 = vpop.permute.xlu0 %4422
      %4424 = vrot.lane.b32.xlu0 %v3557, 113
      %v4425 = vpop.permute.xlu0 %4424
      %4426 = vrot.lane.b32.xlu0 %v3577, 113
      %v4427 = vpop.permute.xlu0 %4426
      %v4428 = vsel %vm488, %v4417, %v4419
      %v4429 = vsel %vm488, %v4419, %v4421
      %v4430 = vsel %vm488, %v4423, %v4425
      %v4431 = vsel %vm488, %v4425, %v4427
      %4432 = vrot.lane.b32.xlu0 %v4035, 113
      %v4433 = vpop.permute.xlu0 %4432
      %4434 = vrot.lane.b32.xlu0 %v4036, 113
      %v4435 = vpop.permute.xlu0 %4434
      %4436 = vrot.lane.b32.xlu0 %v4046, 113
      %v4437 = vpop.permute.xlu0 %4436
      %v4438 = vsel %vm488, %v4433, %v4435
      %v4439 = vsel %vm488, %v4435, %v4437
      %4441 = vrot.lane.b32.xlu0 %v4322, 113
      %v4442 = vpop.permute.xlu0 %4441
      %4443 = vrot.lane.b32.xlu0 %v4323, 113
      %v4444 = vpop.permute.xlu0 %4443
      %4445 = vrot.lane.b32.xlu0 %v4333, 113
      %v4446 = vpop.permute.xlu0 %4445
      %v4447 = vsel %vm488, %v4442, %v4444
      %v4448 = vsel %vm488, %v4444, %v4446
      %4449 = vrot.lane.b32.xlu0 %v3590, 112
      %v4450 = vpop.permute.xlu0 %4449
      %4451 = vrot.lane.b32.xlu0 %v3591, 112
      %v4452 = vpop.permute.xlu0 %4451
      %4453 = vrot.lane.b32.xlu0 %v3592, 112
      %v4454 = vpop.permute.xlu0 %4453
      %4455 = vrot.lane.b32.xlu0 %v3593, 112
      %v4456 = vpop.permute.xlu0 %4455
      %4457 = vrot.lane.b32.xlu0 %v3594, 112
      %v4458 = vpop.permute.xlu0 %4457
      %4459 = vrot.lane.b32.xlu0 %v3595, 112
      %v4460 = vpop.permute.xlu0 %4459
      %v4461 = vsel %vm623, %v4450, %v4452
      %v4462 = vsel %vm623, %v4452, %v4454
      %v4463 = vsel %vm623, %v4456, %v4458
      %v4464 = vsel %vm623, %v4458, %v4460
      %4465 = vrot.lane.b32.xlu0 %v4053, 112
      %v4466 = vpop.permute.xlu0 %4465
      %4467 = vrot.lane.b32.xlu0 %v4054, 112
      %v4468 = vpop.permute.xlu0 %4467
      %4469 = vrot.lane.b32.xlu0 %v4055, 112
      %v4470 = vpop.permute.xlu0 %4469
      %v4471 = vsel %vm623, %v4466, %v4468
      %v4472 = vsel %vm623, %v4468, %v4470
      %4476 = vrot.lane.b32.xlu0 %v4340, 112
      %v4477 = vpop.permute.xlu0 %4476
      %4478 = vrot.lane.b32.xlu0 %v4341, 112
      %v4479 = vpop.permute.xlu0 %4478
      %4480 = vrot.lane.b32.xlu0 %v4342, 112
      %v4481 = vpop.permute.xlu0 %4480
      %v4482 = vsel %vm623, %v4477, %v4479
      %v4483 = vsel %vm623, %v4479, %v4481
      %4487 = vrot.lane.b32.xlu0 %v4334, 110
      %v4488 = vpop.permute.xlu0 %4487
      %4489 = vrot.lane.b32.xlu0 %v4335, 110
      %v4490 = vpop.permute.xlu0 %4489
      %4491 = vrot.lane.b32.xlu0 %v4336, 110
      %v4492 = vpop.permute.xlu0 %4491
      %4493 = vrot.lane.b32.xlu0 %v4393, 110
      %v4494 = vpop.permute.xlu0 %4493
      %4495 = vrot.lane.b32.xlu0 %v4394, 110
      %v4496 = vpop.permute.xlu0 %4495
      %4497 = vrot.lane.b32.xlu0 %v4386, 110
      %v4498 = vpop.permute.xlu0 %4497
      %4499 = vrot.lane.b32.xlu0 %v4395, 110
      %v4500 = vpop.permute.xlu0 %4499
      %4501 = vrot.lane.b32.xlu0 %v4396, 110
      %v4502 = vpop.permute.xlu0 %4501
      %4503 = vrot.lane.b32.xlu0 %v4392, 110
      %v4504 = vpop.permute.xlu0 %4503
      %4505 = vrot.lane.b32.xlu0 %v4403, 110
      %v4506 = vpop.permute.xlu0 %4505
      %4507 = vrot.lane.b32.xlu0 %v4404, 110
      %v4508 = vpop.permute.xlu0 %4507
      %4509 = vrot.lane.b32.xlu0 %v4402, 110
      %v4510 = vpop.permute.xlu0 %4509
      %4511 = vrot.lane.b32.xlu0 %v4414, 110
      %v4512 = vpop.permute.xlu0 %4511
      %4513 = vrot.lane.b32.xlu0 %v4415, 110
      %v4514 = vpop.permute.xlu0 %4513
      %4515 = vrot.lane.b32.xlu0 %v4413, 110
      %v4516 = vpop.permute.xlu0 %4515
      %4517 = vrot.lane.b32.xlu0 %v4428, 110
      %v4518 = vpop.permute.xlu0 %4517
      %4519 = vrot.lane.b32.xlu0 %v4429, 110
      %v4520 = vpop.permute.xlu0 %4519
      %4521 = vrot.lane.b32.xlu0 %v4421, 110
      %v4522 = vpop.permute.xlu0 %4521
      %4523 = vrot.lane.b32.xlu0 %v4430, 110
      %v4524 = vpop.permute.xlu0 %4523
      %4525 = vrot.lane.b32.xlu0 %v4431, 110
      %v4526 = vpop.permute.xlu0 %4525
      %4527 = vrot.lane.b32.xlu0 %v4427, 110
      %v4528 = vpop.permute.xlu0 %4527
      %4529 = vrot.lane.b32.xlu0 %v4438, 110
      %v4530 = vpop.permute.xlu0 %4529
      %4531 = vrot.lane.b32.xlu0 %v4439, 110
      %v4532 = vpop.permute.xlu0 %4531
      %4533 = vrot.lane.b32.xlu0 %v4437, 110
      %v4534 = vpop.permute.xlu0 %4533
      %4535 = vrot.lane.b32.xlu0 %v4447, 110
      %v4536 = vpop.permute.xlu0 %4535
      %4537 = vrot.lane.b32.xlu0 %v4448, 110
      %v4538 = vpop.permute.xlu0 %4537
      %4539 = vrot.lane.b32.xlu0 %v4446, 110
      %v4540 = vpop.permute.xlu0 %4539
      %4541 = vrot.lane.b32.xlu0 %v4461, 110
      %v4542 = vpop.permute.xlu0 %4541
      %4543 = vrot.lane.b32.xlu0 %v4462, 110
      %v4544 = vpop.permute.xlu0 %4543
      %4545 = vrot.lane.b32.xlu0 %v4454, 110
      %v4546 = vpop.permute.xlu0 %4545
      %4547 = vrot.lane.b32.xlu0 %v4463, 110
      %v4548 = vpop.permute.xlu0 %4547
      %4549 = vrot.lane.b32.xlu0 %v4464, 110
      %v4550 = vpop.permute.xlu0 %4549
      %4551 = vrot.lane.b32.xlu0 %v4460, 110
      %v4552 = vpop.permute.xlu0 %4551
      %4553 = vrot.lane.b32.xlu0 %v4471, 110
      %v4554 = vpop.permute.xlu0 %4553
      %4555 = vrot.lane.b32.xlu0 %v4472, 110
      %v4556 = vpop.permute.xlu0 %4555
      %4557 = vrot.lane.b32.xlu0 %v4470, 110
      %v4558 = vpop.permute.xlu0 %4557
      %4559 = vrot.lane.b32.xlu0 %v4482, 110
      %v4560 = vpop.permute.xlu0 %4559
      %4561 = vrot.lane.b32.xlu0 %v4483, 110
      %v4562 = vpop.permute.xlu0 %4561
      %4563 = vrot.lane.b32.xlu0 %v4481, 110
      %v4564 = vpop.permute.xlu0 %4563
      %v4565 = vsel %vm656, %v4488, %v4490
      %v4566 = vsel %vm656, %v4490, %v4492
      %v4567 = vsel %vm656, %v4494, %v4496
      %v4568 = vsel %vm656, %v4496, %v4498
      %v4569 = vsel %vm656, %v4500, %v4502
      %v4570 = vsel %vm656, %v4502, %v4504
      %v4571 = vsel %vm656, %v4506, %v4508
      %v4572 = vsel %vm656, %v4508, %v4510
      %v4573 = vsel %vm656, %v4512, %v4514
      %v4574 = vsel %vm656, %v4514, %v4516
      %v4575 = vsel %vm656, %v4518, %v4520
      %v4576 = vsel %vm656, %v4520, %v4522
      %v4577 = vsel %vm656, %v4524, %v4526
      %v4578 = vsel %vm656, %v4526, %v4528
      %v4579 = vsel %vm656, %v4530, %v4532
      %v4580 = vsel %vm656, %v4532, %v4534
      %v4581 = vsel %vm656, %v4536, %v4538
      %v4582 = vsel %vm656, %v4538, %v4540
      %v4583 = vsel %vm656, %v4542, %v4544
      %v4584 = vsel %vm656, %v4544, %v4546
      %v4585 = vsel %vm656, %v4548, %v4550
      %v4586 = vsel %vm656, %v4550, %v4552
      %v4587 = vsel %vm656, %v4554, %v4556
      %v4588 = vsel %vm656, %v4556, %v4558
      %v4589 = vsel %vm656, %v4560, %v4562
      %v4590 = vsel %vm656, %v4562, %v4564
      %s4591 = scalar_lea.vmem %s3, 24
      %v4592 = vld [vmem:[%s4591] sm:$0xff]
      %v4593 = vld [vmem:[%s4591 + $0x8] sm:$0xff]
      %v4594 = vld [vmem:[%s4591 + $0x10] sm:$0xff]
      %s4595 = scalar_lea.vmem %s8, 8
      %v4596 = vld [vmem:[%s4595] sm:$0xff]
      %4598 = vset.pattern.permute.xlu0 0
      %4599 = vperm.xlu0 %4598, %v4596
      %v4600 = vpop.permute.xlu0 %4599
      %4605 = vrot.lane.b32.xlu0 %v4324, 17
      %v4606 = vpop.permute.xlu0 %4605
      %4607 = vrot.lane.b32.xlu0 %v4325, 17
      %v4608 = vpop.permute.xlu0 %4607
      %4609 = vrot.lane.b32.xlu0 %v4326, 17
      %v4610 = vpop.permute.xlu0 %4609
      %4611 = vrot.lane.b32.xlu0 %v4352, 17
      %v4612 = vpop.permute.xlu0 %4611
      %4613 = vrot.lane.b32.xlu0 %v4353, 17
      %v4614 = vpop.permute.xlu0 %4613
      %4615 = vrot.lane.b32.xlu0 %v4351, 17
      %v4616 = vpop.permute.xlu0 %4615
      %4617 = vrot.lane.b32.xlu0 %v4363, 17
      %v4618 = vpop.permute.xlu0 %4617
      %4619 = vrot.lane.b32.xlu0 %v4364, 17
      %v4620 = vpop.permute.xlu0 %4619
      %4621 = vrot.lane.b32.xlu0 %v4362, 17
      %v4622 = vpop.permute.xlu0 %4621
      %4623 = vrot.lane.b32.xlu0 %v4374, 17
      %v4624 = vpop.permute.xlu0 %4623
      %4625 = vrot.lane.b32.xlu0 %v4375, 17
      %v4626 = vpop.permute.xlu0 %4625
      %4627 = vrot.lane.b32.xlu0 %v4373, 17
      %v4628 = vpop.permute.xlu0 %4627
      %4629 = vrot.lane.b32.xlu0 %v4377, 17
      %v4630 = vpop.permute.xlu0 %4629
      %4631 = vrot.lane.b32.xlu0 %v4380, 17
      %v4632 = vpop.permute.xlu0 %4631
      %4633 = vrot.lane.b32.xlu0 %v4379, 17
      %v4634 = vpop.permute.xlu0 %4633
      %4635 = vrot.lane.b32.xlu0 %v4488, 17
      %v4636 = vpop.permute.xlu0 %4635
      %4637 = vrot.lane.b32.xlu0 %v4565, 17
      %v4638 = vpop.permute.xlu0 %4637
      %4639 = vrot.lane.b32.xlu0 %v4566, 17
      %v4640 = vpop.permute.xlu0 %4639
      %4641 = vrot.lane.b32.xlu0 %v4494, 17
      %v4642 = vpop.permute.xlu0 %4641
      %4643 = vrot.lane.b32.xlu0 %v4567, 17
      %v4644 = vpop.permute.xlu0 %4643
      %4645 = vrot.lane.b32.xlu0 %v4568, 17
      %v4646 = vpop.permute.xlu0 %4645
      %4647 = vrot.lane.b32.xlu0 %v4500, 17
      %v4648 = vpop.permute.xlu0 %4647
      %4649 = vrot.lane.b32.xlu0 %v4569, 17
      %v4650 = vpop.permute.xlu0 %4649
      %4651 = vrot.lane.b32.xlu0 %v4570, 17
      %v4652 = vpop.permute.xlu0 %4651
      %4653 = vrot.lane.b32.xlu0 %v4506, 17
      %v4654 = vpop.permute.xlu0 %4653
      %4655 = vrot.lane.b32.xlu0 %v4571, 17
      %v4656 = vpop.permute.xlu0 %4655
      %4657 = vrot.lane.b32.xlu0 %v4572, 17
      %v4658 = vpop.permute.xlu0 %4657
      %4659 = vrot.lane.b32.xlu0 %v4512, 17
      %v4660 = vpop.permute.xlu0 %4659
      %4661 = vrot.lane.b32.xlu0 %v4573, 17
      %v4662 = vpop.permute.xlu0 %4661
      %4663 = vrot.lane.b32.xlu0 %v4574, 17
      %v4664 = vpop.permute.xlu0 %4663
      %4665 = vrot.lane.b32.xlu0 %v4518, 17
      %v4666 = vpop.permute.xlu0 %4665
      %4667 = vrot.lane.b32.xlu0 %v4575, 17
      %v4668 = vpop.permute.xlu0 %4667
      %4669 = vrot.lane.b32.xlu0 %v4576, 17
      %v4670 = vpop.permute.xlu0 %4669
      %4671 = vrot.lane.b32.xlu0 %v4524, 17
      %v4672 = vpop.permute.xlu0 %4671
      %4673 = vrot.lane.b32.xlu0 %v4577, 17
      %v4674 = vpop.permute.xlu0 %4673
      %4675 = vrot.lane.b32.xlu0 %v4578, 17
      %v4676 = vpop.permute.xlu0 %4675
      %4677 = vrot.lane.b32.xlu0 %v4530, 17
      %v4678 = vpop.permute.xlu0 %4677
      %4679 = vrot.lane.b32.xlu0 %v4579, 17
      %v4680 = vpop.permute.xlu0 %4679
      %4681 = vrot.lane.b32.xlu0 %v4580, 17
      %v4682 = vpop.permute.xlu0 %4681
      %4683 = vrot.lane.b32.xlu0 %v4536, 17
      %v4684 = vpop.permute.xlu0 %4683
      %4685 = vrot.lane.b32.xlu0 %v4581, 17
      %v4686 = vpop.permute.xlu0 %4685
      %4687 = vrot.lane.b32.xlu0 %v4582, 17
      %v4688 = vpop.permute.xlu0 %4687
      %4689 = vrot.lane.b32.xlu0 %v4542, 17
      %v4690 = vpop.permute.xlu0 %4689
      %4691 = vrot.lane.b32.xlu0 %v4583, 17
      %v4692 = vpop.permute.xlu0 %4691
      %4693 = vrot.lane.b32.xlu0 %v4584, 17
      %v4694 = vpop.permute.xlu0 %4693
      %4695 = vrot.lane.b32.xlu0 %v4548, 17
      %v4696 = vpop.permute.xlu0 %4695
      %4697 = vrot.lane.b32.xlu0 %v4585, 17
      %v4698 = vpop.permute.xlu0 %4697
      %4699 = vrot.lane.b32.xlu0 %v4586, 17
      %v4700 = vpop.permute.xlu0 %4699
      %4701 = vrot.lane.b32.xlu0 %v4554, 17
      %v4702 = vpop.permute.xlu0 %4701
      %4703 = vrot.lane.b32.xlu0 %v4587, 17
      %v4704 = vpop.permute.xlu0 %4703
      %4705 = vrot.lane.b32.xlu0 %v4588, 17
      %v4706 = vpop.permute.xlu0 %4705
      %4707 = vrot.lane.b32.xlu0 %v4560, 17
      %v4708 = vpop.permute.xlu0 %4707
      %4709 = vrot.lane.b32.xlu0 %v4589, 17
      %v4710 = vpop.permute.xlu0 %4709
      %4711 = vrot.lane.b32.xlu0 %v4590, 17
      %v4712 = vpop.permute.xlu0 %4711
      %v4713 = vsel %vm429, %v4606, %v4608
      %v4714 = vsel %vm429, %v4608, %v4610
      %v4715 = vsel %vm429, %v4612, %v4614
      %v4716 = vsel %vm429, %v4614, %v4616
      %v4717 = vsel %vm429, %v4618, %v4620
      %v4718 = vsel %vm429, %v4620, %v4622
      %v4719 = vsel %vm429, %v4624, %v4626
      %v4720 = vsel %vm429, %v4626, %v4628
      %v4721 = vsel %vm429, %v4630, %v4632
      %v4722 = vsel %vm429, %v4632, %v4634
      %v4723 = vsel %vm429, %v4636, %v4638
      %v4724 = vsel %vm429, %v4638, %v4640
      %v4725 = vsel %vm429, %v4642, %v4644
      %v4726 = vsel %vm429, %v4644, %v4646
      %v4727 = vsel %vm429, %v4648, %v4650
      %v4728 = vsel %vm429, %v4650, %v4652
      %v4729 = vsel %vm429, %v4654, %v4656
      %v4730 = vsel %vm429, %v4656, %v4658
      %v4731 = vsel %vm429, %v4660, %v4662
      %v4732 = vsel %vm429, %v4662, %v4664
      %v4733 = vsel %vm429, %v4666, %v4668
      %v4734 = vsel %vm429, %v4668, %v4670
      %v4735 = vsel %vm429, %v4672, %v4674
      %v4736 = vsel %vm429, %v4674, %v4676
      %v4737 = vsel %vm429, %v4678, %v4680
      %v4738 = vsel %vm429, %v4680, %v4682
      %v4739 = vsel %vm429, %v4684, %v4686
      %v4740 = vsel %vm429, %v4686, %v4688
      %v4741 = vsel %vm429, %v4690, %v4692
      %v4742 = vsel %vm429, %v4692, %v4694
      %v4743 = vsel %vm429, %v4696, %v4698
      %v4744 = vsel %vm429, %v4698, %v4700
      %v4745 = vsel %vm429, %v4702, %v4704
      %v4746 = vsel %vm429, %v4704, %v4706
      %v4747 = vsel %vm429, %v4708, %v4710
      %v4748 = vsel %vm429, %v4710, %v4712
      %v4786 = vsel %vm1752, %v4594, 0
      %4788 = vmatprep.subr.mxu0 %v3881
      %4789 = vmatpush1.msra.mxu0 %v3880
      %4790 = vmatprep.subr.mxu0 %v3883
      %4791 = vmatpush1.msra.mxu0 %v3882
      %4792 = vmatprep.subr.mxu0 %v4204
      %4793 = vmatpush1.msra.mxu0 %v4203
      %4794 = vmatprep.subr.mxu0 %v4714
      %4795 = vmatpush1.msra.mxu0 %v4713
      %4796 = vmatprep.subr.mxu0 %v3885
      %4797 = vmatpush1.msra.mxu0 %v3884
      %4798 = vmatprep.subr.mxu0 %v3887
      %4799 = vmatpush1.msra.mxu0 %v3886
      %4800 = vmatprep.subr.mxu0 %v4206
      %4801 = vmatpush1.msra.mxu0 %v4205
      %4802 = vmatprep.subr.mxu0 %v4716
      %4803 = vmatpush1.msra.mxu0 %v4715
      %4804 = vmatprep.subr.mxu0 %v3889
      %4805 = vmatpush1.msra.mxu0 %v3888
      %4806 = vmatprep.subr.mxu0 %v3891
      %4807 = vmatpush1.msra.mxu0 %v3890
      %4808 = vmatprep.subr.mxu0 %v4208
      %4809 = vmatpush1.msra.mxu0 %v4207
      %4810 = vmatprep.subr.mxu0 %v4718
      %4811 = vmatpush1.msra.mxu0 %v4717
      %4812 = vmatprep.subr.mxu0 %v3893
      %4813 = vmatpush1.msra.mxu0 %v3892
      %4814 = vmatprep.subr.mxu0 %v3895
      %4815 = vmatpush1.msra.mxu0 %v3894
      %4816 = vmatprep.subr.mxu0 %v4210
      %4817 = vmatpush1.msra.mxu0 %v4209
      %4818 = vmatprep.subr.mxu0 %v4720
      %4819 = vmatpush1.msra.mxu0 %v4719
      %4820 = vmatprep.subr.mxu0 %v3897
      %4821 = vmatpush1.msra.mxu0 %v3896
      %4822 = vmatprep.subr.mxu0 %v3899
      %4823 = vmatpush1.msra.mxu0 %v3898
      %4824 = vmatprep.subr.mxu0 %v4212
      %4825 = vmatpush1.msra.mxu0 %v4211
      %4826 = vmatprep.subr.mxu0 %v4722
      %4827 = vmatpush1.msra.mxu0 %v4721
      %4828 = vmatprep.subr.mxu0 %v3901
      %4829 = vmatpush1.msra.mxu0 %v3900
      %4830 = vmatprep.subr.mxu0 %v3903
      %4831 = vmatpush1.msra.mxu0 %v3902
      %4832 = vmatprep.subr.mxu0 %v4214
      %4833 = vmatpush1.msra.mxu0 %v4213
      %4834 = vmatprep.subr.mxu0 %v4724
      %4835 = vmatpush1.msra.mxu0 %v4723
      %4836 = vmatprep.subr.mxu0 %v4726
      %4837 = vmatpush1.msra.mxu0 %v4725
      %4838 = vmatprep.subr.mxu0 %v4728
      %4839 = vmatpush1.msra.mxu0 %v4727
      %4840 = vmatprep.subr.mxu0 %v4730
      %4841 = vmatpush1.msra.mxu0 %v4729
      %4842 = vmatprep.subr.mxu0 %v4732
      %4843 = vmatpush1.msra.mxu0 %v4731
      %4844 = vmatprep.subr.mxu0 %v4734
      %4845 = vmatpush1.msra.mxu0 %v4733
      %4846 = vmatprep.subr.mxu0 %v4736
      %4847 = vmatpush1.msra.mxu0 %v4735
      %4848 = vmatprep.subr.mxu0 %v4738
      %4849 = vmatpush1.msra.mxu0 %v4737
      %4850 = vmatprep.subr.mxu0 %v4740
      %4851 = vmatpush1.msra.mxu0 %v4739
      %4852 = vmatprep.mubr.f32.mxu0 %v4593
      %4853 = vmatmul.mubr.f32.gmra.mrb[0].mxu0 %v4592
      %v4854 = vpop.f32.mrb[0].mxu0
      %v4855 = vadd.f32 %v4600, %v4854
      %v4856 = vpop.f32.mrb[0].mxu0
      %v4857 = vadd.f32 %v4600, %v4856
      %4858 = vdwg.mxu0
      %4859 = vmatprep.subr.mxu0 %v4742
      %4860 = vmatpush1.msra.mxu0 %v4741
      %4861 = vmatprep.subr.mxu0 %v4744
      %4862 = vmatpush1.msra.mxu0 %v4743
      %4863 = vmatprep.subr.mxu0 %v4746
      %4864 = vmatpush1.msra.mxu0 %v4745
      %4865 = vmatprep.subr.mxu0 %v4748
      %4866 = vmatpush1.msra.mxu0 %v4747
      %4867 = vmatprep.subr.mxu0 0.0
      %4868 = vmatpush1.msra.mxu0 0.0
      %4869 = vmatprep.subr.mxu0 0.0
      %4870 = vmatpush1.msra.mxu0 0.0
      %4871 = vmatprep.subr.mxu0 0.0
      %4872 = vmatpush1.msra.mxu0 0.0
      %4873 = vmatprep.subr.mxu0 0.0
      %4874 = vmatpush1.msra.mxu0 0.0
      %4875 = vmatprep.subr.mxu0 0.0
      %4876 = vmatpush1.msra.mxu0 0.0
      %4877 = vmatprep.subr.mxu0 0.0
      %4878 = vmatpush1.msra.mxu0 0.0
      %4879 = vmatprep.subr.mxu0 0.0
      %4880 = vmatpush1.msra.mxu0 0.0
      %4881 = vmatprep.subr.mxu0 0.0
      %4882 = vmatpush1.msra.mxu0 0.0
      %4883 = vmatprep.subr.mxu0 0.0
      %4884 = vmatpush1.msra.mxu0 0.0
      %4885 = vmatprep.subr.mxu0 0.0
      %4886 = vmatpush1.msra.mxu0 0.0
      %4887 = vmatprep.subr.mxu0 0.0
      %4888 = vmatpush1.msra.mxu0 0.0
      %4889 = vmatprep.subr.mxu0 0.0
      %4890 = vmatpush1.msra.mxu0 0.0
      %4891 = vmatprep.subr.mxu0 0.0
      %4892 = vmatpush1.msra.mxu0 0.0
      %4893 = vmatprep.subr.mxu0 0.0
      %4894 = vmatpush1.msra.mxu0 0.0
      %4895 = vmatprep.subr.mxu0 0.0
      %4896 = vmatpush1.msra.mxu0 0.0
      %4897 = vmatprep.subr.mxu0 0.0
      %4898 = vmatpush1.msra.mxu0 0.0
      %4899 = vmatprep.subr.mxu0 0.0
      %4900 = vmatpush1.msra.mxu0 0.0
      %4901 = vmatprep.subr.mxu0 0.0
      %4902 = vmatpush1.msra.mxu0 0.0
      %4903 = vmatprep.subr.mxu0 0.0
      %4904 = vmatpush1.msra.mxu0 0.0
      %4905 = vmatprep.subr.mxu0 0.0
      %4906 = vmatpush1.msra.mxu0 0.0
      %4907 = vmatprep.subr.mxu0 0.0
      %4908 = vmatpush1.msra.mxu0 0.0
      %4909 = vmatprep.subr.mxu0 0.0
      %4910 = vmatpush1.msra.mxu0 0.0
      %4911 = vmatprep.subr.mxu0 0.0
      %4912 = vmatpush1.msra.mxu0 0.0
      %4913 = vmatprep.subr.mxu0 0.0
      %4914 = vmatpush1.msra.mxu0 0.0
      %4915 = vmatprep.subr.mxu0 0.0
      %4916 = vmatpush1.msra.mxu0 0.0
      %4917 = vmatprep.subr.mxu0 0.0
      %4918 = vmatpush1.msra.mxu0 0.0
      %4919 = vmatprep.subr.mxu0 0.0
      %4920 = vmatpush1.msra.mxu0 0.0
      %4921 = vmatprep.subr.mxu0 0.0
      %4922 = vmatpush1.msra.mxu0 0.0
      %4923 = vmatprep.mubr.f32.mxu0 0.0
      %4924 = vmatmul.mubr.f32.gmra.mrb[0].mxu0 %v4786
      %v4925 = vpop.f32.mrb[0].mxu0
      %v4926 = vadd.f32 %v4855, %v4925
      %v4927 = vpop.f32.mrb[0].mxu0
      %v4928 = vadd.f32 %v4857, %v4927
      %4929 = vdwg.mxu0
      %vm4930 = vcmp.ge.f32.partialorder %v4926, 0.0
      %vm4931 = vcmp.ge.f32.partialorder %v4928, 0.0
      %v4932 = vmul.f32 %v4926, 0.2
      %v4933 = vmul.f32 %v4928, 0.2
      %v4934 = vsel %vm4930, %v4926, %v4932
      %v4935 = vsel %vm4931, %v4928, %v4933
      %4936 = vst [vmem:[#allocation5 + $0x8] sm:$0xff] %v4934
      %4937 = vst [vmem:[#allocation5 + $0x10] sm:$0xff] %v4935
      %v4938 = vld [vmem:[#allocation5] sm:$0xff]
      %v4939 = vld [vmem:[#allocation5 + $0x8] sm:$0xff]
      %v4940 = vld [vmem:[#allocation5 + $0x10] sm:$0xff]
      %v4941 = vmul.f32 %v4938, %v468
      %v4942 = vmul.f32 %v4939, %v472
      %v4943 = vmul.f32 %v4940, %v470
      %v4944 = vmul.f32 %v4938, %v485
      %v4945 = vmul.f32 %v4939, %v489
      %v4946 = vmul.f32 %v4940, %v487
      %v4947 = vmul.f32 %v4938, %v500
      %v4948 = vmul.f32 %v4939, %v504
      %v4949 = vmul.f32 %v4940, %v502
      %v4950 = vld [vmem:[#allocation5 + $0x18] sm:$0xff]
      %v4951 = vmul.f32 %v4939, %v517
      %v4952 = vmul.f32 %v4940, %v521
      %v4953 = vmul.f32 %v4950, %v519
      %v4954 = vmul.f32 %v4939, %v532
      %v4955 = vmul.f32 %v4940, %v536
      %v4956 = vmul.f32 %v4950, %v534
      %v4957 = vmul.f32 %v4939, %v547
      %v4958 = vmul.f32 %v4940, %v550
      %v4959 = vmul.f32 %v4950, %v549
      %4963 = vrot.lane.b32.xlu0 %v4938, 127
      %v4964 = vpop.permute.xlu0 %4963
      %4965 = vrot.lane.b32.xlu0 %v4939, 127
      %v4966 = vpop.permute.xlu0 %4965
      %4967 = vrot.lane.b32.xlu0 %v4940, 127
      %v4968 = vpop.permute.xlu0 %4967
      %v4969 = vsel %vm503, %v4964, %v4966
      %v4970 = vsel %vm503, %v4966, %v4968
      %4974 = vrot.lane.b32.xlu0 %v4944, 126
      %v4975 = vpop.permute.xlu0 %4974
      %4976 = vrot.lane.b32.xlu0 %v4945, 126
      %v4977 = vpop.permute.xlu0 %4976
      %4978 = vrot.lane.b32.xlu0 %v4946, 126
      %v4979 = vpop.permute.xlu0 %4978
      %v4980 = vsel %vm600, %v4975, %v4977
      %v4981 = vsel %vm600, %v4977, %v4979
      %4985 = vrot.lane.b32.xlu0 %v4947, 112
      %v4986 = vpop.permute.xlu0 %4985
      %4987 = vrot.lane.b32.xlu0 %v4948, 112
      %v4988 = vpop.permute.xlu0 %4987
      %4989 = vrot.lane.b32.xlu0 %v4949, 112
      %v4990 = vpop.permute.xlu0 %4989
      %v4991 = vsel %vm623, %v4986, %v4988
      %v4992 = vsel %vm623, %v4988, %v4990
      %4993 = vrot.lane.b32.xlu0 %v3578, 127
      %v4994 = vpop.permute.xlu0 %4993
      %4995 = vrot.lane.b32.xlu0 %v3579, 127
      %v4996 = vpop.permute.xlu0 %4995
      %4997 = vrot.lane.b32.xlu0 %v3580, 127
      %v4998 = vpop.permute.xlu0 %4997
      %4999 = vrot.lane.b32.xlu0 %v3581, 127
      %v5000 = vpop.permute.xlu0 %4999
      %5001 = vrot.lane.b32.xlu0 %v3582, 127
      %v5002 = vpop.permute.xlu0 %5001
      %5003 = vrot.lane.b32.xlu0 %v3583, 127
      %v5004 = vpop.permute.xlu0 %5003
      %v5005 = vsel %vm503, %v4994, %v4996
      %v5006 = vsel %vm503, %v4996, %v4998
      %v5007 = vsel %vm503, %v5000, %v5002
      %v5008 = vsel %vm503, %v5002, %v5004
      %5009 = vrot.lane.b32.xlu0 %v4047, 127
      %v5010 = vpop.permute.xlu0 %5009
      %5011 = vrot.lane.b32.xlu0 %v4048, 127
      %v5012 = vpop.permute.xlu0 %5011
      %5013 = vrot.lane.b32.xlu0 %v4049, 127
      %v5014 = vpop.permute.xlu0 %5013
      %v5015 = vsel %vm503, %v5010, %v5012
      %v5016 = vsel %vm503, %v5012, %v5014
      %5017 = vrot.lane.b32.xlu0 %v4334, 127
      %v5018 = vpop.permute.xlu0 %5017
      %5019 = vrot.lane.b32.xlu0 %v4335, 127
      %v5020 = vpop.permute.xlu0 %5019
      %5021 = vrot.lane.b32.xlu0 %v4336, 127
      %v5022 = vpop.permute.xlu0 %5021
      %v5023 = vsel %vm503, %v5018, %v5020
      %v5024 = vsel %vm503, %v5020, %v5022
      %5028 = vrot.lane.b32.xlu0 %v4951, 127
      %v5029 = vpop.permute.xlu0 %5028
      %5030 = vrot.lane.b32.xlu0 %v4952, 127
      %v5031 = vpop.permute.xlu0 %5030
      %5032 = vrot.lane.b32.xlu0 %v4953, 127
      %v5033 = vpop.permute.xlu0 %5032
      %v5034 = vsel %vm503, %v5029, %v5031
      %v5035 = vsel %vm503, %v5031, %v5033
      %5036 = vrot.lane.b32.xlu0 %v3584, 113
      %v5037 = vpop.permute.xlu0 %5036
      %5038 = vrot.lane.b32.xlu0 %v3585, 113
      %v5039 = vpop.permute.xlu0 %5038
      %5040 = vrot.lane.b32.xlu0 %v3586, 113
      %v5041 = vpop.permute.xlu0 %5040
      %5042 = vrot.lane.b32.xlu0 %v3587, 113
      %v5043 = vpop.permute.xlu0 %5042
      %5044 = vrot.lane.b32.xlu0 %v3588, 113
      %v5045 = vpop.permute.xlu0 %5044
      %5046 = vrot.lane.b32.xlu0 %v3589, 113
      %v5047 = vpop.permute.xlu0 %5046
      %v5048 = vsel %vm488, %v5037, %v5039
      %v5049 = vsel %vm488, %v5039, %v5041
      %v5050 = vsel %vm488, %v5043, %v5045
      %v5051 = vsel %vm488, %v5045, %v5047
      %5052 = vrot.lane.b32.xlu0 %v4050, 113
      %v5053 = vpop.permute.xlu0 %5052
      %5054 = vrot.lane.b32.xlu0 %v4051, 113
      %v5055 = vpop.permute.xlu0 %5054
      %5056 = vrot.lane.b32.xlu0 %v4052, 113
      %v5057 = vpop.permute.xlu0 %5056
      %v5058 = vsel %vm488, %v5053, %v5055
      %v5059 = vsel %vm488, %v5055, %v5057
      %5060 = vrot.lane.b32.xlu0 %v4337, 113
      %v5061 = vpop.permute.xlu0 %5060
      %5062 = vrot.lane.b32.xlu0 %v4338, 113
      %v5063 = vpop.permute.xlu0 %5062
      %5064 = vrot.lane.b32.xlu0 %v4339, 113
      %v5065 = vpop.permute.xlu0 %5064
      %v5066 = vsel %vm488, %v5061, %v5063
      %v5067 = vsel %vm488, %v5063, %v5065
      %5071 = vrot.lane.b32.xlu0 %v4954, 113
      %v5072 = vpop.permute.xlu0 %5071
      %5073 = vrot.lane.b32.xlu0 %v4955, 113
      %v5074 = vpop.permute.xlu0 %5073
      %5075 = vrot.lane.b32.xlu0 %v4956, 113
      %v5076 = vpop.permute.xlu0 %5075
      %v5077 = vsel %vm488, %v5072, %v5074
      %v5078 = vsel %vm488, %v5074, %v5076
      %5079 = vrot.lane.b32.xlu0 %v3553, 112
      %v5080 = vpop.permute.xlu0 %5079
      %5081 = vrot.lane.b32.xlu0 %v3554, 112
      %v5082 = vpop.permute.xlu0 %5081
      %5083 = vrot.lane.b32.xlu0 %v3576, 112
      %v5084 = vpop.permute.xlu0 %5083
      %5085 = vrot.lane.b32.xlu0 %v3556, 112
      %v5086 = vpop.permute.xlu0 %5085
      %5087 = vrot.lane.b32.xlu0 %v3557, 112
      %v5088 = vpop.permute.xlu0 %5087
      %5089 = vrot.lane.b32.xlu0 %v3577, 112
      %v5090 = vpop.permute.xlu0 %5089
      %v5091 = vsel %vm623, %v5080, %v5082
      %v5092 = vsel %vm623, %v5082, %v5084
      %v5093 = vsel %vm623, %v5086, %v5088
      %v5094 = vsel %vm623, %v5088, %v5090
      %5095 = vrot.lane.b32.xlu0 %v4035, 112
      %v5096 = vpop.permute.xlu0 %5095
      %5097 = vrot.lane.b32.xlu0 %v4036, 112
      %v5098 = vpop.permute.xlu0 %5097
      %5099 = vrot.lane.b32.xlu0 %v4046, 112
      %v5100 = vpop.permute.xlu0 %5099
      %v5101 = vsel %vm623, %v5096, %v5098
      %v5102 = vsel %vm623, %v5098, %v5100
      %5103 = vrot.lane.b32.xlu0 %v4322, 112
      %v5104 = vpop.permute.xlu0 %5103
      %5105 = vrot.lane.b32.xlu0 %v4323, 112
      %v5106 = vpop.permute.xlu0 %5105
      %5107 = vrot.lane.b32.xlu0 %v4333, 112
      %v5108 = vpop.permute.xlu0 %5107
      %v5109 = vsel %vm623, %v5104, %v5106
      %v5110 = vsel %vm623, %v5106, %v5108
      %5112 = vrot.lane.b32.xlu0 %v4939, 112
      %v5113 = vpop.permute.xlu0 %5112
      %5114 = vrot.lane.b32.xlu0 %v4940, 112
      %v5115 = vpop.permute.xlu0 %5114
      %5116 = vrot.lane.b32.xlu0 %v4950, 112
      %v5117 = vpop.permute.xlu0 %5116
      %v5118 = vsel %vm623, %v5113, %v5115
      %v5119 = vsel %vm623, %v5115, %v5117
      %5120 = vrot.lane.b32.xlu0 %v4939, 111
      %v5121 = vpop.permute.xlu0 %5120
      %5122 = vrot.lane.b32.xlu0 %v4940, 111
      %v5123 = vpop.permute.xlu0 %5122
      %5124 = vrot.lane.b32.xlu0 %v5005, 111
      %v5125 = vpop.permute.xlu0 %5124
      %5126 = vrot.lane.b32.xlu0 %v5006, 111
      %v5127 = vpop.permute.xlu0 %5126
      %5128 = vrot.lane.b32.xlu0 %v5007, 111
      %v5129 = vpop.permute.xlu0 %5128
      %5130 = vrot.lane.b32.xlu0 %v5008, 111
      %v5131 = vpop.permute.xlu0 %5130
      %5132 = vrot.lane.b32.xlu0 %v5015, 111
      %v5133 = vpop.permute.xlu0 %5132
      %5134 = vrot.lane.b32.xlu0 %v5016, 111
      %v5135 = vpop.permute.xlu0 %5134
      %5136 = vrot.lane.b32.xlu0 %v5023, 111
      %v5137 = vpop.permute.xlu0 %5136
      %5138 = vrot.lane.b32.xlu0 %v5024, 111
      %v5139 = vpop.permute.xlu0 %5138
      %5140 = vrot.lane.b32.xlu0 %v5034, 111
      %v5141 = vpop.permute.xlu0 %5140
      %5142 = vrot.lane.b32.xlu0 %v5035, 111
      %v5143 = vpop.permute.xlu0 %5142
      %5144 = vrot.lane.b32.xlu0 %v5048, 111
      %v5145 = vpop.permute.xlu0 %5144
      %5146 = vrot.lane.b32.xlu0 %v5049, 111
      %v5147 = vpop.permute.xlu0 %5146
      %5148 = vrot.lane.b32.xlu0 %v5050, 111
      %v5149 = vpop.permute.xlu0 %5148
      %5150 = vrot.lane.b32.xlu0 %v5051, 111
      %v5151 = vpop.permute.xlu0 %5150
      %5152 = vrot.lane.b32.xlu0 %v5058, 111
      %v5153 = vpop.permute.xlu0 %5152
      %5154 = vrot.lane.b32.xlu0 %v5059, 111
      %v5155 = vpop.permute.xlu0 %5154
      %5156 = vrot.lane.b32.xlu0 %v5066, 111
      %v5157 = vpop.permute.xlu0 %5156
      %5158 = vrot.lane.b32.xlu0 %v5067, 111
      %v5159 = vpop.permute.xlu0 %5158
      %5160 = vrot.lane.b32.xlu0 %v5077, 111
      %v5161 = vpop.permute.xlu0 %5160
      %5162 = vrot.lane.b32.xlu0 %v5078, 111
      %v5163 = vpop.permute.xlu0 %5162
      %5164 = vrot.lane.b32.xlu0 %v5091, 111
      %v5165 = vpop.permute.xlu0 %5164
      %5166 = vrot.lane.b32.xlu0 %v5092, 111
      %v5167 = vpop.permute.xlu0 %5166
      %5168 = vrot.lane.b32.xlu0 %v5093, 111
      %v5169 = vpop.permute.xlu0 %5168
      %5170 = vrot.lane.b32.xlu0 %v5094, 111
      %v5171 = vpop.permute.xlu0 %5170
      %5172 = vrot.lane.b32.xlu0 %v5101, 111
      %v5173 = vpop.permute.xlu0 %5172
      %5174 = vrot.lane.b32.xlu0 %v5102, 111
      %v5175 = vpop.permute.xlu0 %5174
      %5176 = vrot.lane.b32.xlu0 %v5109, 111
      %v5177 = vpop.permute.xlu0 %5176
      %5178 = vrot.lane.b32.xlu0 %v5110, 111
      %v5179 = vpop.permute.xlu0 %5178
      %5180 = vrot.lane.b32.xlu0 %v5118, 111
      %v5181 = vpop.permute.xlu0 %5180
      %5182 = vrot.lane.b32.xlu0 %v5119, 111
      %v5183 = vpop.permute.xlu0 %5182
      %v5184 = vsel %vm471, %v5121, %v5123
      %v5185 = vsel %vm471, %v5125, %v5127
      %v5186 = vsel %vm471, %v5129, %v5131
      %v5187 = vsel %vm471, %v5133, %v5135
      %v5188 = vsel %vm471, %v5137, %v5139
      %v5189 = vsel %vm471, %v5141, %v5143
      %v5190 = vsel %vm471, %v5145, %v5147
      %v5191 = vsel %vm471, %v5149, %v5151
      %v5192 = vsel %vm471, %v5153, %v5155
      %v5193 = vsel %vm471, %v5157, %v5159
      %v5194 = vsel %vm471, %v5161, %v5163
      %v5195 = vsel %vm471, %v5165, %v5167
      %v5196 = vsel %vm471, %v5169, %v5171
      %v5197 = vsel %vm471, %v5173, %v5175
      %v5198 = vsel %vm471, %v5177, %v5179
      %v5199 = vsel %vm471, %v5181, %v5183
      %5203 = vrot.lane.b32.xlu0 %v4340, 94
      %v5204 = vpop.permute.xlu0 %5203
      %5205 = vrot.lane.b32.xlu0 %v4341, 94
      %v5206 = vpop.permute.xlu0 %5205
      %5207 = vrot.lane.b32.xlu0 %v4342, 94
      %v5208 = vpop.permute.xlu0 %5207
      %5209 = vrot.lane.b32.xlu0 %v4957, 94
      %v5210 = vpop.permute.xlu0 %5209
      %5211 = vrot.lane.b32.xlu0 %v4958, 94
      %v5212 = vpop.permute.xlu0 %5211
      %5213 = vrot.lane.b32.xlu0 %v4959, 94
      %v5214 = vpop.permute.xlu0 %5213
      %v5215 = vsel %vm721, %v5204, %v5206
      %v5216 = vsel %vm721, %v5206, %v5208
      %v5217 = vsel %vm721, %v5210, %v5212
      %v5218 = vsel %vm721, %v5212, %v5214
      %s5219 = scalar_lea.vmem %s4, 24
      %v5220 = vld [vmem:[%s5219] sm:$0xff]
      %v5221 = vld [vmem:[%s5219 + $0x8] sm:$0xff]
      %v5222 = vld [vmem:[%s5219 + $0x10] sm:$0xff]
      %s5223 = scalar_lea.vmem %s9, 8
      %v5224 = vld [vmem:[%s5223] sm:$0xff]
      %5226 = vset.pattern.permute.xlu0 0
      %5227 = vperm.xlu0 %5226, %v5224
      %v5228 = vpop.permute.xlu0 %5227
      %5233 = vrot.lane.b32.xlu0 %v4941, 17
      %v5234 = vpop.permute.xlu0 %5233
      %5235 = vrot.lane.b32.xlu0 %v4942, 17
      %v5236 = vpop.permute.xlu0 %5235
      %5237 = vrot.lane.b32.xlu0 %v4943, 17
      %v5238 = vpop.permute.xlu0 %5237
      %5239 = vrot.lane.b32.xlu0 %v4969, 17
      %v5240 = vpop.permute.xlu0 %5239
      %5241 = vrot.lane.b32.xlu0 %v4970, 17
      %v5242 = vpop.permute.xlu0 %5241
      %5243 = vrot.lane.b32.xlu0 %v4968, 17
      %v5244 = vpop.permute.xlu0 %5243
      %5245 = vrot.lane.b32.xlu0 %v4980, 17
      %v5246 = vpop.permute.xlu0 %5245
      %5247 = vrot.lane.b32.xlu0 %v4981, 17
      %v5248 = vpop.permute.xlu0 %5247
      %5249 = vrot.lane.b32.xlu0 %v4979, 17
      %v5250 = vpop.permute.xlu0 %5249
      %5251 = vrot.lane.b32.xlu0 %v4991, 17
      %v5252 = vpop.permute.xlu0 %5251
      %5253 = vrot.lane.b32.xlu0 %v4992, 17
      %v5254 = vpop.permute.xlu0 %5253
      %5255 = vrot.lane.b32.xlu0 %v4990, 17
      %v5256 = vpop.permute.xlu0 %5255
      %5257 = vrot.lane.b32.xlu0 %v5121, 17
      %v5258 = vpop.permute.xlu0 %5257
      %5259 = vrot.lane.b32.xlu0 %v5184, 17
      %v5260 = vpop.permute.xlu0 %5259
      %5261 = vrot.lane.b32.xlu0 %v5123, 17
      %v5262 = vpop.permute.xlu0 %5261
      %5263 = vrot.lane.b32.xlu0 %v5125, 17
      %v5264 = vpop.permute.xlu0 %5263
      %5265 = vrot.lane.b32.xlu0 %v5185, 17
      %v5266 = vpop.permute.xlu0 %5265
      %5267 = vrot.lane.b32.xlu0 %v5127, 17
      %v5268 = vpop.permute.xlu0 %5267
      %5269 = vrot.lane.b32.xlu0 %v5129, 17
      %v5270 = vpop.permute.xlu0 %5269
      %5271 = vrot.lane.b32.xlu0 %v5186, 17
      %v5272 = vpop.permute.xlu0 %5271
      %5273 = vrot.lane.b32.xlu0 %v5131, 17
      %v5274 = vpop.permute.xlu0 %5273
      %5275 = vrot.lane.b32.xlu0 %v5133, 17
      %v5276 = vpop.permute.xlu0 %5275
      %5277 = vrot.lane.b32.xlu0 %v5187, 17
      %v5278 = vpop.permute.xlu0 %5277
      %5279 = vrot.lane.b32.xlu0 %v5135, 17
      %v5280 = vpop.permute.xlu0 %5279
      %5281 = vrot.lane.b32.xlu0 %v5137, 17
      %v5282 = vpop.permute.xlu0 %5281
      %5283 = vrot.lane.b32.xlu0 %v5188, 17
      %v5284 = vpop.permute.xlu0 %5283
      %5285 = vrot.lane.b32.xlu0 %v5139, 17
      %v5286 = vpop.permute.xlu0 %5285
      %5287 = vrot.lane.b32.xlu0 %v5141, 17
      %v5288 = vpop.permute.xlu0 %5287
      %5289 = vrot.lane.b32.xlu0 %v5189, 17
      %v5290 = vpop.permute.xlu0 %5289
      %5291 = vrot.lane.b32.xlu0 %v5143, 17
      %v5292 = vpop.permute.xlu0 %5291
      %5293 = vrot.lane.b32.xlu0 %v5145, 17
      %v5294 = vpop.permute.xlu0 %5293
      %5295 = vrot.lane.b32.xlu0 %v5190, 17
      %v5296 = vpop.permute.xlu0 %5295
      %5297 = vrot.lane.b32.xlu0 %v5147, 17
      %v5298 = vpop.permute.xlu0 %5297
      %5299 = vrot.lane.b32.xlu0 %v5149, 17
      %v5300 = vpop.permute.xlu0 %5299
      %5301 = vrot.lane.b32.xlu0 %v5191, 17
      %v5302 = vpop.permute.xlu0 %5301
      %5303 = vrot.lane.b32.xlu0 %v5151, 17
      %v5304 = vpop.permute.xlu0 %5303
      %5305 = vrot.lane.b32.xlu0 %v5153, 17
      %v5306 = vpop.permute.xlu0 %5305
      %5307 = vrot.lane.b32.xlu0 %v5192, 17
      %v5308 = vpop.permute.xlu0 %5307
      %5309 = vrot.lane.b32.xlu0 %v5155, 17
      %v5310 = vpop.permute.xlu0 %5309
      %5311 = vrot.lane.b32.xlu0 %v5157, 17
      %v5312 = vpop.permute.xlu0 %5311
      %5313 = vrot.lane.b32.xlu0 %v5193, 17
      %v5314 = vpop.permute.xlu0 %5313
      %5315 = vrot.lane.b32.xlu0 %v5159, 17
      %v5316 = vpop.permute.xlu0 %5315
      %5317 = vrot.lane.b32.xlu0 %v5161, 17
      %v5318 = vpop.permute.xlu0 %5317
      %5319 = vrot.lane.b32.xlu0 %v5194, 17
      %v5320 = vpop.permute.xlu0 %5319
      %5321 = vrot.lane.b32.xlu0 %v5163, 17
      %v5322 = vpop.permute.xlu0 %5321
      %5323 = vrot.lane.b32.xlu0 %v5165, 17
      %v5324 = vpop.permute.xlu0 %5323
      %5325 = vrot.lane.b32.xlu0 %v5195, 17
      %v5326 = vpop.permute.xlu0 %5325
      %5327 = vrot.lane.b32.xlu0 %v5167, 17
      %v5328 = vpop.permute.xlu0 %5327
      %5329 = vrot.lane.b32.xlu0 %v5169, 17
      %v5330 = vpop.permute.xlu0 %5329
      %5331 = vrot.lane.b32.xlu0 %v5196, 17
      %v5332 = vpop.permute.xlu0 %5331
      %5333 = vrot.lane.b32.xlu0 %v5171, 17
      %v5334 = vpop.permute.xlu0 %5333
      %5335 = vrot.lane.b32.xlu0 %v5173, 17
      %v5336 = vpop.permute.xlu0 %5335
      %5337 = vrot.lane.b32.xlu0 %v5197, 17
      %v5338 = vpop.permute.xlu0 %5337
      %5339 = vrot.lane.b32.xlu0 %v5175, 17
      %v5340 = vpop.permute.xlu0 %5339
      %5341 = vrot.lane.b32.xlu0 %v5177, 17
      %v5342 = vpop.permute.xlu0 %5341
      %5343 = vrot.lane.b32.xlu0 %v5198, 17
      %v5344 = vpop.permute.xlu0 %5343
      %5345 = vrot.lane.b32.xlu0 %v5179, 17
      %v5346 = vpop.permute.xlu0 %5345
      %5347 = vrot.lane.b32.xlu0 %v5181, 17
      %v5348 = vpop.permute.xlu0 %5347
      %5349 = vrot.lane.b32.xlu0 %v5199, 17
      %v5350 = vpop.permute.xlu0 %5349
      %5351 = vrot.lane.b32.xlu0 %v5183, 17
      %v5352 = vpop.permute.xlu0 %5351
      %5353 = vrot.lane.b32.xlu0 %v5204, 17
      %v5354 = vpop.permute.xlu0 %5353
      %5355 = vrot.lane.b32.xlu0 %v5215, 17
      %v5356 = vpop.permute.xlu0 %5355
      %5357 = vrot.lane.b32.xlu0 %v5216, 17
      %v5358 = vpop.permute.xlu0 %5357
      %5359 = vrot.lane.b32.xlu0 %v5210, 17
      %v5360 = vpop.permute.xlu0 %5359
      %5361 = vrot.lane.b32.xlu0 %v5217, 17
      %v5362 = vpop.permute.xlu0 %5361
      %5363 = vrot.lane.b32.xlu0 %v5218, 17
      %v5364 = vpop.permute.xlu0 %5363
      %v5365 = vsel %vm429, %v5234, %v5236
      %v5366 = vsel %vm429, %v5236, %v5238
      %v5367 = vsel %vm429, %v5240, %v5242
      %v5368 = vsel %vm429, %v5242, %v5244
      %v5369 = vsel %vm429, %v5246, %v5248
      %v5370 = vsel %vm429, %v5248, %v5250
      %v5371 = vsel %vm429, %v5252, %v5254
      %v5372 = vsel %vm429, %v5254, %v5256
      %v5373 = vsel %vm429, %v5258, %v5260
      %v5374 = vsel %vm429, %v5260, %v5262
      %v5375 = vsel %vm429, %v5264, %v5266
      %v5376 = vsel %vm429, %v5266, %v5268
      %v5377 = vsel %vm429, %v5270, %v5272
      %v5378 = vsel %vm429, %v5272, %v5274
      %v5379 = vsel %vm429, %v5276, %v5278
      %v5380 = vsel %vm429, %v5278, %v5280
      %v5381 = vsel %vm429, %v5282, %v5284
      %v5382 = vsel %vm429, %v5284, %v5286
      %v5383 = vsel %vm429, %v5288, %v5290
      %v5384 = vsel %vm429, %v5290, %v5292
      %v5385 = vsel %vm429, %v5294, %v5296
      %v5386 = vsel %vm429, %v5296, %v5298
      %v5387 = vsel %vm429, %v5300, %v5302
      %v5388 = vsel %vm429, %v5302, %v5304
      %v5389 = vsel %vm429, %v5306, %v5308
      %v5390 = vsel %vm429, %v5308, %v5310
      %v5391 = vsel %vm429, %v5312, %v5314
      %v5392 = vsel %vm429, %v5314, %v5316
      %v5393 = vsel %vm429, %v5318, %v5320
      %v5394 = vsel %vm429, %v5320, %v5322
      %v5395 = vsel %vm429, %v5324, %v5326
      %v5396 = vsel %vm429, %v5326, %v5328
      %v5397 = vsel %vm429, %v5330, %v5332
      %v5398 = vsel %vm429, %v5332, %v5334
      %v5399 = vsel %vm429, %v5336, %v5338
      %v5400 = vsel %vm429, %v5338, %v5340
      %v5401 = vsel %vm429, %v5342, %v5344
      %v5402 = vsel %vm429, %v5344, %v5346
      %v5403 = vsel %vm429, %v5348, %v5350
      %v5404 = vsel %vm429, %v5350, %v5352
      %v5405 = vsel %vm429, %v5354, %v5356
      %v5406 = vsel %vm429, %v5356, %v5358
      %v5407 = vsel %vm429, %v5360, %v5362
      %v5408 = vsel %vm429, %v5362, %v5364
      %v5454 = vsel %vm2419, %v5222, 0
      %5456 = vmatprep.subr.mxu0 %v3881
      %5457 = vmatpush1.msra.mxu0 %v3880
      %5458 = vmatprep.subr.mxu0 %v3883
      %5459 = vmatpush1.msra.mxu0 %v3882
      %5460 = vmatprep.subr.mxu0 %v4204
      %5461 = vmatpush1.msra.mxu0 %v4203
      %5462 = vmatprep.subr.mxu0 %v4714
      %5463 = vmatpush1.msra.mxu0 %v4713
      %5464 = vmatprep.subr.mxu0 %v5366
      %5465 = vmatpush1.msra.mxu0 %v5365
      %5466 = vmatprep.subr.mxu0 %v3885
      %5467 = vmatpush1.msra.mxu0 %v3884
      %5468 = vmatprep.subr.mxu0 %v3887
      %5469 = vmatpush1.msra.mxu0 %v3886
      %5470 = vmatprep.subr.mxu0 %v4206
      %5471 = vmatpush1.msra.mxu0 %v4205
      %5472 = vmatprep.subr.mxu0 %v4716
      %5473 = vmatpush1.msra.mxu0 %v4715
      %5474 = vmatprep.subr.mxu0 %v5368
      %5475 = vmatpush1.msra.mxu0 %v5367
      %5476 = vmatprep.subr.mxu0 %v3889
      %5477 = vmatpush1.msra.mxu0 %v3888
      %5478 = vmatprep.subr.mxu0 %v3891
      %5479 = vmatpush1.msra.mxu0 %v3890
      %5480 = vmatprep.subr.mxu0 %v4208
      %5481 = vmatpush1.msra.mxu0 %v4207
      %5482 = vmatprep.subr.mxu0 %v4718
      %5483 = vmatpush1.msra.mxu0 %v4717
      %5484 = vmatprep.subr.mxu0 %v5370
      %5485 = vmatpush1.msra.mxu0 %v5369
      %5486 = vmatprep.subr.mxu0 %v3893
      %5487 = vmatpush1.msra.mxu0 %v3892
      %5488 = vmatprep.subr.mxu0 %v3895
      %5489 = vmatpush1.msra.mxu0 %v3894
      %5490 = vmatprep.subr.mxu0 %v4210
      %5491 = vmatpush1.msra.mxu0 %v4209
      %5492 = vmatprep.subr.mxu0 %v4720
      %5493 = vmatpush1.msra.mxu0 %v4719
      %5494 = vmatprep.subr.mxu0 %v5372
      %5495 = vmatpush1.msra.mxu0 %v5371
      %5496 = vmatprep.subr.mxu0 %v3897
      %5497 = vmatpush1.msra.mxu0 %v3896
      %5498 = vmatprep.subr.mxu0 %v3899
      %5499 = vmatpush1.msra.mxu0 %v3898
      %5500 = vmatprep.subr.mxu0 %v4212
      %5501 = vmatpush1.msra.mxu0 %v4211
      %5502 = vmatprep.subr.mxu0 %v4722
      %5503 = vmatpush1.msra.mxu0 %v4721
      %5504 = vmatprep.subr.mxu0 %v5374
      %5505 = vmatpush1.msra.mxu0 %v5373
      %5506 = vmatprep.subr.mxu0 %v5376
      %5507 = vmatpush1.msra.mxu0 %v5375
      %5508 = vmatprep.subr.mxu0 %v5378
      %5509 = vmatpush1.msra.mxu0 %v5377
      %5510 = vmatprep.subr.mxu0 %v5380
      %5511 = vmatpush1.msra.mxu0 %v5379
      %5512 = vmatprep.subr.mxu0 %v5382
      %5513 = vmatpush1.msra.mxu0 %v5381
      %5514 = vmatprep.subr.mxu0 %v5384
      %5515 = vmatpush1.msra.mxu0 %v5383
      %5516 = vmatprep.subr.mxu0 %v5386
      %5517 = vmatpush1.msra.mxu0 %v5385
      %5518 = vmatprep.subr.mxu0 %v5388
      %5519 = vmatpush1.msra.mxu0 %v5387
      %5520 = vmatprep.mubr.f32.mxu0 %v5221
      %5521 = vmatmul.mubr.f32.gmra.mrb[0].mxu0 %v5220
      %v5522 = vpop.f32.mrb[0].mxu0
      %v5523 = vadd.f32 %v5228, %v5522
      %v5524 = vpop.f32.mrb[0].mxu0
      %v5525 = vadd.f32 %v5228, %v5524
      %5526 = vdwg.mxu0
      %5527 = vmatprep.subr.mxu0 %v5390
      %5528 = vmatpush1.msra.mxu0 %v5389
      %5529 = vmatprep.subr.mxu0 %v5392
      %5530 = vmatpush1.msra.mxu0 %v5391
      %5531 = vmatprep.subr.mxu0 %v5394
      %5532 = vmatpush1.msra.mxu0 %v5393
      %5533 = vmatprep.subr.mxu0 %v5396
      %5534 = vmatpush1.msra.mxu0 %v5395
      %5535 = vmatprep.subr.mxu0 %v5398
      %5536 = vmatpush1.msra.mxu0 %v5397
      %5537 = vmatprep.subr.mxu0 %v5400
      %5538 = vmatpush1.msra.mxu0 %v5399
      %5539 = vmatprep.subr.mxu0 %v5402
      %5540 = vmatpush1.msra.mxu0 %v5401
      %5541 = vmatprep.subr.mxu0 %v5404
      %5542 = vmatpush1.msra.mxu0 %v5403
      %5543 = vmatprep.subr.mxu0 %v3913
      %5544 = vmatpush1.msra.mxu0 %v3912
      %5545 = vmatprep.subr.mxu0 %v3915
      %5546 = vmatpush1.msra.mxu0 %v3914
      %5547 = vmatprep.subr.mxu0 %v4220
      %5548 = vmatpush1.msra.mxu0 %v4219
      %5549 = vmatprep.subr.mxu0 %v5406
      %5550 = vmatpush1.msra.mxu0 %v5405
      %5551 = vmatprep.subr.mxu0 %v5408
      %5552 = vmatpush1.msra.mxu0 %v5407
      %5553 = vmatprep.subr.mxu0 0.0
      %5554 = vmatpush1.msra.mxu0 0.0
      %5555 = vmatprep.subr.mxu0 0.0
      %5556 = vmatpush1.msra.mxu0 0.0
      %5557 = vmatprep.subr.mxu0 0.0
      %5558 = vmatpush1.msra.mxu0 0.0
      %5559 = vmatprep.subr.mxu0 0.0
      %5560 = vmatpush1.msra.mxu0 0.0
      %5561 = vmatprep.subr.mxu0 0.0
      %5562 = vmatpush1.msra.mxu0 0.0
      %5563 = vmatprep.subr.mxu0 0.0
      %5564 = vmatpush1.msra.mxu0 0.0
      %5565 = vmatprep.subr.mxu0 0.0
      %5566 = vmatpush1.msra.mxu0 0.0
      %5567 = vmatprep.subr.mxu0 0.0
      %5568 = vmatpush1.msra.mxu0 0.0
      %5569 = vmatprep.subr.mxu0 0.0
      %5570 = vmatpush1.msra.mxu0 0.0
      %5571 = vmatprep.subr.mxu0 0.0
      %5572 = vmatpush1.msra.mxu0 0.0
      %5573 = vmatprep.subr.mxu0 0.0
      %5574 = vmatpush1.msra.mxu0 0.0
      %5575 = vmatprep.subr.mxu0 0.0
      %5576 = vmatpush1.msra.mxu0 0.0
      %5577 = vmatprep.subr.mxu0 0.0
      %5578 = vmatpush1.msra.mxu0 0.0
      %5579 = vmatprep.subr.mxu0 0.0
      %5580 = vmatpush1.msra.mxu0 0.0
      %5581 = vmatprep.subr.mxu0 0.0
      %5582 = vmatpush1.msra.mxu0 0.0
      %5583 = vmatprep.subr.mxu0 0.0
      %5584 = vmatpush1.msra.mxu0 0.0
      %5585 = vmatprep.subr.mxu0 0.0
      %5586 = vmatpush1.msra.mxu0 0.0
      %5587 = vmatprep.subr.mxu0 0.0
      %5588 = vmatpush1.msra.mxu0 0.0
      %5589 = vmatprep.subr.mxu0 0.0
      %5590 = vmatpush1.msra.mxu0 0.0
      %5591 = vmatprep.mubr.f32.mxu0 0.0
      %5592 = vmatmul.mubr.f32.gmra.mrb[0].mxu0 %v5454
      %v5593 = vpop.f32.mrb[0].mxu0
      %v5594 = vadd.f32 %v5523, %v5593
      %v5595 = vpop.f32.mrb[0].mxu0
      %v5596 = vadd.f32 %v5525, %v5595
      %5597 = vdwg.mxu0
      %vm5598 = vcmp.ge.f32.partialorder %v5594, 0.0
      %vm5599 = vcmp.ge.f32.partialorder %v5596, 0.0
      %v5600 = vmul.f32 %v5594, 0.2
      %v5601 = vmul.f32 %v5596, 0.2
      %v5602 = vsel %vm5598, %v5594, %v5600
      %v5603 = vsel %vm5599, %v5596, %v5601
      %5604 = vst [vmem:[#allocation6 + $0x8] sm:$0xff] %v5602
      %5605 = vst [vmem:[#allocation6 + $0x10] sm:$0xff] %v5603
      %v5606 = vld [vmem:[#allocation6] sm:$0xff]
      %v5607 = vld [vmem:[#allocation6 + $0x8] sm:$0xff]
      %v5608 = vld [vmem:[#allocation6 + $0x10] sm:$0xff]
      %v5609 = vmul.f32 %v5606, %v468
      %v5610 = vmul.f32 %v5607, %v472
      %v5611 = vmul.f32 %v5608, %v470
      %v5612 = vmul.f32 %v5606, %v485
      %v5613 = vmul.f32 %v5607, %v489
      %v5614 = vmul.f32 %v5608, %v487
      %v5615 = vmul.f32 %v5606, %v500
      %v5616 = vmul.f32 %v5607, %v504
      %v5617 = vmul.f32 %v5608, %v502
      %v5618 = vld [vmem:[#allocation6 + $0x18] sm:$0xff]
      %v5619 = vmul.f32 %v5607, %v517
      %v5620 = vmul.f32 %v5608, %v521
      %v5621 = vmul.f32 %v5618, %v519
      %v5622 = vmul.f32 %v5607, %v532
      %v5623 = vmul.f32 %v5608, %v536
      %v5624 = vmul.f32 %v5618, %v534
      %v5625 = vmul.f32 %v5607, %v547
      %v5626 = vmul.f32 %v5608, %v550
      %v5627 = vmul.f32 %v5618, %v549
      %5631 = vrot.lane.b32.xlu0 %v5606, 127
      %v5632 = vpop.permute.xlu0 %5631
      %5633 = vrot.lane.b32.xlu0 %v5607, 127
      %v5634 = vpop.permute.xlu0 %5633
      %5635 = vrot.lane.b32.xlu0 %v5608, 127
      %v5636 = vpop.permute.xlu0 %5635
      %v5637 = vsel %vm503, %v5632, %v5634
      %v5638 = vsel %vm503, %v5634, %v5636
      %5642 = vrot.lane.b32.xlu0 %v5612, 126
      %v5643 = vpop.permute.xlu0 %5642
      %5644 = vrot.lane.b32.xlu0 %v5613, 126
      %v5645 = vpop.permute.xlu0 %5644
      %5646 = vrot.lane.b32.xlu0 %v5614, 126
      %v5647 = vpop.permute.xlu0 %5646
      %v5648 = vsel %vm600, %v5643, %v5645
      %v5649 = vsel %vm600, %v5645, %v5647
      %5650 = vrot.lane.b32.xlu0 %v3578, 126
      %v5651 = vpop.permute.xlu0 %5650
      %5652 = vrot.lane.b32.xlu0 %v3579, 126
      %v5653 = vpop.permute.xlu0 %5652
      %5654 = vrot.lane.b32.xlu0 %v3580, 126
      %v5655 = vpop.permute.xlu0 %5654
      %5656 = vrot.lane.b32.xlu0 %v3581, 126
      %v5657 = vpop.permute.xlu0 %5656
      %5658 = vrot.lane.b32.xlu0 %v3582, 126
      %v5659 = vpop.permute.xlu0 %5658
      %5660 = vrot.lane.b32.xlu0 %v3583, 126
      %v5661 = vpop.permute.xlu0 %5660
      %v5662 = vsel %vm600, %v5651, %v5653
      %v5663 = vsel %vm600, %v5653, %v5655
      %v5664 = vsel %vm600, %v5657, %v5659
      %v5665 = vsel %vm600, %v5659, %v5661
      %5666 = vrot.lane.b32.xlu0 %v4047, 126
      %v5667 = vpop.permute.xlu0 %5666
      %5668 = vrot.lane.b32.xlu0 %v4048, 126
      %v5669 = vpop.permute.xlu0 %5668
      %5670 = vrot.lane.b32.xlu0 %v4049, 126
      %v5671 = vpop.permute.xlu0 %5670
      %v5672 = vsel %vm600, %v5667, %v5669
      %v5673 = vsel %vm600, %v5669, %v5671
      %5674 = vrot.lane.b32.xlu0 %v4334, 126
      %v5675 = vpop.permute.xlu0 %5674
      %5676 = vrot.lane.b32.xlu0 %v4335, 126
      %v5677 = vpop.permute.xlu0 %5676
      %5678 = vrot.lane.b32.xlu0 %v4336, 126
      %v5679 = vpop.permute.xlu0 %5678
      %v5680 = vsel %vm600, %v5675, %v5677
      %v5681 = vsel %vm600, %v5677, %v5679
      %5682 = vrot.lane.b32.xlu0 %v4951, 126
      %v5683 = vpop.permute.xlu0 %5682
      %5684 = vrot.lane.b32.xlu0 %v4952, 126
      %v5685 = vpop.permute.xlu0 %5684
      %5686 = vrot.lane.b32.xlu0 %v4953, 126
      %v5687 = vpop.permute.xlu0 %5686
      %v5688 = vsel %vm600, %v5683, %v5685
      %v5689 = vsel %vm600, %v5685, %v5687
      %5693 = vrot.lane.b32.xlu0 %v5619, 126
      %v5694 = vpop.permute.xlu0 %5693
      %5695 = vrot.lane.b32.xlu0 %v5620, 126
      %v5696 = vpop.permute.xlu0 %5695
      %5697 = vrot.lane.b32.xlu0 %v5621, 126
      %v5698 = vpop.permute.xlu0 %5697
      %v5699 = vsel %vm600, %v5694, %v5696
      %v5700 = vsel %vm600, %v5696, %v5698
      %5701 = vrot.lane.b32.xlu0 %v3584, 112
      %v5702 = vpop.permute.xlu0 %5701
      %5703 = vrot.lane.b32.xlu0 %v3585, 112
      %v5704 = vpop.permute.xlu0 %5703
      %5705 = vrot.lane.b32.xlu0 %v3586, 112
      %v5706 = vpop.permute.xlu0 %5705
      %5707 = vrot.lane.b32.xlu0 %v3587, 112
      %v5708 = vpop.permute.xlu0 %5707
      %5709 = vrot.lane.b32.xlu0 %v3588, 112
      %v5710 = vpop.permute.xlu0 %5709
      %5711 = vrot.lane.b32.xlu0 %v3589, 112
      %v5712 = vpop.permute.xlu0 %5711
      %v5713 = vsel %vm623, %v5702, %v5704
      %v5714 = vsel %vm623, %v5704, %v5706
      %v5715 = vsel %vm623, %v5708, %v5710
      %v5716 = vsel %vm623, %v5710, %v5712
      %5717 = vrot.lane.b32.xlu0 %v4050, 112
      %v5718 = vpop.permute.xlu0 %5717
      %5719 = vrot.lane.b32.xlu0 %v4051, 112
      %v5720 = vpop.permute.xlu0 %5719
      %5721 = vrot.lane.b32.xlu0 %v4052, 112
      %v5722 = vpop.permute.xlu0 %5721
      %v5723 = vsel %vm623, %v5718, %v5720
      %v5724 = vsel %vm623, %v5720, %v5722
      %5725 = vrot.lane.b32.xlu0 %v3576, 127
      %v5726 = vpop.permute.xlu0 %5725
      %5727 = vrot.lane.b32.xlu0 %v3577, 127
      %v5728 = vpop.permute.xlu0 %5727
      %v5729 = vsel %vm503, %v3607, %v5726
      %v5730 = vsel %vm503, %v3613, %v5728
      %5731 = vrot.lane.b32.xlu0 %v4046, 127
      %v5732 = vpop.permute.xlu0 %5731
      %v5733 = vsel %vm503, %v4064, %v5732
      %5734 = vrot.lane.b32.xlu0 %v4333, 127
      %v5735 = vpop.permute.xlu0 %5734
      %v5736 = vsel %vm503, %v4351, %v5735
      %5737 = vrot.lane.b32.xlu0 %v4950, 127
      %v5738 = vpop.permute.xlu0 %5737
      %v5739 = vsel %vm503, %v4968, %v5738
      %5741 = vrot.lane.b32.xlu0 %v5618, 127
      %v5742 = vpop.permute.xlu0 %5741
      %v5743 = vsel %vm503, %v5636, %v5742
      %5744 = vrot.lane.b32.xlu0 %v3590, 126
      %v5745 = vpop.permute.xlu0 %5744
      %5746 = vrot.lane.b32.xlu0 %v3591, 126
      %v5747 = vpop.permute.xlu0 %5746
      %5748 = vrot.lane.b32.xlu0 %v3592, 126
      %v5749 = vpop.permute.xlu0 %5748
      %5750 = vrot.lane.b32.xlu0 %v3593, 126
      %v5751 = vpop.permute.xlu0 %5750
      %5752 = vrot.lane.b32.xlu0 %v3594, 126
      %v5753 = vpop.permute.xlu0 %5752
      %5754 = vrot.lane.b32.xlu0 %v3595, 126
      %v5755 = vpop.permute.xlu0 %5754
      %v5756 = vsel %vm600, %v5745, %v5747
      %v5757 = vsel %vm600, %v5747, %v5749
      %v5758 = vsel %vm600, %v5751, %v5753
      %v5759 = vsel %vm600, %v5753, %v5755
      %5760 = vrot.lane.b32.xlu0 %v4053, 126
      %v5761 = vpop.permute.xlu0 %5760
      %5762 = vrot.lane.b32.xlu0 %v4054, 126
      %v5763 = vpop.permute.xlu0 %5762
      %5764 = vrot.lane.b32.xlu0 %v4055, 126
      %v5765 = vpop.permute.xlu0 %5764
      %v5766 = vsel %vm600, %v5761, %v5763
      %v5767 = vsel %vm600, %v5763, %v5765
      %5768 = vrot.lane.b32.xlu0 %v4340, 126
      %v5769 = vpop.permute.xlu0 %5768
      %5770 = vrot.lane.b32.xlu0 %v4341, 126
      %v5771 = vpop.permute.xlu0 %5770
      %5772 = vrot.lane.b32.xlu0 %v4342, 126
      %v5773 = vpop.permute.xlu0 %5772
      %v5774 = vsel %vm600, %v5769, %v5771
      %v5775 = vsel %vm600, %v5771, %v5773
      %5776 = vrot.lane.b32.xlu0 %v4957, 126
      %v5777 = vpop.permute.xlu0 %5776
      %5778 = vrot.lane.b32.xlu0 %v4958, 126
      %v5779 = vpop.permute.xlu0 %5778
      %5780 = vrot.lane.b32.xlu0 %v4959, 126
      %v5781 = vpop.permute.xlu0 %5780
      %v5782 = vsel %vm600, %v5777, %v5779
      %v5783 = vsel %vm600, %v5779, %v5781
      %5787 = vrot.lane.b32.xlu0 %v5625, 126
      %v5788 = vpop.permute.xlu0 %5787
      %5789 = vrot.lane.b32.xlu0 %v5626, 126
      %v5790 = vpop.permute.xlu0 %5789
      %5791 = vrot.lane.b32.xlu0 %v5627, 126
      %v5792 = vpop.permute.xlu0 %5791
      %v5793 = vsel %vm600, %v5788, %v5790
      %v5794 = vsel %vm600, %v5790, %v5792
      %5798 = vrot.lane.b32.xlu0 %v5615, 112
      %v5799 = vpop.permute.xlu0 %5798
      %5800 = vrot.lane.b32.xlu0 %v5616, 112
      %v5801 = vpop.permute.xlu0 %5800
      %5802 = vrot.lane.b32.xlu0 %v5617, 112
      %v5803 = vpop.permute.xlu0 %5802
      %5804 = vrot.lane.b32.xlu0 %v3605, 112
      %v5805 = vpop.permute.xlu0 %5804
      %5806 = vrot.lane.b32.xlu0 %v3615, 112
      %v5807 = vpop.permute.xlu0 %5806
      %5808 = vrot.lane.b32.xlu0 %v3607, 112
      %v5809 = vpop.permute.xlu0 %5808
      %5810 = vrot.lane.b32.xlu0 %v3611, 112
      %v5811 = vpop.permute.xlu0 %5810
      %5812 = vrot.lane.b32.xlu0 %v3617, 112
      %v5813 = vpop.permute.xlu0 %5812
      %5814 = vrot.lane.b32.xlu0 %v3613, 112
      %v5815 = vpop.permute.xlu0 %5814
      %5816 = vrot.lane.b32.xlu0 %v4062, 112
      %v5817 = vpop.permute.xlu0 %5816
      %5818 = vrot.lane.b32.xlu0 %v4066, 112
      %v5819 = vpop.permute.xlu0 %5818
      %5820 = vrot.lane.b32.xlu0 %v4064, 112
      %v5821 = vpop.permute.xlu0 %5820
      %5822 = vrot.lane.b32.xlu0 %v4349, 112
      %v5823 = vpop.permute.xlu0 %5822
      %5824 = vrot.lane.b32.xlu0 %v4353, 112
      %v5825 = vpop.permute.xlu0 %5824
      %5826 = vrot.lane.b32.xlu0 %v4351, 112
      %v5827 = vpop.permute.xlu0 %5826
      %5828 = vrot.lane.b32.xlu0 %v4966, 112
      %v5829 = vpop.permute.xlu0 %5828
      %5830 = vrot.lane.b32.xlu0 %v4970, 112
      %v5831 = vpop.permute.xlu0 %5830
      %5832 = vrot.lane.b32.xlu0 %v4968, 112
      %v5833 = vpop.permute.xlu0 %5832
      %5834 = vrot.lane.b32.xlu0 %v5634, 112
      %v5835 = vpop.permute.xlu0 %5834
      %5836 = vrot.lane.b32.xlu0 %v5638, 112
      %v5837 = vpop.permute.xlu0 %5836
      %5838 = vrot.lane.b32.xlu0 %v5636, 112
      %v5839 = vpop.permute.xlu0 %5838
      %5840 = vrot.lane.b32.xlu0 %v5651, 112
      %v5841 = vpop.permute.xlu0 %5840
      %5842 = vrot.lane.b32.xlu0 %v5662, 112
      %v5843 = vpop.permute.xlu0 %5842
      %5844 = vrot.lane.b32.xlu0 %v5663, 112
      %v5845 = vpop.permute.xlu0 %5844
      %5846 = vrot.lane.b32.xlu0 %v5657, 112
      %v5847 = vpop.permute.xlu0 %5846
      %5848 = vrot.lane.b32.xlu0 %v5664, 112
      %v5849 = vpop.permute.xlu0 %5848
      %5850 = vrot.lane.b32.xlu0 %v5665, 112
      %v5851 = vpop.permute.xlu0 %5850
      %5852 = vrot.lane.b32.xlu0 %v5667, 112
      %v5853 = vpop.permute.xlu0 %5852
      %5854 = vrot.lane.b32.xlu0 %v5672, 112
      %v5855 = vpop.permute.xlu0 %5854
      %5856 = vrot.lane.b32.xlu0 %v5673, 112
      %v5857 = vpop.permute.xlu0 %5856
      %5858 = vrot.lane.b32.xlu0 %v5675, 112
      %v5859 = vpop.permute.xlu0 %5858
      %5860 = vrot.lane.b32.xlu0 %v5680, 112
      %v5861 = vpop.permute.xlu0 %5860
      %5862 = vrot.lane.b32.xlu0 %v5681, 112
      %v5863 = vpop.permute.xlu0 %5862
      %5864 = vrot.lane.b32.xlu0 %v5683, 112
      %v5865 = vpop.permute.xlu0 %5864
      %5866 = vrot.lane.b32.xlu0 %v5688, 112
      %v5867 = vpop.permute.xlu0 %5866
      %5868 = vrot.lane.b32.xlu0 %v5689, 112
      %v5869 = vpop.permute.xlu0 %5868
      %5870 = vrot.lane.b32.xlu0 %v5694, 112
      %v5871 = vpop.permute.xlu0 %5870
      %5872 = vrot.lane.b32.xlu0 %v5699, 112
      %v5873 = vpop.permute.xlu0 %5872
      %5874 = vrot.lane.b32.xlu0 %v5700, 112
      %v5875 = vpop.permute.xlu0 %5874
      %5876 = vrot.lane.b32.xlu0 %v5702, 112
      %v5877 = vpop.permute.xlu0 %5876
      %5878 = vrot.lane.b32.xlu0 %v5713, 112
      %v5879 = vpop.permute.xlu0 %5878
      %5880 = vrot.lane.b32.xlu0 %v5714, 112
      %v5881 = vpop.permute.xlu0 %5880
      %5882 = vrot.lane.b32.xlu0 %v5708, 112
      %v5883 = vpop.permute.xlu0 %5882
      %5884 = vrot.lane.b32.xlu0 %v5715, 112
      %v5885 = vpop.permute.xlu0 %5884
      %5886 = vrot.lane.b32.xlu0 %v5716, 112
      %v5887 = vpop.permute.xlu0 %5886
      %5888 = vrot.lane.b32.xlu0 %v5718, 112
      %v5889 = vpop.permute.xlu0 %5888
      %5890 = vrot.lane.b32.xlu0 %v5723, 112
      %v5891 = vpop.permute.xlu0 %5890
      %5892 = vrot.lane.b32.xlu0 %v5724, 112
      %v5893 = vpop.permute.xlu0 %5892
      %v5894 = vsel %vm623, %v5799, %v5801
      %v5895 = vsel %vm623, %v5801, %v5803
      %v5896 = vsel %vm623, %v5805, %v5807
      %v5897 = vsel %vm623, %v5807, %v5809
      %v5898 = vsel %vm623, %v5811, %v5813
      %v5899 = vsel %vm623, %v5813, %v5815
      %v5900 = vsel %vm623, %v5817, %v5819
      %v5901 = vsel %vm623, %v5819, %v5821
      %v5902 = vsel %vm623, %v5823, %v5825
      %v5903 = vsel %vm623, %v5825, %v5827
      %v5904 = vsel %vm623, %v5829, %v5831
      %v5905 = vsel %vm623, %v5831, %v5833
      %v5906 = vsel %vm623, %v5835, %v5837
      %v5907 = vsel %vm623, %v5837, %v5839
      %v5908 = vsel %vm623, %v5841, %v5843
      %v5909 = vsel %vm623, %v5843, %v5845
      %v5910 = vsel %vm623, %v5847, %v5849
      %v5911 = vsel %vm623, %v5849, %v5851
      %v5912 = vsel %vm623, %v5853, %v5855
      %v5913 = vsel %vm623, %v5855, %v5857
      %v5914 = vsel %vm623, %v5859, %v5861
      %v5915 = vsel %vm623, %v5861, %v5863
      %v5916 = vsel %vm623, %v5865, %v5867
      %v5917 = vsel %vm623, %v5867, %v5869
      %v5918 = vsel %vm623, %v5871, %v5873
      %v5919 = vsel %vm623, %v5873, %v5875
      %v5920 = vsel %vm623, %v5877, %v5879
      %v5921 = vsel %vm623, %v5879, %v5881
      %v5922 = vsel %vm623, %v5883, %v5885
      %v5923 = vsel %vm623, %v5885, %v5887
      %v5924 = vsel %vm623, %v5889, %v5891
      %v5925 = vsel %vm623, %v5891, %v5893
      %5929 = vrot.lane.b32.xlu0 %v4337, 96
      %v5930 = vpop.permute.xlu0 %5929
      %5931 = vrot.lane.b32.xlu0 %v4338, 96
      %v5932 = vpop.permute.xlu0 %5931
      %5933 = vrot.lane.b32.xlu0 %v4339, 96
      %v5934 = vpop.permute.xlu0 %5933
      %5935 = vrot.lane.b32.xlu0 %v4954, 96
      %v5936 = vpop.permute.xlu0 %5935
      %5937 = vrot.lane.b32.xlu0 %v4955, 96
      %v5938 = vpop.permute.xlu0 %5937
      %5939 = vrot.lane.b32.xlu0 %v4956, 96
      %v5940 = vpop.permute.xlu0 %5939
      %5941 = vrot.lane.b32.xlu0 %v5622, 96
      %v5942 = vpop.permute.xlu0 %5941
      %5943 = vrot.lane.b32.xlu0 %v5623, 96
      %v5944 = vpop.permute.xlu0 %5943
      %5945 = vrot.lane.b32.xlu0 %v5624, 96
      %v5946 = vpop.permute.xlu0 %5945
      %5947 = vrot.lane.b32.xlu0 %v3615, 96
      %v5948 = vpop.permute.xlu0 %5947
      %5949 = vrot.lane.b32.xlu0 %v5729, 96
      %v5950 = vpop.permute.xlu0 %5949
      %5951 = vrot.lane.b32.xlu0 %v5726, 96
      %v5952 = vpop.permute.xlu0 %5951
      %5953 = vrot.lane.b32.xlu0 %v3617, 96
      %v5954 = vpop.permute.xlu0 %5953
      %5955 = vrot.lane.b32.xlu0 %v5730, 96
      %v5956 = vpop.permute.xlu0 %5955
      %5957 = vrot.lane.b32.xlu0 %v5728, 96
      %v5958 = vpop.permute.xlu0 %5957
      %5959 = vrot.lane.b32.xlu0 %v4066, 96
      %v5960 = vpop.permute.xlu0 %5959
      %5961 = vrot.lane.b32.xlu0 %v5733, 96
      %v5962 = vpop.permute.xlu0 %5961
      %5963 = vrot.lane.b32.xlu0 %v5732, 96
      %v5964 = vpop.permute.xlu0 %5963
      %5965 = vrot.lane.b32.xlu0 %v4353, 96
      %v5966 = vpop.permute.xlu0 %5965
      %5967 = vrot.lane.b32.xlu0 %v5736, 96
      %v5968 = vpop.permute.xlu0 %5967
      %5969 = vrot.lane.b32.xlu0 %v5735, 96
      %v5970 = vpop.permute.xlu0 %5969
      %5971 = vrot.lane.b32.xlu0 %v4970, 96
      %v5972 = vpop.permute.xlu0 %5971
      %5973 = vrot.lane.b32.xlu0 %v5739, 96
      %v5974 = vpop.permute.xlu0 %5973
      %5975 = vrot.lane.b32.xlu0 %v5738, 96
      %v5976 = vpop.permute.xlu0 %5975
      %5977 = vrot.lane.b32.xlu0 %v5638, 96
      %v5978 = vpop.permute.xlu0 %5977
      %5979 = vrot.lane.b32.xlu0 %v5743, 96
      %v5980 = vpop.permute.xlu0 %5979
      %5981 = vrot.lane.b32.xlu0 %v5742, 96
      %v5982 = vpop.permute.xlu0 %5981
      %5983 = vrot.lane.b32.xlu0 %v5756, 96
      %v5984 = vpop.permute.xlu0 %5983
      %5985 = vrot.lane.b32.xlu0 %v5757, 96
      %v5986 = vpop.permute.xlu0 %5985
      %5987 = vrot.lane.b32.xlu0 %v5749, 96
      %v5988 = vpop.permute.xlu0 %5987
      %5989 = vrot.lane.b32.xlu0 %v5758, 96
      %v5990 = vpop.permute.xlu0 %5989
      %5991 = vrot.lane.b32.xlu0 %v5759, 96
      %v5992 = vpop.permute.xlu0 %5991
      %5993 = vrot.lane.b32.xlu0 %v5755, 96
      %v5994 = vpop.permute.xlu0 %5993
      %5995 = vrot.lane.b32.xlu0 %v5766, 96
      %v5996 = vpop.permute.xlu0 %5995
      %5997 = vrot.lane.b32.xlu0 %v5767, 96
      %v5998 = vpop.permute.xlu0 %5997
      %5999 = vrot.lane.b32.xlu0 %v5765, 96
      %v6000 = vpop.permute.xlu0 %5999
      %6001 = vrot.lane.b32.xlu0 %v5774, 96
      %v6002 = vpop.permute.xlu0 %6001
      %6003 = vrot.lane.b32.xlu0 %v5775, 96
      %v6004 = vpop.permute.xlu0 %6003
      %6005 = vrot.lane.b32.xlu0 %v5773, 96
      %v6006 = vpop.permute.xlu0 %6005
      %6007 = vrot.lane.b32.xlu0 %v5782, 96
      %v6008 = vpop.permute.xlu0 %6007
      %6009 = vrot.lane.b32.xlu0 %v5783, 96
      %v6010 = vpop.permute.xlu0 %6009
      %6011 = vrot.lane.b32.xlu0 %v5781, 96
      %v6012 = vpop.permute.xlu0 %6011
      %6013 = vrot.lane.b32.xlu0 %v5793, 96
      %v6014 = vpop.permute.xlu0 %6013
      %6015 = vrot.lane.b32.xlu0 %v5794, 96
      %v6016 = vpop.permute.xlu0 %6015
      %6017 = vrot.lane.b32.xlu0 %v5792, 96
      %v6018 = vpop.permute.xlu0 %6017
      %v6019 = vsel %vm679, %v5930, %v5932
      %v6020 = vsel %vm679, %v5932, %v5934
      %v6021 = vsel %vm679, %v5936, %v5938
      %v6022 = vsel %vm679, %v5938, %v5940
      %v6023 = vsel %vm679, %v5942, %v5944
      %v6024 = vsel %vm679, %v5944, %v5946
      %v6025 = vsel %vm679, %v5948, %v5950
      %v6026 = vsel %vm679, %v5950, %v5952
      %v6027 = vsel %vm679, %v5954, %v5956
      %v6028 = vsel %vm679, %v5956, %v5958
      %v6029 = vsel %vm679, %v5960, %v5962
      %v6030 = vsel %vm679, %v5962, %v5964
      %v6031 = vsel %vm679, %v5966, %v5968
      %v6032 = vsel %vm679, %v5968, %v5970
      %v6033 = vsel %vm679, %v5972, %v5974
      %v6034 = vsel %vm679, %v5974, %v5976
      %v6035 = vsel %vm679, %v5978, %v5980
      %v6036 = vsel %vm679, %v5980, %v5982
      %v6037 = vsel %vm679, %v5984, %v5986
      %v6038 = vsel %vm679, %v5986, %v5988
      %v6039 = vsel %vm679, %v5990, %v5992
      %v6040 = vsel %vm679, %v5992, %v5994
      %v6041 = vsel %vm679, %v5996, %v5998
      %v6042 = vsel %vm679, %v5998, %v6000
      %v6043 = vsel %vm679, %v6002, %v6004
      %v6044 = vsel %vm679, %v6004, %v6006
      %v6045 = vsel %vm679, %v6008, %v6010
      %v6046 = vsel %vm679, %v6010, %v6012
      %v6047 = vsel %vm679, %v6014, %v6016
      %v6048 = vsel %vm679, %v6016, %v6018
      %s6049 = scalar_lea.vmem %s5, 64
      %v6050 = vld [vmem:[%s6049] sm:$0xff]
      %v6051 = vld [vmem:[%s6049 + $0x8] sm:$0xff]
      %v6052 = vld [vmem:[%s6049 + $0x10] sm:$0xff]
      %v6053 = vld [vmem:[%s6049 + $0x18] sm:$0xff]
      %v6054 = vld [vmem:[%s6049 + $0x20] sm:$0xff]
      %v6055 = vld [vmem:[%s6049 + $0x28] sm:$0xff]
      %v6056 = vld [vmem:[%s6049 + $0x30] sm:$0xff]
      %v6057 = vld [vmem:[%s6049 + $0x38] sm:$0xff]
      %s6058 = scalar_lea.vmem %s10, 16
      %v6059 = vld [vmem:[%s6058] sm:$0xff]
      %v6060 = vld [vmem:[%s6058 + $0x8] sm:$0xff]
      %6062 = vset.pattern.permute.xlu0 0
      %6063 = vperm.xlu0 %6062, %v6059
      %v6064 = vpop.permute.xlu0 %6063
      %6067 = vset.pattern.permute.xlu0 0
      %6068 = vperm.xlu0 %6067, %v6060
      %v6069 = vpop.permute.xlu0 %6068
      %6074 = vrot.lane.b32.xlu0 %v5609, 17
      %v6075 = vpop.permute.xlu0 %6074
      %6076 = vrot.lane.b32.xlu0 %v5610, 17
      %v6077 = vpop.permute.xlu0 %6076
      %6078 = vrot.lane.b32.xlu0 %v5611, 17
      %v6079 = vpop.permute.xlu0 %6078
      %6080 = vrot.lane.b32.xlu0 %v5637, 17
      %v6081 = vpop.permute.xlu0 %6080
      %6082 = vrot.lane.b32.xlu0 %v5638, 17
      %v6083 = vpop.permute.xlu0 %6082
      %6084 = vrot.lane.b32.xlu0 %v5636, 17
      %v6085 = vpop.permute.xlu0 %6084
      %6086 = vrot.lane.b32.xlu0 %v5648, 17
      %v6087 = vpop.permute.xlu0 %6086
      %6088 = vrot.lane.b32.xlu0 %v5649, 17
      %v6089 = vpop.permute.xlu0 %6088
      %6090 = vrot.lane.b32.xlu0 %v5647, 17
      %v6091 = vpop.permute.xlu0 %6090
      %6092 = vrot.lane.b32.xlu0 %v5894, 17
      %v6093 = vpop.permute.xlu0 %6092
      %6094 = vrot.lane.b32.xlu0 %v5895, 17
      %v6095 = vpop.permute.xlu0 %6094
      %6096 = vrot.lane.b32.xlu0 %v5803, 17
      %v6097 = vpop.permute.xlu0 %6096
      %6098 = vrot.lane.b32.xlu0 %v5896, 17
      %v6099 = vpop.permute.xlu0 %6098
      %6100 = vrot.lane.b32.xlu0 %v5897, 17
      %v6101 = vpop.permute.xlu0 %6100
      %6102 = vrot.lane.b32.xlu0 %v5809, 17
      %v6103 = vpop.permute.xlu0 %6102
      %6104 = vrot.lane.b32.xlu0 %v5898, 17
      %v6105 = vpop.permute.xlu0 %6104
      %6106 = vrot.lane.b32.xlu0 %v5899, 17
      %v6107 = vpop.permute.xlu0 %6106
      %6108 = vrot.lane.b32.xlu0 %v5815, 17
      %v6109 = vpop.permute.xlu0 %6108
      %6110 = vrot.lane.b32.xlu0 %v5900, 17
      %v6111 = vpop.permute.xlu0 %6110
      %6112 = vrot.lane.b32.xlu0 %v5901, 17
      %v6113 = vpop.permute.xlu0 %6112
      %6114 = vrot.lane.b32.xlu0 %v5821, 17
      %v6115 = vpop.permute.xlu0 %6114
      %6116 = vrot.lane.b32.xlu0 %v5902, 17
      %v6117 = vpop.permute.xlu0 %6116
      %6118 = vrot.lane.b32.xlu0 %v5903, 17
      %v6119 = vpop.permute.xlu0 %6118
      %6120 = vrot.lane.b32.xlu0 %v5827, 17
      %v6121 = vpop.permute.xlu0 %6120
      %6122 = vrot.lane.b32.xlu0 %v5904, 17
      %v6123 = vpop.permute.xlu0 %6122
      %6124 = vrot.lane.b32.xlu0 %v5905, 17
      %v6125 = vpop.permute.xlu0 %6124
      %6126 = vrot.lane.b32.xlu0 %v5833, 17
      %v6127 = vpop.permute.xlu0 %6126
      %6128 = vrot.lane.b32.xlu0 %v5906, 17
      %v6129 = vpop.permute.xlu0 %6128
      %6130 = vrot.lane.b32.xlu0 %v5907, 17
      %v6131 = vpop.permute.xlu0 %6130
      %6132 = vrot.lane.b32.xlu0 %v5839, 17
      %v6133 = vpop.permute.xlu0 %6132
      %6134 = vrot.lane.b32.xlu0 %v5908, 17
      %v6135 = vpop.permute.xlu0 %6134
      %6136 = vrot.lane.b32.xlu0 %v5909, 17
      %v6137 = vpop.permute.xlu0 %6136
      %6138 = vrot.lane.b32.xlu0 %v5845, 17
      %v6139 = vpop.permute.xlu0 %6138
      %6140 = vrot.lane.b32.xlu0 %v5910, 17
      %v6141 = vpop.permute.xlu0 %6140
      %6142 = vrot.lane.b32.xlu0 %v5911, 17
      %v6143 = vpop.permute.xlu0 %6142
      %6144 = vrot.lane.b32.xlu0 %v5851, 17
      %v6145 = vpop.permute.xlu0 %6144
      %6146 = vrot.lane.b32.xlu0 %v5912, 17
      %v6147 = vpop.permute.xlu0 %6146
      %6148 = vrot.lane.b32.xlu0 %v5913, 17
      %v6149 = vpop.permute.xlu0 %6148
      %6150 = vrot.lane.b32.xlu0 %v5857, 17
      %v6151 = vpop.permute.xlu0 %6150
      %6152 = vrot.lane.b32.xlu0 %v5914, 17
      %v6153 = vpop.permute.xlu0 %6152
      %6154 = vrot.lane.b32.xlu0 %v5915, 17
      %v6155 = vpop.permute.xlu0 %6154
      %6156 = vrot.lane.b32.xlu0 %v5863, 17
      %v6157 = vpop.permute.xlu0 %6156
      %6158 = vrot.lane.b32.xlu0 %v5916, 17
      %v6159 = vpop.permute.xlu0 %6158
      %6160 = vrot.lane.b32.xlu0 %v5917, 17
      %v6161 = vpop.permute.xlu0 %6160
      %6162 = vrot.lane.b32.xlu0 %v5869, 17
      %v6163 = vpop.permute.xlu0 %6162
      %6164 = vrot.lane.b32.xlu0 %v5918, 17
      %v6165 = vpop.permute.xlu0 %6164
      %6166 = vrot.lane.b32.xlu0 %v5919, 17
      %v6167 = vpop.permute.xlu0 %6166
      %6168 = vrot.lane.b32.xlu0 %v5875, 17
      %v6169 = vpop.permute.xlu0 %6168
      %6170 = vrot.lane.b32.xlu0 %v5920, 17
      %v6171 = vpop.permute.xlu0 %6170
      %6172 = vrot.lane.b32.xlu0 %v5921, 17
      %v6173 = vpop.permute.xlu0 %6172
      %6174 = vrot.lane.b32.xlu0 %v5881, 17
      %v6175 = vpop.permute.xlu0 %6174
      %6176 = vrot.lane.b32.xlu0 %v5922, 17
      %v6177 = vpop.permute.xlu0 %6176
      %6178 = vrot.lane.b32.xlu0 %v5923, 17
      %v6179 = vpop.permute.xlu0 %6178
      %6180 = vrot.lane.b32.xlu0 %v5887, 17
      %v6181 = vpop.permute.xlu0 %6180
      %6182 = vrot.lane.b32.xlu0 %v5924, 17
      %v6183 = vpop.permute.xlu0 %6182
      %6184 = vrot.lane.b32.xlu0 %v5925, 17
      %v6185 = vpop.permute.xlu0 %6184
      %6186 = vrot.lane.b32.xlu0 %v5893, 17
      %v6187 = vpop.permute.xlu0 %6186
      %6188 = vrot.lane.b32.xlu0 %v5930, 17
      %v6189 = vpop.permute.xlu0 %6188
      %6190 = vrot.lane.b32.xlu0 %v6019, 17
      %v6191 = vpop.permute.xlu0 %6190
      %6192 = vrot.lane.b32.xlu0 %v6020, 17
      %v6193 = vpop.permute.xlu0 %6192
      %6194 = vrot.lane.b32.xlu0 %v5936, 17
      %v6195 = vpop.permute.xlu0 %6194
      %6196 = vrot.lane.b32.xlu0 %v6021, 17
      %v6197 = vpop.permute.xlu0 %6196
      %6198 = vrot.lane.b32.xlu0 %v6022, 17
      %v6199 = vpop.permute.xlu0 %6198
      %6200 = vrot.lane.b32.xlu0 %v5942, 17
      %v6201 = vpop.permute.xlu0 %6200
      %6202 = vrot.lane.b32.xlu0 %v6023, 17
      %v6203 = vpop.permute.xlu0 %6202
      %6204 = vrot.lane.b32.xlu0 %v6024, 17
      %v6205 = vpop.permute.xlu0 %6204
      %6206 = vrot.lane.b32.xlu0 %v5948, 17
      %v6207 = vpop.permute.xlu0 %6206
      %6208 = vrot.lane.b32.xlu0 %v6025, 17
      %v6209 = vpop.permute.xlu0 %6208
      %6210 = vrot.lane.b32.xlu0 %v6026, 17
      %v6211 = vpop.permute.xlu0 %6210
      %6212 = vrot.lane.b32.xlu0 %v5954, 17
      %v6213 = vpop.permute.xlu0 %6212
      %6214 = vrot.lane.b32.xlu0 %v6027, 17
      %v6215 = vpop.permute.xlu0 %6214
      %6216 = vrot.lane.b32.xlu0 %v6028, 17
      %v6217 = vpop.permute.xlu0 %6216
      %6218 = vrot.lane.b32.xlu0 %v5960, 17
      %v6219 = vpop.permute.xlu0 %6218
      %6220 = vrot.lane.b32.xlu0 %v6029, 17
      %v6221 = vpop.permute.xlu0 %6220
      %6222 = vrot.lane.b32.xlu0 %v6030, 17
      %v6223 = vpop.permute.xlu0 %6222
      %6224 = vrot.lane.b32.xlu0 %v5966, 17
      %v6225 = vpop.permute.xlu0 %6224
      %6226 = vrot.lane.b32.xlu0 %v6031, 17
      %v6227 = vpop.permute.xlu0 %6226
      %6228 = vrot.lane.b32.xlu0 %v6032, 17
      %v6229 = vpop.permute.xlu0 %6228
      %6230 = vrot.lane.b32.xlu0 %v5972, 17
      %v6231 = vpop.permute.xlu0 %6230
      %6232 = vrot.lane.b32.xlu0 %v6033, 17
      %v6233 = vpop.permute.xlu0 %6232
      %6234 = vrot.lane.b32.xlu0 %v6034, 17
      %v6235 = vpop.permute.xlu0 %6234
      %6236 = vrot.lane.b32.xlu0 %v5978, 17
      %v6237 = vpop.permute.xlu0 %6236
      %6238 = vrot.lane.b32.xlu0 %v6035, 17
      %v6239 = vpop.permute.xlu0 %6238
      %6240 = vrot.lane.b32.xlu0 %v6036, 17
      %v6241 = vpop.permute.xlu0 %6240
      %6242 = vrot.lane.b32.xlu0 %v5984, 17
      %v6243 = vpop.permute.xlu0 %6242
      %6244 = vrot.lane.b32.xlu0 %v6037, 17
      %v6245 = vpop.permute.xlu0 %6244
      %6246 = vrot.lane.b32.xlu0 %v6038, 17
      %v6247 = vpop.permute.xlu0 %6246
      %6248 = vrot.lane.b32.xlu0 %v5990, 17
      %v6249 = vpop.permute.xlu0 %6248
      %6250 = vrot.lane.b32.xlu0 %v6039, 17
      %v6251 = vpop.permute.xlu0 %6250
      %6252 = vrot.lane.b32.xlu0 %v6040, 17
      %v6253 = vpop.permute.xlu0 %6252
      %6254 = vrot.lane.b32.xlu0 %v5996, 17
      %v6255 = vpop.permute.xlu0 %6254
      %6256 = vrot.lane.b32.xlu0 %v6041, 17
      %v6257 = vpop.permute.xlu0 %6256
      %6258 = vrot.lane.b32.xlu0 %v6042, 17
      %v6259 = vpop.permute.xlu0 %6258
      %6260 = vrot.lane.b32.xlu0 %v6002, 17
      %v6261 = vpop.permute.xlu0 %6260
      %6262 = vrot.lane.b32.xlu0 %v6043, 17
      %v6263 = vpop.permute.xlu0 %6262
      %6264 = vrot.lane.b32.xlu0 %v6044, 17
      %v6265 = vpop.permute.xlu0 %6264
      %6266 = vrot.lane.b32.xlu0 %v6008, 17
      %v6267 = vpop.permute.xlu0 %6266
      %6268 = vrot.lane.b32.xlu0 %v6045, 17
      %v6269 = vpop.permute.xlu0 %6268
      %6270 = vrot.lane.b32.xlu0 %v6046, 17
      %v6271 = vpop.permute.xlu0 %6270
      %6272 = vrot.lane.b32.xlu0 %v6014, 17
      %v6273 = vpop.permute.xlu0 %6272
      %6274 = vrot.lane.b32.xlu0 %v6047, 17
      %v6275 = vpop.permute.xlu0 %6274
      %6276 = vrot.lane.b32.xlu0 %v6048, 17
      %v6277 = vpop.permute.xlu0 %6276
      %v6278 = vsel %vm429, %v6075, %v6077
      %v6279 = vsel %vm429, %v6077, %v6079
      %v6280 = vsel %vm429, %v6081, %v6083
      %v6281 = vsel %vm429, %v6083, %v6085
      %v6282 = vsel %vm429, %v6087, %v6089
      %v6283 = vsel %vm429, %v6089, %v6091
      %v6284 = vsel %vm429, %v6093, %v6095
      %v6285 = vsel %vm429, %v6095, %v6097
      %v6286 = vsel %vm429, %v6099, %v6101
      %v6287 = vsel %vm429, %v6101, %v6103
      %v6288 = vsel %vm429, %v6105, %v6107
      %v6289 = vsel %vm429, %v6107, %v6109
      %v6290 = vsel %vm429, %v6111, %v6113
      %v6291 = vsel %vm429, %v6113, %v6115
      %v6292 = vsel %vm429, %v6117, %v6119
      %v6293 = vsel %vm429, %v6119, %v6121
      %v6294 = vsel %vm429, %v6123, %v6125
      %v6295 = vsel %vm429, %v6125, %v6127
      %v6296 = vsel %vm429, %v6129, %v6131
      %v6297 = vsel %vm429, %v6131, %v6133
      %v6298 = vsel %vm429, %v6135, %v6137
      %v6299 = vsel %vm429, %v6137, %v6139
      %v6300 = vsel %vm429, %v6141, %v6143
      %v6301 = vsel %vm429, %v6143, %v6145
      %v6302 = vsel %vm429, %v6147, %v6149
      %v6303 = vsel %vm429, %v6149, %v6151
      %v6304 = vsel %vm429, %v6153, %v6155
      %v6305 = vsel %vm429, %v6155, %v6157
      %v6306 = vsel %vm429, %v6159, %v6161
      %v6307 = vsel %vm429, %v6161, %v6163
      %v6308 = vsel %vm429, %v6165, %v6167
      %v6309 = vsel %vm429, %v6167, %v6169
      %v6310 = vsel %vm429, %v6171, %v6173
      %v6311 = vsel %vm429, %v6173, %v6175
      %v6312 = vsel %vm429, %v6177, %v6179
      %v6313 = vsel %vm429, %v6179, %v6181
      %v6314 = vsel %vm429, %v6183, %v6185
      %v6315 = vsel %vm429, %v6185, %v6187
      %v6316 = vsel %vm429, %v6189, %v6191
      %v6317 = vsel %vm429, %v6191, %v6193
      %v6318 = vsel %vm429, %v6195, %v6197
      %v6319 = vsel %vm429, %v6197, %v6199
      %v6320 = vsel %vm429, %v6201, %v6203
      %v6321 = vsel %vm429, %v6203, %v6205
      %v6322 = vsel %vm429, %v6207, %v6209
      %v6323 = vsel %vm429, %v6209, %v6211
      %v6324 = vsel %vm429, %v6213, %v6215
      %v6325 = vsel %vm429, %v6215, %v6217
      %v6326 = vsel %vm429, %v6219, %v6221
      %v6327 = vsel %vm429, %v6221, %v6223
      %v6328 = vsel %vm429, %v6225, %v6227
      %v6329 = vsel %vm429, %v6227, %v6229
      %v6330 = vsel %vm429, %v6231, %v6233
      %v6331 = vsel %vm429, %v6233, %v6235
      %v6332 = vsel %vm429, %v6237, %v6239
      %v6333 = vsel %vm429, %v6239, %v6241
      %v6334 = vsel %vm429, %v6243, %v6245
      %v6335 = vsel %vm429, %v6245, %v6247
      %v6336 = vsel %vm429, %v6249, %v6251
      %v6337 = vsel %vm429, %v6251, %v6253
      %v6338 = vsel %vm429, %v6255, %v6257
      %v6339 = vsel %vm429, %v6257, %v6259
      %v6340 = vsel %vm429, %v6261, %v6263
      %v6341 = vsel %vm429, %v6263, %v6265
      %v6342 = vsel %vm429, %v6267, %v6269
      %v6343 = vsel %vm429, %v6269, %v6271
      %v6344 = vsel %vm429, %v6273, %v6275
      %v6345 = vsel %vm429, %v6275, %v6277
      %v6415 = vsel %vm3379, %v6053, 0
      %v6418 = vsel %vm3379, %v6057, 0
      %6420 = vmatprep.subr.mxu0 %v3881
      %6421 = vmatpush1.msra.mxu0 %v3880
      %6422 = vmatprep.subr.mxu0 %v3883
      %6423 = vmatpush1.msra.mxu0 %v3882
      %6424 = vmatprep.subr.mxu0 %v4204
      %6425 = vmatpush1.msra.mxu0 %v4203
      %6426 = vmatprep.subr.mxu0 %v4714
      %6427 = vmatpush1.msra.mxu0 %v4713
      %6428 = vmatprep.subr.mxu0 %v5366
      %6429 = vmatpush1.msra.mxu0 %v5365
      %6430 = vmatprep.subr.mxu0 %v6279
      %6431 = vmatpush1.msra.mxu0 %v6278
      %6432 = vmatprep.subr.mxu0 %v3885
      %6433 = vmatpush1.msra.mxu0 %v3884
      %6434 = vmatprep.subr.mxu0 %v3887
      %6435 = vmatpush1.msra.mxu0 %v3886
      %6436 = vmatprep.subr.mxu0 %v4206
      %6437 = vmatpush1.msra.mxu0 %v4205
      %6438 = vmatprep.subr.mxu0 %v4716
      %6439 = vmatpush1.msra.mxu0 %v4715
      %6440 = vmatprep.subr.mxu0 %v5368
      %6441 = vmatpush1.msra.mxu0 %v5367
      %6442 = vmatprep.subr.mxu0 %v6281
      %6443 = vmatpush1.msra.mxu0 %v6280
      %6444 = vmatprep.subr.mxu0 %v3889
      %6445 = vmatpush1.msra.mxu0 %v3888
      %6446 = vmatprep.subr.mxu0 %v3891
      %6447 = vmatpush1.msra.mxu0 %v3890
      %6448 = vmatprep.subr.mxu0 %v4208
      %6449 = vmatpush1.msra.mxu0 %v4207
      %6450 = vmatprep.subr.mxu0 %v4718
      %6451 = vmatpush1.msra.mxu0 %v4717
      %6452 = vmatprep.subr.mxu0 %v5370
      %6453 = vmatpush1.msra.mxu0 %v5369
      %6454 = vmatprep.subr.mxu0 %v6283
      %6455 = vmatpush1.msra.mxu0 %v6282
      %6456 = vmatprep.subr.mxu0 %v3893
      %6457 = vmatpush1.msra.mxu0 %v3892
      %6458 = vmatprep.subr.mxu0 %v3895
      %6459 = vmatpush1.msra.mxu0 %v3894
      %6460 = vmatprep.subr.mxu0 %v4210
      %6461 = vmatpush1.msra.mxu0 %v4209
      %6462 = vmatprep.subr.mxu0 %v4720
      %6463 = vmatpush1.msra.mxu0 %v4719
      %6464 = vmatprep.subr.mxu0 %v5372
      %6465 = vmatpush1.msra.mxu0 %v5371
      %6466 = vmatprep.subr.mxu0 %v6285
      %6467 = vmatpush1.msra.mxu0 %v6284
      %6468 = vmatprep.subr.mxu0 %v6287
      %6469 = vmatpush1.msra.mxu0 %v6286
      %6470 = vmatprep.subr.mxu0 %v6289
      %6471 = vmatpush1.msra.mxu0 %v6288
      %6472 = vmatprep.subr.mxu0 %v6291
      %6473 = vmatpush1.msra.mxu0 %v6290
      %6474 = vmatprep.subr.mxu0 %v6293
      %6475 = vmatpush1.msra.mxu0 %v6292
      %6476 = vmatprep.subr.mxu0 %v6295
      %6477 = vmatpush1.msra.mxu0 %v6294
      %6478 = vmatprep.subr.mxu0 %v6297
      %6479 = vmatpush1.msra.mxu0 %v6296
      %6480 = vmatprep.subr.mxu0 %v6299
      %6481 = vmatpush1.msra.mxu0 %v6298
      %6482 = vmatprep.subr.mxu0 %v6301
      %6483 = vmatpush1.msra.mxu0 %v6300
      %6484 = vmatprep.mubr.f32.mxu0 %v6051
      %6485 = vmatmul.mubr.f32.gmra.mrb[0].mxu0 %v6050
      %v6486 = vpop.f32.mrb[0].mxu0
      %v6487 = vadd.f32 %v6064, %v6486
      %v6488 = vpop.f32.mrb[0].mxu0
      %v6489 = vadd.f32 %v6064, %v6488
      %6490 = vmatprep.mubr.f32.mxu0 %v6055
      %6491 = vmatmul.mubr.f32.gmra.mrb[0].mxu0 %v6054
      %v6492 = vpop.f32.mrb[0].mxu0
      %v6493 = vadd.f32 %v6069, %v6492
      %v6494 = vpop.f32.mrb[0].mxu0
      %v6495 = vadd.f32 %v6069, %v6494
      %6496 = vdwg.mxu0
      %6497 = vmatprep.subr.mxu0 %v6303
      %6498 = vmatpush1.msra.mxu0 %v6302
      %6499 = vmatprep.subr.mxu0 %v6305
      %6500 = vmatpush1.msra.mxu0 %v6304
      %6501 = vmatprep.subr.mxu0 %v6307
      %6502 = vmatpush1.msra.mxu0 %v6306
      %6503 = vmatprep.subr.mxu0 %v6309
      %6504 = vmatpush1.msra.mxu0 %v6308
      %6505 = vmatprep.subr.mxu0 %v6311
      %6506 = vmatpush1.msra.mxu0 %v6310
      %6507 = vmatprep.subr.mxu0 %v6313
      %6508 = vmatpush1.msra.mxu0 %v6312
      %6509 = vmatprep.subr.mxu0 %v6315
      %6510 = vmatpush1.msra.mxu0 %v6314
      %6511 = vmatprep.subr.mxu0 %v6317
      %6512 = vmatpush1.msra.mxu0 %v6316
      %6513 = vmatprep.subr.mxu0 %v6319
      %6514 = vmatpush1.msra.mxu0 %v6318
      %6515 = vmatprep.subr.mxu0 %v6321
      %6516 = vmatpush1.msra.mxu0 %v6320
      %6517 = vmatprep.subr.mxu0 %v6323
      %6518 = vmatpush1.msra.mxu0 %v6322
      %6519 = vmatprep.subr.mxu0 %v6325
      %6520 = vmatpush1.msra.mxu0 %v6324
      %6521 = vmatprep.subr.mxu0 %v6327
      %6522 = vmatpush1.msra.mxu0 %v6326
      %6523 = vmatprep.subr.mxu0 %v6329
      %6524 = vmatpush1.msra.mxu0 %v6328
      %6525 = vmatprep.subr.mxu0 %v6331
      %6526 = vmatpush1.msra.mxu0 %v6330
      %6527 = vmatprep.subr.mxu0 %v6333
      %6528 = vmatpush1.msra.mxu0 %v6332
      %6529 = vmatprep.subr.mxu0 %v6335
      %6530 = vmatpush1.msra.mxu0 %v6334
      %6531 = vmatprep.subr.mxu0 %v6337
      %6532 = vmatpush1.msra.mxu0 %v6336
      %6533 = vmatprep.subr.mxu0 %v6339
      %6534 = vmatpush1.msra.mxu0 %v6338
      %6535 = vmatprep.subr.mxu0 %v6341
      %6536 = vmatpush1.msra.mxu0 %v6340
      %6537 = vmatprep.subr.mxu0 %v6343
      %6538 = vmatpush1.msra.mxu0 %v6342
      %6539 = vmatprep.subr.mxu0 %v6345
      %6540 = vmatpush1.msra.mxu0 %v6344
      %6541 = vmatprep.subr.mxu0 0.0
      %6542 = vmatpush1.msra.mxu0 0.0
      %6543 = vmatprep.subr.mxu0 0.0
      %6544 = vmatpush1.msra.mxu0 0.0
      %6545 = vmatprep.subr.mxu0 0.0
      %6546 = vmatpush1.msra.mxu0 0.0
      %6547 = vmatprep.subr.mxu0 0.0
      %6548 = vmatpush1.msra.mxu0 0.0
      %6549 = vmatprep.subr.mxu0 0.0
      %6550 = vmatpush1.msra.mxu0 0.0
      %6551 = vmatprep.subr.mxu0 0.0
      %6552 = vmatpush1.msra.mxu0 0.0
      %6553 = vmatprep.subr.mxu0 0.0
      %6554 = vmatpush1.msra.mxu0 0.0
      %6555 = vmatprep.subr.mxu0 0.0
      %6556 = vmatpush1.msra.mxu0 0.0
      %6557 = vmatprep.subr.mxu0 0.0
      %6558 = vmatpush1.msra.mxu0 0.0
      %6559 = vmatprep.subr.mxu0 0.0
      %6560 = vmatpush1.msra.mxu0 0.0
      %6561 = vmatprep.mubr.f32.mxu0 %v6415
      %6562 = vmatmul.mubr.f32.gmra.mrb[0].mxu0 %v6052
      %v6563 = vpop.f32.mrb[0].mxu0
      %v6564 = vadd.f32 %v6487, %v6563
      %v6565 = vpop.f32.mrb[0].mxu0
      %v6566 = vadd.f32 %v6489, %v6565
      %6567 = vmatprep.mubr.f32.mxu0 %v6418
      %6568 = vmatmul.mubr.f32.gmra.mrb[0].mxu0 %v6056
      %v6569 = vpop.f32.mrb[0].mxu0
      %v6570 = vadd.f32 %v6493, %v6569
      %v6571 = vpop.f32.mrb[0].mxu0
      %v6572 = vadd.f32 %v6495, %v6571
      %6573 = vdwg.mxu0
      %v6574 = vmul.f32 %v6564, 0.2
      %v6575 = vmul.f32 %v6566, 0.2
      %v6576 = vmul.f32 %v6570, 0.2
      %v6577 = vmul.f32 %v6572, 0.2
      %v6578 = vadd.f32 %v6574, %v3544
      %v6579 = vadd.f32 %v6575, %v3545
      %v6580 = vadd.f32 %v6576, %v3546
      %v6581 = vadd.f32 %v6577, %v3547
      %6582 = vst [vmem:[#allocation2 + $0x8] sm:$0xff] %v6578
      %6583 = vst [vmem:[#allocation2 + $0x10] sm:$0xff] %v6579
      %6584 = vst [vmem:[#allocation2 + $0x28] sm:$0xff] %v6580
      %6585 = vst [vmem:[#allocation2 + $0x30] sm:$0xff] %v6581
      %v6586 = vld [vmem:[#allocation2] sm:$0xff]
      %v6587 = vld [vmem:[#allocation2 + $0x8] sm:$0xff]
      %v6588 = vld [vmem:[#allocation2 + $0x10] sm:$0xff]
      %v6589 = vld [vmem:[#allocation2 + $0x20] sm:$0xff]
      %v6590 = vld [vmem:[#allocation2 + $0x28] sm:$0xff]
      %v6591 = vld [vmem:[#allocation2 + $0x30] sm:$0xff]
      %v6592 = vmul.f32 %v6586, %v468
      %v6593 = vmul.f32 %v6587, %v472
      %v6594 = vmul.f32 %v6588, %v470
      %v6595 = vmul.f32 %v6589, %v468
      %v6596 = vmul.f32 %v6590, %v472
      %v6597 = vmul.f32 %v6591, %v470
      %v6598 = vmul.f32 %v6586, %v485
      %v6599 = vmul.f32 %v6587, %v489
      %v6600 = vmul.f32 %v6588, %v487
      %v6601 = vmul.f32 %v6589, %v485
      %v6602 = vmul.f32 %v6590, %v489
      %v6603 = vmul.f32 %v6591, %v487
      %v6604 = vmul.f32 %v6586, %v500
      %v6605 = vmul.f32 %v6587, %v504
      %v6606 = vmul.f32 %v6588, %v502
      %v6607 = vmul.f32 %v6589, %v500
      %v6608 = vmul.f32 %v6590, %v504
      %v6609 = vmul.f32 %v6591, %v502
      %v6610 = vld [vmem:[#allocation2 + $0x18] sm:$0xff]
      %v6611 = vld [vmem:[#allocation2 + $0x38] sm:$0xff]
      %v6612 = vmul.f32 %v6587, %v517
      %v6613 = vmul.f32 %v6588, %v521
      %v6614 = vmul.f32 %v6610, %v519
      %v6615 = vmul.f32 %v6590, %v517
      %v6616 = vmul.f32 %v6591, %v521
      %v6617 = vmul.f32 %v6611, %v519
      %v6618 = vmul.f32 %v6587, %v532
      %v6619 = vmul.f32 %v6588, %v536
      %v6620 = vmul.f32 %v6610, %v534
      %v6621 = vmul.f32 %v6590, %v532
      %v6622 = vmul.f32 %v6591, %v536
      %v6623 = vmul.f32 %v6611, %v534
      %v6624 = vmul.f32 %v6587, %v547
      %v6625 = vmul.f32 %v6588, %v550
      %v6626 = vmul.f32 %v6610, %v549
      %v6627 = vmul.f32 %v6590, %v547
      %v6628 = vmul.f32 %v6591, %v550
      %v6629 = vmul.f32 %v6611, %v549
      %6636 = vrot.lane.b32.xlu0 %v6586, 127
      %v6637 = vpop.permute.xlu0 %6636
      %6638 = vrot.lane.b32.xlu0 %v6587, 127
      %v6639 = vpop.permute.xlu0 %6638
      %6640 = vrot.lane.b32.xlu0 %v6588, 127
      %v6641 = vpop.permute.xlu0 %6640
      %6642 = vrot.lane.b32.xlu0 %v6589, 127
      %v6643 = vpop.permute.xlu0 %6642
      %6644 = vrot.lane.b32.xlu0 %v6590, 127
      %v6645 = vpop.permute.xlu0 %6644
      %6646 = vrot.lane.b32.xlu0 %v6591, 127
      %v6647 = vpop.permute.xlu0 %6646
      %v6648 = vsel %vm503, %v6637, %v6639
      %v6649 = vsel %vm503, %v6639, %v6641
      %v6650 = vsel %vm503, %v6643, %v6645
      %v6651 = vsel %vm503, %v6645, %v6647
      %6658 = vrot.lane.b32.xlu0 %v6598, 126
      %v6659 = vpop.permute.xlu0 %6658
      %6660 = vrot.lane.b32.xlu0 %v6599, 126
      %v6661 = vpop.permute.xlu0 %6660
      %6662 = vrot.lane.b32.xlu0 %v6600, 126
      %v6663 = vpop.permute.xlu0 %6662
      %6664 = vrot.lane.b32.xlu0 %v6601, 126
      %v6665 = vpop.permute.xlu0 %6664
      %6666 = vrot.lane.b32.xlu0 %v6602, 126
      %v6667 = vpop.permute.xlu0 %6666
      %6668 = vrot.lane.b32.xlu0 %v6603, 126
      %v6669 = vpop.permute.xlu0 %6668
      %v6670 = vsel %vm600, %v6659, %v6661
      %v6671 = vsel %vm600, %v6661, %v6663
      %v6672 = vsel %vm600, %v6665, %v6667
      %v6673 = vsel %vm600, %v6667, %v6669
      %6680 = vrot.lane.b32.xlu0 %v6604, 112
      %v6681 = vpop.permute.xlu0 %6680
      %6682 = vrot.lane.b32.xlu0 %v6605, 112
      %v6683 = vpop.permute.xlu0 %6682
      %6684 = vrot.lane.b32.xlu0 %v6606, 112
      %v6685 = vpop.permute.xlu0 %6684
      %6686 = vrot.lane.b32.xlu0 %v6607, 112
      %v6687 = vpop.permute.xlu0 %6686
      %6688 = vrot.lane.b32.xlu0 %v6608, 112
      %v6689 = vpop.permute.xlu0 %6688
      %6690 = vrot.lane.b32.xlu0 %v6609, 112
      %v6691 = vpop.permute.xlu0 %6690
      %v6692 = vsel %vm623, %v6681, %v6683
      %v6693 = vsel %vm623, %v6683, %v6685
      %v6694 = vsel %vm623, %v6687, %v6689
      %v6695 = vsel %vm623, %v6689, %v6691
      %6696 = vrot.lane.b32.xlu0 %v6587, 111
      %v6697 = vpop.permute.xlu0 %6696
      %6698 = vrot.lane.b32.xlu0 %v6588, 111
      %v6699 = vpop.permute.xlu0 %6698
      %6700 = vrot.lane.b32.xlu0 %v6590, 111
      %v6701 = vpop.permute.xlu0 %6700
      %6702 = vrot.lane.b32.xlu0 %v6591, 111
      %v6703 = vpop.permute.xlu0 %6702
      %v6704 = vsel %vm471, %v6697, %v6699
      %v6705 = vsel %vm471, %v6701, %v6703
      %6712 = vrot.lane.b32.xlu0 %v6612, 110
      %v6713 = vpop.permute.xlu0 %6712
      %6714 = vrot.lane.b32.xlu0 %v6613, 110
      %v6715 = vpop.permute.xlu0 %6714
      %6716 = vrot.lane.b32.xlu0 %v6614, 110
      %v6717 = vpop.permute.xlu0 %6716
      %6718 = vrot.lane.b32.xlu0 %v6615, 110
      %v6719 = vpop.permute.xlu0 %6718
      %6720 = vrot.lane.b32.xlu0 %v6616, 110
      %v6721 = vpop.permute.xlu0 %6720
      %6722 = vrot.lane.b32.xlu0 %v6617, 110
      %v6723 = vpop.permute.xlu0 %6722
      %v6724 = vsel %vm656, %v6713, %v6715
      %v6725 = vsel %vm656, %v6715, %v6717
      %v6726 = vsel %vm656, %v6719, %v6721
      %v6727 = vsel %vm656, %v6721, %v6723
      %6734 = vrot.lane.b32.xlu0 %v6618, 96
      %v6735 = vpop.permute.xlu0 %6734
      %6736 = vrot.lane.b32.xlu0 %v6619, 96
      %v6737 = vpop.permute.xlu0 %6736
      %6738 = vrot.lane.b32.xlu0 %v6620, 96
      %v6739 = vpop.permute.xlu0 %6738
      %6740 = vrot.lane.b32.xlu0 %v6621, 96
      %v6741 = vpop.permute.xlu0 %6740
      %6742 = vrot.lane.b32.xlu0 %v6622, 96
      %v6743 = vpop.permute.xlu0 %6742
      %6744 = vrot.lane.b32.xlu0 %v6623, 96
      %v6745 = vpop.permute.xlu0 %6744
      %v6746 = vsel %vm679, %v6735, %v6737
      %v6747 = vsel %vm679, %v6737, %v6739
      %v6748 = vsel %vm679, %v6741, %v6743
      %v6749 = vsel %vm679, %v6743, %v6745
      %6752 = vrot.lane.b32.xlu0 %v6587, 95
      %v6753 = vpop.permute.xlu0 %6752
      %6754 = vrot.lane.b32.xlu0 %v6588, 95
      %v6755 = vpop.permute.xlu0 %6754
      %6756 = vrot.lane.b32.xlu0 %v6610, 95
      %v6757 = vpop.permute.xlu0 %6756
      %6758 = vrot.lane.b32.xlu0 %v6590, 95
      %v6759 = vpop.permute.xlu0 %6758
      %6760 = vrot.lane.b32.xlu0 %v6591, 95
      %v6761 = vpop.permute.xlu0 %6760
      %6762 = vrot.lane.b32.xlu0 %v6611, 95
      %v6763 = vpop.permute.xlu0 %6762
      %v6764 = vsel %vm698, %v6753, %v6755
      %v6765 = vsel %vm698, %v6755, %v6757
      %v6766 = vsel %vm698, %v6759, %v6761
      %v6767 = vsel %vm698, %v6761, %v6763
      %6774 = vrot.lane.b32.xlu0 %v6624, 94
      %v6775 = vpop.permute.xlu0 %6774
      %6776 = vrot.lane.b32.xlu0 %v6625, 94
      %v6777 = vpop.permute.xlu0 %6776
      %6778 = vrot.lane.b32.xlu0 %v6626, 94
      %v6779 = vpop.permute.xlu0 %6778
      %6780 = vrot.lane.b32.xlu0 %v6627, 94
      %v6781 = vpop.permute.xlu0 %6780
      %6782 = vrot.lane.b32.xlu0 %v6628, 94
      %v6783 = vpop.permute.xlu0 %6782
      %6784 = vrot.lane.b32.xlu0 %v6629, 94
      %v6785 = vpop.permute.xlu0 %6784
      %v6786 = vsel %vm721, %v6775, %v6777
      %v6787 = vsel %vm721, %v6777, %v6779
      %v6788 = vsel %vm721, %v6781, %v6783
      %v6789 = vsel %vm721, %v6783, %v6785
      %s6790 = scalar_lea.vmem %s1, 32
      %v6791 = vld [vmem:[%s6790] sm:$0xff]
      %v6792 = vld [vmem:[%s6790 + $0x8] sm:$0xff]
      %s6793 = scalar_lea.vmem %s6, 16
      %v6794 = vld [vmem:[%s6793] sm:$0xff]
      %6796 = vset.pattern.permute.xlu0 0
      %6797 = vperm.xlu0 %6796, %v6794
      %v6798 = vpop.permute.xlu0 %6797
      %6806 = vrot.lane.b32.xlu0 %v6592, 17
      %v6807 = vpop.permute.xlu0 %6806
      %6808 = vrot.lane.b32.xlu0 %v6593, 17
      %v6809 = vpop.permute.xlu0 %6808
      %6810 = vrot.lane.b32.xlu0 %v6594, 17
      %v6811 = vpop.permute.xlu0 %6810
      %6812 = vrot.lane.b32.xlu0 %v6595, 17
      %v6813 = vpop.permute.xlu0 %6812
      %6814 = vrot.lane.b32.xlu0 %v6596, 17
      %v6815 = vpop.permute.xlu0 %6814
      %6816 = vrot.lane.b32.xlu0 %v6597, 17
      %v6817 = vpop.permute.xlu0 %6816
      %6818 = vrot.lane.b32.xlu0 %v6648, 17
      %v6819 = vpop.permute.xlu0 %6818
      %6820 = vrot.lane.b32.xlu0 %v6649, 17
      %v6821 = vpop.permute.xlu0 %6820
      %6822 = vrot.lane.b32.xlu0 %v6641, 17
      %v6823 = vpop.permute.xlu0 %6822
      %6824 = vrot.lane.b32.xlu0 %v6650, 17
      %v6825 = vpop.permute.xlu0 %6824
      %6826 = vrot.lane.b32.xlu0 %v6651, 17
      %v6827 = vpop.permute.xlu0 %6826
      %6828 = vrot.lane.b32.xlu0 %v6647, 17
      %v6829 = vpop.permute.xlu0 %6828
      %6830 = vrot.lane.b32.xlu0 %v6670, 17
      %v6831 = vpop.permute.xlu0 %6830
      %6832 = vrot.lane.b32.xlu0 %v6671, 17
      %v6833 = vpop.permute.xlu0 %6832
      %6834 = vrot.lane.b32.xlu0 %v6663, 17
      %v6835 = vpop.permute.xlu0 %6834
      %6836 = vrot.lane.b32.xlu0 %v6672, 17
      %v6837 = vpop.permute.xlu0 %6836
      %6838 = vrot.lane.b32.xlu0 %v6673, 17
      %v6839 = vpop.permute.xlu0 %6838
      %6840 = vrot.lane.b32.xlu0 %v6669, 17
      %v6841 = vpop.permute.xlu0 %6840
      %6842 = vrot.lane.b32.xlu0 %v6692, 17
      %v6843 = vpop.permute.xlu0 %6842
      %6844 = vrot.lane.b32.xlu0 %v6693, 17
      %v6845 = vpop.permute.xlu0 %6844
      %6846 = vrot.lane.b32.xlu0 %v6685, 17
      %v6847 = vpop.permute.xlu0 %6846
      %6848 = vrot.lane.b32.xlu0 %v6694, 17
      %v6849 = vpop.permute.xlu0 %6848
      %6850 = vrot.lane.b32.xlu0 %v6695, 17
      %v6851 = vpop.permute.xlu0 %6850
      %6852 = vrot.lane.b32.xlu0 %v6691, 17
      %v6853 = vpop.permute.xlu0 %6852
      %6854 = vrot.lane.b32.xlu0 %v6697, 17
      %v6855 = vpop.permute.xlu0 %6854
      %6856 = vrot.lane.b32.xlu0 %v6704, 17
      %v6857 = vpop.permute.xlu0 %6856
      %6858 = vrot.lane.b32.xlu0 %v6699, 17
      %v6859 = vpop.permute.xlu0 %6858
      %6860 = vrot.lane.b32.xlu0 %v6701, 17
      %v6861 = vpop.permute.xlu0 %6860
      %6862 = vrot.lane.b32.xlu0 %v6705, 17
      %v6863 = vpop.permute.xlu0 %6862
      %6864 = vrot.lane.b32.xlu0 %v6703, 17
      %v6865 = vpop.permute.xlu0 %6864
      %6866 = vrot.lane.b32.xlu0 %v6713, 17
      %v6867 = vpop.permute.xlu0 %6866
      %6868 = vrot.lane.b32.xlu0 %v6724, 17
      %v6869 = vpop.permute.xlu0 %6868
      %6870 = vrot.lane.b32.xlu0 %v6725, 17
      %v6871 = vpop.permute.xlu0 %6870
      %6872 = vrot.lane.b32.xlu0 %v6719, 17
      %v6873 = vpop.permute.xlu0 %6872
      %6874 = vrot.lane.b32.xlu0 %v6726, 17
      %v6875 = vpop.permute.xlu0 %6874
      %6876 = vrot.lane.b32.xlu0 %v6727, 17
      %v6877 = vpop.permute.xlu0 %6876
      %6878 = vrot.lane.b32.xlu0 %v6735, 17
      %v6879 = vpop.permute.xlu0 %6878
      %6880 = vrot.lane.b32.xlu0 %v6746, 17
      %v6881 = vpop.permute.xlu0 %6880
      %6882 = vrot.lane.b32.xlu0 %v6747, 17
      %v6883 = vpop.permute.xlu0 %6882
      %6884 = vrot.lane.b32.xlu0 %v6741, 17
      %v6885 = vpop.permute.xlu0 %6884
      %6886 = vrot.lane.b32.xlu0 %v6748, 17
      %v6887 = vpop.permute.xlu0 %6886
      %6888 = vrot.lane.b32.xlu0 %v6749, 17
      %v6889 = vpop.permute.xlu0 %6888
      %6890 = vrot.lane.b32.xlu0 %v6753, 17
      %v6891 = vpop.permute.xlu0 %6890
      %6892 = vrot.lane.b32.xlu0 %v6764, 17
      %v6893 = vpop.permute.xlu0 %6892
      %6894 = vrot.lane.b32.xlu0 %v6765, 17
      %v6895 = vpop.permute.xlu0 %6894
      %6896 = vrot.lane.b32.xlu0 %v6759, 17
      %v6897 = vpop.permute.xlu0 %6896
      %6898 = vrot.lane.b32.xlu0 %v6766, 17
      %v6899 = vpop.permute.xlu0 %6898
      %6900 = vrot.lane.b32.xlu0 %v6767, 17
      %v6901 = vpop.permute.xlu0 %6900
      %6902 = vrot.lane.b32.xlu0 %v6775, 17
      %v6903 = vpop.permute.xlu0 %6902
      %6904 = vrot.lane.b32.xlu0 %v6786, 17
      %v6905 = vpop.permute.xlu0 %6904
      %6906 = vrot.lane.b32.xlu0 %v6787, 17
      %v6907 = vpop.permute.xlu0 %6906
      %6908 = vrot.lane.b32.xlu0 %v6781, 17
      %v6909 = vpop.permute.xlu0 %6908
      %6910 = vrot.lane.b32.xlu0 %v6788, 17
      %v6911 = vpop.permute.xlu0 %6910
      %6912 = vrot.lane.b32.xlu0 %v6789, 17
      %v6913 = vpop.permute.xlu0 %6912
      %v6914 = vsel %vm429, %v6807, %v6809
      %v6915 = vsel %vm429, %v6809, %v6811
      %v6916 = vsel %vm429, %v6813, %v6815
      %v6917 = vsel %vm429, %v6815, %v6817
      %v6918 = vsel %vm429, %v6819, %v6821
      %v6919 = vsel %vm429, %v6821, %v6823
      %v6920 = vsel %vm429, %v6825, %v6827
      %v6921 = vsel %vm429, %v6827, %v6829
      %v6922 = vsel %vm429, %v6831, %v6833
      %v6923 = vsel %vm429, %v6833, %v6835
      %v6924 = vsel %vm429, %v6837, %v6839
      %v6925 = vsel %vm429, %v6839, %v6841
      %v6926 = vsel %vm429, %v6843, %v6845
      %v6927 = vsel %vm429, %v6845, %v6847
      %v6928 = vsel %vm429, %v6849, %v6851
      %v6929 = vsel %vm429, %v6851, %v6853
      %v6930 = vsel %vm429, %v6855, %v6857
      %v6931 = vsel %vm429, %v6857, %v6859
      %v6932 = vsel %vm429, %v6861, %v6863
      %v6933 = vsel %vm429, %v6863, %v6865
      %v6934 = vsel %vm429, %v6867, %v6869
      %v6935 = vsel %vm429, %v6869, %v6871
      %v6936 = vsel %vm429, %v6873, %v6875
      %v6937 = vsel %vm429, %v6875, %v6877
      %v6938 = vsel %vm429, %v6879, %v6881
      %v6939 = vsel %vm429, %v6881, %v6883
      %v6940 = vsel %vm429, %v6885, %v6887
      %v6941 = vsel %vm429, %v6887, %v6889
      %v6942 = vsel %vm429, %v6891, %v6893
      %v6943 = vsel %vm429, %v6893, %v6895
      %v6944 = vsel %vm429, %v6897, %v6899
      %v6945 = vsel %vm429, %v6899, %v6901
      %v6946 = vsel %vm429, %v6903, %v6905
      %v6947 = vsel %vm429, %v6905, %v6907
      %v6948 = vsel %vm429, %v6909, %v6911
      %v6949 = vsel %vm429, %v6911, %v6913
      %v6987 = vsel %vm920, %v6792, 0
      %6989 = vmatprep.subr.mxu0 %v6915
      %6990 = vmatpush1.msra.mxu0 %v6914
      %6991 = vmatprep.subr.mxu0 %v6917
      %6992 = vmatpush1.msra.mxu0 %v6916
      %6993 = vmatprep.subr.mxu0 %v6919
      %6994 = vmatpush1.msra.mxu0 %v6918
      %6995 = vmatprep.subr.mxu0 %v6921
      %6996 = vmatpush1.msra.mxu0 %v6920
      %6997 = vmatprep.subr.mxu0 %v6923
      %6998 = vmatpush1.msra.mxu0 %v6922
      %6999 = vmatprep.subr.mxu0 %v6925
      %7000 = vmatpush1.msra.mxu0 %v6924
      %7001 = vmatprep.subr.mxu0 %v6927
      %7002 = vmatpush1.msra.mxu0 %v6926
      %7003 = vmatprep.subr.mxu0 %v6929
      %7004 = vmatpush1.msra.mxu0 %v6928
      %7005 = vmatprep.subr.mxu0 %v6931
      %7006 = vmatpush1.msra.mxu0 %v6930
      %7007 = vmatprep.subr.mxu0 %v6933
      %7008 = vmatpush1.msra.mxu0 %v6932
      %7009 = vmatprep.subr.mxu0 %v6935
      %7010 = vmatpush1.msra.mxu0 %v6934
      %7011 = vmatprep.subr.mxu0 %v6937
      %7012 = vmatpush1.msra.mxu0 %v6936
      %7013 = vmatprep.subr.mxu0 %v6939
      %7014 = vmatpush1.msra.mxu0 %v6938
      %7015 = vmatprep.subr.mxu0 %v6941
      %7016 = vmatpush1.msra.mxu0 %v6940
      %7017 = vmatprep.subr.mxu0 %v6943
      %7018 = vmatpush1.msra.mxu0 %v6942
      %7019 = vmatprep.subr.mxu0 %v6945
      %7020 = vmatpush1.msra.mxu0 %v6944
      %7021 = vmatprep.subr.mxu0 %v6947
      %7022 = vmatpush1.msra.mxu0 %v6946
      %7023 = vmatprep.subr.mxu0 %v6949
      %7024 = vmatpush1.msra.mxu0 %v6948
      %7025 = vmatprep.subr.mxu0 0.0
      %7026 = vmatpush1.msra.mxu0 0.0
      %7027 = vmatprep.subr.mxu0 0.0
      %7028 = vmatpush1.msra.mxu0 0.0
      %7029 = vmatprep.subr.mxu0 0.0
      %7030 = vmatpush1.msra.mxu0 0.0
      %7031 = vmatprep.subr.mxu0 0.0
      %7032 = vmatpush1.msra.mxu0 0.0
      %7033 = vmatprep.subr.mxu0 0.0
      %7034 = vmatpush1.msra.mxu0 0.0
      %7035 = vmatprep.subr.mxu0 0.0
      %7036 = vmatpush1.msra.mxu0 0.0
      %7037 = vmatprep.subr.mxu0 0.0
      %7038 = vmatpush1.msra.mxu0 0.0
      %7039 = vmatprep.subr.mxu0 0.0
      %7040 = vmatpush1.msra.mxu0 0.0
      %7041 = vmatprep.subr.mxu0 0.0
      %7042 = vmatpush1.msra.mxu0 0.0
      %7043 = vmatprep.subr.mxu0 0.0
      %7044 = vmatpush1.msra.mxu0 0.0
      %7045 = vmatprep.subr.mxu0 0.0
      %7046 = vmatpush1.msra.mxu0 0.0
      %7047 = vmatprep.subr.mxu0 0.0
      %7048 = vmatpush1.msra.mxu0 0.0
      %7049 = vmatprep.subr.mxu0 0.0
      %7050 = vmatpush1.msra.mxu0 0.0
      %7051 = vmatprep.subr.mxu0 0.0
      %7052 = vmatpush1.msra.mxu0 0.0
      %7053 = vmatprep.mubr.f32.mxu0 %v6987
      %7054 = vmatmul.mubr.f32.gmra.mrb[0].mxu0 %v6791
      %v7055 = vpop.f32.mrb[0].mxu0
      %v7056 = vadd.f32 %v6798, %v7055
      %v7057 = vpop.f32.mrb[0].mxu0
      %v7058 = vadd.f32 %v6798, %v7057
      %7059 = vdwg.mxu0
      %vm7060 = vcmp.ge.f32.partialorder %v7056, 0.0
      %vm7061 = vcmp.ge.f32.partialorder %v7058, 0.0
      %v7062 = vmul.f32 %v7056, 0.2
      %v7063 = vmul.f32 %v7058, 0.2
      %v7064 = vsel %vm7060, %v7056, %v7062
      %v7065 = vsel %vm7061, %v7058, %v7063
      %7066 = vst [vmem:[#allocation3 + $0x8] sm:$0xff] %v7064
      %7067 = vst [vmem:[#allocation3 + $0x10] sm:$0xff] %v7065
      %v7068 = vld [vmem:[#allocation3] sm:$0xff]
      %v7069 = vld [vmem:[#allocation3 + $0x8] sm:$0xff]
      %v7070 = vld [vmem:[#allocation3 + $0x10] sm:$0xff]
      %v7071 = vmul.f32 %v7068, %v468
      %v7072 = vmul.f32 %v7069, %v472
      %v7073 = vmul.f32 %v7070, %v470
      %v7074 = vmul.f32 %v7068, %v485
      %v7075 = vmul.f32 %v7069, %v489
      %v7076 = vmul.f32 %v7070, %v487
      %v7077 = vmul.f32 %v7068, %v500
      %v7078 = vmul.f32 %v7069, %v504
      %v7079 = vmul.f32 %v7070, %v502
      %v7080 = vld [vmem:[#allocation3 + $0x18] sm:$0xff]
      %v7081 = vmul.f32 %v7069, %v517
      %v7082 = vmul.f32 %v7070, %v521
      %v7083 = vmul.f32 %v7080, %v519
      %v7084 = vmul.f32 %v7069, %v532
      %v7085 = vmul.f32 %v7070, %v536
      %v7086 = vmul.f32 %v7080, %v534
      %v7087 = vmul.f32 %v7069, %v547
      %v7088 = vmul.f32 %v7070, %v550
      %v7089 = vmul.f32 %v7080, %v549
      %7093 = vrot.lane.b32.xlu0 %v7068, 127
      %v7094 = vpop.permute.xlu0 %7093
      %7095 = vrot.lane.b32.xlu0 %v7069, 127
      %v7096 = vpop.permute.xlu0 %7095
      %7097 = vrot.lane.b32.xlu0 %v7070, 127
      %v7098 = vpop.permute.xlu0 %7097
      %v7099 = vsel %vm503, %v7094, %v7096
      %v7100 = vsel %vm503, %v7096, %v7098
      %7104 = vrot.lane.b32.xlu0 %v7074, 126
      %v7105 = vpop.permute.xlu0 %7104
      %7106 = vrot.lane.b32.xlu0 %v7075, 126
      %v7107 = vpop.permute.xlu0 %7106
      %7108 = vrot.lane.b32.xlu0 %v7076, 126
      %v7109 = vpop.permute.xlu0 %7108
      %v7110 = vsel %vm600, %v7105, %v7107
      %v7111 = vsel %vm600, %v7107, %v7109
      %7115 = vrot.lane.b32.xlu0 %v7077, 112
      %v7116 = vpop.permute.xlu0 %7115
      %7117 = vrot.lane.b32.xlu0 %v7078, 112
      %v7118 = vpop.permute.xlu0 %7117
      %7119 = vrot.lane.b32.xlu0 %v7079, 112
      %v7120 = vpop.permute.xlu0 %7119
      %v7121 = vsel %vm623, %v7116, %v7118
      %v7122 = vsel %vm623, %v7118, %v7120
      %7123 = vrot.lane.b32.xlu0 %v7069, 111
      %v7124 = vpop.permute.xlu0 %7123
      %7125 = vrot.lane.b32.xlu0 %v7070, 111
      %v7126 = vpop.permute.xlu0 %7125
      %v7127 = vsel %vm471, %v7124, %v7126
      %7131 = vrot.lane.b32.xlu0 %v7081, 110
      %v7132 = vpop.permute.xlu0 %7131
      %7133 = vrot.lane.b32.xlu0 %v7082, 110
      %v7134 = vpop.permute.xlu0 %7133
      %7135 = vrot.lane.b32.xlu0 %v7083, 110
      %v7136 = vpop.permute.xlu0 %7135
      %v7137 = vsel %vm656, %v7132, %v7134
      %v7138 = vsel %vm656, %v7134, %v7136
      %7142 = vrot.lane.b32.xlu0 %v7084, 96
      %v7143 = vpop.permute.xlu0 %7142
      %7144 = vrot.lane.b32.xlu0 %v7085, 96
      %v7145 = vpop.permute.xlu0 %7144
      %7146 = vrot.lane.b32.xlu0 %v7086, 96
      %v7147 = vpop.permute.xlu0 %7146
      %v7148 = vsel %vm679, %v7143, %v7145
      %v7149 = vsel %vm679, %v7145, %v7147
      %7151 = vrot.lane.b32.xlu0 %v7069, 95
      %v7152 = vpop.permute.xlu0 %7151
      %7153 = vrot.lane.b32.xlu0 %v7070, 95
      %v7154 = vpop.permute.xlu0 %7153
      %7155 = vrot.lane.b32.xlu0 %v7080, 95
      %v7156 = vpop.permute.xlu0 %7155
      %v7157 = vsel %vm698, %v7152, %v7154
      %v7158 = vsel %vm698, %v7154, %v7156
      %7162 = vrot.lane.b32.xlu0 %v7087, 94
      %v7163 = vpop.permute.xlu0 %7162
      %7164 = vrot.lane.b32.xlu0 %v7088, 94
      %v7165 = vpop.permute.xlu0 %7164
      %7166 = vrot.lane.b32.xlu0 %v7089, 94
      %v7167 = vpop.permute.xlu0 %7166
      %v7168 = vsel %vm721, %v7163, %v7165
      %v7169 = vsel %vm721, %v7165, %v7167
      %s7170 = scalar_lea.vmem %s2, 32
      %v7171 = vld [vmem:[%s7170] sm:$0xff]
      %v7172 = vld [vmem:[%s7170 + $0x8] sm:$0xff]
      %s7173 = scalar_lea.vmem %s7, 16
      %v7174 = vld [vmem:[%s7173] sm:$0xff]
      %7176 = vset.pattern.permute.xlu0 0
      %7177 = vperm.xlu0 %7176, %v7174
      %v7178 = vpop.permute.xlu0 %7177
      %7183 = vrot.lane.b32.xlu0 %v7071, 17
      %v7184 = vpop.permute.xlu0 %7183
      %7185 = vrot.lane.b32.xlu0 %v7072, 17
      %v7186 = vpop.permute.xlu0 %7185
      %7187 = vrot.lane.b32.xlu0 %v7073, 17
      %v7188 = vpop.permute.xlu0 %7187
      %7189 = vrot.lane.b32.xlu0 %v7099, 17
      %v7190 = vpop.permute.xlu0 %7189
      %7191 = vrot.lane.b32.xlu0 %v7100, 17
      %v7192 = vpop.permute.xlu0 %7191
      %7193 = vrot.lane.b32.xlu0 %v7098, 17
      %v7194 = vpop.permute.xlu0 %7193
      %7195 = vrot.lane.b32.xlu0 %v7110, 17
      %v7196 = vpop.permute.xlu0 %7195
      %7197 = vrot.lane.b32.xlu0 %v7111, 17
      %v7198 = vpop.permute.xlu0 %7197
      %7199 = vrot.lane.b32.xlu0 %v7109, 17
      %v7200 = vpop.permute.xlu0 %7199
      %7201 = vrot.lane.b32.xlu0 %v7121, 17
      %v7202 = vpop.permute.xlu0 %7201
      %7203 = vrot.lane.b32.xlu0 %v7122, 17
      %v7204 = vpop.permute.xlu0 %7203
      %7205 = vrot.lane.b32.xlu0 %v7120, 17
      %v7206 = vpop.permute.xlu0 %7205
      %7207 = vrot.lane.b32.xlu0 %v7124, 17
      %v7208 = vpop.permute.xlu0 %7207
      %7209 = vrot.lane.b32.xlu0 %v7127, 17
      %v7210 = vpop.permute.xlu0 %7209
      %7211 = vrot.lane.b32.xlu0 %v7126, 17
      %v7212 = vpop.permute.xlu0 %7211
      %7213 = vrot.lane.b32.xlu0 %v7132, 17
      %v7214 = vpop.permute.xlu0 %7213
      %7215 = vrot.lane.b32.xlu0 %v7137, 17
      %v7216 = vpop.permute.xlu0 %7215
      %7217 = vrot.lane.b32.xlu0 %v7138, 17
      %v7218 = vpop.permute.xlu0 %7217
      %7219 = vrot.lane.b32.xlu0 %v7143, 17
      %v7220 = vpop.permute.xlu0 %7219
      %7221 = vrot.lane.b32.xlu0 %v7148, 17
      %v7222 = vpop.permute.xlu0 %7221
      %7223 = vrot.lane.b32.xlu0 %v7149, 17
      %v7224 = vpop.permute.xlu0 %7223
      %7225 = vrot.lane.b32.xlu0 %v7152, 17
      %v7226 = vpop.permute.xlu0 %7225
      %7227 = vrot.lane.b32.xlu0 %v7157, 17
      %v7228 = vpop.permute.xlu0 %7227
      %7229 = vrot.lane.b32.xlu0 %v7158, 17
      %v7230 = vpop.permute.xlu0 %7229
      %7231 = vrot.lane.b32.xlu0 %v7163, 17
      %v7232 = vpop.permute.xlu0 %7231
      %7233 = vrot.lane.b32.xlu0 %v7168, 17
      %v7234 = vpop.permute.xlu0 %7233
      %7235 = vrot.lane.b32.xlu0 %v7169, 17
      %v7236 = vpop.permute.xlu0 %7235
      %v7237 = vsel %vm429, %v7184, %v7186
      %v7238 = vsel %vm429, %v7186, %v7188
      %v7239 = vsel %vm429, %v7190, %v7192
      %v7240 = vsel %vm429, %v7192, %v7194
      %v7241 = vsel %vm429, %v7196, %v7198
      %v7242 = vsel %vm429, %v7198, %v7200
      %v7243 = vsel %vm429, %v7202, %v7204
      %v7244 = vsel %vm429, %v7204, %v7206
      %v7245 = vsel %vm429, %v7208, %v7210
      %v7246 = vsel %vm429, %v7210, %v7212
      %v7247 = vsel %vm429, %v7214, %v7216
      %v7248 = vsel %vm429, %v7216, %v7218
      %v7249 = vsel %vm429, %v7220, %v7222
      %v7250 = vsel %vm429, %v7222, %v7224
      %v7251 = vsel %vm429, %v7226, %v7228
      %v7252 = vsel %vm429, %v7228, %v7230
      %v7253 = vsel %vm429, %v7232, %v7234
      %v7254 = vsel %vm429, %v7234, %v7236
      %v7274 = vsel %vm1206, %v7172, 0
      %7276 = vmatprep.subr.mxu0 %v6915
      %7277 = vmatpush1.msra.mxu0 %v6914
      %7278 = vmatprep.subr.mxu0 %v6917
      %7279 = vmatpush1.msra.mxu0 %v6916
      %7280 = vmatprep.subr.mxu0 %v7238
      %7281 = vmatpush1.msra.mxu0 %v7237
      %7282 = vmatprep.subr.mxu0 %v6919
      %7283 = vmatpush1.msra.mxu0 %v6918
      %7284 = vmatprep.subr.mxu0 %v6921
      %7285 = vmatpush1.msra.mxu0 %v6920
      %7286 = vmatprep.subr.mxu0 %v7240
      %7287 = vmatpush1.msra.mxu0 %v7239
      %7288 = vmatprep.subr.mxu0 %v6923
      %7289 = vmatpush1.msra.mxu0 %v6922
      %7290 = vmatprep.subr.mxu0 %v6925
      %7291 = vmatpush1.msra.mxu0 %v6924
      %7292 = vmatprep.subr.mxu0 %v7242
      %7293 = vmatpush1.msra.mxu0 %v7241
      %7294 = vmatprep.subr.mxu0 %v6927
      %7295 = vmatpush1.msra.mxu0 %v6926
      %7296 = vmatprep.subr.mxu0 %v6929
      %7297 = vmatpush1.msra.mxu0 %v6928
      %7298 = vmatprep.subr.mxu0 %v7244
      %7299 = vmatpush1.msra.mxu0 %v7243
      %7300 = vmatprep.subr.mxu0 %v6931
      %7301 = vmatpush1.msra.mxu0 %v6930
      %7302 = vmatprep.subr.mxu0 %v6933
      %7303 = vmatpush1.msra.mxu0 %v6932
      %7304 = vmatprep.subr.mxu0 %v7246
      %7305 = vmatpush1.msra.mxu0 %v7245
      %7306 = vmatprep.subr.mxu0 %v6935
      %7307 = vmatpush1.msra.mxu0 %v6934
      %7308 = vmatprep.subr.mxu0 %v6937
      %7309 = vmatpush1.msra.mxu0 %v6936
      %7310 = vmatprep.subr.mxu0 %v7248
      %7311 = vmatpush1.msra.mxu0 %v7247
      %7312 = vmatprep.subr.mxu0 %v6939
      %7313 = vmatpush1.msra.mxu0 %v6938
      %7314 = vmatprep.subr.mxu0 %v6941
      %7315 = vmatpush1.msra.mxu0 %v6940
      %7316 = vmatprep.subr.mxu0 %v7250
      %7317 = vmatpush1.msra.mxu0 %v7249
      %7318 = vmatprep.subr.mxu0 %v6943
      %7319 = vmatpush1.msra.mxu0 %v6942
      %7320 = vmatprep.subr.mxu0 %v6945
      %7321 = vmatpush1.msra.mxu0 %v6944
      %7322 = vmatprep.subr.mxu0 %v7252
      %7323 = vmatpush1.msra.mxu0 %v7251
      %7324 = vmatprep.subr.mxu0 %v6947
      %7325 = vmatpush1.msra.mxu0 %v6946
      %7326 = vmatprep.subr.mxu0 %v6949
      %7327 = vmatpush1.msra.mxu0 %v6948
      %7328 = vmatprep.subr.mxu0 %v7254
      %7329 = vmatpush1.msra.mxu0 %v7253
      %7330 = vmatprep.subr.mxu0 0.0
      %7331 = vmatpush1.msra.mxu0 0.0
      %7332 = vmatprep.subr.mxu0 0.0
      %7333 = vmatpush1.msra.mxu0 0.0
      %7334 = vmatprep.subr.mxu0 0.0
      %7335 = vmatpush1.msra.mxu0 0.0
      %7336 = vmatprep.subr.mxu0 0.0
      %7337 = vmatpush1.msra.mxu0 0.0
      %7338 = vmatprep.subr.mxu0 0.0
      %7339 = vmatpush1.msra.mxu0 0.0
      %7340 = vmatprep.mubr.f32.mxu0 %v7274
      %7341 = vmatmul.mubr.f32.gmra.mrb[0].mxu0 %v7171
      %v7342 = vpop.f32.mrb[0].mxu0
      %v7343 = vadd.f32 %v7178, %v7342
      %v7344 = vpop.f32.mrb[0].mxu0
      %v7345 = vadd.f32 %v7178, %v7344
      %7346 = vdwg.mxu0
      %vm7347 = vcmp.ge.f32.partialorder %v7343, 0.0
      %vm7348 = vcmp.ge.f32.partialorder %v7345, 0.0
      %v7349 = vmul.f32 %v7343, 0.2
      %v7350 = vmul.f32 %v7345, 0.2
      %v7351 = vsel %vm7347, %v7343, %v7349
      %v7352 = vsel %vm7348, %v7345, %v7350
      %7353 = vst [vmem:[#allocation4 + $0x8] sm:$0xff] %v7351
      %7354 = vst [vmem:[#allocation4 + $0x10] sm:$0xff] %v7352
      %v7355 = vld [vmem:[#allocation4] sm:$0xff]
      %v7356 = vld [vmem:[#allocation4 + $0x8] sm:$0xff]
      %v7357 = vld [vmem:[#allocation4 + $0x10] sm:$0xff]
      %v7358 = vmul.f32 %v7355, %v468
      %v7359 = vmul.f32 %v7356, %v472
      %v7360 = vmul.f32 %v7357, %v470
      %v7361 = vmul.f32 %v7355, %v485
      %v7362 = vmul.f32 %v7356, %v489
      %v7363 = vmul.f32 %v7357, %v487
      %v7364 = vmul.f32 %v7355, %v500
      %v7365 = vmul.f32 %v7356, %v504
      %v7366 = vmul.f32 %v7357, %v502
      %v7367 = vld [vmem:[#allocation4 + $0x18] sm:$0xff]
      %v7368 = vmul.f32 %v7356, %v517
      %v7369 = vmul.f32 %v7357, %v521
      %v7370 = vmul.f32 %v7367, %v519
      %v7371 = vmul.f32 %v7356, %v532
      %v7372 = vmul.f32 %v7357, %v536
      %v7373 = vmul.f32 %v7367, %v534
      %v7374 = vmul.f32 %v7356, %v547
      %v7375 = vmul.f32 %v7357, %v550
      %v7376 = vmul.f32 %v7367, %v549
      %7380 = vrot.lane.b32.xlu0 %v7355, 127
      %v7381 = vpop.permute.xlu0 %7380
      %7382 = vrot.lane.b32.xlu0 %v7356, 127
      %v7383 = vpop.permute.xlu0 %7382
      %7384 = vrot.lane.b32.xlu0 %v7357, 127
      %v7385 = vpop.permute.xlu0 %7384
      %v7386 = vsel %vm503, %v7381, %v7383
      %v7387 = vsel %vm503, %v7383, %v7385
      %7391 = vrot.lane.b32.xlu0 %v7361, 126
      %v7392 = vpop.permute.xlu0 %7391
      %7393 = vrot.lane.b32.xlu0 %v7362, 126
      %v7394 = vpop.permute.xlu0 %7393
      %7395 = vrot.lane.b32.xlu0 %v7363, 126
      %v7396 = vpop.permute.xlu0 %7395
      %v7397 = vsel %vm600, %v7392, %v7394
      %v7398 = vsel %vm600, %v7394, %v7396
      %7402 = vrot.lane.b32.xlu0 %v7364, 112
      %v7403 = vpop.permute.xlu0 %7402
      %7404 = vrot.lane.b32.xlu0 %v7365, 112
      %v7405 = vpop.permute.xlu0 %7404
      %7406 = vrot.lane.b32.xlu0 %v7366, 112
      %v7407 = vpop.permute.xlu0 %7406
      %v7408 = vsel %vm623, %v7403, %v7405
      %v7409 = vsel %vm623, %v7405, %v7407
      %7410 = vrot.lane.b32.xlu0 %v7356, 111
      %v7411 = vpop.permute.xlu0 %7410
      %7412 = vrot.lane.b32.xlu0 %v7357, 111
      %v7413 = vpop.permute.xlu0 %7412
      %v7414 = vsel %vm471, %v7411, %v7413
      %7415 = vrot.lane.b32.xlu0 %v6618, 114
      %v7416 = vpop.permute.xlu0 %7415
      %7417 = vrot.lane.b32.xlu0 %v6619, 114
      %v7418 = vpop.permute.xlu0 %7417
      %7419 = vrot.lane.b32.xlu0 %v6620, 114
      %v7420 = vpop.permute.xlu0 %7419
      %7421 = vrot.lane.b32.xlu0 %v6621, 114
      %v7422 = vpop.permute.xlu0 %7421
      %7423 = vrot.lane.b32.xlu0 %v6622, 114
      %v7424 = vpop.permute.xlu0 %7423
      %7425 = vrot.lane.b32.xlu0 %v6623, 114
      %v7426 = vpop.permute.xlu0 %7425
      %v7427 = vsel %vm1361, %v7416, %v7418
      %v7428 = vsel %vm1361, %v7418, %v7420
      %v7429 = vsel %vm1361, %v7422, %v7424
      %v7430 = vsel %vm1361, %v7424, %v7426
      %7431 = vrot.lane.b32.xlu0 %v7084, 114
      %v7432 = vpop.permute.xlu0 %7431
      %7433 = vrot.lane.b32.xlu0 %v7085, 114
      %v7434 = vpop.permute.xlu0 %7433
      %7435 = vrot.lane.b32.xlu0 %v7086, 114
      %v7436 = vpop.permute.xlu0 %7435
      %v7437 = vsel %vm1361, %v7432, %v7434
      %v7438 = vsel %vm1361, %v7434, %v7436
      %7442 = vrot.lane.b32.xlu0 %v7371, 114
      %v7443 = vpop.permute.xlu0 %7442
      %7444 = vrot.lane.b32.xlu0 %v7372, 114
      %v7445 = vpop.permute.xlu0 %7444
      %7446 = vrot.lane.b32.xlu0 %v7373, 114
      %v7447 = vpop.permute.xlu0 %7446
      %v7448 = vsel %vm1361, %v7443, %v7445
      %v7449 = vsel %vm1361, %v7445, %v7447
      %7450 = vrot.lane.b32.xlu0 %v6587, 113
      %v7451 = vpop.permute.xlu0 %7450
      %7452 = vrot.lane.b32.xlu0 %v6588, 113
      %v7453 = vpop.permute.xlu0 %7452
      %7454 = vrot.lane.b32.xlu0 %v6610, 113
      %v7455 = vpop.permute.xlu0 %7454
      %7456 = vrot.lane.b32.xlu0 %v6590, 113
      %v7457 = vpop.permute.xlu0 %7456
      %7458 = vrot.lane.b32.xlu0 %v6591, 113
      %v7459 = vpop.permute.xlu0 %7458
      %7460 = vrot.lane.b32.xlu0 %v6611, 113
      %v7461 = vpop.permute.xlu0 %7460
      %v7462 = vsel %vm488, %v7451, %v7453
      %v7463 = vsel %vm488, %v7453, %v7455
      %v7464 = vsel %vm488, %v7457, %v7459
      %v7465 = vsel %vm488, %v7459, %v7461
      %7466 = vrot.lane.b32.xlu0 %v7069, 113
      %v7467 = vpop.permute.xlu0 %7466
      %7468 = vrot.lane.b32.xlu0 %v7070, 113
      %v7469 = vpop.permute.xlu0 %7468
      %7470 = vrot.lane.b32.xlu0 %v7080, 113
      %v7471 = vpop.permute.xlu0 %7470
      %v7472 = vsel %vm488, %v7467, %v7469
      %v7473 = vsel %vm488, %v7469, %v7471
      %7475 = vrot.lane.b32.xlu0 %v7356, 113
      %v7476 = vpop.permute.xlu0 %7475
      %7477 = vrot.lane.b32.xlu0 %v7357, 113
      %v7478 = vpop.permute.xlu0 %7477
      %7479 = vrot.lane.b32.xlu0 %v7367, 113
      %v7480 = vpop.permute.xlu0 %7479
      %v7481 = vsel %vm488, %v7476, %v7478
      %v7482 = vsel %vm488, %v7478, %v7480
      %7483 = vrot.lane.b32.xlu0 %v6624, 112
      %v7484 = vpop.permute.xlu0 %7483
      %7485 = vrot.lane.b32.xlu0 %v6625, 112
      %v7486 = vpop.permute.xlu0 %7485
      %7487 = vrot.lane.b32.xlu0 %v6626, 112
      %v7488 = vpop.permute.xlu0 %7487
      %7489 = vrot.lane.b32.xlu0 %v6627, 112
      %v7490 = vpop.permute.xlu0 %7489
      %7491 = vrot.lane.b32.xlu0 %v6628, 112
      %v7492 = vpop.permute.xlu0 %7491
      %7493 = vrot.lane.b32.xlu0 %v6629, 112
      %v7494 = vpop.permute.xlu0 %7493
      %v7495 = vsel %vm623, %v7484, %v7486
      %v7496 = vsel %vm623, %v7486, %v7488
      %v7497 = vsel %vm623, %v7490, %v7492
      %v7498 = vsel %vm623, %v7492, %v7494
      %7499 = vrot.lane.b32.xlu0 %v7087, 112
      %v7500 = vpop.permute.xlu0 %7499
      %7501 = vrot.lane.b32.xlu0 %v7088, 112
      %v7502 = vpop.permute.xlu0 %7501
      %7503 = vrot.lane.b32.xlu0 %v7089, 112
      %v7504 = vpop.permute.xlu0 %7503
      %v7505 = vsel %vm623, %v7500, %v7502
      %v7506 = vsel %vm623, %v7502, %v7504
      %7510 = vrot.lane.b32.xlu0 %v7374, 112
      %v7511 = vpop.permute.xlu0 %7510
      %7512 = vrot.lane.b32.xlu0 %v7375, 112
      %v7513 = vpop.permute.xlu0 %7512
      %7514 = vrot.lane.b32.xlu0 %v7376, 112
      %v7515 = vpop.permute.xlu0 %7514
      %v7516 = vsel %vm623, %v7511, %v7513
      %v7517 = vsel %vm623, %v7513, %v7515
      %7521 = vrot.lane.b32.xlu0 %v7368, 110
      %v7522 = vpop.permute.xlu0 %7521
      %7523 = vrot.lane.b32.xlu0 %v7369, 110
      %v7524 = vpop.permute.xlu0 %7523
      %7525 = vrot.lane.b32.xlu0 %v7370, 110
      %v7526 = vpop.permute.xlu0 %7525
      %7527 = vrot.lane.b32.xlu0 %v7427, 110
      %v7528 = vpop.permute.xlu0 %7527
      %7529 = vrot.lane.b32.xlu0 %v7428, 110
      %v7530 = vpop.permute.xlu0 %7529
      %7531 = vrot.lane.b32.xlu0 %v7420, 110
      %v7532 = vpop.permute.xlu0 %7531
      %7533 = vrot.lane.b32.xlu0 %v7429, 110
      %v7534 = vpop.permute.xlu0 %7533
      %7535 = vrot.lane.b32.xlu0 %v7430, 110
      %v7536 = vpop.permute.xlu0 %7535
      %7537 = vrot.lane.b32.xlu0 %v7426, 110
      %v7538 = vpop.permute.xlu0 %7537
      %7539 = vrot.lane.b32.xlu0 %v7437, 110
      %v7540 = vpop.permute.xlu0 %7539
      %7541 = vrot.lane.b32.xlu0 %v7438, 110
      %v7542 = vpop.permute.xlu0 %7541
      %7543 = vrot.lane.b32.xlu0 %v7436, 110
      %v7544 = vpop.permute.xlu0 %7543
      %7545 = vrot.lane.b32.xlu0 %v7448, 110
      %v7546 = vpop.permute.xlu0 %7545
      %7547 = vrot.lane.b32.xlu0 %v7449, 110
      %v7548 = vpop.permute.xlu0 %7547
      %7549 = vrot.lane.b32.xlu0 %v7447, 110
      %v7550 = vpop.permute.xlu0 %7549
      %7551 = vrot.lane.b32.xlu0 %v7462, 110
      %v7552 = vpop.permute.xlu0 %7551
      %7553 = vrot.lane.b32.xlu0 %v7463, 110
      %v7554 = vpop.permute.xlu0 %7553
      %7555 = vrot.lane.b32.xlu0 %v7455, 110
      %v7556 = vpop.permute.xlu0 %7555
      %7557 = vrot.lane.b32.xlu0 %v7464, 110
      %v7558 = vpop.permute.xlu0 %7557
      %7559 = vrot.lane.b32.xlu0 %v7465, 110
      %v7560 = vpop.permute.xlu0 %7559
      %7561 = vrot.lane.b32.xlu0 %v7461, 110
      %v7562 = vpop.permute.xlu0 %7561
      %7563 = vrot.lane.b32.xlu0 %v7472, 110
      %v7564 = vpop.permute.xlu0 %7563
      %7565 = vrot.lane.b32.xlu0 %v7473, 110
      %v7566 = vpop.permute.xlu0 %7565
      %7567 = vrot.lane.b32.xlu0 %v7471, 110
      %v7568 = vpop.permute.xlu0 %7567
      %7569 = vrot.lane.b32.xlu0 %v7481, 110
      %v7570 = vpop.permute.xlu0 %7569
      %7571 = vrot.lane.b32.xlu0 %v7482, 110
      %v7572 = vpop.permute.xlu0 %7571
      %7573 = vrot.lane.b32.xlu0 %v7480, 110
      %v7574 = vpop.permute.xlu0 %7573
      %7575 = vrot.lane.b32.xlu0 %v7495, 110
      %v7576 = vpop.permute.xlu0 %7575
      %7577 = vrot.lane.b32.xlu0 %v7496, 110
      %v7578 = vpop.permute.xlu0 %7577
      %7579 = vrot.lane.b32.xlu0 %v7488, 110
      %v7580 = vpop.permute.xlu0 %7579
      %7581 = vrot.lane.b32.xlu0 %v7497, 110
      %v7582 = vpop.permute.xlu0 %7581
      %7583 = vrot.lane.b32.xlu0 %v7498, 110
      %v7584 = vpop.permute.xlu0 %7583
      %7585 = vrot.lane.b32.xlu0 %v7494, 110
      %v7586 = vpop.permute.xlu0 %7585
      %7587 = vrot.lane.b32.xlu0 %v7505, 110
      %v7588 = vpop.permute.xlu0 %7587
      %7589 = vrot.lane.b32.xlu0 %v7506, 110
      %v7590 = vpop.permute.xlu0 %7589
      %7591 = vrot.lane.b32.xlu0 %v7504, 110
      %v7592 = vpop.permute.xlu0 %7591
      %7593 = vrot.lane.b32.xlu0 %v7516, 110
      %v7594 = vpop.permute.xlu0 %7593
      %7595 = vrot.lane.b32.xlu0 %v7517, 110
      %v7596 = vpop.permute.xlu0 %7595
      %7597 = vrot.lane.b32.xlu0 %v7515, 110
      %v7598 = vpop.permute.xlu0 %7597
      %v7599 = vsel %vm656, %v7522, %v7524
      %v7600 = vsel %vm656, %v7524, %v7526
      %v7601 = vsel %vm656, %v7528, %v7530
      %v7602 = vsel %vm656, %v7530, %v7532
      %v7603 = vsel %vm656, %v7534, %v7536
      %v7604 = vsel %vm656, %v7536, %v7538
      %v7605 = vsel %vm656, %v7540, %v7542
      %v7606 = vsel %vm656, %v7542, %v7544
      %v7607 = vsel %vm656, %v7546, %v7548
      %v7608 = vsel %vm656, %v7548, %v7550
      %v7609 = vsel %vm656, %v7552, %v7554
      %v7610 = vsel %vm656, %v7554, %v7556
      %v7611 = vsel %vm656, %v7558, %v7560
      %v7612 = vsel %vm656, %v7560, %v7562
      %v7613 = vsel %vm656, %v7564, %v7566
      %v7614 = vsel %vm656, %v7566, %v7568
      %v7615 = vsel %vm656, %v7570, %v7572
      %v7616 = vsel %vm656, %v7572, %v7574
      %v7617 = vsel %vm656, %v7576, %v7578
      %v7618 = vsel %vm656, %v7578, %v7580
      %v7619 = vsel %vm656, %v7582, %v7584
      %v7620 = vsel %vm656, %v7584, %v7586
      %v7621 = vsel %vm656, %v7588, %v7590
      %v7622 = vsel %vm656, %v7590, %v7592
      %v7623 = vsel %vm656, %v7594, %v7596
      %v7624 = vsel %vm656, %v7596, %v7598
      %s7625 = scalar_lea.vmem %s3, 48
      %v7626 = vld [vmem:[%s7625] sm:$0xff]
      %v7627 = vld [vmem:[%s7625 + $0x8] sm:$0xff]
      %v7628 = vld [vmem:[%s7625 + $0x10] sm:$0xff]
      %s7629 = scalar_lea.vmem %s8, 16
      %v7630 = vld [vmem:[%s7629] sm:$0xff]
      %7632 = vset.pattern.permute.xlu0 0
      %7633 = vperm.xlu0 %7632, %v7630
      %v7634 = vpop.permute.xlu0 %7633
      %7639 = vrot.lane.b32.xlu0 %v7358, 17
      %v7640 = vpop.permute.xlu0 %7639
      %7641 = vrot.lane.b32.xlu0 %v7359, 17
      %v7642 = vpop.permute.xlu0 %7641
      %7643 = vrot.lane.b32.xlu0 %v7360, 17
      %v7644 = vpop.permute.xlu0 %7643
      %7645 = vrot.lane.b32.xlu0 %v7386, 17
      %v7646 = vpop.permute.xlu0 %7645
      %7647 = vrot.lane.b32.xlu0 %v7387, 17
      %v7648 = vpop.permute.xlu0 %7647
      %7649 = vrot.lane.b32.xlu0 %v7385, 17
      %v7650 = vpop.permute.xlu0 %7649
      %7651 = vrot.lane.b32.xlu0 %v7397, 17
      %v7652 = vpop.permute.xlu0 %7651
      %7653 = vrot.lane.b32.xlu0 %v7398, 17
      %v7654 = vpop.permute.xlu0 %7653
      %7655 = vrot.lane.b32.xlu0 %v7396, 17
      %v7656 = vpop.permute.xlu0 %7655
      %7657 = vrot.lane.b32.xlu0 %v7408, 17
      %v7658 = vpop.permute.xlu0 %7657
      %7659 = vrot.lane.b32.xlu0 %v7409, 17
      %v7660 = vpop.permute.xlu0 %7659
      %7661 = vrot.lane.b32.xlu0 %v7407, 17
      %v7662 = vpop.permute.xlu0 %7661
      %7663 = vrot.lane.b32.xlu0 %v7411, 17
      %v7664 = vpop.permute.xlu0 %7663
      %7665 = vrot.lane.b32.xlu0 %v7414, 17
      %v7666 = vpop.permute.xlu0 %7665
      %7667 = vrot.lane.b32.xlu0 %v7413, 17
      %v7668 = vpop.permute.xlu0 %7667
      %7669 = vrot.lane.b32.xlu0 %v7522, 17
      %v7670 = vpop.permute.xlu0 %7669
      %7671 = vrot.lane.b32.xlu0 %v7599, 17
      %v7672 = vpop.permute.xlu0 %7671
      %7673 = vrot.lane.b32.xlu0 %v7600, 17
      %v7674 = vpop.permute.xlu0 %7673
      %7675 = vrot.lane.b32.xlu0 %v7528, 17
      %v7676 = vpop.permute.xlu0 %7675
      %7677 = vrot.lane.b32.xlu0 %v7601, 17
      %v7678 = vpop.permute.xlu0 %7677
      %7679 = vrot.lane.b32.xlu0 %v7602, 17
      %v7680 = vpop.permute.xlu0 %7679
      %7681 = vrot.lane.b32.xlu0 %v7534, 17
      %v7682 = vpop.permute.xlu0 %7681
      %7683 = vrot.lane.b32.xlu0 %v7603, 17
      %v7684 = vpop.permute.xlu0 %7683
      %7685 = vrot.lane.b32.xlu0 %v7604, 17
      %v7686 = vpop.permute.xlu0 %7685
      %7687 = vrot.lane.b32.xlu0 %v7540, 17
      %v7688 = vpop.permute.xlu0 %7687
      %7689 = vrot.lane.b32.xlu0 %v7605, 17
      %v7690 = vpop.permute.xlu0 %7689
      %7691 = vrot.lane.b32.xlu0 %v7606, 17
      %v7692 = vpop.permute.xlu0 %7691
      %7693 = vrot.lane.b32.xlu0 %v7546, 17
      %v7694 = vpop.permute.xlu0 %7693
      %7695 = vrot.lane.b32.xlu0 %v7607, 17
      %v7696 = vpop.permute.xlu0 %7695
      %7697 = vrot.lane.b32.xlu0 %v7608, 17
      %v7698 = vpop.permute.xlu0 %7697
      %7699 = vrot.lane.b32.xlu0 %v7552, 17
      %v7700 = vpop.permute.xlu0 %7699
      %7701 = vrot.lane.b32.xlu0 %v7609, 17
      %v7702 = vpop.permute.xlu0 %7701
      %7703 = vrot.lane.b32.xlu0 %v7610, 17
      %v7704 = vpop.permute.xlu0 %7703
      %7705 = vrot.lane.b32.xlu0 %v7558, 17
      %v7706 = vpop.permute.xlu0 %7705
      %7707 = vrot.lane.b32.xlu0 %v7611, 17
      %v7708 = vpop.permute.xlu0 %7707
      %7709 = vrot.lane.b32.xlu0 %v7612, 17
      %v7710 = vpop.permute.xlu0 %7709
      %7711 = vrot.lane.b32.xlu0 %v7564, 17
      %v7712 = vpop.permute.xlu0 %7711
      %7713 = vrot.lane.b32.xlu0 %v7613, 17
      %v7714 = vpop.permute.xlu0 %7713
      %7715 = vrot.lane.b32.xlu0 %v7614, 17
      %v7716 = vpop.permute.xlu0 %7715
      %7717 = vrot.lane.b32.xlu0 %v7570, 17
      %v7718 = vpop.permute.xlu0 %7717
      %7719 = vrot.lane.b32.xlu0 %v7615, 17
      %v7720 = vpop.permute.xlu0 %7719
      %7721 = vrot.lane.b32.xlu0 %v7616, 17
      %v7722 = vpop.permute.xlu0 %7721
      %7723 = vrot.lane.b32.xlu0 %v7576, 17
      %v7724 = vpop.permute.xlu0 %7723
      %7725 = vrot.lane.b32.xlu0 %v7617, 17
      %v7726 = vpop.permute.xlu0 %7725
      %7727 = vrot.lane.b32.xlu0 %v7618, 17
      %v7728 = vpop.permute.xlu0 %7727
      %7729 = vrot.lane.b32.xlu0 %v7582, 17
      %v7730 = vpop.permute.xlu0 %7729
      %7731 = vrot.lane.b32.xlu0 %v7619, 17
      %v7732 = vpop.permute.xlu0 %7731
      %7733 = vrot.lane.b32.xlu0 %v7620, 17
      %v7734 = vpop.permute.xlu0 %7733
      %7735 = vrot.lane.b32.xlu0 %v7588, 17
      %v7736 = vpop.permute.xlu0 %7735
      %7737 = vrot.lane.b32.xlu0 %v7621, 17
      %v7738 = vpop.permute.xlu0 %7737
      %7739 = vrot.lane.b32.xlu0 %v7622, 17
      %v7740 = vpop.permute.xlu0 %7739
      %7741 = vrot.lane.b32.xlu0 %v7594, 17
      %v7742 = vpop.permute.xlu0 %7741
      %7743 = vrot.lane.b32.xlu0 %v7623, 17
      %v7744 = vpop.permute.xlu0 %7743
      %7745 = vrot.lane.b32.xlu0 %v7624, 17
      %v7746 = vpop.permute.xlu0 %7745
      %v7747 = vsel %vm429, %v7640, %v7642
      %v7748 = vsel %vm429, %v7642, %v7644
      %v7749 = vsel %vm429, %v7646, %v7648
      %v7750 = vsel %vm429, %v7648, %v7650
      %v7751 = vsel %vm429, %v7652, %v7654
      %v7752 = vsel %vm429, %v7654, %v7656
      %v7753 = vsel %vm429, %v7658, %v7660
      %v7754 = vsel %vm429, %v7660, %v7662
      %v7755 = vsel %vm429, %v7664, %v7666
      %v7756 = vsel %vm429, %v7666, %v7668
      %v7757 = vsel %vm429, %v7670, %v7672
      %v7758 = vsel %vm429, %v7672, %v7674
      %v7759 = vsel %vm429, %v7676, %v7678
      %v7760 = vsel %vm429, %v7678, %v7680
      %v7761 = vsel %vm429, %v7682, %v7684
      %v7762 = vsel %vm429, %v7684, %v7686
      %v7763 = vsel %vm429, %v7688, %v7690
      %v7764 = vsel %vm429, %v7690, %v7692
      %v7765 = vsel %vm429, %v7694, %v7696
      %v7766 = vsel %vm429, %v7696, %v7698
      %v7767 = vsel %vm429, %v7700, %v7702
      %v7768 = vsel %vm429, %v7702, %v7704
      %v7769 = vsel %vm429, %v7706, %v7708
      %v7770 = vsel %vm429, %v7708, %v7710
      %v7771 = vsel %vm429, %v7712, %v7714
      %v7772 = vsel %vm429, %v7714, %v7716
      %v7773 = vsel %vm429, %v7718, %v7720
      %v7774 = vsel %vm429, %v7720, %v7722
      %v7775 = vsel %vm429, %v7724, %v7726
      %v7776 = vsel %vm429, %v7726, %v7728
      %v7777 = vsel %vm429, %v7730, %v7732
      %v7778 = vsel %vm429, %v7732, %v7734
      %v7779 = vsel %vm429, %v7736, %v7738
      %v7780 = vsel %vm429, %v7738, %v7740
      %v7781 = vsel %vm429, %v7742, %v7744
      %v7782 = vsel %vm429, %v7744, %v7746
      %v7820 = vsel %vm1752, %v7628, 0
      %7822 = vmatprep.subr.mxu0 %v6915
      %7823 = vmatpush1.msra.mxu0 %v6914
      %7824 = vmatprep.subr.mxu0 %v6917
      %7825 = vmatpush1.msra.mxu0 %v6916
      %7826 = vmatprep.subr.mxu0 %v7238
      %7827 = vmatpush1.msra.mxu0 %v7237
      %7828 = vmatprep.subr.mxu0 %v7748
      %7829 = vmatpush1.msra.mxu0 %v7747
      %7830 = vmatprep.subr.mxu0 %v6919
      %7831 = vmatpush1.msra.mxu0 %v6918
      %7832 = vmatprep.subr.mxu0 %v6921
      %7833 = vmatpush1.msra.mxu0 %v6920
      %7834 = vmatprep.subr.mxu0 %v7240
      %7835 = vmatpush1.msra.mxu0 %v7239
      %7836 = vmatprep.subr.mxu0 %v7750
      %7837 = vmatpush1.msra.mxu0 %v7749
      %7838 = vmatprep.subr.mxu0 %v6923
      %7839 = vmatpush1.msra.mxu0 %v6922
      %7840 = vmatprep.subr.mxu0 %v6925
      %7841 = vmatpush1.msra.mxu0 %v6924
      %7842 = vmatprep.subr.mxu0 %v7242
      %7843 = vmatpush1.msra.mxu0 %v7241
      %7844 = vmatprep.subr.mxu0 %v7752
      %7845 = vmatpush1.msra.mxu0 %v7751
      %7846 = vmatprep.subr.mxu0 %v6927
      %7847 = vmatpush1.msra.mxu0 %v6926
      %7848 = vmatprep.subr.mxu0 %v6929
      %7849 = vmatpush1.msra.mxu0 %v6928
      %7850 = vmatprep.subr.mxu0 %v7244
      %7851 = vmatpush1.msra.mxu0 %v7243
      %7852 = vmatprep.subr.mxu0 %v7754
      %7853 = vmatpush1.msra.mxu0 %v7753
      %7854 = vmatprep.subr.mxu0 %v6931
      %7855 = vmatpush1.msra.mxu0 %v6930
      %7856 = vmatprep.subr.mxu0 %v6933
      %7857 = vmatpush1.msra.mxu0 %v6932
      %7858 = vmatprep.subr.mxu0 %v7246
      %7859 = vmatpush1.msra.mxu0 %v7245
      %7860 = vmatprep.subr.mxu0 %v7756
      %7861 = vmatpush1.msra.mxu0 %v7755
      %7862 = vmatprep.subr.mxu0 %v6935
      %7863 = vmatpush1.msra.mxu0 %v6934
      %7864 = vmatprep.subr.mxu0 %v6937
      %7865 = vmatpush1.msra.mxu0 %v6936
      %7866 = vmatprep.subr.mxu0 %v7248
      %7867 = vmatpush1.msra.mxu0 %v7247
      %7868 = vmatprep.subr.mxu0 %v7758
      %7869 = vmatpush1.msra.mxu0 %v7757
      %7870 = vmatprep.subr.mxu0 %v7760
      %7871 = vmatpush1.msra.mxu0 %v7759
      %7872 = vmatprep.subr.mxu0 %v7762
      %7873 = vmatpush1.msra.mxu0 %v7761
      %7874 = vmatprep.subr.mxu0 %v7764
      %7875 = vmatpush1.msra.mxu0 %v7763
      %7876 = vmatprep.subr.mxu0 %v7766
      %7877 = vmatpush1.msra.mxu0 %v7765
      %7878 = vmatprep.subr.mxu0 %v7768
      %7879 = vmatpush1.msra.mxu0 %v7767
      %7880 = vmatprep.subr.mxu0 %v7770
      %7881 = vmatpush1.msra.mxu0 %v7769
      %7882 = vmatprep.subr.mxu0 %v7772
      %7883 = vmatpush1.msra.mxu0 %v7771
      %7884 = vmatprep.subr.mxu0 %v7774
      %7885 = vmatpush1.msra.mxu0 %v7773
      %7886 = vmatprep.mubr.f32.mxu0 %v7627
      %7887 = vmatmul.mubr.f32.gmra.mrb[0].mxu0 %v7626
      %v7888 = vpop.f32.mrb[0].mxu0
      %v7889 = vadd.f32 %v7634, %v7888
      %v7890 = vpop.f32.mrb[0].mxu0
      %v7891 = vadd.f32 %v7634, %v7890
      %7892 = vdwg.mxu0
      %7893 = vmatprep.subr.mxu0 %v7776
      %7894 = vmatpush1.msra.mxu0 %v7775
      %7895 = vmatprep.subr.mxu0 %v7778
      %7896 = vmatpush1.msra.mxu0 %v7777
      %7897 = vmatprep.subr.mxu0 %v7780
      %7898 = vmatpush1.msra.mxu0 %v7779
      %7899 = vmatprep.subr.mxu0 %v7782
      %7900 = vmatpush1.msra.mxu0 %v7781
      %7901 = vmatprep.subr.mxu0 0.0
      %7902 = vmatpush1.msra.mxu0 0.0
      %7903 = vmatprep.subr.mxu0 0.0
      %7904 = vmatpush1.msra.mxu0 0.0
      %7905 = vmatprep.subr.mxu0 0.0
      %7906 = vmatpush1.msra.mxu0 0.0
      %7907 = vmatprep.subr.mxu0 0.0
      %7908 = vmatpush1.msra.mxu0 0.0
      %7909 = vmatprep.subr.mxu0 0.0
      %7910 = vmatpush1.msra.mxu0 0.0
      %7911 = vmatprep.subr.mxu0 0.0
      %7912 = vmatpush1.msra.mxu0 0.0
      %7913 = vmatprep.subr.mxu0 0.0
      %7914 = vmatpush1.msra.mxu0 0.0
      %7915 = vmatprep.subr.mxu0 0.0
      %7916 = vmatpush1.msra.mxu0 0.0
      %7917 = vmatprep.subr.mxu0 0.0
      %7918 = vmatpush1.msra.mxu0 0.0
      %7919 = vmatprep.subr.mxu0 0.0
      %7920 = vmatpush1.msra.mxu0 0.0
      %7921 = vmatprep.subr.mxu0 0.0
      %7922 = vmatpush1.msra.mxu0 0.0
      %7923 = vmatprep.subr.mxu0 0.0
      %7924 = vmatpush1.msra.mxu0 0.0
      %7925 = vmatprep.subr.mxu0 0.0
      %7926 = vmatpush1.msra.mxu0 0.0
      %7927 = vmatprep.subr.mxu0 0.0
      %7928 = vmatpush1.msra.mxu0 0.0
      %7929 = vmatprep.subr.mxu0 0.0
      %7930 = vmatpush1.msra.mxu0 0.0
      %7931 = vmatprep.subr.mxu0 0.0
      %7932 = vmatpush1.msra.mxu0 0.0
      %7933 = vmatprep.subr.mxu0 0.0
      %7934 = vmatpush1.msra.mxu0 0.0
      %7935 = vmatprep.subr.mxu0 0.0
      %7936 = vmatpush1.msra.mxu0 0.0
      %7937 = vmatprep.subr.mxu0 0.0
      %7938 = vmatpush1.msra.mxu0 0.0
      %7939 = vmatprep.subr.mxu0 0.0
      %7940 = vmatpush1.msra.mxu0 0.0
      %7941 = vmatprep.subr.mxu0 0.0
      %7942 = vmatpush1.msra.mxu0 0.0
      %7943 = vmatprep.subr.mxu0 0.0
      %7944 = vmatpush1.msra.mxu0 0.0
      %7945 = vmatprep.subr.mxu0 0.0
      %7946 = vmatpush1.msra.mxu0 0.0
      %7947 = vmatprep.subr.mxu0 0.0
      %7948 = vmatpush1.msra.mxu0 0.0
      %7949 = vmatprep.subr.mxu0 0.0
      %7950 = vmatpush1.msra.mxu0 0.0
      %7951 = vmatprep.subr.mxu0 0.0
      %7952 = vmatpush1.msra.mxu0 0.0
      %7953 = vmatprep.subr.mxu0 0.0
      %7954 = vmatpush1.msra.mxu0 0.0
      %7955 = vmatprep.subr.mxu0 0.0
      %7956 = vmatpush1.msra.mxu0 0.0
      %7957 = vmatprep.mubr.f32.mxu0 0.0
      %7958 = vmatmul.mubr.f32.gmra.mrb[0].mxu0 %v7820
      %v7959 = vpop.f32.mrb[0].mxu0
      %v7960 = vadd.f32 %v7889, %v7959
      %v7961 = vpop.f32.mrb[0].mxu0
      %v7962 = vadd.f32 %v7891, %v7961
      %7963 = vdwg.mxu0
      %vm7964 = vcmp.ge.f32.partialorder %v7960, 0.0
      %vm7965 = vcmp.ge.f32.partialorder %v7962, 0.0
      %v7966 = vmul.f32 %v7960, 0.2
      %v7967 = vmul.f32 %v7962, 0.2
      %v7968 = vsel %vm7964, %v7960, %v7966
      %v7969 = vsel %vm7965, %v7962, %v7967
      %7970 = vst [vmem:[#allocation5 + $0x8] sm:$0xff] %v7968
      %7971 = vst [vmem:[#allocation5 + $0x10] sm:$0xff] %v7969
      %v7972 = vld [vmem:[#allocation5] sm:$0xff]
      %v7973 = vld [vmem:[#allocation5 + $0x8] sm:$0xff]
      %v7974 = vld [vmem:[#allocation5 + $0x10] sm:$0xff]
      %v7975 = vmul.f32 %v7972, %v468
      %v7976 = vmul.f32 %v7973, %v472
      %v7977 = vmul.f32 %v7974, %v470
      %v7978 = vmul.f32 %v7972, %v485
      %v7979 = vmul.f32 %v7973, %v489
      %v7980 = vmul.f32 %v7974, %v487
      %v7981 = vmul.f32 %v7972, %v500
      %v7982 = vmul.f32 %v7973, %v504
      %v7983 = vmul.f32 %v7974, %v502
      %v7984 = vld [vmem:[#allocation5 + $0x18] sm:$0xff]
      %v7985 = vmul.f32 %v7973, %v517
      %v7986 = vmul.f32 %v7974, %v521
      %v7987 = vmul.f32 %v7984, %v519
      %v7988 = vmul.f32 %v7973, %v532
      %v7989 = vmul.f32 %v7974, %v536
      %v7990 = vmul.f32 %v7984, %v534
      %v7991 = vmul.f32 %v7973, %v547
      %v7992 = vmul.f32 %v7974, %v550
      %v7993 = vmul.f32 %v7984, %v549
      %7997 = vrot.lane.b32.xlu0 %v7972, 127
      %v7998 = vpop.permute.xlu0 %7997
      %7999 = vrot.lane.b32.xlu0 %v7973, 127
      %v8000 = vpop.permute.xlu0 %7999
      %8001 = vrot.lane.b32.xlu0 %v7974, 127
      %v8002 = vpop.permute.xlu0 %8001
      %v8003 = vsel %vm503, %v7998, %v8000
      %v8004 = vsel %vm503, %v8000, %v8002
      %8008 = vrot.lane.b32.xlu0 %v7978, 126
      %v8009 = vpop.permute.xlu0 %8008
      %8010 = vrot.lane.b32.xlu0 %v7979, 126
      %v8011 = vpop.permute.xlu0 %8010
      %8012 = vrot.lane.b32.xlu0 %v7980, 126
      %v8013 = vpop.permute.xlu0 %8012
      %v8014 = vsel %vm600, %v8009, %v8011
      %v8015 = vsel %vm600, %v8011, %v8013
      %8019 = vrot.lane.b32.xlu0 %v7981, 112
      %v8020 = vpop.permute.xlu0 %8019
      %8021 = vrot.lane.b32.xlu0 %v7982, 112
      %v8022 = vpop.permute.xlu0 %8021
      %8023 = vrot.lane.b32.xlu0 %v7983, 112
      %v8024 = vpop.permute.xlu0 %8023
      %v8025 = vsel %vm623, %v8020, %v8022
      %v8026 = vsel %vm623, %v8022, %v8024
      %8027 = vrot.lane.b32.xlu0 %v6612, 127
      %v8028 = vpop.permute.xlu0 %8027
      %8029 = vrot.lane.b32.xlu0 %v6613, 127
      %v8030 = vpop.permute.xlu0 %8029
      %8031 = vrot.lane.b32.xlu0 %v6614, 127
      %v8032 = vpop.permute.xlu0 %8031
      %8033 = vrot.lane.b32.xlu0 %v6615, 127
      %v8034 = vpop.permute.xlu0 %8033
      %8035 = vrot.lane.b32.xlu0 %v6616, 127
      %v8036 = vpop.permute.xlu0 %8035
      %8037 = vrot.lane.b32.xlu0 %v6617, 127
      %v8038 = vpop.permute.xlu0 %8037
      %v8039 = vsel %vm503, %v8028, %v8030
      %v8040 = vsel %vm503, %v8030, %v8032
      %v8041 = vsel %vm503, %v8034, %v8036
      %v8042 = vsel %vm503, %v8036, %v8038
      %8043 = vrot.lane.b32.xlu0 %v7081, 127
      %v8044 = vpop.permute.xlu0 %8043
      %8045 = vrot.lane.b32.xlu0 %v7082, 127
      %v8046 = vpop.permute.xlu0 %8045
      %8047 = vrot.lane.b32.xlu0 %v7083, 127
      %v8048 = vpop.permute.xlu0 %8047
      %v8049 = vsel %vm503, %v8044, %v8046
      %v8050 = vsel %vm503, %v8046, %v8048
      %8051 = vrot.lane.b32.xlu0 %v7368, 127
      %v8052 = vpop.permute.xlu0 %8051
      %8053 = vrot.lane.b32.xlu0 %v7369, 127
      %v8054 = vpop.permute.xlu0 %8053
      %8055 = vrot.lane.b32.xlu0 %v7370, 127
      %v8056 = vpop.permute.xlu0 %8055
      %v8057 = vsel %vm503, %v8052, %v8054
      %v8058 = vsel %vm503, %v8054, %v8056
      %8062 = vrot.lane.b32.xlu0 %v7985, 127
      %v8063 = vpop.permute.xlu0 %8062
      %8064 = vrot.lane.b32.xlu0 %v7986, 127
      %v8065 = vpop.permute.xlu0 %8064
      %8066 = vrot.lane.b32.xlu0 %v7987, 127
      %v8067 = vpop.permute.xlu0 %8066
      %v8068 = vsel %vm503, %v8063, %v8065
      %v8069 = vsel %vm503, %v8065, %v8067
      %8070 = vrot.lane.b32.xlu0 %v6618, 113
      %v8071 = vpop.permute.xlu0 %8070
      %8072 = vrot.lane.b32.xlu0 %v6619, 113
      %v8073 = vpop.permute.xlu0 %8072
      %8074 = vrot.lane.b32.xlu0 %v6620, 113
      %v8075 = vpop.permute.xlu0 %8074
      %8076 = vrot.lane.b32.xlu0 %v6621, 113
      %v8077 = vpop.permute.xlu0 %8076
      %8078 = vrot.lane.b32.xlu0 %v6622, 113
      %v8079 = vpop.permute.xlu0 %8078
      %8080 = vrot.lane.b32.xlu0 %v6623, 113
      %v8081 = vpop.permute.xlu0 %8080
      %v8082 = vsel %vm488, %v8071, %v8073
      %v8083 = vsel %vm488, %v8073, %v8075
      %v8084 = vsel %vm488, %v8077, %v8079
      %v8085 = vsel %vm488, %v8079, %v8081
      %8086 = vrot.lane.b32.xlu0 %v7084, 113
      %v8087 = vpop.permute.xlu0 %8086
      %8088 = vrot.lane.b32.xlu0 %v7085, 113
      %v8089 = vpop.permute.xlu0 %8088
      %8090 = vrot.lane.b32.xlu0 %v7086, 113
      %v8091 = vpop.permute.xlu0 %8090
      %v8092 = vsel %vm488, %v8087, %v8089
      %v8093 = vsel %vm488, %v8089, %v8091
      %8094 = vrot.lane.b32.xlu0 %v7371, 113
      %v8095 = vpop.permute.xlu0 %8094
      %8096 = vrot.lane.b32.xlu0 %v7372, 113
      %v8097 = vpop.permute.xlu0 %8096
      %8098 = vrot.lane.b32.xlu0 %v7373, 113
      %v8099 = vpop.permute.xlu0 %8098
      %v8100 = vsel %vm488, %v8095, %v8097
      %v8101 = vsel %vm488, %v8097, %v8099
      %8105 = vrot.lane.b32.xlu0 %v7988, 113
      %v8106 = vpop.permute.xlu0 %8105
      %8107 = vrot.lane.b32.xlu0 %v7989, 113
      %v8108 = vpop.permute.xlu0 %8107
      %8109 = vrot.lane.b32.xlu0 %v7990, 113
      %v8110 = vpop.permute.xlu0 %8109
      %v8111 = vsel %vm488, %v8106, %v8108
      %v8112 = vsel %vm488, %v8108, %v8110
      %8113 = vrot.lane.b32.xlu0 %v6587, 112
      %v8114 = vpop.permute.xlu0 %8113
      %8115 = vrot.lane.b32.xlu0 %v6588, 112
      %v8116 = vpop.permute.xlu0 %8115
      %8117 = vrot.lane.b32.xlu0 %v6610, 112
      %v8118 = vpop.permute.xlu0 %8117
      %8119 = vrot.lane.b32.xlu0 %v6590, 112
      %v8120 = vpop.permute.xlu0 %8119
      %8121 = vrot.lane.b32.xlu0 %v6591, 112
      %v8122 = vpop.permute.xlu0 %8121
      %8123 = vrot.lane.b32.xlu0 %v6611, 112
      %v8124 = vpop.permute.xlu0 %8123
      %v8125 = vsel %vm623, %v8114, %v8116
      %v8126 = vsel %vm623, %v8116, %v8118
      %v8127 = vsel %vm623, %v8120, %v8122
      %v8128 = vsel %vm623, %v8122, %v8124
      %8129 = vrot.lane.b32.xlu0 %v7069, 112
      %v8130 = vpop.permute.xlu0 %8129
      %8131 = vrot.lane.b32.xlu0 %v7070, 112
      %v8132 = vpop.permute.xlu0 %8131
      %8133 = vrot.lane.b32.xlu0 %v7080, 112
      %v8134 = vpop.permute.xlu0 %8133
      %v8135 = vsel %vm623, %v8130, %v8132
      %v8136 = vsel %vm623, %v8132, %v8134
      %8137 = vrot.lane.b32.xlu0 %v7356, 112
      %v8138 = vpop.permute.xlu0 %8137
      %8139 = vrot.lane.b32.xlu0 %v7357, 112
      %v8140 = vpop.permute.xlu0 %8139
      %8141 = vrot.lane.b32.xlu0 %v7367, 112
      %v8142 = vpop.permute.xlu0 %8141
      %v8143 = vsel %vm623, %v8138, %v8140
      %v8144 = vsel %vm623, %v8140, %v8142
      %8146 = vrot.lane.b32.xlu0 %v7973, 112
      %v8147 = vpop.permute.xlu0 %8146
      %8148 = vrot.lane.b32.xlu0 %v7974, 112
      %v8149 = vpop.permute.xlu0 %8148
      %8150 = vrot.lane.b32.xlu0 %v7984, 112
      %v8151 = vpop.permute.xlu0 %8150
      %v8152 = vsel %vm623, %v8147, %v8149
      %v8153 = vsel %vm623, %v8149, %v8151
      %8154 = vrot.lane.b32.xlu0 %v7973, 111
      %v8155 = vpop.permute.xlu0 %8154
      %8156 = vrot.lane.b32.xlu0 %v7974, 111
      %v8157 = vpop.permute.xlu0 %8156
      %8158 = vrot.lane.b32.xlu0 %v8039, 111
      %v8159 = vpop.permute.xlu0 %8158
      %8160 = vrot.lane.b32.xlu0 %v8040, 111
      %v8161 = vpop.permute.xlu0 %8160
      %8162 = vrot.lane.b32.xlu0 %v8041, 111
      %v8163 = vpop.permute.xlu0 %8162
      %8164 = vrot.lane.b32.xlu0 %v8042, 111
      %v8165 = vpop.permute.xlu0 %8164
      %8166 = vrot.lane.b32.xlu0 %v8049, 111
      %v8167 = vpop.permute.xlu0 %8166
      %8168 = vrot.lane.b32.xlu0 %v8050, 111
      %v8169 = vpop.permute.xlu0 %8168
      %8170 = vrot.lane.b32.xlu0 %v8057, 111
      %v8171 = vpop.permute.xlu0 %8170
      %8172 = vrot.lane.b32.xlu0 %v8058, 111
      %v8173 = vpop.permute.xlu0 %8172
      %8174 = vrot.lane.b32.xlu0 %v8068, 111
      %v8175 = vpop.permute.xlu0 %8174
      %8176 = vrot.lane.b32.xlu0 %v8069, 111
      %v8177 = vpop.permute.xlu0 %8176
      %8178 = vrot.lane.b32.xlu0 %v8082, 111
      %v8179 = vpop.permute.xlu0 %8178
      %8180 = vrot.lane.b32.xlu0 %v8083, 111
      %v8181 = vpop.permute.xlu0 %8180
      %8182 = vrot.lane.b32.xlu0 %v8084, 111
      %v8183 = vpop.permute.xlu0 %8182
      %8184 = vrot.lane.b32.xlu0 %v8085, 111
      %v8185 = vpop.permute.xlu0 %8184
      %8186 = vrot.lane.b32.xlu0 %v8092, 111
      %v8187 = vpop.permute.xlu0 %8186
      %8188 = vrot.lane.b32.xlu0 %v8093, 111
      %v8189 = vpop.permute.xlu0 %8188
      %8190 = vrot.lane.b32.xlu0 %v8100, 111
      %v8191 = vpop.permute.xlu0 %8190
      %8192 = vrot.lane.b32.xlu0 %v8101, 111
      %v8193 = vpop.permute.xlu0 %8192
      %8194 = vrot.lane.b32.xlu0 %v8111, 111
      %v8195 = vpop.permute.xlu0 %8194
      %8196 = vrot.lane.b32.xlu0 %v8112, 111
      %v8197 = vpop.permute.xlu0 %8196
      %8198 = vrot.lane.b32.xlu0 %v8125, 111
      %v8199 = vpop.permute.xlu0 %8198
      %8200 = vrot.lane.b32.xlu0 %v8126, 111
      %v8201 = vpop.permute.xlu0 %8200
      %8202 = vrot.lane.b32.xlu0 %v8127, 111
      %v8203 = vpop.permute.xlu0 %8202
      %8204 = vrot.lane.b32.xlu0 %v8128, 111
      %v8205 = vpop.permute.xlu0 %8204
      %8206 = vrot.lane.b32.xlu0 %v8135, 111
      %v8207 = vpop.permute.xlu0 %8206
      %8208 = vrot.lane.b32.xlu0 %v8136, 111
      %v8209 = vpop.permute.xlu0 %8208
      %8210 = vrot.lane.b32.xlu0 %v8143, 111
      %v8211 = vpop.permute.xlu0 %8210
      %8212 = vrot.lane.b32.xlu0 %v8144, 111
      %v8213 = vpop.permute.xlu0 %8212
      %8214 = vrot.lane.b32.xlu0 %v8152, 111
      %v8215 = vpop.permute.xlu0 %8214
      %8216 = vrot.lane.b32.xlu0 %v8153, 111
      %v8217 = vpop.permute.xlu0 %8216
      %v8218 = vsel %vm471, %v8155, %v8157
      %v8219 = vsel %vm471, %v8159, %v8161
      %v8220 = vsel %vm471, %v8163, %v8165
      %v8221 = vsel %vm471, %v8167, %v8169
      %v8222 = vsel %vm471, %v8171, %v8173
      %v8223 = vsel %vm471, %v8175, %v8177
      %v8224 = vsel %vm471, %v8179, %v8181
      %v8225 = vsel %vm471, %v8183, %v8185
      %v8226 = vsel %vm471, %v8187, %v8189
      %v8227 = vsel %vm471, %v8191, %v8193
      %v8228 = vsel %vm471, %v8195, %v8197
      %v8229 = vsel %vm471, %v8199, %v8201
      %v8230 = vsel %vm471, %v8203, %v8205
      %v8231 = vsel %vm471, %v8207, %v8209
      %v8232 = vsel %vm471, %v8211, %v8213
      %v8233 = vsel %vm471, %v8215, %v8217
      %8237 = vrot.lane.b32.xlu0 %v7374, 94
      %v8238 = vpop.permute.xlu0 %8237
      %8239 = vrot.lane.b32.xlu0 %v7375, 94
      %v8240 = vpop.permute.xlu0 %8239
      %8241 = vrot.lane.b32.xlu0 %v7376, 94
      %v8242 = vpop.permute.xlu0 %8241
      %8243 = vrot.lane.b32.xlu0 %v7991, 94
      %v8244 = vpop.permute.xlu0 %8243
      %8245 = vrot.lane.b32.xlu0 %v7992, 94
      %v8246 = vpop.permute.xlu0 %8245
      %8247 = vrot.lane.b32.xlu0 %v7993, 94
      %v8248 = vpop.permute.xlu0 %8247
      %v8249 = vsel %vm721, %v8238, %v8240
      %v8250 = vsel %vm721, %v8240, %v8242
      %v8251 = vsel %vm721, %v8244, %v8246
      %v8252 = vsel %vm721, %v8246, %v8248
      %s8253 = scalar_lea.vmem %s4, 48
      %v8254 = vld [vmem:[%s8253] sm:$0xff]
      %v8255 = vld [vmem:[%s8253 + $0x8] sm:$0xff]
      %v8256 = vld [vmem:[%s8253 + $0x10] sm:$0xff]
      %s8257 = scalar_lea.vmem %s9, 16
      %v8258 = vld [vmem:[%s8257] sm:$0xff]
      %8260 = vset.pattern.permute.xlu0 0
      %8261 = vperm.xlu0 %8260, %v8258
      %v8262 = vpop.permute.xlu0 %8261
      %8267 = vrot.lane.b32.xlu0 %v7975, 17
      %v8268 = vpop.permute.xlu0 %8267
      %8269 = vrot.lane.b32.xlu0 %v7976, 17
      %v8270 = vpop.permute.xlu0 %8269
      %8271 = vrot.lane.b32.xlu0 %v7977, 17
      %v8272 = vpop.permute.xlu0 %8271
      %8273 = vrot.lane.b32.xlu0 %v8003, 17
      %v8274 = vpop.permute.xlu0 %8273
      %8275 = vrot.lane.b32.xlu0 %v8004, 17
      %v8276 = vpop.permute.xlu0 %8275
      %8277 = vrot.lane.b32.xlu0 %v8002, 17
      %v8278 = vpop.permute.xlu0 %8277
      %8279 = vrot.lane.b32.xlu0 %v8014, 17
      %v8280 = vpop.permute.xlu0 %8279
      %8281 = vrot.lane.b32.xlu0 %v8015, 17
      %v8282 = vpop.permute.xlu0 %8281
      %8283 = vrot.lane.b32.xlu0 %v8013, 17
      %v8284 = vpop.permute.xlu0 %8283
      %8285 = vrot.lane.b32.xlu0 %v8025, 17
      %v8286 = vpop.permute.xlu0 %8285
      %8287 = vrot.lane.b32.xlu0 %v8026, 17
      %v8288 = vpop.permute.xlu0 %8287
      %8289 = vrot.lane.b32.xlu0 %v8024, 17
      %v8290 = vpop.permute.xlu0 %8289
      %8291 = vrot.lane.b32.xlu0 %v8155, 17
      %v8292 = vpop.permute.xlu0 %8291
      %8293 = vrot.lane.b32.xlu0 %v8218, 17
      %v8294 = vpop.permute.xlu0 %8293
      %8295 = vrot.lane.b32.xlu0 %v8157, 17
      %v8296 = vpop.permute.xlu0 %8295
      %8297 = vrot.lane.b32.xlu0 %v8159, 17
      %v8298 = vpop.permute.xlu0 %8297
      %8299 = vrot.lane.b32.xlu0 %v8219, 17
      %v8300 = vpop.permute.xlu0 %8299
      %8301 = vrot.lane.b32.xlu0 %v8161, 17
      %v8302 = vpop.permute.xlu0 %8301
      %8303 = vrot.lane.b32.xlu0 %v8163, 17
      %v8304 = vpop.permute.xlu0 %8303
      %8305 = vrot.lane.b32.xlu0 %v8220, 17
      %v8306 = vpop.permute.xlu0 %8305
      %8307 = vrot.lane.b32.xlu0 %v8165, 17
      %v8308 = vpop.permute.xlu0 %8307
      %8309 = vrot.lane.b32.xlu0 %v8167, 17
      %v8310 = vpop.permute.xlu0 %8309
      %8311 = vrot.lane.b32.xlu0 %v8221, 17
      %v8312 = vpop.permute.xlu0 %8311
      %8313 = vrot.lane.b32.xlu0 %v8169, 17
      %v8314 = vpop.permute.xlu0 %8313
      %8315 = vrot.lane.b32.xlu0 %v8171, 17
      %v8316 = vpop.permute.xlu0 %8315
      %8317 = vrot.lane.b32.xlu0 %v8222, 17
      %v8318 = vpop.permute.xlu0 %8317
      %8319 = vrot.lane.b32.xlu0 %v8173, 17
      %v8320 = vpop.permute.xlu0 %8319
      %8321 = vrot.lane.b32.xlu0 %v8175, 17
      %v8322 = vpop.permute.xlu0 %8321
      %8323 = vrot.lane.b32.xlu0 %v8223, 17
      %v8324 = vpop.permute.xlu0 %8323
      %8325 = vrot.lane.b32.xlu0 %v8177, 17
      %v8326 = vpop.permute.xlu0 %8325
      %8327 = vrot.lane.b32.xlu0 %v8179, 17
      %v8328 = vpop.permute.xlu0 %8327
      %8329 = vrot.lane.b32.xlu0 %v8224, 17
      %v8330 = vpop.permute.xlu0 %8329
      %8331 = vrot.lane.b32.xlu0 %v8181, 17
      %v8332 = vpop.permute.xlu0 %8331
      %8333 = vrot.lane.b32.xlu0 %v8183, 17
      %v8334 = vpop.permute.xlu0 %8333
      %8335 = vrot.lane.b32.xlu0 %v8225, 17
      %v8336 = vpop.permute.xlu0 %8335
      %8337 = vrot.lane.b32.xlu0 %v8185, 17
      %v8338 = vpop.permute.xlu0 %8337
      %8339 = vrot.lane.b32.xlu0 %v8187, 17
      %v8340 = vpop.permute.xlu0 %8339
      %8341 = vrot.lane.b32.xlu0 %v8226, 17
      %v8342 = vpop.permute.xlu0 %8341
      %8343 = vrot.lane.b32.xlu0 %v8189, 17
      %v8344 = vpop.permute.xlu0 %8343
      %8345 = vrot.lane.b32.xlu0 %v8191, 17
      %v8346 = vpop.permute.xlu0 %8345
      %8347 = vrot.lane.b32.xlu0 %v8227, 17
      %v8348 = vpop.permute.xlu0 %8347
      %8349 = vrot.lane.b32.xlu0 %v8193, 17
      %v8350 = vpop.permute.xlu0 %8349
      %8351 = vrot.lane.b32.xlu0 %v8195, 17
      %v8352 = vpop.permute.xlu0 %8351
      %8353 = vrot.lane.b32.xlu0 %v8228, 17
      %v8354 = vpop.permute.xlu0 %8353
      %8355 = vrot.lane.b32.xlu0 %v8197, 17
      %v8356 = vpop.permute.xlu0 %8355
      %8357 = vrot.lane.b32.xlu0 %v8199, 17
      %v8358 = vpop.permute.xlu0 %8357
      %8359 = vrot.lane.b32.xlu0 %v8229, 17
      %v8360 = vpop.permute.xlu0 %8359
      %8361 = vrot.lane.b32.xlu0 %v8201, 17
      %v8362 = vpop.permute.xlu0 %8361
      %8363 = vrot.lane.b32.xlu0 %v8203, 17
      %v8364 = vpop.permute.xlu0 %8363
      %8365 = vrot.lane.b32.xlu0 %v8230, 17
      %v8366 = vpop.permute.xlu0 %8365
      %8367 = vrot.lane.b32.xlu0 %v8205, 17
      %v8368 = vpop.permute.xlu0 %8367
      %8369 = vrot.lane.b32.xlu0 %v8207, 17
      %v8370 = vpop.permute.xlu0 %8369
      %8371 = vrot.lane.b32.xlu0 %v8231, 17
      %v8372 = vpop.permute.xlu0 %8371
      %8373 = vrot.lane.b32.xlu0 %v8209, 17
      %v8374 = vpop.permute.xlu0 %8373
      %8375 = vrot.lane.b32.xlu0 %v8211, 17
      %v8376 = vpop.permute.xlu0 %8375
      %8377 = vrot.lane.b32.xlu0 %v8232, 17
      %v8378 = vpop.permute.xlu0 %8377
      %8379 = vrot.lane.b32.xlu0 %v8213, 17
      %v8380 = vpop.permute.xlu0 %8379
      %8381 = vrot.lane.b32.xlu0 %v8215, 17
      %v8382 = vpop.permute.xlu0 %8381
      %8383 = vrot.lane.b32.xlu0 %v8233, 17
      %v8384 = vpop.permute.xlu0 %8383
      %8385 = vrot.lane.b32.xlu0 %v8217, 17
      %v8386 = vpop.permute.xlu0 %8385
      %8387 = vrot.lane.b32.xlu0 %v8238, 17
      %v8388 = vpop.permute.xlu0 %8387
      %8389 = vrot.lane.b32.xlu0 %v8249, 17
      %v8390 = vpop.permute.xlu0 %8389
      %8391 = vrot.lane.b32.xlu0 %v8250, 17
      %v8392 = vpop.permute.xlu0 %8391
      %8393 = vrot.lane.b32.xlu0 %v8244, 17
      %v8394 = vpop.permute.xlu0 %8393
      %8395 = vrot.lane.b32.xlu0 %v8251, 17
      %v8396 = vpop.permute.xlu0 %8395
      %8397 = vrot.lane.b32.xlu0 %v8252, 17
      %v8398 = vpop.permute.xlu0 %8397
      %v8399 = vsel %vm429, %v8268, %v8270
      %v8400 = vsel %vm429, %v8270, %v8272
      %v8401 = vsel %vm429, %v8274, %v8276
      %v8402 = vsel %vm429, %v8276, %v8278
      %v8403 = vsel %vm429, %v8280, %v8282
      %v8404 = vsel %vm429, %v8282, %v8284
      %v8405 = vsel %vm429, %v8286, %v8288
      %v8406 = vsel %vm429, %v8288, %v8290
      %v8407 = vsel %vm429, %v8292, %v8294
      %v8408 = vsel %vm429, %v8294, %v8296
      %v8409 = vsel %vm429, %v8298, %v8300
      %v8410 = vsel %vm429, %v8300, %v8302
      %v8411 = vsel %vm429, %v8304, %v8306
      %v8412 = vsel %vm429, %v8306, %v8308
      %v8413 = vsel %vm429, %v8310, %v8312
      %v8414 = vsel %vm429, %v8312, %v8314
      %v8415 = vsel %vm429, %v8316, %v8318
      %v8416 = vsel %vm429, %v8318, %v8320
      %v8417 = vsel %vm429, %v8322, %v8324
      %v8418 = vsel %vm429, %v8324, %v8326
      %v8419 = vsel %vm429, %v8328, %v8330
      %v8420 = vsel %vm429, %v8330, %v8332
      %v8421 = vsel %vm429, %v8334, %v8336
      %v8422 = vsel %vm429, %v8336, %v8338
      %v8423 = vsel %vm429, %v8340, %v8342
      %v8424 = vsel %vm429, %v8342, %v8344
      %v8425 = vsel %vm429, %v8346, %v8348
      %v8426 = vsel %vm429, %v8348, %v8350
      %v8427 = vsel %vm429, %v8352, %v8354
      %v8428 = vsel %vm429, %v8354, %v8356
      %v8429 = vsel %vm429, %v8358, %v8360
      %v8430 = vsel %vm429, %v8360, %v8362
      %v8431 = vsel %vm429, %v8364, %v8366
      %v8432 = vsel %vm429, %v8366, %v8368
      %v8433 = vsel %vm429, %v8370, %v8372
      %v8434 = vsel %vm429, %v8372, %v8374
      %v8435 = vsel %vm429, %v8376, %v8378
      %v8436 = vsel %vm429, %v8378, %v8380
      %v8437 = vsel %vm429, %v8382, %v8384
      %v8438 = vsel %vm429, %v8384, %v8386
      %v8439 = vsel %vm429, %v8388, %v8390
      %v8440 = vsel %vm429, %v8390, %v8392
      %v8441 = vsel %vm429, %v8394, %v8396
      %v8442 = vsel %vm429, %v8396, %v8398
      %v8488 = vsel %vm2419, %v8256, 0
      %8490 = vmatprep.subr.mxu0 %v6915
      %8491 = vmatpush1.msra.mxu0 %v6914
      %8492 = vmatprep.subr.mxu0 %v6917
      %8493 = vmatpush1.msra.mxu0 %v6916
      %8494 = vmatprep.subr.mxu0 %v7238
      %8495 = vmatpush1.msra.mxu0 %v7237
      %8496 = vmatprep.subr.mxu0 %v7748
      %8497 = vmatpush1.msra.mxu0 %v7747
      %8498 = vmatprep.subr.mxu0 %v8400
      %8499 = vmatpush1.msra.mxu0 %v8399
      %8500 = vmatprep.subr.mxu0 %v6919
      %8501 = vmatpush1.msra.mxu0 %v6918
      %8502 = vmatprep.subr.mxu0 %v6921
      %8503 = vmatpush1.msra.mxu0 %v6920
      %8504 = vmatprep.subr.mxu0 %v7240
      %8505 = vmatpush1.msra.mxu0 %v7239
      %8506 = vmatprep.subr.mxu0 %v7750
      %8507 = vmatpush1.msra.mxu0 %v7749
      %8508 = vmatprep.subr.mxu0 %v8402
      %8509 = vmatpush1.msra.mxu0 %v8401
      %8510 = vmatprep.subr.mxu0 %v6923
      %8511 = vmatpush1.msra.mxu0 %v6922
      %8512 = vmatprep.subr.mxu0 %v6925
      %8513 = vmatpush1.msra.mxu0 %v6924
      %8514 = vmatprep.subr.mxu0 %v7242
      %8515 = vmatpush1.msra.mxu0 %v7241
      %8516 = vmatprep.subr.mxu0 %v7752
      %8517 = vmatpush1.msra.mxu0 %v7751
      %8518 = vmatprep.subr.mxu0 %v8404
      %8519 = vmatpush1.msra.mxu0 %v8403
      %8520 = vmatprep.subr.mxu0 %v6927
      %8521 = vmatpush1.msra.mxu0 %v6926
      %8522 = vmatprep.subr.mxu0 %v6929
      %8523 = vmatpush1.msra.mxu0 %v6928
      %8524 = vmatprep.subr.mxu0 %v7244
      %8525 = vmatpush1.msra.mxu0 %v7243
      %8526 = vmatprep.subr.mxu0 %v7754
      %8527 = vmatpush1.msra.mxu0 %v7753
      %8528 = vmatprep.subr.mxu0 %v8406
      %8529 = vmatpush1.msra.mxu0 %v8405
      %8530 = vmatprep.subr.mxu0 %v6931
      %8531 = vmatpush1.msra.mxu0 %v6930
      %8532 = vmatprep.subr.mxu0 %v6933
      %8533 = vmatpush1.msra.mxu0 %v6932
      %8534 = vmatprep.subr.mxu0 %v7246
      %8535 = vmatpush1.msra.mxu0 %v7245
      %8536 = vmatprep.subr.mxu0 %v7756
      %8537 = vmatpush1.msra.mxu0 %v7755
      %8538 = vmatprep.subr.mxu0 %v8408
      %8539 = vmatpush1.msra.mxu0 %v8407
      %8540 = vmatprep.subr.mxu0 %v8410
      %8541 = vmatpush1.msra.mxu0 %v8409
      %8542 = vmatprep.subr.mxu0 %v8412
      %8543 = vmatpush1.msra.mxu0 %v8411
      %8544 = vmatprep.subr.mxu0 %v8414
      %8545 = vmatpush1.msra.mxu0 %v8413
      %8546 = vmatprep.subr.mxu0 %v8416
      %8547 = vmatpush1.msra.mxu0 %v8415
      %8548 = vmatprep.subr.mxu0 %v8418
      %8549 = vmatpush1.msra.mxu0 %v8417
      %8550 = vmatprep.subr.mxu0 %v8420
      %8551 = vmatpush1.msra.mxu0 %v8419
      %8552 = vmatprep.subr.mxu0 %v8422
      %8553 = vmatpush1.msra.mxu0 %v8421
      %8554 = vmatprep.mubr.f32.mxu0 %v8255
      %8555 = vmatmul.mubr.f32.gmra.mrb[0].mxu0 %v8254
      %v8556 = vpop.f32.mrb[0].mxu0
      %v8557 = vadd.f32 %v8262, %v8556
      %v8558 = vpop.f32.mrb[0].mxu0
      %v8559 = vadd.f32 %v8262, %v8558
      %8560 = vdwg.mxu0
      %8561 = vmatprep.subr.mxu0 %v8424
      %8562 = vmatpush1.msra.mxu0 %v8423
      %8563 = vmatprep.subr.mxu0 %v8426
      %8564 = vmatpush1.msra.mxu0 %v8425
      %8565 = vmatprep.subr.mxu0 %v8428
      %8566 = vmatpush1.msra.mxu0 %v8427
      %8567 = vmatprep.subr.mxu0 %v8430
      %8568 = vmatpush1.msra.mxu0 %v8429
      %8569 = vmatprep.subr.mxu0 %v8432
      %8570 = vmatpush1.msra.mxu0 %v8431
      %8571 = vmatprep.subr.mxu0 %v8434
      %8572 = vmatpush1.msra.mxu0 %v8433
      %8573 = vmatprep.subr.mxu0 %v8436
      %8574 = vmatpush1.msra.mxu0 %v8435
      %8575 = vmatprep.subr.mxu0 %v8438
      %8576 = vmatpush1.msra.mxu0 %v8437
      %8577 = vmatprep.subr.mxu0 %v6947
      %8578 = vmatpush1.msra.mxu0 %v6946
      %8579 = vmatprep.subr.mxu0 %v6949
      %8580 = vmatpush1.msra.mxu0 %v6948
      %8581 = vmatprep.subr.mxu0 %v7254
      %8582 = vmatpush1.msra.mxu0 %v7253
      %8583 = vmatprep.subr.mxu0 %v8440
      %8584 = vmatpush1.msra.mxu0 %v8439
      %8585 = vmatprep.subr.mxu0 %v8442
      %8586 = vmatpush1.msra.mxu0 %v8441
      %8587 = vmatprep.subr.mxu0 0.0
      %8588 = vmatpush1.msra.mxu0 0.0
      %8589 = vmatprep.subr.mxu0 0.0
      %8590 = vmatpush1.msra.mxu0 0.0
      %8591 = vmatprep.subr.mxu0 0.0
      %8592 = vmatpush1.msra.mxu0 0.0
      %8593 = vmatprep.subr.mxu0 0.0
      %8594 = vmatpush1.msra.mxu0 0.0
      %8595 = vmatprep.subr.mxu0 0.0
      %8596 = vmatpush1.msra.mxu0 0.0
      %8597 = vmatprep.subr.mxu0 0.0
      %8598 = vmatpush1.msra.mxu0 0.0
      %8599 = vmatprep.subr.mxu0 0.0
      %8600 = vmatpush1.msra.mxu0 0.0
      %8601 = vmatprep.subr.mxu0 0.0
      %8602 = vmatpush1.msra.mxu0 0.0
      %8603 = vmatprep.subr.mxu0 0.0
      %8604 = vmatpush1.msra.mxu0 0.0
      %8605 = vmatprep.subr.mxu0 0.0
      %8606 = vmatpush1.msra.mxu0 0.0
      %8607 = vmatprep.subr.mxu0 0.0
      %8608 = vmatpush1.msra.mxu0 0.0
      %8609 = vmatprep.subr.mxu0 0.0
      %8610 = vmatpush1.msra.mxu0 0.0
      %8611 = vmatprep.subr.mxu0 0.0
      %8612 = vmatpush1.msra.mxu0 0.0
      %8613 = vmatprep.subr.mxu0 0.0
      %8614 = vmatpush1.msra.mxu0 0.0
      %8615 = vmatprep.subr.mxu0 0.0
      %8616 = vmatpush1.msra.mxu0 0.0
      %8617 = vmatprep.subr.mxu0 0.0
      %8618 = vmatpush1.msra.mxu0 0.0
      %8619 = vmatprep.subr.mxu0 0.0
      %8620 = vmatpush1.msra.mxu0 0.0
      %8621 = vmatprep.subr.mxu0 0.0
      %8622 = vmatpush1.msra.mxu0 0.0
      %8623 = vmatprep.subr.mxu0 0.0
      %8624 = vmatpush1.msra.mxu0 0.0
      %8625 = vmatprep.mubr.f32.mxu0 0.0
      %8626 = vmatmul.mubr.f32.gmra.mrb[0].mxu0 %v8488
      %v8627 = vpop.f32.mrb[0].mxu0
      %v8628 = vadd.f32 %v8557, %v8627
      %v8629 = vpop.f32.mrb[0].mxu0
      %v8630 = vadd.f32 %v8559, %v8629
      %8631 = vdwg.mxu0
      %vm8632 = vcmp.ge.f32.partialorder %v8628, 0.0
      %vm8633 = vcmp.ge.f32.partialorder %v8630, 0.0
      %v8634 = vmul.f32 %v8628, 0.2
      %v8635 = vmul.f32 %v8630, 0.2
      %v8636 = vsel %vm8632, %v8628, %v8634
      %v8637 = vsel %vm8633, %v8630, %v8635
      %8638 = vst [vmem:[#allocation6 + $0x8] sm:$0xff] %v8636
      %8639 = vst [vmem:[#allocation6 + $0x10] sm:$0xff] %v8637
      %v8640 = vld [vmem:[#allocation6] sm:$0xff]
      %v8641 = vld [vmem:[#allocation6 + $0x8] sm:$0xff]
      %v8642 = vld [vmem:[#allocation6 + $0x10] sm:$0xff]
      %v8643 = vmul.f32 %v8640, %v468
      %v8644 = vmul.f32 %v8641, %v472
      %v8645 = vmul.f32 %v8642, %v470
      %v8646 = vmul.f32 %v8640, %v485
      %v8647 = vmul.f32 %v8641, %v489
      %v8648 = vmul.f32 %v8642, %v487
      %v8649 = vmul.f32 %v8640, %v500
      %v8650 = vmul.f32 %v8641, %v504
      %v8651 = vmul.f32 %v8642, %v502
      %v8652 = vld [vmem:[#allocation6 + $0x18] sm:$0xff]
      %v8653 = vmul.f32 %v8641, %v517
      %v8654 = vmul.f32 %v8642, %v521
      %v8655 = vmul.f32 %v8652, %v519
      %v8656 = vmul.f32 %v8641, %v532
      %v8657 = vmul.f32 %v8642, %v536
      %v8658 = vmul.f32 %v8652, %v534
      %v8659 = vmul.f32 %v8641, %v547
      %v8660 = vmul.f32 %v8642, %v550
      %v8661 = vmul.f32 %v8652, %v549
      %8665 = vrot.lane.b32.xlu0 %v8640, 127
      %v8666 = vpop.permute.xlu0 %8665
      %8667 = vrot.lane.b32.xlu0 %v8641, 127
      %v8668 = vpop.permute.xlu0 %8667
      %8669 = vrot.lane.b32.xlu0 %v8642, 127
      %v8670 = vpop.permute.xlu0 %8669
      %v8671 = vsel %vm503, %v8666, %v8668
      %v8672 = vsel %vm503, %v8668, %v8670
      %8676 = vrot.lane.b32.xlu0 %v8646, 126
      %v8677 = vpop.permute.xlu0 %8676
      %8678 = vrot.lane.b32.xlu0 %v8647, 126
      %v8679 = vpop.permute.xlu0 %8678
      %8680 = vrot.lane.b32.xlu0 %v8648, 126
      %v8681 = vpop.permute.xlu0 %8680
      %v8682 = vsel %vm600, %v8677, %v8679
      %v8683 = vsel %vm600, %v8679, %v8681
      %8684 = vrot.lane.b32.xlu0 %v6612, 126
      %v8685 = vpop.permute.xlu0 %8684
      %8686 = vrot.lane.b32.xlu0 %v6613, 126
      %v8687 = vpop.permute.xlu0 %8686
      %8688 = vrot.lane.b32.xlu0 %v6614, 126
      %v8689 = vpop.permute.xlu0 %8688
      %8690 = vrot.lane.b32.xlu0 %v6615, 126
      %v8691 = vpop.permute.xlu0 %8690
      %8692 = vrot.lane.b32.xlu0 %v6616, 126
      %v8693 = vpop.permute.xlu0 %8692
      %8694 = vrot.lane.b32.xlu0 %v6617, 126
      %v8695 = vpop.permute.xlu0 %8694
      %v8696 = vsel %vm600, %v8685, %v8687
      %v8697 = vsel %vm600, %v8687, %v8689
      %v8698 = vsel %vm600, %v8691, %v8693
      %v8699 = vsel %vm600, %v8693, %v8695
      %8700 = vrot.lane.b32.xlu0 %v7081, 126
      %v8701 = vpop.permute.xlu0 %8700
      %8702 = vrot.lane.b32.xlu0 %v7082, 126
      %v8703 = vpop.permute.xlu0 %8702
      %8704 = vrot.lane.b32.xlu0 %v7083, 126
      %v8705 = vpop.permute.xlu0 %8704
      %v8706 = vsel %vm600, %v8701, %v8703
      %v8707 = vsel %vm600, %v8703, %v8705
      %8708 = vrot.lane.b32.xlu0 %v7368, 126
      %v8709 = vpop.permute.xlu0 %8708
      %8710 = vrot.lane.b32.xlu0 %v7369, 126
      %v8711 = vpop.permute.xlu0 %8710
      %8712 = vrot.lane.b32.xlu0 %v7370, 126
      %v8713 = vpop.permute.xlu0 %8712
      %v8714 = vsel %vm600, %v8709, %v8711
      %v8715 = vsel %vm600, %v8711, %v8713
      %8716 = vrot.lane.b32.xlu0 %v7985, 126
      %v8717 = vpop.permute.xlu0 %8716
      %8718 = vrot.lane.b32.xlu0 %v7986, 126
      %v8719 = vpop.permute.xlu0 %8718
      %8720 = vrot.lane.b32.xlu0 %v7987, 126
      %v8721 = vpop.permute.xlu0 %8720
      %v8722 = vsel %vm600, %v8717, %v8719
      %v8723 = vsel %vm600, %v8719, %v8721
      %8727 = vrot.lane.b32.xlu0 %v8653, 126
      %v8728 = vpop.permute.xlu0 %8727
      %8729 = vrot.lane.b32.xlu0 %v8654, 126
      %v8730 = vpop.permute.xlu0 %8729
      %8731 = vrot.lane.b32.xlu0 %v8655, 126
      %v8732 = vpop.permute.xlu0 %8731
      %v8733 = vsel %vm600, %v8728, %v8730
      %v8734 = vsel %vm600, %v8730, %v8732
      %8735 = vrot.lane.b32.xlu0 %v6618, 112
      %v8736 = vpop.permute.xlu0 %8735
      %8737 = vrot.lane.b32.xlu0 %v6619, 112
      %v8738 = vpop.permute.xlu0 %8737
      %8739 = vrot.lane.b32.xlu0 %v6620, 112
      %v8740 = vpop.permute.xlu0 %8739
      %8741 = vrot.lane.b32.xlu0 %v6621, 112
      %v8742 = vpop.permute.xlu0 %8741
      %8743 = vrot.lane.b32.xlu0 %v6622, 112
      %v8744 = vpop.permute.xlu0 %8743
      %8745 = vrot.lane.b32.xlu0 %v6623, 112
      %v8746 = vpop.permute.xlu0 %8745
      %v8747 = vsel %vm623, %v8736, %v8738
      %v8748 = vsel %vm623, %v8738, %v8740
      %v8749 = vsel %vm623, %v8742, %v8744
      %v8750 = vsel %vm623, %v8744, %v8746
      %8751 = vrot.lane.b32.xlu0 %v7084, 112
      %v8752 = vpop.permute.xlu0 %8751
      %8753 = vrot.lane.b32.xlu0 %v7085, 112
      %v8754 = vpop.permute.xlu0 %8753
      %8755 = vrot.lane.b32.xlu0 %v7086, 112
      %v8756 = vpop.permute.xlu0 %8755
      %v8757 = vsel %vm623, %v8752, %v8754
      %v8758 = vsel %vm623, %v8754, %v8756
      %8759 = vrot.lane.b32.xlu0 %v6610, 127
      %v8760 = vpop.permute.xlu0 %8759
      %8761 = vrot.lane.b32.xlu0 %v6611, 127
      %v8762 = vpop.permute.xlu0 %8761
      %v8763 = vsel %vm503, %v6641, %v8760
      %v8764 = vsel %vm503, %v6647, %v8762
      %8765 = vrot.lane.b32.xlu0 %v7080, 127
      %v8766 = vpop.permute.xlu0 %8765
      %v8767 = vsel %vm503, %v7098, %v8766
      %8768 = vrot.lane.b32.xlu0 %v7367, 127
      %v8769 = vpop.permute.xlu0 %8768
      %v8770 = vsel %vm503, %v7385, %v8769
      %8771 = vrot.lane.b32.xlu0 %v7984, 127
      %v8772 = vpop.permute.xlu0 %8771
      %v8773 = vsel %vm503, %v8002, %v8772
      %8775 = vrot.lane.b32.xlu0 %v8652, 127
      %v8776 = vpop.permute.xlu0 %8775
      %v8777 = vsel %vm503, %v8670, %v8776
      %8778 = vrot.lane.b32.xlu0 %v6624, 126
      %v8779 = vpop.permute.xlu0 %8778
      %8780 = vrot.lane.b32.xlu0 %v6625, 126
      %v8781 = vpop.permute.xlu0 %8780
      %8782 = vrot.lane.b32.xlu0 %v6626, 126
      %v8783 = vpop.permute.xlu0 %8782
      %8784 = vrot.lane.b32.xlu0 %v6627, 126
      %v8785 = vpop.permute.xlu0 %8784
      %8786 = vrot.lane.b32.xlu0 %v6628, 126
      %v8787 = vpop.permute.xlu0 %8786
      %8788 = vrot.lane.b32.xlu0 %v6629, 126
      %v8789 = vpop.permute.xlu0 %8788
      %v8790 = vsel %vm600, %v8779, %v8781
      %v8791 = vsel %vm600, %v8781, %v8783
      %v8792 = vsel %vm600, %v8785, %v8787
      %v8793 = vsel %vm600, %v8787, %v8789
      %8794 = vrot.lane.b32.xlu0 %v7087, 126
      %v8795 = vpop.permute.xlu0 %8794
      %8796 = vrot.lane.b32.xlu0 %v7088, 126
      %v8797 = vpop.permute.xlu0 %8796
      %8798 = vrot.lane.b32.xlu0 %v7089, 126
      %v8799 = vpop.permute.xlu0 %8798
      %v8800 = vsel %vm600, %v8795, %v8797
      %v8801 = vsel %vm600, %v8797, %v8799
      %8802 = vrot.lane.b32.xlu0 %v7374, 126
      %v8803 = vpop.permute.xlu0 %8802
      %8804 = vrot.lane.b32.xlu0 %v7375, 126
      %v8805 = vpop.permute.xlu0 %8804
      %8806 = vrot.lane.b32.xlu0 %v7376, 126
      %v8807 = vpop.permute.xlu0 %8806
      %v8808 = vsel %vm600, %v8803, %v8805
      %v8809 = vsel %vm600, %v8805, %v8807
      %8810 = vrot.lane.b32.xlu0 %v7991, 126
      %v8811 = vpop.permute.xlu0 %8810
      %8812 = vrot.lane.b32.xlu0 %v7992, 126
      %v8813 = vpop.permute.xlu0 %8812
      %8814 = vrot.lane.b32.xlu0 %v7993, 126
      %v8815 = vpop.permute.xlu0 %8814
      %v8816 = vsel %vm600, %v8811, %v8813
      %v8817 = vsel %vm600, %v8813, %v8815
      %8821 = vrot.lane.b32.xlu0 %v8659, 126
      %v8822 = vpop.permute.xlu0 %8821
      %8823 = vrot.lane.b32.xlu0 %v8660, 126
      %v8824 = vpop.permute.xlu0 %8823
      %8825 = vrot.lane.b32.xlu0 %v8661, 126
      %v8826 = vpop.permute.xlu0 %8825
      %v8827 = vsel %vm600, %v8822, %v8824
      %v8828 = vsel %vm600, %v8824, %v8826
      %8832 = vrot.lane.b32.xlu0 %v8649, 112
      %v8833 = vpop.permute.xlu0 %8832
      %8834 = vrot.lane.b32.xlu0 %v8650, 112
      %v8835 = vpop.permute.xlu0 %8834
      %8836 = vrot.lane.b32.xlu0 %v8651, 112
      %v8837 = vpop.permute.xlu0 %8836
      %8838 = vrot.lane.b32.xlu0 %v6639, 112
      %v8839 = vpop.permute.xlu0 %8838
      %8840 = vrot.lane.b32.xlu0 %v6649, 112
      %v8841 = vpop.permute.xlu0 %8840
      %8842 = vrot.lane.b32.xlu0 %v6641, 112
      %v8843 = vpop.permute.xlu0 %8842
      %8844 = vrot.lane.b32.xlu0 %v6645, 112
      %v8845 = vpop.permute.xlu0 %8844
      %8846 = vrot.lane.b32.xlu0 %v6651, 112
      %v8847 = vpop.permute.xlu0 %8846
      %8848 = vrot.lane.b32.xlu0 %v6647, 112
      %v8849 = vpop.permute.xlu0 %8848
      %8850 = vrot.lane.b32.xlu0 %v7096, 112
      %v8851 = vpop.permute.xlu0 %8850
      %8852 = vrot.lane.b32.xlu0 %v7100, 112
      %v8853 = vpop.permute.xlu0 %8852
      %8854 = vrot.lane.b32.xlu0 %v7098, 112
      %v8855 = vpop.permute.xlu0 %8854
      %8856 = vrot.lane.b32.xlu0 %v7383, 112
      %v8857 = vpop.permute.xlu0 %8856
      %8858 = vrot.lane.b32.xlu0 %v7387, 112
      %v8859 = vpop.permute.xlu0 %8858
      %8860 = vrot.lane.b32.xlu0 %v7385, 112
      %v8861 = vpop.permute.xlu0 %8860
      %8862 = vrot.lane.b32.xlu0 %v8000, 112
      %v8863 = vpop.permute.xlu0 %8862
      %8864 = vrot.lane.b32.xlu0 %v8004, 112
      %v8865 = vpop.permute.xlu0 %8864
      %8866 = vrot.lane.b32.xlu0 %v8002, 112
      %v8867 = vpop.permute.xlu0 %8866
      %8868 = vrot.lane.b32.xlu0 %v8668, 112
      %v8869 = vpop.permute.xlu0 %8868
      %8870 = vrot.lane.b32.xlu0 %v8672, 112
      %v8871 = vpop.permute.xlu0 %8870
      %8872 = vrot.lane.b32.xlu0 %v8670, 112
      %v8873 = vpop.permute.xlu0 %8872
      %8874 = vrot.lane.b32.xlu0 %v8685, 112
      %v8875 = vpop.permute.xlu0 %8874
      %8876 = vrot.lane.b32.xlu0 %v8696, 112
      %v8877 = vpop.permute.xlu0 %8876
      %8878 = vrot.lane.b32.xlu0 %v8697, 112
      %v8879 = vpop.permute.xlu0 %8878
      %8880 = vrot.lane.b32.xlu0 %v8691, 112
      %v8881 = vpop.permute.xlu0 %8880
      %8882 = vrot.lane.b32.xlu0 %v8698, 112
      %v8883 = vpop.permute.xlu0 %8882
      %8884 = vrot.lane.b32.xlu0 %v8699, 112
      %v8885 = vpop.permute.xlu0 %8884
      %8886 = vrot.lane.b32.xlu0 %v8701, 112
      %v8887 = vpop.permute.xlu0 %8886
      %8888 = vrot.lane.b32.xlu0 %v8706, 112
      %v8889 = vpop.permute.xlu0 %8888
      %8890 = vrot.lane.b32.xlu0 %v8707, 112
      %v8891 = vpop.permute.xlu0 %8890
      %8892 = vrot.lane.b32.xlu0 %v8709, 112
      %v8893 = vpop.permute.xlu0 %8892
      %8894 = vrot.lane.b32.xlu0 %v8714, 112
      %v8895 = vpop.permute.xlu0 %8894
      %8896 = vrot.lane.b32.xlu0 %v8715, 112
      %v8897 = vpop.permute.xlu0 %8896
      %8898 = vrot.lane.b32.xlu0 %v8717, 112
      %v8899 = vpop.permute.xlu0 %8898
      %8900 = vrot.lane.b32.xlu0 %v8722, 112
      %v8901 = vpop.permute.xlu0 %8900
      %8902 = vrot.lane.b32.xlu0 %v8723, 112
      %v8903 = vpop.permute.xlu0 %8902
      %8904 = vrot.lane.b32.xlu0 %v8728, 112
      %v8905 = vpop.permute.xlu0 %8904
      %8906 = vrot.lane.b32.xlu0 %v8733, 112
      %v8907 = vpop.permute.xlu0 %8906
      %8908 = vrot.lane.b32.xlu0 %v8734, 112
      %v8909 = vpop.permute.xlu0 %8908
      %8910 = vrot.lane.b32.xlu0 %v8736, 112
      %v8911 = vpop.permute.xlu0 %8910
      %8912 = vrot.lane.b32.xlu0 %v8747, 112
      %v8913 = vpop.permute.xlu0 %8912
      %8914 = vrot.lane.b32.xlu0 %v8748, 112
      %v8915 = vpop.permute.xlu0 %8914
      %8916 = vrot.lane.b32.xlu0 %v8742, 112
      %v8917 = vpop.permute.xlu0 %8916
      %8918 = vrot.lane.b32.xlu0 %v8749, 112
      %v8919 = vpop.permute.xlu0 %8918
      %8920 = vrot.lane.b32.xlu0 %v8750, 112
      %v8921 = vpop.permute.xlu0 %8920
      %8922 = vrot.lane.b32.xlu0 %v8752, 112
      %v8923 = vpop.permute.xlu0 %8922
      %8924 = vrot.lane.b32.xlu0 %v8757, 112
      %v8925 = vpop.permute.xlu0 %8924
      %8926 = vrot.lane.b32.xlu0 %v8758, 112
      %v8927 = vpop.permute.xlu0 %8926
      %v8928 = vsel %vm623, %v8833, %v8835
      %v8929 = vsel %vm623, %v8835, %v8837
      %v8930 = vsel %vm623, %v8839, %v8841
      %v8931 = vsel %vm623, %v8841, %v8843
      %v8932 = vsel %vm623, %v8845, %v8847
      %v8933 = vsel %vm623, %v8847, %v8849
      %v8934 = vsel %vm623, %v8851, %v8853
      %v8935 = vsel %vm623, %v8853, %v8855
      %v8936 = vsel %vm623, %v8857, %v8859
      %v8937 = vsel %vm623, %v8859, %v8861
      %v8938 = vsel %vm623, %v8863, %v8865
      %v8939 = vsel %vm623, %v8865, %v8867
      %v8940 = vsel %vm623, %v8869, %v8871
      %v8941 = vsel %vm623, %v8871, %v8873
      %v8942 = vsel %vm623, %v8875, %v8877
      %v8943 = vsel %vm623, %v8877, %v8879
      %v8944 = vsel %vm623, %v8881, %v8883
      %v8945 = vsel %vm623, %v8883, %v8885
      %v8946 = vsel %vm623, %v8887, %v8889
      %v8947 = vsel %vm623, %v8889, %v8891
      %v8948 = vsel %vm623, %v8893, %v8895
      %v8949 = vsel %vm623, %v8895, %v8897
      %v8950 = vsel %vm623, %v8899, %v8901
      %v8951 = vsel %vm623, %v8901, %v8903
      %v8952 = vsel %vm623, %v8905, %v8907
      %v8953 = vsel %vm623, %v8907, %v8909
      %v8954 = vsel %vm623, %v8911, %v8913
      %v8955 = vsel %vm623, %v8913, %v8915
      %v8956 = vsel %vm623, %v8917, %v8919
      %v8957 = vsel %vm623, %v8919, %v8921
      %v8958 = vsel %vm623, %v8923, %v8925
      %v8959 = vsel %vm623, %v8925, %v8927
      %8963 = vrot.lane.b32.xlu0 %v7371, 96
      %v8964 = vpop.permute.xlu0 %8963
      %8965 = vrot.lane.b32.xlu0 %v7372, 96
      %v8966 = vpop.permute.xlu0 %8965
      %8967 = vrot.lane.b32.xlu0 %v7373, 96
      %v8968 = vpop.permute.xlu0 %8967
      %8969 = vrot.lane.b32.xlu0 %v7988, 96
      %v8970 = vpop.permute.xlu0 %8969
      %8971 = vrot.lane.b32.xlu0 %v7989, 96
      %v8972 = vpop.permute.xlu0 %8971
      %8973 = vrot.lane.b32.xlu0 %v7990, 96
      %v8974 = vpop.permute.xlu0 %8973
      %8975 = vrot.lane.b32.xlu0 %v8656, 96
      %v8976 = vpop.permute.xlu0 %8975
      %8977 = vrot.lane.b32.xlu0 %v8657, 96
      %v8978 = vpop.permute.xlu0 %8977
      %8979 = vrot.lane.b32.xlu0 %v8658, 96
      %v8980 = vpop.permute.xlu0 %8979
      %8981 = vrot.lane.b32.xlu0 %v6649, 96
      %v8982 = vpop.permute.xlu0 %8981
      %8983 = vrot.lane.b32.xlu0 %v8763, 96
      %v8984 = vpop.permute.xlu0 %8983
      %8985 = vrot.lane.b32.xlu0 %v8760, 96
      %v8986 = vpop.permute.xlu0 %8985
      %8987 = vrot.lane.b32.xlu0 %v6651, 96
      %v8988 = vpop.permute.xlu0 %8987
      %8989 = vrot.lane.b32.xlu0 %v8764, 96
      %v8990 = vpop.permute.xlu0 %8989
      %8991 = vrot.lane.b32.xlu0 %v8762, 96
      %v8992 = vpop.permute.xlu0 %8991
      %8993 = vrot.lane.b32.xlu0 %v7100, 96
      %v8994 = vpop.permute.xlu0 %8993
      %8995 = vrot.lane.b32.xlu0 %v8767, 96
      %v8996 = vpop.permute.xlu0 %8995
      %8997 = vrot.lane.b32.xlu0 %v8766, 96
      %v8998 = vpop.permute.xlu0 %8997
      %8999 = vrot.lane.b32.xlu0 %v7387, 96
      %v9000 = vpop.permute.xlu0 %8999
      %9001 = vrot.lane.b32.xlu0 %v8770, 96
      %v9002 = vpop.permute.xlu0 %9001
      %9003 = vrot.lane.b32.xlu0 %v8769, 96
      %v9004 = vpop.permute.xlu0 %9003
      %9005 = vrot.lane.b32.xlu0 %v8004, 96
      %v9006 = vpop.permute.xlu0 %9005
      %9007 = vrot.lane.b32.xlu0 %v8773, 96
      %v9008 = vpop.permute.xlu0 %9007
      %9009 = vrot.lane.b32.xlu0 %v8772, 96
      %v9010 = vpop.permute.xlu0 %9009
      %9011 = vrot.lane.b32.xlu0 %v8672, 96
      %v9012 = vpop.permute.xlu0 %9011
      %9013 = vrot.lane.b32.xlu0 %v8777, 96
      %v9014 = vpop.permute.xlu0 %9013
      %9015 = vrot.lane.b32.xlu0 %v8776, 96
      %v9016 = vpop.permute.xlu0 %9015
      %9017 = vrot.lane.b32.xlu0 %v8790, 96
      %v9018 = vpop.permute.xlu0 %9017
      %9019 = vrot.lane.b32.xlu0 %v8791, 96
      %v9020 = vpop.permute.xlu0 %9019
      %9021 = vrot.lane.b32.xlu0 %v8783, 96
      %v9022 = vpop.permute.xlu0 %9021
      %9023 = vrot.lane.b32.xlu0 %v8792, 96
      %v9024 = vpop.permute.xlu0 %9023
      %9025 = vrot.lane.b32.xlu0 %v8793, 96
      %v9026 = vpop.permute.xlu0 %9025
      %9027 = vrot.lane.b32.xlu0 %v8789, 96
      %v9028 = vpop.permute.xlu0 %9027
      %9029 = vrot.lane.b32.xlu0 %v8800, 96
      %v9030 = vpop.permute.xlu0 %9029
      %9031 = vrot.lane.b32.xlu0 %v8801, 96
      %v9032 = vpop.permute.xlu0 %9031
      %9033 = vrot.lane.b32.xlu0 %v8799, 96
      %v9034 = vpop.permute.xlu0 %9033
      %9035 = vrot.lane.b32.xlu0 %v8808, 96
      %v9036 = vpop.permute.xlu0 %9035
      %9037 = vrot.lane.b32.xlu0 %v8809, 96
      %v9038 = vpop.permute.xlu0 %9037
      %9039 = vrot.lane.b32.xlu0 %v8807, 96
      %v9040 = vpop.permute.xlu0 %9039
      %9041 = vrot.lane.b32.xlu0 %v8816, 96
      %v9042 = vpop.permute.xlu0 %9041
      %9043 = vrot.lane.b32.xlu0 %v8817, 96
      %v9044 = vpop.permute.xlu0 %9043
      %9045 = vrot.lane.b32.xlu0 %v8815, 96
      %v9046 = vpop.permute.xlu0 %9045
      %9047 = vrot.lane.b32.xlu0 %v8827, 96
      %v9048 = vpop.permute.xlu0 %9047
      %9049 = vrot.lane.b32.xlu0 %v8828, 96
      %v9050 = vpop.permute.xlu0 %9049
      %9051 = vrot.lane.b32.xlu0 %v8826, 96
      %v9052 = vpop.permute.xlu0 %9051
      %v9053 = vsel %vm679, %v8964, %v8966
      %v9054 = vsel %vm679, %v8966, %v8968
      %v9055 = vsel %vm679, %v8970, %v8972
      %v9056 = vsel %vm679, %v8972, %v8974
      %v9057 = vsel %vm679, %v8976, %v8978
      %v9058 = vsel %vm679, %v8978, %v8980
      %v9059 = vsel %vm679, %v8982, %v8984
      %v9060 = vsel %vm679, %v8984, %v8986
      %v9061 = vsel %vm679, %v8988, %v8990
      %v9062 = vsel %vm679, %v8990, %v8992
      %v9063 = vsel %vm679, %v8994, %v8996
      %v9064 = vsel %vm679, %v8996, %v8998
      %v9065 = vsel %vm679, %v9000, %v9002
      %v9066 = vsel %vm679, %v9002, %v9004
      %v9067 = vsel %vm679, %v9006, %v9008
      %v9068 = vsel %vm679, %v9008, %v9010
      %v9069 = vsel %vm679, %v9012, %v9014
      %v9070 = vsel %vm679, %v9014, %v9016
      %v9071 = vsel %vm679, %v9018, %v9020
      %v9072 = vsel %vm679, %v9020, %v9022
      %v9073 = vsel %vm679, %v9024, %v9026
      %v9074 = vsel %vm679, %v9026, %v9028
      %v9075 = vsel %vm679, %v9030, %v9032
      %v9076 = vsel %vm679, %v9032, %v9034
      %v9077 = vsel %vm679, %v9036, %v9038
      %v9078 = vsel %vm679, %v9038, %v9040
      %v9079 = vsel %vm679, %v9042, %v9044
      %v9080 = vsel %vm679, %v9044, %v9046
      %v9081 = vsel %vm679, %v9048, %v9050
      %v9082 = vsel %vm679, %v9050, %v9052
      %s9083 = scalar_lea.vmem %s5, 128
      %v9084 = vld [vmem:[%s9083] sm:$0xff]
      %v9085 = vld [vmem:[%s9083 + $0x8] sm:$0xff]
      %v9086 = vld [vmem:[%s9083 + $0x10] sm:$0xff]
      %v9087 = vld [vmem:[%s9083 + $0x18] sm:$0xff]
      %v9088 = vld [vmem:[%s9083 + $0x20] sm:$0xff]
      %v9089 = vld [vmem:[%s9083 + $0x28] sm:$0xff]
      %v9090 = vld [vmem:[%s9083 + $0x30] sm:$0xff]
      %v9091 = vld [vmem:[%s9083 + $0x38] sm:$0xff]
      %s9092 = scalar_lea.vmem %s10, 32
      %v9093 = vld [vmem:[%s9092] sm:$0xff]
      %v9094 = vld [vmem:[%s9092 + $0x8] sm:$0xff]
      %9096 = vset.pattern.permute.xlu0 0
      %9097 = vperm.xlu0 %9096, %v9093
      %v9098 = vpop.permute.xlu0 %9097
      %9101 = vset.pattern.permute.xlu0 0
      %9102 = vperm.xlu0 %9101, %v9094
      %v9103 = vpop.permute.xlu0 %9102
      %9108 = vrot.lane.b32.xlu0 %v8643, 17
      %v9109 = vpop.permute.xlu0 %9108
      %9110 = vrot.lane.b32.xlu0 %v8644, 17
      %v9111 = vpop.permute.xlu0 %9110
      %9112 = vrot.lane.b32.xlu0 %v8645, 17
      %v9113 = vpop.permute.xlu0 %9112
      %9114 = vrot.lane.b32.xlu0 %v8671, 17
      %v9115 = vpop.permute.xlu0 %9114
      %9116 = vrot.lane.b32.xlu0 %v8672, 17
      %v9117 = vpop.permute.xlu0 %9116
      %9118 = vrot.lane.b32.xlu0 %v8670, 17
      %v9119 = vpop.permute.xlu0 %9118
      %9120 = vrot.lane.b32.xlu0 %v8682, 17
      %v9121 = vpop.permute.xlu0 %9120
      %9122 = vrot.lane.b32.xlu0 %v8683, 17
      %v9123 = vpop.permute.xlu0 %9122
      %9124 = vrot.lane.b32.xlu0 %v8681, 17
      %v9125 = vpop.permute.xlu0 %9124
      %9126 = vrot.lane.b32.xlu0 %v8928, 17
      %v9127 = vpop.permute.xlu0 %9126
      %9128 = vrot.lane.b32.xlu0 %v8929, 17
      %v9129 = vpop.permute.xlu0 %9128
      %9130 = vrot.lane.b32.xlu0 %v8837, 17
      %v9131 = vpop.permute.xlu0 %9130
      %9132 = vrot.lane.b32.xlu0 %v8930, 17
      %v9133 = vpop.permute.xlu0 %9132
      %9134 = vrot.lane.b32.xlu0 %v8931, 17
      %v9135 = vpop.permute.xlu0 %9134
      %9136 = vrot.lane.b32.xlu0 %v8843, 17
      %v9137 = vpop.permute.xlu0 %9136
      %9138 = vrot.lane.b32.xlu0 %v8932, 17
      %v9139 = vpop.permute.xlu0 %9138
      %9140 = vrot.lane.b32.xlu0 %v8933, 17
      %v9141 = vpop.permute.xlu0 %9140
      %9142 = vrot.lane.b32.xlu0 %v8849, 17
      %v9143 = vpop.permute.xlu0 %9142
      %9144 = vrot.lane.b32.xlu0 %v8934, 17
      %v9145 = vpop.permute.xlu0 %9144
      %9146 = vrot.lane.b32.xlu0 %v8935, 17
      %v9147 = vpop.permute.xlu0 %9146
      %9148 = vrot.lane.b32.xlu0 %v8855, 17
      %v9149 = vpop.permute.xlu0 %9148
      %9150 = vrot.lane.b32.xlu0 %v8936, 17
      %v9151 = vpop.permute.xlu0 %9150
      %9152 = vrot.lane.b32.xlu0 %v8937, 17
      %v9153 = vpop.permute.xlu0 %9152
      %9154 = vrot.lane.b32.xlu0 %v8861, 17
      %v9155 = vpop.permute.xlu0 %9154
      %9156 = vrot.lane.b32.xlu0 %v8938, 17
      %v9157 = vpop.permute.xlu0 %9156
      %9158 = vrot.lane.b32.xlu0 %v8939, 17
      %v9159 = vpop.permute.xlu0 %9158
      %9160 = vrot.lane.b32.xlu0 %v8867, 17
      %v9161 = vpop.permute.xlu0 %9160
      %9162 = vrot.lane.b32.xlu0 %v8940, 17
      %v9163 = vpop.permute.xlu0 %9162
      %9164 = vrot.lane.b32.xlu0 %v8941, 17
      %v9165 = vpop.permute.xlu0 %9164
      %9166 = vrot.lane.b32.xlu0 %v8873, 17
      %v9167 = vpop.permute.xlu0 %9166
      %9168 = vrot.lane.b32.xlu0 %v8942, 17
      %v9169 = vpop.permute.xlu0 %9168
      %9170 = vrot.lane.b32.xlu0 %v8943, 17
      %v9171 = vpop.permute.xlu0 %9170
      %9172 = vrot.lane.b32.xlu0 %v8879, 17
      %v9173 = vpop.permute.xlu0 %9172
      %9174 = vrot.lane.b32.xlu0 %v8944, 17
      %v9175 = vpop.permute.xlu0 %9174
      %9176 = vrot.lane.b32.xlu0 %v8945, 17
      %v9177 = vpop.permute.xlu0 %9176
      %9178 = vrot.lane.b32.xlu0 %v8885, 17
      %v9179 = vpop.permute.xlu0 %9178
      %9180 = vrot.lane.b32.xlu0 %v8946, 17
      %v9181 = vpop.permute.xlu0 %9180
      %9182 = vrot.lane.b32.xlu0 %v8947, 17
      %v9183 = vpop.permute.xlu0 %9182
      %9184 = vrot.lane.b32.xlu0 %v8891, 17
      %v9185 = vpop.permute.xlu0 %9184
      %9186 = vrot.lane.b32.xlu0 %v8948, 17
      %v9187 = vpop.permute.xlu0 %9186
      %9188 = vrot.lane.b32.xlu0 %v8949, 17
      %v9189 = vpop.permute.xlu0 %9188
      %9190 = vrot.lane.b32.xlu0 %v8897, 17
      %v9191 = vpop.permute.xlu0 %9190
      %9192 = vrot.lane.b32.xlu0 %v8950, 17
      %v9193 = vpop.permute.xlu0 %9192
      %9194 = vrot.lane.b32.xlu0 %v8951, 17
      %v9195 = vpop.permute.xlu0 %9194
      %9196 = vrot.lane.b32.xlu0 %v8903, 17
      %v9197 = vpop.permute.xlu0 %9196
      %9198 = vrot.lane.b32.xlu0 %v8952, 17
      %v9199 = vpop.permute.xlu0 %9198
      %9200 = vrot.lane.b32.xlu0 %v8953, 17
      %v9201 = vpop.permute.xlu0 %9200
      %9202 = vrot.lane.b32.xlu0 %v8909, 17
      %v9203 = vpop.permute.xlu0 %9202
      %9204 = vrot.lane.b32.xlu0 %v8954, 17
      %v9205 = vpop.permute.xlu0 %9204
      %9206 = vrot.lane.b32.xlu0 %v8955, 17
      %v9207 = vpop.permute.xlu0 %9206
      %9208 = vrot.lane.b32.xlu0 %v8915, 17
      %v9209 = vpop.permute.xlu0 %9208
      %9210 = vrot.lane.b32.xlu0 %v8956, 17
      %v9211 = vpop.permute.xlu0 %9210
      %9212 = vrot.lane.b32.xlu0 %v8957, 17
      %v9213 = vpop.permute.xlu0 %9212
      %9214 = vrot.lane.b32.xlu0 %v8921, 17
      %v9215 = vpop.permute.xlu0 %9214
      %9216 = vrot.lane.b32.xlu0 %v8958, 17
      %v9217 = vpop.permute.xlu0 %9216
      %9218 = vrot.lane.b32.xlu0 %v8959, 17
      %v9219 = vpop.permute.xlu0 %9218
      %9220 = vrot.lane.b32.xlu0 %v8927, 17
      %v9221 = vpop.permute.xlu0 %9220
      %9222 = vrot.lane.b32.xlu0 %v8964, 17
      %v9223 = vpop.permute.xlu0 %9222
      %9224 = vrot.lane.b32.xlu0 %v9053, 17
      %v9225 = vpop.permute.xlu0 %9224
      %9226 = vrot.lane.b32.xlu0 %v9054, 17
      %v9227 = vpop.permute.xlu0 %9226
      %9228 = vrot.lane.b32.xlu0 %v8970, 17
      %v9229 = vpop.permute.xlu0 %9228
      %9230 = vrot.lane.b32.xlu0 %v9055, 17
      %v9231 = vpop.permute.xlu0 %9230
      %9232 = vrot.lane.b32.xlu0 %v9056, 17
      %v9233 = vpop.permute.xlu0 %9232
      %9234 = vrot.lane.b32.xlu0 %v8976, 17
      %v9235 = vpop.permute.xlu0 %9234
      %9236 = vrot.lane.b32.xlu0 %v9057, 17
      %v9237 = vpop.permute.xlu0 %9236
      %9238 = vrot.lane.b32.xlu0 %v9058, 17
      %v9239 = vpop.permute.xlu0 %9238
      %9240 = vrot.lane.b32.xlu0 %v8982, 17
      %v9241 = vpop.permute.xlu0 %9240
      %9242 = vrot.lane.b32.xlu0 %v9059, 17
      %v9243 = vpop.permute.xlu0 %9242
      %9244 = vrot.lane.b32.xlu0 %v9060, 17
      %v9245 = vpop.permute.xlu0 %9244
      %9246 = vrot.lane.b32.xlu0 %v8988, 17
      %v9247 = vpop.permute.xlu0 %9246
      %9248 = vrot.lane.b32.xlu0 %v9061, 17
      %v9249 = vpop.permute.xlu0 %9248
      %9250 = vrot.lane.b32.xlu0 %v9062, 17
      %v9251 = vpop.permute.xlu0 %9250
      %9252 = vrot.lane.b32.xlu0 %v8994, 17
      %v9253 = vpop.permute.xlu0 %9252
      %9254 = vrot.lane.b32.xlu0 %v9063, 17
      %v9255 = vpop.permute.xlu0 %9254
      %9256 = vrot.lane.b32.xlu0 %v9064, 17
      %v9257 = vpop.permute.xlu0 %9256
      %9258 = vrot.lane.b32.xlu0 %v9000, 17
      %v9259 = vpop.permute.xlu0 %9258
      %9260 = vrot.lane.b32.xlu0 %v9065, 17
      %v9261 = vpop.permute.xlu0 %9260
      %9262 = vrot.lane.b32.xlu0 %v9066, 17
      %v9263 = vpop.permute.xlu0 %9262
      %9264 = vrot.lane.b32.xlu0 %v9006, 17
      %v9265 = vpop.permute.xlu0 %9264
      %9266 = vrot.lane.b32.xlu0 %v9067, 17
      %v9267 = vpop.permute.xlu0 %9266
      %9268 = vrot.lane.b32.xlu0 %v9068, 17
      %v9269 = vpop.permute.xlu0 %9268
      %9270 = vrot.lane.b32.xlu0 %v9012, 17
      %v9271 = vpop.permute.xlu0 %9270
      %9272 = vrot.lane.b32.xlu0 %v9069, 17
      %v9273 = vpop.permute.xlu0 %9272
      %9274 = vrot.lane.b32.xlu0 %v9070, 17
      %v9275 = vpop.permute.xlu0 %9274
      %9276 = vrot.lane.b32.xlu0 %v9018, 17
      %v9277 = vpop.permute.xlu0 %9276
      %9278 = vrot.lane.b32.xlu0 %v9071, 17
      %v9279 = vpop.permute.xlu0 %9278
      %9280 = vrot.lane.b32.xlu0 %v9072, 17
      %v9281 = vpop.permute.xlu0 %9280
      %9282 = vrot.lane.b32.xlu0 %v9024, 17
      %v9283 = vpop.permute.xlu0 %9282
      %9284 = vrot.lane.b32.xlu0 %v9073, 17
      %v9285 = vpop.permute.xlu0 %9284
      %9286 = vrot.lane.b32.xlu0 %v9074, 17
      %v9287 = vpop.permute.xlu0 %9286
      %9288 = vrot.lane.b32.xlu0 %v9030, 17
      %v9289 = vpop.permute.xlu0 %9288
      %9290 = vrot.lane.b32.xlu0 %v9075, 17
      %v9291 = vpop.permute.xlu0 %9290
      %9292 = vrot.lane.b32.xlu0 %v9076, 17
      %v9293 = vpop.permute.xlu0 %9292
      %9294 = vrot.lane.b32.xlu0 %v9036, 17
      %v9295 = vpop.permute.xlu0 %9294
      %9296 = vrot.lane.b32.xlu0 %v9077, 17
      %v9297 = vpop.permute.xlu0 %9296
      %9298 = vrot.lane.b32.xlu0 %v9078, 17
      %v9299 = vpop.permute.xlu0 %9298
      %9300 = vrot.lane.b32.xlu0 %v9042, 17
      %v9301 = vpop.permute.xlu0 %9300
      %9302 = vrot.lane.b32.xlu0 %v9079, 17
      %v9303 = vpop.permute.xlu0 %9302
      %9304 = vrot.lane.b32.xlu0 %v9080, 17
      %v9305 = vpop.permute.xlu0 %9304
      %9306 = vrot.lane.b32.xlu0 %v9048, 17
      %v9307 = vpop.permute.xlu0 %9306
      %9308 = vrot.lane.b32.xlu0 %v9081, 17
      %v9309 = vpop.permute.xlu0 %9308
      %9310 = vrot.lane.b32.xlu0 %v9082, 17
      %v9311 = vpop.permute.xlu0 %9310
      %v9312 = vsel %vm429, %v9109, %v9111
      %v9313 = vsel %vm429, %v9111, %v9113
      %v9314 = vsel %vm429, %v9115, %v9117
      %v9315 = vsel %vm429, %v9117, %v9119
      %v9316 = vsel %vm429, %v9121, %v9123
      %v9317 = vsel %vm429, %v9123, %v9125
      %v9318 = vsel %vm429, %v9127, %v9129
      %v9319 = vsel %vm429, %v9129, %v9131
      %v9320 = vsel %vm429, %v9133, %v9135
      %v9321 = vsel %vm429, %v9135, %v9137
      %v9322 = vsel %vm429, %v9139, %v9141
      %v9323 = vsel %vm429, %v9141, %v9143
      %v9324 = vsel %vm429, %v9145, %v9147
      %v9325 = vsel %vm429, %v9147, %v9149
      %v9326 = vsel %vm429, %v9151, %v9153
      %v9327 = vsel %vm429, %v9153, %v9155
      %v9328 = vsel %vm429, %v9157, %v9159
      %v9329 = vsel %vm429, %v9159, %v9161
      %v9330 = vsel %vm429, %v9163, %v9165
      %v9331 = vsel %vm429, %v9165, %v9167
      %v9332 = vsel %vm429, %v9169, %v9171
      %v9333 = vsel %vm429, %v9171, %v9173
      %v9334 = vsel %vm429, %v9175, %v9177
      %v9335 = vsel %vm429, %v9177, %v9179
      %v9336 = vsel %vm429, %v9181, %v9183
      %v9337 = vsel %vm429, %v9183, %v9185
      %v9338 = vsel %vm429, %v9187, %v9189
      %v9339 = vsel %vm429, %v9189, %v9191
      %v9340 = vsel %vm429, %v9193, %v9195
      %v9341 = vsel %vm429, %v9195, %v9197
      %v9342 = vsel %vm429, %v9199, %v9201
      %v9343 = vsel %vm429, %v9201, %v9203
      %v9344 = vsel %vm429, %v9205, %v9207
      %v9345 = vsel %vm429, %v9207, %v9209
      %v9346 = vsel %vm429, %v9211, %v9213
      %v9347 = vsel %vm429, %v9213, %v9215
      %v9348 = vsel %vm429, %v9217, %v9219
      %v9349 = vsel %vm429, %v9219, %v9221
      %v9350 = vsel %vm429, %v9223, %v9225
      %v9351 = vsel %vm429, %v9225, %v9227
      %v9352 = vsel %vm429, %v9229, %v9231
      %v9353 = vsel %vm429, %v9231, %v9233
      %v9354 = vsel %vm429, %v9235, %v9237
      %v9355 = vsel %vm429, %v9237, %v9239
      %v9356 = vsel %vm429, %v9241, %v9243
      %v9357 = vsel %vm429, %v9243, %v9245
      %v9358 = vsel %vm429, %v9247, %v9249
      %v9359 = vsel %vm429, %v9249, %v9251
      %v9360 = vsel %vm429, %v9253, %v9255
      %v9361 = vsel %vm429, %v9255, %v9257
      %v9362 = vsel %vm429, %v9259, %v9261
      %v9363 = vsel %vm429, %v9261, %v9263
      %v9364 = vsel %vm429, %v9265, %v9267
      %v9365 = vsel %vm429, %v9267, %v9269
      %v9366 = vsel %vm429, %v9271, %v9273
      %v9367 = vsel %vm429, %v9273, %v9275
      %v9368 = vsel %vm429, %v9277, %v9279
      %v9369 = vsel %vm429, %v9279, %v9281
      %v9370 = vsel %vm429, %v9283, %v9285
      %v9371 = vsel %vm429, %v9285, %v9287
      %v9372 = vsel %vm429, %v9289, %v9291
      %v9373 = vsel %vm429, %v9291, %v9293
      %v9374 = vsel %vm429, %v9295, %v9297
      %v9375 = vsel %vm429, %v9297, %v9299
      %v9376 = vsel %vm429, %v9301, %v9303
      %v9377 = vsel %vm429, %v9303, %v9305
      %v9378 = vsel %vm429, %v9307, %v9309
      %v9379 = vsel %vm429, %v9309, %v9311
      %v9449 = vsel %vm3379, %v9087, 0
      %v9452 = vsel %vm3379, %v9091, 0
      %9454 = vmatprep.subr.mxu0 %v6915
      %9455 = vmatpush1.msra.mxu0 %v6914
      %9456 = vmatprep.subr.mxu0 %v6917
      %9457 = vmatpush1.msra.mxu0 %v6916
      %9458 = vmatprep.subr.mxu0 %v7238
      %9459 = vmatpush1.msra.mxu0 %v7237
      %9460 = vmatprep.subr.mxu0 %v7748
      %9461 = vmatpush1.msra.mxu0 %v7747
      %9462 = vmatprep.subr.mxu0 %v8400
      %9463 = vmatpush1.msra.mxu0 %v8399
      %9464 = vmatprep.subr.mxu0 %v9313
      %9465 = vmatpush1.msra.mxu0 %v9312
      %9466 = vmatprep.subr.mxu0 %v6919
      %9467 = vmatpush1.msra.mxu0 %v6918
      %9468 = vmatprep.subr.mxu0 %v6921
      %9469 = vmatpush1.msra.mxu0 %v6920
      %9470 = vmatprep.subr.mxu0 %v7240
      %9471 = vmatpush1.msra.mxu0 %v7239
      %9472 = vmatprep.subr.mxu0 %v7750
      %9473 = vmatpush1.msra.mxu0 %v7749
      %9474 = vmatprep.subr.mxu0 %v8402
      %9475 = vmatpush1.msra.mxu0 %v8401
      %9476 = vmatprep.subr.mxu0 %v9315
      %9477 = vmatpush1.msra.mxu0 %v9314
      %9478 = vmatprep.subr.mxu0 %v6923
      %9479 = vmatpush1.msra.mxu0 %v6922
      %9480 = vmatprep.subr.mxu0 %v6925
      %9481 = vmatpush1.msra.mxu0 %v6924
      %9482 = vmatprep.subr.mxu0 %v7242
      %9483 = vmatpush1.msra.mxu0 %v7241
      %9484 = vmatprep.subr.mxu0 %v7752
      %9485 = vmatpush1.msra.mxu0 %v7751
      %9486 = vmatprep.subr.mxu0 %v8404
      %9487 = vmatpush1.msra.mxu0 %v8403
      %9488 = vmatprep.subr.mxu0 %v9317
      %9489 = vmatpush1.msra.mxu0 %v9316
      %9490 = vmatprep.subr.mxu0 %v6927
      %9491 = vmatpush1.msra.mxu0 %v6926
      %9492 = vmatprep.subr.mxu0 %v6929
      %9493 = vmatpush1.msra.mxu0 %v6928
      %9494 = vmatprep.subr.mxu0 %v7244
      %9495 = vmatpush1.msra.mxu0 %v7243
      %9496 = vmatprep.subr.mxu0 %v7754
      %9497 = vmatpush1.msra.mxu0 %v7753
      %9498 = vmatprep.subr.mxu0 %v8406
      %9499 = vmatpush1.msra.mxu0 %v8405
      %9500 = vmatprep.subr.mxu0 %v9319
      %9501 = vmatpush1.msra.mxu0 %v9318
      %9502 = vmatprep.subr.mxu0 %v9321
      %9503 = vmatpush1.msra.mxu0 %v9320
      %9504 = vmatprep.subr.mxu0 %v9323
      %9505 = vmatpush1.msra.mxu0 %v9322
      %9506 = vmatprep.subr.mxu0 %v9325
      %9507 = vmatpush1.msra.mxu0 %v9324
      %9508 = vmatprep.subr.mxu0 %v9327
      %9509 = vmatpush1.msra.mxu0 %v9326
      %9510 = vmatprep.subr.mxu0 %v9329
      %9511 = vmatpush1.msra.mxu0 %v9328
      %9512 = vmatprep.subr.mxu0 %v9331
      %9513 = vmatpush1.msra.mxu0 %v9330
      %9514 = vmatprep.subr.mxu0 %v9333
      %9515 = vmatpush1.msra.mxu0 %v9332
      %9516 = vmatprep.subr.mxu0 %v9335
      %9517 = vmatpush1.msra.mxu0 %v9334
      %9518 = vmatprep.mubr.f32.mxu0 %v9085
      %9519 = vmatmul.mubr.f32.gmra.mrb[0].mxu0 %v9084
      %v9520 = vpop.f32.mrb[0].mxu0
      %v9521 = vadd.f32 %v9098, %v9520
      %v9522 = vpop.f32.mrb[0].mxu0
      %v9523 = vadd.f32 %v9098, %v9522
      %9524 = vmatprep.mubr.f32.mxu0 %v9089
      %9525 = vmatmul.mubr.f32.gmra.mrb[0].mxu0 %v9088
      %v9526 = vpop.f32.mrb[0].mxu0
      %v9527 = vadd.f32 %v9103, %v9526
      %v9528 = vpop.f32.mrb[0].mxu0
      %v9529 = vadd.f32 %v9103, %v9528
      %9530 = vdwg.mxu0
      %9531 = vmatprep.subr.mxu0 %v9337
      %9532 = vmatpush1.msra.mxu0 %v9336
      %9533 = vmatprep.subr.mxu0 %v9339
      %9534 = vmatpush1.msra.mxu0 %v9338
      %9535 = vmatprep.subr.mxu0 %v9341
      %9536 = vmatpush1.msra.mxu0 %v9340
      %9537 = vmatprep.subr.mxu0 %v9343
      %9538 = vmatpush1.msra.mxu0 %v9342
      %9539 = vmatprep.subr.mxu0 %v9345
      %9540 = vmatpush1.msra.mxu0 %v9344
      %9541 = vmatprep.subr.mxu0 %v9347
      %9542 = vmatpush1.msra.mxu0 %v9346
      %9543 = vmatprep.subr.mxu0 %v9349
      %9544 = vmatpush1.msra.mxu0 %v9348
      %9545 = vmatprep.subr.mxu0 %v9351
      %9546 = vmatpush1.msra.mxu0 %v9350
      %9547 = vmatprep.subr.mxu0 %v9353
      %9548 = vmatpush1.msra.mxu0 %v9352
      %9549 = vmatprep.subr.mxu0 %v9355
      %9550 = vmatpush1.msra.mxu0 %v9354
      %9551 = vmatprep.subr.mxu0 %v9357
      %9552 = vmatpush1.msra.mxu0 %v9356
      %9553 = vmatprep.subr.mxu0 %v9359
      %9554 = vmatpush1.msra.mxu0 %v9358
      %9555 = vmatprep.subr.mxu0 %v9361
      %9556 = vmatpush1.msra.mxu0 %v9360
      %9557 = vmatprep.subr.mxu0 %v9363
      %9558 = vmatpush1.msra.mxu0 %v9362
      %9559 = vmatprep.subr.mxu0 %v9365
      %9560 = vmatpush1.msra.mxu0 %v9364
      %9561 = vmatprep.subr.mxu0 %v9367
      %9562 = vmatpush1.msra.mxu0 %v9366
      %9563 = vmatprep.subr.mxu0 %v9369
      %9564 = vmatpush1.msra.mxu0 %v9368
      %9565 = vmatprep.subr.mxu0 %v9371
      %9566 = vmatpush1.msra.mxu0 %v9370
      %9567 = vmatprep.subr.mxu0 %v9373
      %9568 = vmatpush1.msra.mxu0 %v9372
      %9569 = vmatprep.subr.mxu0 %v9375
      %9570 = vmatpush1.msra.mxu0 %v9374
      %9571 = vmatprep.subr.mxu0 %v9377
      %9572 = vmatpush1.msra.mxu0 %v9376
      %9573 = vmatprep.subr.mxu0 %v9379
      %9574 = vmatpush1.msra.mxu0 %v9378
      %9575 = vmatprep.subr.mxu0 0.0
      %9576 = vmatpush1.msra.mxu0 0.0
      %9577 = vmatprep.subr.mxu0 0.0
      %9578 = vmatpush1.msra.mxu0 0.0
      %9579 = vmatprep.subr.mxu0 0.0
      %9580 = vmatpush1.msra.mxu0 0.0
      %9581 = vmatprep.subr.mxu0 0.0
      %9582 = vmatpush1.msra.mxu0 0.0
      %9583 = vmatprep.subr.mxu0 0.0
      %9584 = vmatpush1.msra.mxu0 0.0
      %9585 = vmatprep.subr.mxu0 0.0
      %9586 = vmatpush1.msra.mxu0 0.0
      %9587 = vmatprep.subr.mxu0 0.0
      %9588 = vmatpush1.msra.mxu0 0.0
      %9589 = vmatprep.subr.mxu0 0.0
      %9590 = vmatpush1.msra.mxu0 0.0
      %9591 = vmatprep.subr.mxu0 0.0
      %9592 = vmatpush1.msra.mxu0 0.0
      %9593 = vmatprep.subr.mxu0 0.0
      %9594 = vmatpush1.msra.mxu0 0.0
      %9595 = vmatprep.mubr.f32.mxu0 %v9449
      %9596 = vmatmul.mubr.f32.gmra.mrb[0].mxu0 %v9086
      %v9597 = vpop.f32.mrb[0].mxu0
      %v9598 = vadd.f32 %v9521, %v9597
      %v9599 = vpop.f32.mrb[0].mxu0
      %v9600 = vadd.f32 %v9523, %v9599
      %9601 = vmatprep.mubr.f32.mxu0 %v9452
      %9602 = vmatmul.mubr.f32.gmra.mrb[0].mxu0 %v9090
      %v9603 = vpop.f32.mrb[0].mxu0
      %v9604 = vadd.f32 %v9527, %v9603
      %v9605 = vpop.f32.mrb[0].mxu0
      %v9606 = vadd.f32 %v9529, %v9605
      %9607 = vdwg.mxu0
      %v9608 = vmul.f32 %v9598, 0.2
      %v9609 = vmul.f32 %v9600, 0.2
      %v9610 = vmul.f32 %v9604, 0.2
      %v9611 = vmul.f32 %v9606, 0.2
      %v9612 = vadd.f32 %v9608, %v6578
      %v9613 = vadd.f32 %v9609, %v6579
      %v9614 = vadd.f32 %v9610, %v6580
      %v9615 = vadd.f32 %v9611, %v6581
      %v9616 = vmul.f32 %v9612, 0.2
      %v9617 = vmul.f32 %v9613, 0.2
      %v9618 = vmul.f32 %v9614, 0.2
      %v9619 = vmul.f32 %v9615, 0.2
      %v9620 = vadd.f32 %v9616, %v451
      %v9621 = vadd.f32 %v9617, %v452
      %v9622 = vadd.f32 %v9618, %v453
      %v9623 = vadd.f32 %v9619, %v454
      %9624 = vst [vmem:[%s386] sm:$0xff] %v9620
      %9625 = vst [vmem:[%s386 + $0x8] sm:$0xff] %v9621
      %9626 = vst [vmem:[%s386 + $0x10] sm:$0xff] %v9622
      %9627 = vst [vmem:[%s386 + $0x18] sm:$0xff] %v9623
      %p9628 = scmp.lt.s32.totalorder %s22, 1
      %s9629 = scalar_select %p9628, %s22, 1
      %s9630 = smul.addr %s9629, 4
      %s9631 = smul.addr %s9630, 8
      %s9632 = scalar_lea.vmem %s11, %s9631
      // Predicated region
      $region65: #{rrdb_forward.1} parent=63 // pred_check
        %p9633 = pneg %p276
      $region66: #{rrdb_forward.1} parent=63 // pred_check_branch
        %9635 = sbr.rel (%p9633) target = $region68
      $region67: #{rrdb_forward.1} parent=63 // pred_region
        _
      $region68: #{rrdb_forward.1} parent=63 // pred_fallthru
        _
    $region64: #{rrdb_forward.1} parent=5 // pred_fallthru
      _
    %p9636 = scmp.le.s32.totalorder 2, %s17
    // Predicated region
    $region69: #{rrdb_forward.1} parent=5 // pred_check
      %p9637 = pneg %p9636
    $region70: #{rrdb_forward.1} parent=5 // pred_check_branch
      %9639 = sbr.rel (%p9637) target = $region72
    $region71: #{rrdb_forward.1} parent=5 // pred_region
      %s9640 = ssub.s32 %s17, 2
      // Predicated region
      $region73: #{rrdb_forward.1} parent=71 // pred_check
        %p9641 = pneg %p282
      $region74: #{rrdb_forward.1} parent=71 // pred_check_branch
        %9643 = sbr.rel (%p9641) target = $region76
      $region75: #{rrdb_forward.1} parent=71 // pred_region
        %p9644 = scmp.lt.s32.totalorder %s23, 1
        %s9645 = scalar_select %p9644, %s23, 1
        %s9646 = smul.addr %s9645, 4
        %s9647 = smul.addr %s9646, 8
        %s9648 = scalar_lea.vmem %s11, %s9647
      $region76: #{rrdb_forward.1} parent=71 // pred_fallthru
        _
    $region72: #{rrdb_forward.1} parent=5 // pred_fallthru
      _
  $region6: #{rrdb_forward.1} parent=0 // loop_footer
    %s21 = sadd.s32 1, %s17
  $region7: #{rrdb_forward.1} parent=0 // loop_footer_branch
    %16 = sbr.rel target = $region3
  $region8: #{rrdb_forward.1} parent=0 // loop_exit
    _

</llo_original>
